<compile_context>
chip_gen: v7x
topology: tpu7x:2x2x1
jax: 0.10.0
libtpu: 0.0.40
codegen_flags: <defaults>
</compile_context>

<pallas_src>
import functools

import jax
import jax.numpy as jnp
from jax.experimental import pallas as pl
from jax.experimental.pallas import tpu as pltpu

LANES = 128          # canvas lane width (>= 10*10 spatial positions)
H = W = 10           # input spatial size implied by Linear(160, 100)
N_OFFSETS = 9        # 3x3 kernel taps
C_IN = 3             # input channels


# ------------------------------ Pallas kernel -------------------------------


def _dueling_dqn_kernel(
    x_ref, shift_ref,
    wc1_ref, bc1_ref, wc2_ref, bc2_ref, wc3_ref, bc3_ref,
    wfc_ref, bf_ref,
    wsv1_ref, bsv1_ref, wsv2_ref, bsv2_ref,
    wav1_ref, bav1_ref, wav2_ref, bav2_ref,
    o_ref,
):
    """Entire DuelingDQN forward for one image; everything stays in VMEM/vregs.

    Activation layout: (channels, 128) canvas with lane l = i*10 + j.
    A 3x3 valid conv is 9 taps; tap k (= di*3 + dj) is
        act @ shift[k]   -> lane shift so column l reads input (i+di, j+dj)
        wc[k] @ shifted  -> channel mixing (Cout, Cin)
    accumulated over k, then bias + tanh.  Garbage lanes never feed valid
    outputs and are zeroed out of the fully connected stage by construction.
    """
    f32 = jnp.float32
    act = x_ref[0]                                                 # (3, 128)

    # --- head: 3x (Conv2d 3x3 valid + Tanh + Dropout(identity)) -------------
    for w_ref, b_ref in ((wc1_ref, bc1_ref), (wc2_ref, bc2_ref), (wc3_ref, bc3_ref)):
        y = jnp.zeros((w_ref.shape[1], LANES), f32)
        for k in range(N_OFFSETS):                                 # unrolled taps
            shifted = jnp.dot(act, shift_ref[k], preferred_element_type=f32)
            y = y + jnp.dot(w_ref[k], shifted, preferred_element_type=f32)
        act = jnp.tanh(y + b_ref[...])                             # (Cout, 128)

    # --- Flatten (NCHW order folded into wfc) + Linear(160, 100) + Tanh -----
    n_ch = act.shape[0]                                            # 10
    ch_iota = jax.lax.broadcasted_iota(jnp.int32, (1, n_ch), 1)
    h = bf_ref[...]                                                # (1, 128)
    for c in range(n_ch):
        # One-hot matmul row extraction (robust alternative to sublane slicing).
        row = jnp.dot((ch_iota == c).astype(f32), act,
                      preferred_element_type=f32)                  # act[c, :]
        h = h + jnp.dot(row, wfc_ref[c], preferred_element_type=f32)
    h = jnp.tanh(h)

    # --- state value tail ----------------------------------------------------
    sv = jnp.tanh(jnp.dot(h, wsv1_ref[...], preferred_element_type=f32)
                  + bsv1_ref[...])
    sv = jnp.dot(sv, wsv2_ref[...], preferred_element_type=f32) + bsv2_ref[...]

    # --- action value tail ---------------------------------------------------
    av = jnp.tanh(jnp.dot(h, wav1_ref[...], preferred_element_type=f32)
                  + bav1_ref[...])
    av = jnp.dot(av, wav2_ref[...], preferred_element_type=f32) + bav2_ref[...]

    # --- dueling combine: Q = V + A (broadcast add, as in the reference) -----
    o_ref[0] = av + sv[:, 0:1]                                     # lane-dense store


# ------------------------------ host wrapper --------------------------------


def _const_index_map(*grid_ids, rank):
    del grid_ids
    return (0,) * rank


def dueling_dqn_forward(x_nchw, params):
    """Fused forward pass.  x_nchw: (B, 3, 10, 10) float32 -> (B, 5) float32."""
    B = x_nchw.shape[0]
    assert x_nchw.shape[1:] == (C_IN, H, W)
    # Canvas layout: lane l = i*10 + j, zero padded out to 128 lanes.
    canvas = jnp.pad(x_nchw.reshape(B, C_IN, H * W),
                     ((0, 0), (0, 0), (0, LANES - H * W)))

    weights = (
        params["shift"],
        params["wc1"], params["bc1"], params["wc2"], params["bc2"],
        params["wc3"], params["bc3"],
        params["wfc"], params["bf"],
        params["wsv1"], params["bsv1"], params["wsv2"], params["bsv2"],
        params["wav1"], params["bav1"], params["wav2"], params["bav2"],
    )
    in_specs = [pl.BlockSpec((1, C_IN, LANES), lambda b: (b, 0, 0))]
    in_specs += [
        pl.BlockSpec(wgt.shape, functools.partial(_const_index_map, rank=wgt.ndim))
        for wgt in weights
    ]

    out = pl.pallas_call(
        _dueling_dqn_kernel,
        grid=(B,),
        out_shape=jax.ShapeDtypeStruct((B, 1, LANES), jnp.float32),
        in_specs=in_specs,
        out_specs=pl.BlockSpec((1, 1, LANES), lambda b: (b, 0, 0)),
        compiler_params=pltpu.CompilerParams(
            # One image per grid step; "parallel" lets v7x's two TensorCores
            # split the batch.  Weights + activations (<2 MiB) fit the default
            # scoped VMEM on v5e/v6e/v7x, so no vmem_limit tuning is needed.
            dimension_semantics=("parallel",),
        ),
    )(canvas, *weights)
    return out[:, 0, :5]


# --------------------------- parameter init / pack --------------------------


def init_torch_params(key):
    """PyTorch-layout params with PyTorch-style U(-1/sqrt(fan_in), .) init."""
    keys = jax.random.split(key, 16)
    ki = iter(keys)

    def uni(k, shape, fan_in):
        bound = 1.0 / float(fan_in) ** 0.5
        return jax.random.uniform(k, shape, jnp.float32, -bound, bound)

    def conv(o, cin):
        fan = cin * 9
        return uni(next(ki), (o, cin, 3, 3), fan), uni(next(ki), (o,), fan)

    def lin(out_f, in_f):
        return uni(next(ki), (out_f, in_f), in_f), uni(next(ki), (out_f,), in_f)

    p = {}
    p["w1"], p["b1"] = conv(30, 3)
    p["w2"], p["b2"] = conv(20, 30)
    p["w3"], p["b3"] = conv(10, 20)
    p["wf"], p["bf"] = lin(100, 160)
    p["wsv1"], p["bsv1"] = lin(50, 100)
    p["wsv2"], p["bsv2"] = lin(1, 50)
    p["wav1"], p["bav1"] = lin(50, 100)
    p["wav2"], p["bav2"] = lin(5, 50)
    return p


def _pad_to(x, shape):
    return jnp.pad(x, [(0, t - s) for s, t in zip(x.shape, shape)])


def pack_params(tp):
    """Re-lay out PyTorch-format params for the fused canvas kernel (exact)."""
    kp = {}

    # Conv2d (O, Cin, 3, 3) -> per-tap channel-mix matrices (9, O, Cin);
    # tap k = di*3 + dj pairs with canvas lane shift di*10 + dj below.
    for n, (wn, bn) in enumerate((("w1", "b1"), ("w2", "b2"), ("w3", "b3")), 1):
        w, b = tp[wn], tp[bn]
        o, cin = w.shape[0], w.shape[1]
        kp[f"wc{n}"] = jnp.transpose(w, (2, 3, 0, 1)).reshape(N_OFFSETS, o, cin)
        kp[f"bc{n}"] = b.reshape(o, 1)

    # Linear(160, 100): fold the NCHW Flatten order and the 4x4 valid-region
    # gather into the weight: wfc[c, i*10 + j, n] = wf[n, c*16 + i*4 + j].
    wf = jnp.transpose(tp["wf"].reshape(100, 10, 4, 4), (1, 2, 3, 0))   # (c,i,j,n)
    wfc = jnp.zeros((10, H, W, LANES), jnp.float32).at[:, :4, :4, :100].set(wf)
    kp["wfc"] = _pad_to(wfc.reshape(10, H * W, LANES), (10, LANES, LANES))
    kp["bf"] = _pad_to(tp["bf"].reshape(1, 100), (1, LANES))

    # Tail Linears: torch (out, in) -> zero-padded (128, 128) right-multiply form.
    def lin_pack(w, b):
        return (_pad_to(w.T, (LANES, LANES)),
                _pad_to(b.reshape(1, b.shape[0]), (1, LANES)))

    kp["wsv1"], kp["bsv1"] = lin_pack(tp["wsv1"], tp["bsv1"])
    kp["wsv2"], kp["bsv2"] = lin_pack(tp["wsv2"], tp["bsv2"])
    kp["wav1"], kp["bav1"] = lin_pack(tp["wav1"], tp["bav1"])
    kp["wav2"], kp["bav2"] = lin_pack(tp["wav2"], tp["bav2"])

    # Exact 0/1 lane-shift matrices: (act @ shift[k])[:, m] = act[:, m + di*10 + dj].
    shifts = jnp.array([di * W + dj for di in range(3) for dj in range(3)], jnp.int32)
    l_idx = jnp.arange(LANES, dtype=jnp.int32)[None, :, None]
    m_idx = jnp.arange(LANES, dtype=jnp.int32)[None, None, :]
    kp["shift"] = (l_idx == m_idx + shifts[:, None, None]).astype(jnp.float32)
    return kp


# ------------------------------ JAX reference --------------------------------


def reference_forward(x_nchw, tp):
    """Plain-JAX re-implementation of the PyTorch module (inference mode)."""
    def conv_tanh(x, w, b):
        y = jax.lax.conv_general_dilated(
            x, w, window_strides=(1, 1), padding="VALID",
            dimension_numbers=("NCHW", "OIHW", "NCHW"))
        return jnp.tanh(y + b[None, :, None, None])

    x = conv_tanh(x_nchw, tp["w1"], tp["b1"])
    x = conv_tanh(x, tp["w2"], tp["b2"])
    x = conv_tanh(x, tp["w3"], tp["b3"])
    h = jnp.tanh(x.reshape(x.shape[0], -1) @ tp["wf"].T + tp["bf"])
    sv = jnp.tanh(h @ tp["wsv1"].T + tp["bsv1"]) @ tp["wsv2"].T + tp["bsv2"]
    av = jnp.tanh(h @ tp["wav1"].T + tp["bav1"]) @ tp["wav2"].T + tp["bav2"]
    return sv + av


# --------------------------------- main --------------------------------------


if __name__ == "__main__":
    key = jax.random.PRNGKey(0)
    pkey, xkey = jax.random.split(key)
    torch_params = init_torch_params(pkey)
    params = pack_params(torch_params)

    # Input implied by the module: Conv2d(3, ...) and Linear(160, 100) after
    # three valid 3x3 convs => (B, 3, 10, 10).
    x = jax.random.normal(xkey, (2, C_IN, H, W), dtype=jnp.float32)

    out = jax.jit(dueling_dqn_forward)(x, params)
    out = jax.block_until_ready(out)
    assert out.shape == (2, 5) and out.dtype == jnp.float32

    # Sanity check against the plain-JAX reference of the PyTorch forward pass.
    ref = reference_forward(x, torch_params)
    max_err = float(jnp.max(jnp.abs(out - ref)))
    assert max_err < 3e-2, f"kernel/reference mismatch: max|diff|={max_err}"

    print("KERNEL_OK")
</pallas_src>

<mosaic_0001>
module attributes {stable_mosaic.version = 11 : i64} {
  func.func @_dueling_dqn_kernel(%arg0: i32, %arg1: memref<1x3x128xf32, #tpu.memory_space<vmem>>, %arg2: memref<9x128x128xf32, #tpu.memory_space<vmem>>, %arg3: memref<9x30x3xf32, #tpu.memory_space<vmem>>, %arg4: memref<30x1xf32, #tpu.memory_space<vmem>>, %arg5: memref<9x20x30xf32, #tpu.memory_space<vmem>>, %arg6: memref<20x1xf32, #tpu.memory_space<vmem>>, %arg7: memref<9x10x20xf32, #tpu.memory_space<vmem>>, %arg8: memref<10x1xf32, #tpu.memory_space<vmem>>, %arg9: memref<10x128x128xf32, #tpu.memory_space<vmem>>, %arg10: memref<1x128xf32, #tpu.memory_space<vmem>>, %arg11: memref<128x128xf32, #tpu.memory_space<vmem>>, %arg12: memref<1x128xf32, #tpu.memory_space<vmem>>, %arg13: memref<128x128xf32, #tpu.memory_space<vmem>>, %arg14: memref<1x128xf32, #tpu.memory_space<vmem>>, %arg15: memref<128x128xf32, #tpu.memory_space<vmem>>, %arg16: memref<1x128xf32, #tpu.memory_space<vmem>>, %arg17: memref<128x128xf32, #tpu.memory_space<vmem>>, %arg18: memref<1x128xf32, #tpu.memory_space<vmem>>, %arg19: memref<1x1x128xf32, #tpu.memory_space<vmem>>) attributes {dimension_semantics = [#tpu.dimension_semantics<parallel>], iteration_bounds = array<i64: 2>, scalar_prefetch = 0 : i64, scratch_operands = 0 : i64, tpu.core_type = #tpu.core_type<tc>, window_params = [{transform_indices = @transform_0, window_bounds = array<i64: 1, 3, 128>}, {pipeline_mode = #tpu.pipeline_mode<synchronous>, transform_indices = @transform_1, window_bounds = array<i64: 9, 128, 128>}, {pipeline_mode = #tpu.pipeline_mode<synchronous>, transform_indices = @transform_2, window_bounds = array<i64: 9, 30, 3>}, {pipeline_mode = #tpu.pipeline_mode<synchronous>, transform_indices = @transform_3, window_bounds = array<i64: 30, 1>}, {pipeline_mode = #tpu.pipeline_mode<synchronous>, transform_indices = @transform_4, window_bounds = array<i64: 9, 20, 30>}, {pipeline_mode = #tpu.pipeline_mode<synchronous>, transform_indices = @transform_5, window_bounds = array<i64: 20, 1>}, {pipeline_mode = #tpu.pipeline_mode<synchronous>, transform_indices = @transform_6, window_bounds = array<i64: 9, 10, 20>}, {pipeline_mode = #tpu.pipeline_mode<synchronous>, transform_indices = @transform_7, window_bounds = array<i64: 10, 1>}, {pipeline_mode = #tpu.pipeline_mode<synchronous>, transform_indices = @transform_8, window_bounds = array<i64: 10, 128, 128>}, {pipeline_mode = #tpu.pipeline_mode<synchronous>, transform_indices = @transform_9, window_bounds = array<i64: 1, 128>}, {pipeline_mode = #tpu.pipeline_mode<synchronous>, transform_indices = @transform_10, window_bounds = array<i64: 128, 128>}, {pipeline_mode = #tpu.pipeline_mode<synchronous>, transform_indices = @transform_11, window_bounds = array<i64: 1, 128>}, {pipeline_mode = #tpu.pipeline_mode<synchronous>, transform_indices = @transform_12, window_bounds = array<i64: 128, 128>}, {pipeline_mode = #tpu.pipeline_mode<synchronous>, transform_indices = @transform_13, window_bounds = array<i64: 1, 128>}, {pipeline_mode = #tpu.pipeline_mode<synchronous>, transform_indices = @transform_14, window_bounds = array<i64: 128, 128>}, {pipeline_mode = #tpu.pipeline_mode<synchronous>, transform_indices = @transform_15, window_bounds = array<i64: 1, 128>}, {pipeline_mode = #tpu.pipeline_mode<synchronous>, transform_indices = @transform_16, window_bounds = array<i64: 128, 128>}, {pipeline_mode = #tpu.pipeline_mode<synchronous>, transform_indices = @transform_17, window_bounds = array<i64: 1, 128>}, {transform_indices = @transform_18, window_bounds = array<i64: 1, 1, 128>}]} {
    %c0 = arith.constant 0 : index
    %c0_0 = arith.constant 0 : index
    %c0_1 = arith.constant 0 : index
    %0 = vector.load %arg1[%c0, %c0_0, %c0_1] : memref<1x3x128xf32, #tpu.memory_space<vmem>>, vector<1x3x128xf32>
    %1 = vector.shape_cast %0 : vector<1x3x128xf32> to vector<3x128xf32>
    %cst = arith.constant 0.000000e+00 : f32
    %2 = vector.broadcast %cst : f32 to vector<30x128xf32>
    %c0_2 = arith.constant 0 : index
    %c0_3 = arith.constant 0 : index
    %c0_4 = arith.constant 0 : index
    %3 = vector.load %arg2[%c0_2, %c0_3, %c0_4] : memref<9x128x128xf32, #tpu.memory_space<vmem>>, vector<1x128x128xf32>
    %4 = vector.shape_cast %3 : vector<1x128x128xf32> to vector<128x128xf32>
    %cst_5 = arith.constant dense<0.000000e+00> : vector<3x128xf32>
    %5 = tpu.matmul %1, %4, %cst_5 {dimension_numbers = #tpu.dot_dimension_numbers<[1], [0], [0], [1], [0, 0, 1, 1], [], []>} : vector<3x128xf32>, vector<128x128xf32>, vector<3x128xf32> -> vector<3x128xf32>
    %c0_6 = arith.constant 0 : index
    %c0_7 = arith.constant 0 : index
    %c0_8 = arith.constant 0 : index
    %6 = vector.load %arg3[%c0_6, %c0_7, %c0_8] : memref<9x30x3xf32, #tpu.memory_space<vmem>>, vector<1x30x3xf32>
    %7 = vector.shape_cast %6 : vector<1x30x3xf32> to vector<30x3xf32>
    %cst_9 = arith.constant dense<0.000000e+00> : vector<30x128xf32>
    %8 = tpu.matmul %7, %5, %cst_9 {dimension_numbers = #tpu.dot_dimension_numbers<[1], [0], [0], [1], [0, 0, 1, 1], [], []>} : vector<30x3xf32>, vector<3x128xf32>, vector<30x128xf32> -> vector<30x128xf32>
    %9 = arith.addf %2, %8 : vector<30x128xf32>
    %c1 = arith.constant 1 : index
    %c0_10 = arith.constant 0 : index
    %c0_11 = arith.constant 0 : index
    %10 = vector.load %arg2[%c1, %c0_10, %c0_11] : memref<9x128x128xf32, #tpu.memory_space<vmem>>, vector<1x128x128xf32>
    %11 = vector.shape_cast %10 : vector<1x128x128xf32> to vector<128x128xf32>
    %cst_12 = arith.constant dense<0.000000e+00> : vector<3x128xf32>
    %12 = tpu.matmul %1, %11, %cst_12 {dimension_numbers = #tpu.dot_dimension_numbers<[1], [0], [0], [1], [0, 0, 1, 1], [], []>} : vector<3x128xf32>, vector<128x128xf32>, vector<3x128xf32> -> vector<3x128xf32>
    %c1_13 = arith.constant 1 : index
    %c0_14 = arith.constant 0 : index
    %c0_15 = arith.constant 0 : index
    %13 = vector.load %arg3[%c1_13, %c0_14, %c0_15] : memref<9x30x3xf32, #tpu.memory_space<vmem>>, vector<1x30x3xf32>
    %14 = vector.shape_cast %13 : vector<1x30x3xf32> to vector<30x3xf32>
    %cst_16 = arith.constant dense<0.000000e+00> : vector<30x128xf32>
    %15 = tpu.matmul %14, %12, %cst_16 {dimension_numbers = #tpu.dot_dimension_numbers<[1], [0], [0], [1], [0, 0, 1, 1], [], []>} : vector<30x3xf32>, vector<3x128xf32>, vector<30x128xf32> -> vector<30x128xf32>
    %16 = arith.addf %9, %15 : vector<30x128xf32>
    %c2 = arith.constant 2 : index
    %c0_17 = arith.constant 0 : index
    %c0_18 = arith.constant 0 : index
    %17 = vector.load %arg2[%c2, %c0_17, %c0_18] : memref<9x128x128xf32, #tpu.memory_space<vmem>>, vector<1x128x128xf32>
    %18 = vector.shape_cast %17 : vector<1x128x128xf32> to vector<128x128xf32>
    %cst_19 = arith.constant dense<0.000000e+00> : vector<3x128xf32>
    %19 = tpu.matmul %1, %18, %cst_19 {dimension_numbers = #tpu.dot_dimension_numbers<[1], [0], [0], [1], [0, 0, 1, 1], [], []>} : vector<3x128xf32>, vector<128x128xf32>, vector<3x128xf32> -> vector<3x128xf32>
    %c2_20 = arith.constant 2 : index
    %c0_21 = arith.constant 0 : index
    %c0_22 = arith.constant 0 : index
    %20 = vector.load %arg3[%c2_20, %c0_21, %c0_22] : memref<9x30x3xf32, #tpu.memory_space<vmem>>, vector<1x30x3xf32>
    %21 = vector.shape_cast %20 : vector<1x30x3xf32> to vector<30x3xf32>
    %cst_23 = arith.constant dense<0.000000e+00> : vector<30x128xf32>
    %22 = tpu.matmul %21, %19, %cst_23 {dimension_numbers = #tpu.dot_dimension_numbers<[1], [0], [0], [1], [0, 0, 1, 1], [], []>} : vector<30x3xf32>, vector<3x128xf32>, vector<30x128xf32> -> vector<30x128xf32>
    %23 = arith.addf %16, %22 : vector<30x128xf32>
    %c3 = arith.constant 3 : index
    %c0_24 = arith.constant 0 : index
    %c0_25 = arith.constant 0 : index
    %24 = vector.load %arg2[%c3, %c0_24, %c0_25] : memref<9x128x128xf32, #tpu.memory_space<vmem>>, vector<1x128x128xf32>
    %25 = vector.shape_cast %24 : vector<1x128x128xf32> to vector<128x128xf32>
    %cst_26 = arith.constant dense<0.000000e+00> : vector<3x128xf32>
    %26 = tpu.matmul %1, %25, %cst_26 {dimension_numbers = #tpu.dot_dimension_numbers<[1], [0], [0], [1], [0, 0, 1, 1], [], []>} : vector<3x128xf32>, vector<128x128xf32>, vector<3x128xf32> -> vector<3x128xf32>
    %c3_27 = arith.constant 3 : index
    %c0_28 = arith.constant 0 : index
    %c0_29 = arith.constant 0 : index
    %27 = vector.load %arg3[%c3_27, %c0_28, %c0_29] : memref<9x30x3xf32, #tpu.memory_space<vmem>>, vector<1x30x3xf32>
    %28 = vector.shape_cast %27 : vector<1x30x3xf32> to vector<30x3xf32>
    %cst_30 = arith.constant dense<0.000000e+00> : vector<30x128xf32>
    %29 = tpu.matmul %28, %26, %cst_30 {dimension_numbers = #tpu.dot_dimension_numbers<[1], [0], [0], [1], [0, 0, 1, 1], [], []>} : vector<30x3xf32>, vector<3x128xf32>, vector<30x128xf32> -> vector<30x128xf32>
    %30 = arith.addf %23, %29 : vector<30x128xf32>
    %c4 = arith.constant 4 : index
    %c0_31 = arith.constant 0 : index
    %c0_32 = arith.constant 0 : index
    %31 = vector.load %arg2[%c4, %c0_31, %c0_32] : memref<9x128x128xf32, #tpu.memory_space<vmem>>, vector<1x128x128xf32>
    %32 = vector.shape_cast %31 : vector<1x128x128xf32> to vector<128x128xf32>
    %cst_33 = arith.constant dense<0.000000e+00> : vector<3x128xf32>
    %33 = tpu.matmul %1, %32, %cst_33 {dimension_numbers = #tpu.dot_dimension_numbers<[1], [0], [0], [1], [0, 0, 1, 1], [], []>} : vector<3x128xf32>, vector<128x128xf32>, vector<3x128xf32> -> vector<3x128xf32>
    %c4_34 = arith.constant 4 : index
    %c0_35 = arith.constant 0 : index
    %c0_36 = arith.constant 0 : index
    %34 = vector.load %arg3[%c4_34, %c0_35, %c0_36] : memref<9x30x3xf32, #tpu.memory_space<vmem>>, vector<1x30x3xf32>
    %35 = vector.shape_cast %34 : vector<1x30x3xf32> to vector<30x3xf32>
    %cst_37 = arith.constant dense<0.000000e+00> : vector<30x128xf32>
    %36 = tpu.matmul %35, %33, %cst_37 {dimension_numbers = #tpu.dot_dimension_numbers<[1], [0], [0], [1], [0, 0, 1, 1], [], []>} : vector<30x3xf32>, vector<3x128xf32>, vector<30x128xf32> -> vector<30x128xf32>
    %37 = arith.addf %30, %36 : vector<30x128xf32>
    %c5 = arith.constant 5 : index
    %c0_38 = arith.constant 0 : index
    %c0_39 = arith.constant 0 : index
    %38 = vector.load %arg2[%c5, %c0_38, %c0_39] : memref<9x128x128xf32, #tpu.memory_space<vmem>>, vector<1x128x128xf32>
    %39 = vector.shape_cast %38 : vector<1x128x128xf32> to vector<128x128xf32>
    %cst_40 = arith.constant dense<0.000000e+00> : vector<3x128xf32>
    %40 = tpu.matmul %1, %39, %cst_40 {dimension_numbers = #tpu.dot_dimension_numbers<[1], [0], [0], [1], [0, 0, 1, 1], [], []>} : vector<3x128xf32>, vector<128x128xf32>, vector<3x128xf32> -> vector<3x128xf32>
    %c5_41 = arith.constant 5 : index
    %c0_42 = arith.constant 0 : index
    %c0_43 = arith.constant 0 : index
    %41 = vector.load %arg3[%c5_41, %c0_42, %c0_43] : memref<9x30x3xf32, #tpu.memory_space<vmem>>, vector<1x30x3xf32>
    %42 = vector.shape_cast %41 : vector<1x30x3xf32> to vector<30x3xf32>
    %cst_44 = arith.constant dense<0.000000e+00> : vector<30x128xf32>
    %43 = tpu.matmul %42, %40, %cst_44 {dimension_numbers = #tpu.dot_dimension_numbers<[1], [0], [0], [1], [0, 0, 1, 1], [], []>} : vector<30x3xf32>, vector<3x128xf32>, vector<30x128xf32> -> vector<30x128xf32>
    %44 = arith.addf %37, %43 : vector<30x128xf32>
    %c6 = arith.constant 6 : index
    %c0_45 = arith.constant 0 : index
    %c0_46 = arith.constant 0 : index
    %45 = vector.load %arg2[%c6, %c0_45, %c0_46] : memref<9x128x128xf32, #tpu.memory_space<vmem>>, vector<1x128x128xf32>
    %46 = vector.shape_cast %45 : vector<1x128x128xf32> to vector<128x128xf32>
    %cst_47 = arith.constant dense<0.000000e+00> : vector<3x128xf32>
    %47 = tpu.matmul %1, %46, %cst_47 {dimension_numbers = #tpu.dot_dimension_numbers<[1], [0], [0], [1], [0, 0, 1, 1], [], []>} : vector<3x128xf32>, vector<128x128xf32>, vector<3x128xf32> -> vector<3x128xf32>
    %c6_48 = arith.constant 6 : index
    %c0_49 = arith.constant 0 : index
    %c0_50 = arith.constant 0 : index
    %48 = vector.load %arg3[%c6_48, %c0_49, %c0_50] : memref<9x30x3xf32, #tpu.memory_space<vmem>>, vector<1x30x3xf32>
    %49 = vector.shape_cast %48 : vector<1x30x3xf32> to vector<30x3xf32>
    %cst_51 = arith.constant dense<0.000000e+00> : vector<30x128xf32>
    %50 = tpu.matmul %49, %47, %cst_51 {dimension_numbers = #tpu.dot_dimension_numbers<[1], [0], [0], [1], [0, 0, 1, 1], [], []>} : vector<30x3xf32>, vector<3x128xf32>, vector<30x128xf32> -> vector<30x128xf32>
    %51 = arith.addf %44, %50 : vector<30x128xf32>
    %c7 = arith.constant 7 : index
    %c0_52 = arith.constant 0 : index
    %c0_53 = arith.constant 0 : index
    %52 = vector.load %arg2[%c7, %c0_52, %c0_53] : memref<9x128x128xf32, #tpu.memory_space<vmem>>, vector<1x128x128xf32>
    %53 = vector.shape_cast %52 : vector<1x128x128xf32> to vector<128x128xf32>
    %cst_54 = arith.constant dense<0.000000e+00> : vector<3x128xf32>
    %54 = tpu.matmul %1, %53, %cst_54 {dimension_numbers = #tpu.dot_dimension_numbers<[1], [0], [0], [1], [0, 0, 1, 1], [], []>} : vector<3x128xf32>, vector<128x128xf32>, vector<3x128xf32> -> vector<3x128xf32>
    %c7_55 = arith.constant 7 : index
    %c0_56 = arith.constant 0 : index
    %c0_57 = arith.constant 0 : index
    %55 = vector.load %arg3[%c7_55, %c0_56, %c0_57] : memref<9x30x3xf32, #tpu.memory_space<vmem>>, vector<1x30x3xf32>
    %56 = vector.shape_cast %55 : vector<1x30x3xf32> to vector<30x3xf32>
    %cst_58 = arith.constant dense<0.000000e+00> : vector<30x128xf32>
    %57 = tpu.matmul %56, %54, %cst_58 {dimension_numbers = #tpu.dot_dimension_numbers<[1], [0], [0], [1], [0, 0, 1, 1], [], []>} : vector<30x3xf32>, vector<3x128xf32>, vector<30x128xf32> -> vector<30x128xf32>
    %58 = arith.addf %51, %57 : vector<30x128xf32>
    %c8 = arith.constant 8 : index
    %c0_59 = arith.constant 0 : index
    %c0_60 = arith.constant 0 : index
    %59 = vector.load %arg2[%c8, %c0_59, %c0_60] : memref<9x128x128xf32, #tpu.memory_space<vmem>>, vector<1x128x128xf32>
    %60 = vector.shape_cast %59 : vector<1x128x128xf32> to vector<128x128xf32>
    %cst_61 = arith.constant dense<0.000000e+00> : vector<3x128xf32>
    %61 = tpu.matmul %1, %60, %cst_61 {dimension_numbers = #tpu.dot_dimension_numbers<[1], [0], [0], [1], [0, 0, 1, 1], [], []>} : vector<3x128xf32>, vector<128x128xf32>, vector<3x128xf32> -> vector<3x128xf32>
    %c8_62 = arith.constant 8 : index
    %c0_63 = arith.constant 0 : index
    %c0_64 = arith.constant 0 : index
    %62 = vector.load %arg3[%c8_62, %c0_63, %c0_64] : memref<9x30x3xf32, #tpu.memory_space<vmem>>, vector<1x30x3xf32>
    %63 = vector.shape_cast %62 : vector<1x30x3xf32> to vector<30x3xf32>
    %cst_65 = arith.constant dense<0.000000e+00> : vector<30x128xf32>
    %64 = tpu.matmul %63, %61, %cst_65 {dimension_numbers = #tpu.dot_dimension_numbers<[1], [0], [0], [1], [0, 0, 1, 1], [], []>} : vector<30x3xf32>, vector<3x128xf32>, vector<30x128xf32> -> vector<30x128xf32>
    %65 = arith.addf %58, %64 : vector<30x128xf32>
    %c0_66 = arith.constant 0 : index
    %c0_67 = arith.constant 0 : index
    %66 = vector.load %arg4[%c0_66, %c0_67] : memref<30x1xf32, #tpu.memory_space<vmem>>, vector<30x1xf32>
    %67 = vector.broadcast %66 : vector<30x1xf32> to vector<30x128xf32>
    %68 = arith.addf %65, %67 : vector<30x128xf32>
    %69 = math.tanh %68 : vector<30x128xf32>
    %cst_68 = arith.constant 0.000000e+00 : f32
    %70 = vector.broadcast %cst_68 : f32 to vector<20x128xf32>
    %c0_69 = arith.constant 0 : index
    %c0_70 = arith.constant 0 : index
    %c0_71 = arith.constant 0 : index
    %71 = vector.load %arg2[%c0_69, %c0_70, %c0_71] : memref<9x128x128xf32, #tpu.memory_space<vmem>>, vector<1x128x128xf32>
    %72 = vector.shape_cast %71 : vector<1x128x128xf32> to vector<128x128xf32>
    %cst_72 = arith.constant dense<0.000000e+00> : vector<30x128xf32>
    %73 = tpu.matmul %69, %72, %cst_72 {dimension_numbers = #tpu.dot_dimension_numbers<[1], [0], [0], [1], [0, 0, 1, 1], [], []>} : vector<30x128xf32>, vector<128x128xf32>, vector<30x128xf32> -> vector<30x128xf32>
    %c0_73 = arith.constant 0 : index
    %c0_74 = arith.constant 0 : index
    %c0_75 = arith.constant 0 : index
    %74 = vector.load %arg5[%c0_73, %c0_74, %c0_75] : memref<9x20x30xf32, #tpu.memory_space<vmem>>, vector<1x20x30xf32>
    %75 = vector.shape_cast %74 : vector<1x20x30xf32> to vector<20x30xf32>
    %cst_76 = arith.constant dense<0.000000e+00> : vector<20x128xf32>
    %76 = tpu.matmul %75, %73, %cst_76 {dimension_numbers = #tpu.dot_dimension_numbers<[1], [0], [0], [1], [0, 0, 1, 1], [], []>} : vector<20x30xf32>, vector<30x128xf32>, vector<20x128xf32> -> vector<20x128xf32>
    %77 = arith.addf %70, %76 : vector<20x128xf32>
    %c1_77 = arith.constant 1 : index
    %c0_78 = arith.constant 0 : index
    %c0_79 = arith.constant 0 : index
    %78 = vector.load %arg2[%c1_77, %c0_78, %c0_79] : memref<9x128x128xf32, #tpu.memory_space<vmem>>, vector<1x128x128xf32>
    %79 = vector.shape_cast %78 : vector<1x128x128xf32> to vector<128x128xf32>
    %cst_80 = arith.constant dense<0.000000e+00> : vector<30x128xf32>
    %80 = tpu.matmul %69, %79, %cst_80 {dimension_numbers = #tpu.dot_dimension_numbers<[1], [0], [0], [1], [0, 0, 1, 1], [], []>} : vector<30x128xf32>, vector<128x128xf32>, vector<30x128xf32> -> vector<30x128xf32>
    %c1_81 = arith.constant 1 : index
    %c0_82 = arith.constant 0 : index
    %c0_83 = arith.constant 0 : index
    %81 = vector.load %arg5[%c1_81, %c0_82, %c0_83] : memref<9x20x30xf32, #tpu.memory_space<vmem>>, vector<1x20x30xf32>
    %82 = vector.shape_cast %81 : vector<1x20x30xf32> to vector<20x30xf32>
    %cst_84 = arith.constant dense<0.000000e+00> : vector<20x128xf32>
    %83 = tpu.matmul %82, %80, %cst_84 {dimension_numbers = #tpu.dot_dimension_numbers<[1], [0], [0], [1], [0, 0, 1, 1], [], []>} : vector<20x30xf32>, vector<30x128xf32>, vector<20x128xf32> -> vector<20x128xf32>
    %84 = arith.addf %77, %83 : vector<20x128xf32>
    %c2_85 = arith.constant 2 : index
    %c0_86 = arith.constant 0 : index
    %c0_87 = arith.constant 0 : index
    %85 = vector.load %arg2[%c2_85, %c0_86, %c0_87] : memref<9x128x128xf32, #tpu.memory_space<vmem>>, vector<1x128x128xf32>
    %86 = vector.shape_cast %85 : vector<1x128x128xf32> to vector<128x128xf32>
    %cst_88 = arith.constant dense<0.000000e+00> : vector<30x128xf32>
    %87 = tpu.matmul %69, %86, %cst_88 {dimension_numbers = #tpu.dot_dimension_numbers<[1], [0], [0], [1], [0, 0, 1, 1], [], []>} : vector<30x128xf32>, vector<128x128xf32>, vector<30x128xf32> -> vector<30x128xf32>
    %c2_89 = arith.constant 2 : index
    %c0_90 = arith.constant 0 : index
    %c0_91 = arith.constant 0 : index
    %88 = vector.load %arg5[%c2_89, %c0_90, %c0_91] : memref<9x20x30xf32, #tpu.memory_space<vmem>>, vector<1x20x30xf32>
    %89 = vector.shape_cast %88 : vector<1x20x30xf32> to vector<20x30xf32>
    %cst_92 = arith.constant dense<0.000000e+00> : vector<20x128xf32>
    %90 = tpu.matmul %89, %87, %cst_92 {dimension_numbers = #tpu.dot_dimension_numbers<[1], [0], [0], [1], [0, 0, 1, 1], [], []>} : vector<20x30xf32>, vector<30x128xf32>, vector<20x128xf32> -> vector<20x128xf32>
    %91 = arith.addf %84, %90 : vector<20x128xf32>
    %c3_93 = arith.constant 3 : index
    %c0_94 = arith.constant 0 : index
    %c0_95 = arith.constant 0 : index
    %92 = vector.load %arg2[%c3_93, %c0_94, %c0_95] : memref<9x128x128xf32, #tpu.memory_space<vmem>>, vector<1x128x128xf32>
    %93 = vector.shape_cast %92 : vector<1x128x128xf32> to vector<128x128xf32>
    %cst_96 = arith.constant dense<0.000000e+00> : vector<30x128xf32>
    %94 = tpu.matmul %69, %93, %cst_96 {dimension_numbers = #tpu.dot_dimension_numbers<[1], [0], [0], [1], [0, 0, 1, 1], [], []>} : vector<30x128xf32>, vector<128x128xf32>, vector<30x128xf32> -> vector<30x128xf32>
    %c3_97 = arith.constant 3 : index
    %c0_98 = arith.constant 0 : index
    %c0_99 = arith.constant 0 : index
    %95 = vector.load %arg5[%c3_97, %c0_98, %c0_99] : memref<9x20x30xf32, #tpu.memory_space<vmem>>, vector<1x20x30xf32>
    %96 = vector.shape_cast %95 : vector<1x20x30xf32> to vector<20x30xf32>
    %cst_100 = arith.constant dense<0.000000e+00> : vector<20x128xf32>
    %97 = tpu.matmul %96, %94, %cst_100 {dimension_numbers = #tpu.dot_dimension_numbers<[1], [0], [0], [1], [0, 0, 1, 1], [], []>} : vector<20x30xf32>, vector<30x128xf32>, vector<20x128xf32> -> vector<20x128xf32>
    %98 = arith.addf %91, %97 : vector<20x128xf32>
    %c4_101 = arith.constant 4 : index
    %c0_102 = arith.constant 0 : index
    %c0_103 = arith.constant 0 : index
    %99 = vector.load %arg2[%c4_101, %c0_102, %c0_103] : memref<9x128x128xf32, #tpu.memory_space<vmem>>, vector<1x128x128xf32>
    %100 = vector.shape_cast %99 : vector<1x128x128xf32> to vector<128x128xf32>
    %cst_104 = arith.constant dense<0.000000e+00> : vector<30x128xf32>
    %101 = tpu.matmul %69, %100, %cst_104 {dimension_numbers = #tpu.dot_dimension_numbers<[1], [0], [0], [1], [0, 0, 1, 1], [], []>} : vector<30x128xf32>, vector<128x128xf32>, vector<30x128xf32> -> vector<30x128xf32>
    %c4_105 = arith.constant 4 : index
    %c0_106 = arith.constant 0 : index
    %c0_107 = arith.constant 0 : index
    %102 = vector.load %arg5[%c4_105, %c0_106, %c0_107] : memref<9x20x30xf32, #tpu.memory_space<vmem>>, vector<1x20x30xf32>
    %103 = vector.shape_cast %102 : vector<1x20x30xf32> to vector<20x30xf32>
    %cst_108 = arith.constant dense<0.000000e+00> : vector<20x128xf32>
    %104 = tpu.matmul %103, %101, %cst_108 {dimension_numbers = #tpu.dot_dimension_numbers<[1], [0], [0], [1], [0, 0, 1, 1], [], []>} : vector<20x30xf32>, vector<30x128xf32>, vector<20x128xf32> -> vector<20x128xf32>
    %105 = arith.addf %98, %104 : vector<20x128xf32>
    %c5_109 = arith.constant 5 : index
    %c0_110 = arith.constant 0 : index
    %c0_111 = arith.constant 0 : index
    %106 = vector.load %arg2[%c5_109, %c0_110, %c0_111] : memref<9x128x128xf32, #tpu.memory_space<vmem>>, vector<1x128x128xf32>
    %107 = vector.shape_cast %106 : vector<1x128x128xf32> to vector<128x128xf32>
    %cst_112 = arith.constant dense<0.000000e+00> : vector<30x128xf32>
    %108 = tpu.matmul %69, %107, %cst_112 {dimension_numbers = #tpu.dot_dimension_numbers<[1], [0], [0], [1], [0, 0, 1, 1], [], []>} : vector<30x128xf32>, vector<128x128xf32>, vector<30x128xf32> -> vector<30x128xf32>
    %c5_113 = arith.constant 5 : index
    %c0_114 = arith.constant 0 : index
    %c0_115 = arith.constant 0 : index
    %109 = vector.load %arg5[%c5_113, %c0_114, %c0_115] : memref<9x20x30xf32, #tpu.memory_space<vmem>>, vector<1x20x30xf32>
    %110 = vector.shape_cast %109 : vector<1x20x30xf32> to vector<20x30xf32>
    %cst_116 = arith.constant dense<0.000000e+00> : vector<20x128xf32>
    %111 = tpu.matmul %110, %108, %cst_116 {dimension_numbers = #tpu.dot_dimension_numbers<[1], [0], [0], [1], [0, 0, 1, 1], [], []>} : vector<20x30xf32>, vector<30x128xf32>, vector<20x128xf32> -> vector<20x128xf32>
    %112 = arith.addf %105, %111 : vector<20x128xf32>
    %c6_117 = arith.constant 6 : index
    %c0_118 = arith.constant 0 : index
    %c0_119 = arith.constant 0 : index
    %113 = vector.load %arg2[%c6_117, %c0_118, %c0_119] : memref<9x128x128xf32, #tpu.memory_space<vmem>>, vector<1x128x128xf32>
    %114 = vector.shape_cast %113 : vector<1x128x128xf32> to vector<128x128xf32>
    %cst_120 = arith.constant dense<0.000000e+00> : vector<30x128xf32>
    %115 = tpu.matmul %69, %114, %cst_120 {dimension_numbers = #tpu.dot_dimension_numbers<[1], [0], [0], [1], [0, 0, 1, 1], [], []>} : vector<30x128xf32>, vector<128x128xf32>, vector<30x128xf32> -> vector<30x128xf32>
    %c6_121 = arith.constant 6 : index
    %c0_122 = arith.constant 0 : index
    %c0_123 = arith.constant 0 : index
    %116 = vector.load %arg5[%c6_121, %c0_122, %c0_123] : memref<9x20x30xf32, #tpu.memory_space<vmem>>, vector<1x20x30xf32>
    %117 = vector.shape_cast %116 : vector<1x20x30xf32> to vector<20x30xf32>
    %cst_124 = arith.constant dense<0.000000e+00> : vector<20x128xf32>
    %118 = tpu.matmul %117, %115, %cst_124 {dimension_numbers = #tpu.dot_dimension_numbers<[1], [0], [0], [1], [0, 0, 1, 1], [], []>} : vector<20x30xf32>, vector<30x128xf32>, vector<20x128xf32> -> vector<20x128xf32>
    %119 = arith.addf %112, %118 : vector<20x128xf32>
    %c7_125 = arith.constant 7 : index
    %c0_126 = arith.constant 0 : index
    %c0_127 = arith.constant 0 : index
    %120 = vector.load %arg2[%c7_125, %c0_126, %c0_127] : memref<9x128x128xf32, #tpu.memory_space<vmem>>, vector<1x128x128xf32>
    %121 = vector.shape_cast %120 : vector<1x128x128xf32> to vector<128x128xf32>
    %cst_128 = arith.constant dense<0.000000e+00> : vector<30x128xf32>
    %122 = tpu.matmul %69, %121, %cst_128 {dimension_numbers = #tpu.dot_dimension_numbers<[1], [0], [0], [1], [0, 0, 1, 1], [], []>} : vector<30x128xf32>, vector<128x128xf32>, vector<30x128xf32> -> vector<30x128xf32>
    %c7_129 = arith.constant 7 : index
    %c0_130 = arith.constant 0 : index
    %c0_131 = arith.constant 0 : index
    %123 = vector.load %arg5[%c7_129, %c0_130, %c0_131] : memref<9x20x30xf32, #tpu.memory_space<vmem>>, vector<1x20x30xf32>
    %124 = vector.shape_cast %123 : vector<1x20x30xf32> to vector<20x30xf32>
    %cst_132 = arith.constant dense<0.000000e+00> : vector<20x128xf32>
    %125 = tpu.matmul %124, %122, %cst_132 {dimension_numbers = #tpu.dot_dimension_numbers<[1], [0], [0], [1], [0, 0, 1, 1], [], []>} : vector<20x30xf32>, vector<30x128xf32>, vector<20x128xf32> -> vector<20x128xf32>
    %126 = arith.addf %119, %125 : vector<20x128xf32>
    %c8_133 = arith.constant 8 : index
    %c0_134 = arith.constant 0 : index
    %c0_135 = arith.constant 0 : index
    %127 = vector.load %arg2[%c8_133, %c0_134, %c0_135] : memref<9x128x128xf32, #tpu.memory_space<vmem>>, vector<1x128x128xf32>
    %128 = vector.shape_cast %127 : vector<1x128x128xf32> to vector<128x128xf32>
    %cst_136 = arith.constant dense<0.000000e+00> : vector<30x128xf32>
    %129 = tpu.matmul %69, %128, %cst_136 {dimension_numbers = #tpu.dot_dimension_numbers<[1], [0], [0], [1], [0, 0, 1, 1], [], []>} : vector<30x128xf32>, vector<128x128xf32>, vector<30x128xf32> -> vector<30x128xf32>
    %c8_137 = arith.constant 8 : index
    %c0_138 = arith.constant 0 : index
    %c0_139 = arith.constant 0 : index
    %130 = vector.load %arg5[%c8_137, %c0_138, %c0_139] : memref<9x20x30xf32, #tpu.memory_space<vmem>>, vector<1x20x30xf32>
    %131 = vector.shape_cast %130 : vector<1x20x30xf32> to vector<20x30xf32>
    %cst_140 = arith.constant dense<0.000000e+00> : vector<20x128xf32>
    %132 = tpu.matmul %131, %129, %cst_140 {dimension_numbers = #tpu.dot_dimension_numbers<[1], [0], [0], [1], [0, 0, 1, 1], [], []>} : vector<20x30xf32>, vector<30x128xf32>, vector<20x128xf32> -> vector<20x128xf32>
    %133 = arith.addf %126, %132 : vector<20x128xf32>
    %c0_141 = arith.constant 0 : index
    %c0_142 = arith.constant 0 : index
    %134 = vector.load %arg6[%c0_141, %c0_142] : memref<20x1xf32, #tpu.memory_space<vmem>>, vector<20x1xf32>
    %135 = vector.broadcast %134 : vector<20x1xf32> to vector<20x128xf32>
    %136 = arith.addf %133, %135 : vector<20x128xf32>
    %137 = math.tanh %136 : vector<20x128xf32>
    %cst_143 = arith.constant 0.000000e+00 : f32
    %138 = vector.broadcast %cst_143 : f32 to vector<10x128xf32>
    %c0_144 = arith.constant 0 : index
    %c0_145 = arith.constant 0 : index
    %c0_146 = arith.constant 0 : index
    %139 = vector.load %arg2[%c0_144, %c0_145, %c0_146] : memref<9x128x128xf32, #tpu.memory_space<vmem>>, vector<1x128x128xf32>
    %140 = vector.shape_cast %139 : vector<1x128x128xf32> to vector<128x128xf32>
    %cst_147 = arith.constant dense<0.000000e+00> : vector<20x128xf32>
    %141 = tpu.matmul %137, %140, %cst_147 {dimension_numbers = #tpu.dot_dimension_numbers<[1], [0], [0], [1], [0, 0, 1, 1], [], []>} : vector<20x128xf32>, vector<128x128xf32>, vector<20x128xf32> -> vector<20x128xf32>
    %c0_148 = arith.constant 0 : index
    %c0_149 = arith.constant 0 : index
    %c0_150 = arith.constant 0 : index
    %142 = vector.load %arg7[%c0_148, %c0_149, %c0_150] : memref<9x10x20xf32, #tpu.memory_space<vmem>>, vector<1x10x20xf32>
    %143 = vector.shape_cast %142 : vector<1x10x20xf32> to vector<10x20xf32>
    %cst_151 = arith.constant dense<0.000000e+00> : vector<10x128xf32>
    %144 = tpu.matmul %143, %141, %cst_151 {dimension_numbers = #tpu.dot_dimension_numbers<[1], [0], [0], [1], [0, 0, 1, 1], [], []>} : vector<10x20xf32>, vector<20x128xf32>, vector<10x128xf32> -> vector<10x128xf32>
    %145 = arith.addf %138, %144 : vector<10x128xf32>
    %c1_152 = arith.constant 1 : index
    %c0_153 = arith.constant 0 : index
    %c0_154 = arith.constant 0 : index
    %146 = vector.load %arg2[%c1_152, %c0_153, %c0_154] : memref<9x128x128xf32, #tpu.memory_space<vmem>>, vector<1x128x128xf32>
    %147 = vector.shape_cast %146 : vector<1x128x128xf32> to vector<128x128xf32>
    %cst_155 = arith.constant dense<0.000000e+00> : vector<20x128xf32>
    %148 = tpu.matmul %137, %147, %cst_155 {dimension_numbers = #tpu.dot_dimension_numbers<[1], [0], [0], [1], [0, 0, 1, 1], [], []>} : vector<20x128xf32>, vector<128x128xf32>, vector<20x128xf32> -> vector<20x128xf32>
    %c1_156 = arith.constant 1 : index
    %c0_157 = arith.constant 0 : index
    %c0_158 = arith.constant 0 : index
    %149 = vector.load %arg7[%c1_156, %c0_157, %c0_158] : memref<9x10x20xf32, #tpu.memory_space<vmem>>, vector<1x10x20xf32>
    %150 = vector.shape_cast %149 : vector<1x10x20xf32> to vector<10x20xf32>
    %cst_159 = arith.constant dense<0.000000e+00> : vector<10x128xf32>
    %151 = tpu.matmul %150, %148, %cst_159 {dimension_numbers = #tpu.dot_dimension_numbers<[1], [0], [0], [1], [0, 0, 1, 1], [], []>} : vector<10x20xf32>, vector<20x128xf32>, vector<10x128xf32> -> vector<10x128xf32>
    %152 = arith.addf %145, %151 : vector<10x128xf32>
    %c2_160 = arith.constant 2 : index
    %c0_161 = arith.constant 0 : index
    %c0_162 = arith.constant 0 : index
    %153 = vector.load %arg2[%c2_160, %c0_161, %c0_162] : memref<9x128x128xf32, #tpu.memory_space<vmem>>, vector<1x128x128xf32>
    %154 = vector.shape_cast %153 : vector<1x128x128xf32> to vector<128x128xf32>
    %cst_163 = arith.constant dense<0.000000e+00> : vector<20x128xf32>
    %155 = tpu.matmul %137, %154, %cst_163 {dimension_numbers = #tpu.dot_dimension_numbers<[1], [0], [0], [1], [0, 0, 1, 1], [], []>} : vector<20x128xf32>, vector<128x128xf32>, vector<20x128xf32> -> vector<20x128xf32>
    %c2_164 = arith.constant 2 : index
    %c0_165 = arith.constant 0 : index
    %c0_166 = arith.constant 0 : index
    %156 = vector.load %arg7[%c2_164, %c0_165, %c0_166] : memref<9x10x20xf32, #tpu.memory_space<vmem>>, vector<1x10x20xf32>
    %157 = vector.shape_cast %156 : vector<1x10x20xf32> to vector<10x20xf32>
    %cst_167 = arith.constant dense<0.000000e+00> : vector<10x128xf32>
    %158 = tpu.matmul %157, %155, %cst_167 {dimension_numbers = #tpu.dot_dimension_numbers<[1], [0], [0], [1], [0, 0, 1, 1], [], []>} : vector<10x20xf32>, vector<20x128xf32>, vector<10x128xf32> -> vector<10x128xf32>
    %159 = arith.addf %152, %158 : vector<10x128xf32>
    %c3_168 = arith.constant 3 : index
    %c0_169 = arith.constant 0 : index
    %c0_170 = arith.constant 0 : index
    %160 = vector.load %arg2[%c3_168, %c0_169, %c0_170] : memref<9x128x128xf32, #tpu.memory_space<vmem>>, vector<1x128x128xf32>
    %161 = vector.shape_cast %160 : vector<1x128x128xf32> to vector<128x128xf32>
    %cst_171 = arith.constant dense<0.000000e+00> : vector<20x128xf32>
    %162 = tpu.matmul %137, %161, %cst_171 {dimension_numbers = #tpu.dot_dimension_numbers<[1], [0], [0], [1], [0, 0, 1, 1], [], []>} : vector<20x128xf32>, vector<128x128xf32>, vector<20x128xf32> -> vector<20x128xf32>
    %c3_172 = arith.constant 3 : index
    %c0_173 = arith.constant 0 : index
    %c0_174 = arith.constant 0 : index
    %163 = vector.load %arg7[%c3_172, %c0_173, %c0_174] : memref<9x10x20xf32, #tpu.memory_space<vmem>>, vector<1x10x20xf32>
    %164 = vector.shape_cast %163 : vector<1x10x20xf32> to vector<10x20xf32>
    %cst_175 = arith.constant dense<0.000000e+00> : vector<10x128xf32>
    %165 = tpu.matmul %164, %162, %cst_175 {dimension_numbers = #tpu.dot_dimension_numbers<[1], [0], [0], [1], [0, 0, 1, 1], [], []>} : vector<10x20xf32>, vector<20x128xf32>, vector<10x128xf32> -> vector<10x128xf32>
    %166 = arith.addf %159, %165 : vector<10x128xf32>
    %c4_176 = arith.constant 4 : index
    %c0_177 = arith.constant 0 : index
    %c0_178 = arith.constant 0 : index
    %167 = vector.load %arg2[%c4_176, %c0_177, %c0_178] : memref<9x128x128xf32, #tpu.memory_space<vmem>>, vector<1x128x128xf32>
    %168 = vector.shape_cast %167 : vector<1x128x128xf32> to vector<128x128xf32>
    %cst_179 = arith.constant dense<0.000000e+00> : vector<20x128xf32>
    %169 = tpu.matmul %137, %168, %cst_179 {dimension_numbers = #tpu.dot_dimension_numbers<[1], [0], [0], [1], [0, 0, 1, 1], [], []>} : vector<20x128xf32>, vector<128x128xf32>, vector<20x128xf32> -> vector<20x128xf32>
    %c4_180 = arith.constant 4 : index
    %c0_181 = arith.constant 0 : index
    %c0_182 = arith.constant 0 : index
    %170 = vector.load %arg7[%c4_180, %c0_181, %c0_182] : memref<9x10x20xf32, #tpu.memory_space<vmem>>, vector<1x10x20xf32>
    %171 = vector.shape_cast %170 : vector<1x10x20xf32> to vector<10x20xf32>
    %cst_183 = arith.constant dense<0.000000e+00> : vector<10x128xf32>
    %172 = tpu.matmul %171, %169, %cst_183 {dimension_numbers = #tpu.dot_dimension_numbers<[1], [0], [0], [1], [0, 0, 1, 1], [], []>} : vector<10x20xf32>, vector<20x128xf32>, vector<10x128xf32> -> vector<10x128xf32>
    %173 = arith.addf %166, %172 : vector<10x128xf32>
    %c5_184 = arith.constant 5 : index
    %c0_185 = arith.constant 0 : index
    %c0_186 = arith.constant 0 : index
    %174 = vector.load %arg2[%c5_184, %c0_185, %c0_186] : memref<9x128x128xf32, #tpu.memory_space<vmem>>, vector<1x128x128xf32>
    %175 = vector.shape_cast %174 : vector<1x128x128xf32> to vector<128x128xf32>
    %cst_187 = arith.constant dense<0.000000e+00> : vector<20x128xf32>
    %176 = tpu.matmul %137, %175, %cst_187 {dimension_numbers = #tpu.dot_dimension_numbers<[1], [0], [0], [1], [0, 0, 1, 1], [], []>} : vector<20x128xf32>, vector<128x128xf32>, vector<20x128xf32> -> vector<20x128xf32>
    %c5_188 = arith.constant 5 : index
    %c0_189 = arith.constant 0 : index
    %c0_190 = arith.constant 0 : index
    %177 = vector.load %arg7[%c5_188, %c0_189, %c0_190] : memref<9x10x20xf32, #tpu.memory_space<vmem>>, vector<1x10x20xf32>
    %178 = vector.shape_cast %177 : vector<1x10x20xf32> to vector<10x20xf32>
    %cst_191 = arith.constant dense<0.000000e+00> : vector<10x128xf32>
    %179 = tpu.matmul %178, %176, %cst_191 {dimension_numbers = #tpu.dot_dimension_numbers<[1], [0], [0], [1], [0, 0, 1, 1], [], []>} : vector<10x20xf32>, vector<20x128xf32>, vector<10x128xf32> -> vector<10x128xf32>
    %180 = arith.addf %173, %179 : vector<10x128xf32>
    %c6_192 = arith.constant 6 : index
    %c0_193 = arith.constant 0 : index
    %c0_194 = arith.constant 0 : index
    %181 = vector.load %arg2[%c6_192, %c0_193, %c0_194] : memref<9x128x128xf32, #tpu.memory_space<vmem>>, vector<1x128x128xf32>
    %182 = vector.shape_cast %181 : vector<1x128x128xf32> to vector<128x128xf32>
    %cst_195 = arith.constant dense<0.000000e+00> : vector<20x128xf32>
    %183 = tpu.matmul %137, %182, %cst_195 {dimension_numbers = #tpu.dot_dimension_numbers<[1], [0], [0], [1], [0, 0, 1, 1], [], []>} : vector<20x128xf32>, vector<128x128xf32>, vector<20x128xf32> -> vector<20x128xf32>
    %c6_196 = arith.constant 6 : index
    %c0_197 = arith.constant 0 : index
    %c0_198 = arith.constant 0 : index
    %184 = vector.load %arg7[%c6_196, %c0_197, %c0_198] : memref<9x10x20xf32, #tpu.memory_space<vmem>>, vector<1x10x20xf32>
    %185 = vector.shape_cast %184 : vector<1x10x20xf32> to vector<10x20xf32>
    %cst_199 = arith.constant dense<0.000000e+00> : vector<10x128xf32>
    %186 = tpu.matmul %185, %183, %cst_199 {dimension_numbers = #tpu.dot_dimension_numbers<[1], [0], [0], [1], [0, 0, 1, 1], [], []>} : vector<10x20xf32>, vector<20x128xf32>, vector<10x128xf32> -> vector<10x128xf32>
    %187 = arith.addf %180, %186 : vector<10x128xf32>
    %c7_200 = arith.constant 7 : index
    %c0_201 = arith.constant 0 : index
    %c0_202 = arith.constant 0 : index
    %188 = vector.load %arg2[%c7_200, %c0_201, %c0_202] : memref<9x128x128xf32, #tpu.memory_space<vmem>>, vector<1x128x128xf32>
    %189 = vector.shape_cast %188 : vector<1x128x128xf32> to vector<128x128xf32>
    %cst_203 = arith.constant dense<0.000000e+00> : vector<20x128xf32>
    %190 = tpu.matmul %137, %189, %cst_203 {dimension_numbers = #tpu.dot_dimension_numbers<[1], [0], [0], [1], [0, 0, 1, 1], [], []>} : vector<20x128xf32>, vector<128x128xf32>, vector<20x128xf32> -> vector<20x128xf32>
    %c7_204 = arith.constant 7 : index
    %c0_205 = arith.constant 0 : index
    %c0_206 = arith.constant 0 : index
    %191 = vector.load %arg7[%c7_204, %c0_205, %c0_206] : memref<9x10x20xf32, #tpu.memory_space<vmem>>, vector<1x10x20xf32>
    %192 = vector.shape_cast %191 : vector<1x10x20xf32> to vector<10x20xf32>
    %cst_207 = arith.constant dense<0.000000e+00> : vector<10x128xf32>
    %193 = tpu.matmul %192, %190, %cst_207 {dimension_numbers = #tpu.dot_dimension_numbers<[1], [0], [0], [1], [0, 0, 1, 1], [], []>} : vector<10x20xf32>, vector<20x128xf32>, vector<10x128xf32> -> vector<10x128xf32>
    %194 = arith.addf %187, %193 : vector<10x128xf32>
    %c8_208 = arith.constant 8 : index
    %c0_209 = arith.constant 0 : index
    %c0_210 = arith.constant 0 : index
    %195 = vector.load %arg2[%c8_208, %c0_209, %c0_210] : memref<9x128x128xf32, #tpu.memory_space<vmem>>, vector<1x128x128xf32>
    %196 = vector.shape_cast %195 : vector<1x128x128xf32> to vector<128x128xf32>
    %cst_211 = arith.constant dense<0.000000e+00> : vector<20x128xf32>
    %197 = tpu.matmul %137, %196, %cst_211 {dimension_numbers = #tpu.dot_dimension_numbers<[1], [0], [0], [1], [0, 0, 1, 1], [], []>} : vector<20x128xf32>, vector<128x128xf32>, vector<20x128xf32> -> vector<20x128xf32>
    %c8_212 = arith.constant 8 : index
    %c0_213 = arith.constant 0 : index
    %c0_214 = arith.constant 0 : index
    %198 = vector.load %arg7[%c8_212, %c0_213, %c0_214] : memref<9x10x20xf32, #tpu.memory_space<vmem>>, vector<1x10x20xf32>
    %199 = vector.shape_cast %198 : vector<1x10x20xf32> to vector<10x20xf32>
    %cst_215 = arith.constant dense<0.000000e+00> : vector<10x128xf32>
    %200 = tpu.matmul %199, %197, %cst_215 {dimension_numbers = #tpu.dot_dimension_numbers<[1], [0], [0], [1], [0, 0, 1, 1], [], []>} : vector<10x20xf32>, vector<20x128xf32>, vector<10x128xf32> -> vector<10x128xf32>
    %201 = arith.addf %194, %200 : vector<10x128xf32>
    %c0_216 = arith.constant 0 : index
    %c0_217 = arith.constant 0 : index
    %202 = vector.load %arg8[%c0_216, %c0_217] : memref<10x1xf32, #tpu.memory_space<vmem>>, vector<10x1xf32>
    %203 = vector.broadcast %202 : vector<10x1xf32> to vector<10x128xf32>
    %204 = arith.addf %201, %203 : vector<10x128xf32>
    %205 = math.tanh %204 : vector<10x128xf32>
    %206 = tpu.iota {dimensions = array<i32: 1>} : vector<1x10xi32>
    %c0_218 = arith.constant 0 : index
    %c0_219 = arith.constant 0 : index
    %207 = vector.load %arg10[%c0_218, %c0_219] : memref<1x128xf32, #tpu.memory_space<vmem>>, vector<1x128xf32>
    %c0_i32 = arith.constant 0 : i32
    %208 = vector.broadcast %c0_i32 : i32 to vector<1x10xi32>
    %209 = arith.cmpi eq, %206, %208 : vector<1x10xi32>
    %210 = arith.extui %209 : vector<1x10xi1> to vector<1x10xi32>
    %211 = arith.sitofp %210 : vector<1x10xi32> to vector<1x10xf32>
    %cst_220 = arith.constant dense<0.000000e+00> : vector<1x128xf32>
    %212 = tpu.matmul %211, %205, %cst_220 {dimension_numbers = #tpu.dot_dimension_numbers<[1], [0], [0], [1], [0, 0, 1, 1], [], []>} : vector<1x10xf32>, vector<10x128xf32>, vector<1x128xf32> -> vector<1x128xf32>
    %c0_221 = arith.constant 0 : index
    %c0_222 = arith.constant 0 : index
    %c0_223 = arith.constant 0 : index
    %213 = vector.load %arg9[%c0_221, %c0_222, %c0_223] : memref<10x128x128xf32, #tpu.memory_space<vmem>>, vector<1x128x128xf32>
    %214 = vector.shape_cast %213 : vector<1x128x128xf32> to vector<128x128xf32>
    %cst_224 = arith.constant dense<0.000000e+00> : vector<1x128xf32>
    %215 = tpu.matmul %212, %214, %cst_224 {dimension_numbers = #tpu.dot_dimension_numbers<[1], [0], [0], [1], [0, 0, 1, 1], [], []>} : vector<1x128xf32>, vector<128x128xf32>, vector<1x128xf32> -> vector<1x128xf32>
    %216 = arith.addf %207, %215 : vector<1x128xf32>
    %c1_i32 = arith.constant 1 : i32
    %217 = vector.broadcast %c1_i32 : i32 to vector<1x10xi32>
    %218 = arith.cmpi eq, %206, %217 : vector<1x10xi32>
    %219 = arith.extui %218 : vector<1x10xi1> to vector<1x10xi32>
    %220 = arith.sitofp %219 : vector<1x10xi32> to vector<1x10xf32>
    %cst_225 = arith.constant dense<0.000000e+00> : vector<1x128xf32>
    %221 = tpu.matmul %220, %205, %cst_225 {dimension_numbers = #tpu.dot_dimension_numbers<[1], [0], [0], [1], [0, 0, 1, 1], [], []>} : vector<1x10xf32>, vector<10x128xf32>, vector<1x128xf32> -> vector<1x128xf32>
    %c1_226 = arith.constant 1 : index
    %c0_227 = arith.constant 0 : index
    %c0_228 = arith.constant 0 : index
    %222 = vector.load %arg9[%c1_226, %c0_227, %c0_228] : memref<10x128x128xf32, #tpu.memory_space<vmem>>, vector<1x128x128xf32>
    %223 = vector.shape_cast %222 : vector<1x128x128xf32> to vector<128x128xf32>
    %cst_229 = arith.constant dense<0.000000e+00> : vector<1x128xf32>
    %224 = tpu.matmul %221, %223, %cst_229 {dimension_numbers = #tpu.dot_dimension_numbers<[1], [0], [0], [1], [0, 0, 1, 1], [], []>} : vector<1x128xf32>, vector<128x128xf32>, vector<1x128xf32> -> vector<1x128xf32>
    %225 = arith.addf %216, %224 : vector<1x128xf32>
    %c2_i32 = arith.constant 2 : i32
    %226 = vector.broadcast %c2_i32 : i32 to vector<1x10xi32>
    %227 = arith.cmpi eq, %206, %226 : vector<1x10xi32>
    %228 = arith.extui %227 : vector<1x10xi1> to vector<1x10xi32>
    %229 = arith.sitofp %228 : vector<1x10xi32> to vector<1x10xf32>
    %cst_230 = arith.constant dense<0.000000e+00> : vector<1x128xf32>
    %230 = tpu.matmul %229, %205, %cst_230 {dimension_numbers = #tpu.dot_dimension_numbers<[1], [0], [0], [1], [0, 0, 1, 1], [], []>} : vector<1x10xf32>, vector<10x128xf32>, vector<1x128xf32> -> vector<1x128xf32>
    %c2_231 = arith.constant 2 : index
    %c0_232 = arith.constant 0 : index
    %c0_233 = arith.constant 0 : index
    %231 = vector.load %arg9[%c2_231, %c0_232, %c0_233] : memref<10x128x128xf32, #tpu.memory_space<vmem>>, vector<1x128x128xf32>
    %232 = vector.shape_cast %231 : vector<1x128x128xf32> to vector<128x128xf32>
    %cst_234 = arith.constant dense<0.000000e+00> : vector<1x128xf32>
    %233 = tpu.matmul %230, %232, %cst_234 {dimension_numbers = #tpu.dot_dimension_numbers<[1], [0], [0], [1], [0, 0, 1, 1], [], []>} : vector<1x128xf32>, vector<128x128xf32>, vector<1x128xf32> -> vector<1x128xf32>
    %234 = arith.addf %225, %233 : vector<1x128xf32>
    %c3_i32 = arith.constant 3 : i32
    %235 = vector.broadcast %c3_i32 : i32 to vector<1x10xi32>
    %236 = arith.cmpi eq, %206, %235 : vector<1x10xi32>
    %237 = arith.extui %236 : vector<1x10xi1> to vector<1x10xi32>
    %238 = arith.sitofp %237 : vector<1x10xi32> to vector<1x10xf32>
    %cst_235 = arith.constant dense<0.000000e+00> : vector<1x128xf32>
    %239 = tpu.matmul %238, %205, %cst_235 {dimension_numbers = #tpu.dot_dimension_numbers<[1], [0], [0], [1], [0, 0, 1, 1], [], []>} : vector<1x10xf32>, vector<10x128xf32>, vector<1x128xf32> -> vector<1x128xf32>
    %c3_236 = arith.constant 3 : index
    %c0_237 = arith.constant 0 : index
    %c0_238 = arith.constant 0 : index
    %240 = vector.load %arg9[%c3_236, %c0_237, %c0_238] : memref<10x128x128xf32, #tpu.memory_space<vmem>>, vector<1x128x128xf32>
    %241 = vector.shape_cast %240 : vector<1x128x128xf32> to vector<128x128xf32>
    %cst_239 = arith.constant dense<0.000000e+00> : vector<1x128xf32>
    %242 = tpu.matmul %239, %241, %cst_239 {dimension_numbers = #tpu.dot_dimension_numbers<[1], [0], [0], [1], [0, 0, 1, 1], [], []>} : vector<1x128xf32>, vector<128x128xf32>, vector<1x128xf32> -> vector<1x128xf32>
    %243 = arith.addf %234, %242 : vector<1x128xf32>
    %c4_i32 = arith.constant 4 : i32
    %244 = vector.broadcast %c4_i32 : i32 to vector<1x10xi32>
    %245 = arith.cmpi eq, %206, %244 : vector<1x10xi32>
    %246 = arith.extui %245 : vector<1x10xi1> to vector<1x10xi32>
    %247 = arith.sitofp %246 : vector<1x10xi32> to vector<1x10xf32>
    %cst_240 = arith.constant dense<0.000000e+00> : vector<1x128xf32>
    %248 = tpu.matmul %247, %205, %cst_240 {dimension_numbers = #tpu.dot_dimension_numbers<[1], [0], [0], [1], [0, 0, 1, 1], [], []>} : vector<1x10xf32>, vector<10x128xf32>, vector<1x128xf32> -> vector<1x128xf32>
    %c4_241 = arith.constant 4 : index
    %c0_242 = arith.constant 0 : index
    %c0_243 = arith.constant 0 : index
    %249 = vector.load %arg9[%c4_241, %c0_242, %c0_243] : memref<10x128x128xf32, #tpu.memory_space<vmem>>, vector<1x128x128xf32>
    %250 = vector.shape_cast %249 : vector<1x128x128xf32> to vector<128x128xf32>
    %cst_244 = arith.constant dense<0.000000e+00> : vector<1x128xf32>
    %251 = tpu.matmul %248, %250, %cst_244 {dimension_numbers = #tpu.dot_dimension_numbers<[1], [0], [0], [1], [0, 0, 1, 1], [], []>} : vector<1x128xf32>, vector<128x128xf32>, vector<1x128xf32> -> vector<1x128xf32>
    %252 = arith.addf %243, %251 : vector<1x128xf32>
    %c5_i32 = arith.constant 5 : i32
    %253 = vector.broadcast %c5_i32 : i32 to vector<1x10xi32>
    %254 = arith.cmpi eq, %206, %253 : vector<1x10xi32>
    %255 = arith.extui %254 : vector<1x10xi1> to vector<1x10xi32>
    %256 = arith.sitofp %255 : vector<1x10xi32> to vector<1x10xf32>
    %cst_245 = arith.constant dense<0.000000e+00> : vector<1x128xf32>
    %257 = tpu.matmul %256, %205, %cst_245 {dimension_numbers = #tpu.dot_dimension_numbers<[1], [0], [0], [1], [0, 0, 1, 1], [], []>} : vector<1x10xf32>, vector<10x128xf32>, vector<1x128xf32> -> vector<1x128xf32>
    %c5_246 = arith.constant 5 : index
    %c0_247 = arith.constant 0 : index
    %c0_248 = arith.constant 0 : index
    %258 = vector.load %arg9[%c5_246, %c0_247, %c0_248] : memref<10x128x128xf32, #tpu.memory_space<vmem>>, vector<1x128x128xf32>
    %259 = vector.shape_cast %258 : vector<1x128x128xf32> to vector<128x128xf32>
    %cst_249 = arith.constant dense<0.000000e+00> : vector<1x128xf32>
    %260 = tpu.matmul %257, %259, %cst_249 {dimension_numbers = #tpu.dot_dimension_numbers<[1], [0], [0], [1], [0, 0, 1, 1], [], []>} : vector<1x128xf32>, vector<128x128xf32>, vector<1x128xf32> -> vector<1x128xf32>
    %261 = arith.addf %252, %260 : vector<1x128xf32>
    %c6_i32 = arith.constant 6 : i32
    %262 = vector.broadcast %c6_i32 : i32 to vector<1x10xi32>
    %263 = arith.cmpi eq, %206, %262 : vector<1x10xi32>
    %264 = arith.extui %263 : vector<1x10xi1> to vector<1x10xi32>
    %265 = arith.sitofp %264 : vector<1x10xi32> to vector<1x10xf32>
    %cst_250 = arith.constant dense<0.000000e+00> : vector<1x128xf32>
    %266 = tpu.matmul %265, %205, %cst_250 {dimension_numbers = #tpu.dot_dimension_numbers<[1], [0], [0], [1], [0, 0, 1, 1], [], []>} : vector<1x10xf32>, vector<10x128xf32>, vector<1x128xf32> -> vector<1x128xf32>
    %c6_251 = arith.constant 6 : index
    %c0_252 = arith.constant 0 : index
    %c0_253 = arith.constant 0 : index
    %267 = vector.load %arg9[%c6_251, %c0_252, %c0_253] : memref<10x128x128xf32, #tpu.memory_space<vmem>>, vector<1x128x128xf32>
    %268 = vector.shape_cast %267 : vector<1x128x128xf32> to vector<128x128xf32>
    %cst_254 = arith.constant dense<0.000000e+00> : vector<1x128xf32>
    %269 = tpu.matmul %266, %268, %cst_254 {dimension_numbers = #tpu.dot_dimension_numbers<[1], [0], [0], [1], [0, 0, 1, 1], [], []>} : vector<1x128xf32>, vector<128x128xf32>, vector<1x128xf32> -> vector<1x128xf32>
    %270 = arith.addf %261, %269 : vector<1x128xf32>
    %c7_i32 = arith.constant 7 : i32
    %271 = vector.broadcast %c7_i32 : i32 to vector<1x10xi32>
    %272 = arith.cmpi eq, %206, %271 : vector<1x10xi32>
    %273 = arith.extui %272 : vector<1x10xi1> to vector<1x10xi32>
    %274 = arith.sitofp %273 : vector<1x10xi32> to vector<1x10xf32>
    %cst_255 = arith.constant dense<0.000000e+00> : vector<1x128xf32>
    %275 = tpu.matmul %274, %205, %cst_255 {dimension_numbers = #tpu.dot_dimension_numbers<[1], [0], [0], [1], [0, 0, 1, 1], [], []>} : vector<1x10xf32>, vector<10x128xf32>, vector<1x128xf32> -> vector<1x128xf32>
    %c7_256 = arith.constant 7 : index
    %c0_257 = arith.constant 0 : index
    %c0_258 = arith.constant 0 : index
    %276 = vector.load %arg9[%c7_256, %c0_257, %c0_258] : memref<10x128x128xf32, #tpu.memory_space<vmem>>, vector<1x128x128xf32>
    %277 = vector.shape_cast %276 : vector<1x128x128xf32> to vector<128x128xf32>
    %cst_259 = arith.constant dense<0.000000e+00> : vector<1x128xf32>
    %278 = tpu.matmul %275, %277, %cst_259 {dimension_numbers = #tpu.dot_dimension_numbers<[1], [0], [0], [1], [0, 0, 1, 1], [], []>} : vector<1x128xf32>, vector<128x128xf32>, vector<1x128xf32> -> vector<1x128xf32>
    %279 = arith.addf %270, %278 : vector<1x128xf32>
    %c8_i32 = arith.constant 8 : i32
    %280 = vector.broadcast %c8_i32 : i32 to vector<1x10xi32>
    %281 = arith.cmpi eq, %206, %280 : vector<1x10xi32>
    %282 = arith.extui %281 : vector<1x10xi1> to vector<1x10xi32>
    %283 = arith.sitofp %282 : vector<1x10xi32> to vector<1x10xf32>
    %cst_260 = arith.constant dense<0.000000e+00> : vector<1x128xf32>
    %284 = tpu.matmul %283, %205, %cst_260 {dimension_numbers = #tpu.dot_dimension_numbers<[1], [0], [0], [1], [0, 0, 1, 1], [], []>} : vector<1x10xf32>, vector<10x128xf32>, vector<1x128xf32> -> vector<1x128xf32>
    %c8_261 = arith.constant 8 : index
    %c0_262 = arith.constant 0 : index
    %c0_263 = arith.constant 0 : index
    %285 = vector.load %arg9[%c8_261, %c0_262, %c0_263] : memref<10x128x128xf32, #tpu.memory_space<vmem>>, vector<1x128x128xf32>
    %286 = vector.shape_cast %285 : vector<1x128x128xf32> to vector<128x128xf32>
    %cst_264 = arith.constant dense<0.000000e+00> : vector<1x128xf32>
    %287 = tpu.matmul %284, %286, %cst_264 {dimension_numbers = #tpu.dot_dimension_numbers<[1], [0], [0], [1], [0, 0, 1, 1], [], []>} : vector<1x128xf32>, vector<128x128xf32>, vector<1x128xf32> -> vector<1x128xf32>
    %288 = arith.addf %279, %287 : vector<1x128xf32>
    %c9_i32 = arith.constant 9 : i32
    %289 = vector.broadcast %c9_i32 : i32 to vector<1x10xi32>
    %290 = arith.cmpi eq, %206, %289 : vector<1x10xi32>
    %291 = arith.extui %290 : vector<1x10xi1> to vector<1x10xi32>
    %292 = arith.sitofp %291 : vector<1x10xi32> to vector<1x10xf32>
    %cst_265 = arith.constant dense<0.000000e+00> : vector<1x128xf32>
    %293 = tpu.matmul %292, %205, %cst_265 {dimension_numbers = #tpu.dot_dimension_numbers<[1], [0], [0], [1], [0, 0, 1, 1], [], []>} : vector<1x10xf32>, vector<10x128xf32>, vector<1x128xf32> -> vector<1x128xf32>
    %c9 = arith.constant 9 : index
    %c0_266 = arith.constant 0 : index
    %c0_267 = arith.constant 0 : index
    %294 = vector.load %arg9[%c9, %c0_266, %c0_267] : memref<10x128x128xf32, #tpu.memory_space<vmem>>, vector<1x128x128xf32>
    %295 = vector.shape_cast %294 : vector<1x128x128xf32> to vector<128x128xf32>
    %cst_268 = arith.constant dense<0.000000e+00> : vector<1x128xf32>
    %296 = tpu.matmul %293, %295, %cst_268 {dimension_numbers = #tpu.dot_dimension_numbers<[1], [0], [0], [1], [0, 0, 1, 1], [], []>} : vector<1x128xf32>, vector<128x128xf32>, vector<1x128xf32> -> vector<1x128xf32>
    %297 = arith.addf %288, %296 : vector<1x128xf32>
    %298 = math.tanh %297 : vector<1x128xf32>
    %c0_269 = arith.constant 0 : index
    %c0_270 = arith.constant 0 : index
    %299 = vector.load %arg11[%c0_269, %c0_270] : memref<128x128xf32, #tpu.memory_space<vmem>>, vector<128x128xf32>
    %cst_271 = arith.constant dense<0.000000e+00> : vector<1x128xf32>
    %300 = tpu.matmul %298, %299, %cst_271 {dimension_numbers = #tpu.dot_dimension_numbers<[1], [0], [0], [1], [0, 0, 1, 1], [], []>} : vector<1x128xf32>, vector<128x128xf32>, vector<1x128xf32> -> vector<1x128xf32>
    %c0_272 = arith.constant 0 : index
    %c0_273 = arith.constant 0 : index
    %301 = vector.load %arg12[%c0_272, %c0_273] : memref<1x128xf32, #tpu.memory_space<vmem>>, vector<1x128xf32>
    %302 = arith.addf %300, %301 : vector<1x128xf32>
    %303 = math.tanh %302 : vector<1x128xf32>
    %c0_274 = arith.constant 0 : index
    %c0_275 = arith.constant 0 : index
    %304 = vector.load %arg13[%c0_274, %c0_275] : memref<128x128xf32, #tpu.memory_space<vmem>>, vector<128x128xf32>
    %cst_276 = arith.constant dense<0.000000e+00> : vector<1x128xf32>
    %305 = tpu.matmul %303, %304, %cst_276 {dimension_numbers = #tpu.dot_dimension_numbers<[1], [0], [0], [1], [0, 0, 1, 1], [], []>} : vector<1x128xf32>, vector<128x128xf32>, vector<1x128xf32> -> vector<1x128xf32>
    %c0_277 = arith.constant 0 : index
    %c0_278 = arith.constant 0 : index
    %306 = vector.load %arg14[%c0_277, %c0_278] : memref<1x128xf32, #tpu.memory_space<vmem>>, vector<1x128xf32>
    %307 = arith.addf %305, %306 : vector<1x128xf32>
    %c0_279 = arith.constant 0 : index
    %c0_280 = arith.constant 0 : index
    %308 = vector.load %arg15[%c0_279, %c0_280] : memref<128x128xf32, #tpu.memory_space<vmem>>, vector<128x128xf32>
    %cst_281 = arith.constant dense<0.000000e+00> : vector<1x128xf32>
    %309 = tpu.matmul %298, %308, %cst_281 {dimension_numbers = #tpu.dot_dimension_numbers<[1], [0], [0], [1], [0, 0, 1, 1], [], []>} : vector<1x128xf32>, vector<128x128xf32>, vector<1x128xf32> -> vector<1x128xf32>
    %c0_282 = arith.constant 0 : index
    %c0_283 = arith.constant 0 : index
    %310 = vector.load %arg16[%c0_282, %c0_283] : memref<1x128xf32, #tpu.memory_space<vmem>>, vector<1x128xf32>
    %311 = arith.addf %309, %310 : vector<1x128xf32>
    %312 = math.tanh %311 : vector<1x128xf32>
    %c0_284 = arith.constant 0 : index
    %c0_285 = arith.constant 0 : index
    %313 = vector.load %arg17[%c0_284, %c0_285] : memref<128x128xf32, #tpu.memory_space<vmem>>, vector<128x128xf32>
    %cst_286 = arith.constant dense<0.000000e+00> : vector<1x128xf32>
    %314 = tpu.matmul %312, %313, %cst_286 {dimension_numbers = #tpu.dot_dimension_numbers<[1], [0], [0], [1], [0, 0, 1, 1], [], []>} : vector<1x128xf32>, vector<128x128xf32>, vector<1x128xf32> -> vector<1x128xf32>
    %c0_287 = arith.constant 0 : index
    %c0_288 = arith.constant 0 : index
    %315 = vector.load %arg18[%c0_287, %c0_288] : memref<1x128xf32, #tpu.memory_space<vmem>>, vector<1x128xf32>
    %316 = arith.addf %314, %315 : vector<1x128xf32>
    %317 = vector.extract_strided_slice %307 {offsets = [0, 0], sizes = [1, 1], strides = [1, 1]} : vector<1x128xf32> to vector<1x1xf32>
    %318 = vector.broadcast %317 : vector<1x1xf32> to vector<1x128xf32>
    %319 = arith.addf %316, %318 : vector<1x128xf32>
    %c0_289 = arith.constant 0 : index
    %c0_290 = arith.constant 0 : index
    %c0_291 = arith.constant 0 : index
    %320 = vector.load %arg19[%c0_289, %c0_290, %c0_291] : memref<1x1x128xf32, #tpu.memory_space<vmem>>, vector<1x1x128xf32>
    %321 = vector.shape_cast %320 : vector<1x1x128xf32> to vector<1x128xf32>
    %322 = vector.shape_cast %319 : vector<1x128xf32> to vector<1x1x128xf32>
    tpu.vector_store %arg19[%c0_289, %c0_290, %c0_291], %322 {strides = array<i32>} : memref<1x1x128xf32, #tpu.memory_space<vmem>>, vector<1x1x128xf32>,
    return
  }
  func.func @transform_0(%arg0: i32) -> (i32, i32, i32) {
    %c0_i32 = arith.constant 0 : i32
    %c0_i32_0 = arith.constant 0 : i32
    %c0_i32_1 = arith.constant 0 : i32
    return %arg0, %c0_i32, %c0_i32_0 : i32, i32, i32
  }
  func.func @transform_1(%arg0: i32) -> (i32, i32, i32) {
    %c0_i32 = arith.constant 0 : i32
    %c0_i32_0 = arith.constant 0 : i32
    %c0_i32_1 = arith.constant 0 : i32
    %c0_i32_2 = arith.constant 0 : i32
    return %c0_i32, %c0_i32_0, %c0_i32_1 : i32, i32, i32
  }
  func.func @transform_2(%arg0: i32) -> (i32, i32, i32) {
    %c0_i32 = arith.constant 0 : i32
    %c0_i32_0 = arith.constant 0 : i32
    %c0_i32_1 = arith.constant 0 : i32
    %c0_i32_2 = arith.constant 0 : i32
    return %c0_i32, %c0_i32_0, %c0_i32_1 : i32, i32, i32
  }
  func.func @transform_3(%arg0: i32) -> (i32, i32) {
    %c0_i32 = arith.constant 0 : i32
    %c0_i32_0 = arith.constant 0 : i32
    %c0_i32_1 = arith.constant 0 : i32
    return %c0_i32, %c0_i32_0 : i32, i32
  }
  func.func @transform_4(%arg0: i32) -> (i32, i32, i32) {
    %c0_i32 = arith.constant 0 : i32
    %c0_i32_0 = arith.constant 0 : i32
    %c0_i32_1 = arith.constant 0 : i32
    %c0_i32_2 = arith.constant 0 : i32
    return %c0_i32, %c0_i32_0, %c0_i32_1 : i32, i32, i32
  }
  func.func @transform_5(%arg0: i32) -> (i32, i32) {
    %c0_i32 = arith.constant 0 : i32
    %c0_i32_0 = arith.constant 0 : i32
    %c0_i32_1 = arith.constant 0 : i32
    return %c0_i32, %c0_i32_0 : i32, i32
  }
  func.func @transform_6(%arg0: i32) -> (i32, i32, i32) {
    %c0_i32 = arith.constant 0 : i32
    %c0_i32_0 = arith.constant 0 : i32
    %c0_i32_1 = arith.constant 0 : i32
    %c0_i32_2 = arith.constant 0 : i32
    return %c0_i32, %c0_i32_0, %c0_i32_1 : i32, i32, i32
  }
  func.func @transform_7(%arg0: i32) -> (i32, i32) {
    %c0_i32 = arith.constant 0 : i32
    %c0_i32_0 = arith.constant 0 : i32
    %c0_i32_1 = arith.constant 0 : i32
    return %c0_i32, %c0_i32_0 : i32, i32
  }
  func.func @transform_8(%arg0: i32) -> (i32, i32, i32) {
    %c0_i32 = arith.constant 0 : i32
    %c0_i32_0 = arith.constant 0 : i32
    %c0_i32_1 = arith.constant 0 : i32
    %c0_i32_2 = arith.constant 0 : i32
    return %c0_i32, %c0_i32_0, %c0_i32_1 : i32, i32, i32
  }
  func.func @transform_9(%arg0: i32) -> (i32, i32) {
    %c0_i32 = arith.constant 0 : i32
    %c0_i32_0 = arith.constant 0 : i32
    %c0_i32_1 = arith.constant 0 : i32
    return %c0_i32, %c0_i32_0 : i32, i32
  }
  func.func @transform_10(%arg0: i32) -> (i32, i32) {
    %c0_i32 = arith.constant 0 : i32
    %c0_i32_0 = arith.constant 0 : i32
    %c0_i32_1 = arith.constant 0 : i32
    return %c0_i32, %c0_i32_0 : i32, i32
  }
  func.func @transform_11(%arg0: i32) -> (i32, i32) {
    %c0_i32 = arith.constant 0 : i32
    %c0_i32_0 = arith.constant 0 : i32
    %c0_i32_1 = arith.constant 0 : i32
    return %c0_i32, %c0_i32_0 : i32, i32
  }
  func.func @transform_12(%arg0: i32) -> (i32, i32) {
    %c0_i32 = arith.constant 0 : i32
    %c0_i32_0 = arith.constant 0 : i32
    %c0_i32_1 = arith.constant 0 : i32
    return %c0_i32, %c0_i32_0 : i32, i32
  }
  func.func @transform_13(%arg0: i32) -> (i32, i32) {
    %c0_i32 = arith.constant 0 : i32
    %c0_i32_0 = arith.constant 0 : i32
    %c0_i32_1 = arith.constant 0 : i32
    return %c0_i32, %c0_i32_0 : i32, i32
  }
  func.func @transform_14(%arg0: i32) -> (i32, i32) {
    %c0_i32 = arith.constant 0 : i32
    %c0_i32_0 = arith.constant 0 : i32
    %c0_i32_1 = arith.constant 0 : i32
    return %c0_i32, %c0_i32_0 : i32, i32
  }
  func.func @transform_15(%arg0: i32) -> (i32, i32) {
    %c0_i32 = arith.constant 0 : i32
    %c0_i32_0 = arith.constant 0 : i32
    %c0_i32_1 = arith.constant 0 : i32
    return %c0_i32, %c0_i32_0 : i32, i32
  }
  func.func @transform_16(%arg0: i32) -> (i32, i32) {
    %c0_i32 = arith.constant 0 : i32
    %c0_i32_0 = arith.constant 0 : i32
    %c0_i32_1 = arith.constant 0 : i32
    return %c0_i32, %c0_i32_0 : i32, i32
  }
  func.func @transform_17(%arg0: i32) -> (i32, i32) {
    %c0_i32 = arith.constant 0 : i32
    %c0_i32_0 = arith.constant 0 : i32
    %c0_i32_1 = arith.constant 0 : i32
    return %c0_i32, %c0_i32_0 : i32, i32
  }
  func.func @transform_18(%arg0: i32) -> (i32, i32, i32) {
    %c0_i32 = arith.constant 0 : i32
    %c0_i32_0 = arith.constant 0 : i32
    %c0_i32_1 = arith.constant 0 : i32
    return %arg0, %c0_i32, %c0_i32_0 : i32, i32, i32
  }
}

</mosaic_0001>

<llo_original>
// kernel: dueling_dqn_forward.1
$region0: #{dueling_dqn_forward.1}
  #allocation0 [shape = 'u32[]', space=smem, size = 0x4, offset = 0x4, fixed_abs, tag = 'smem constant byte address 0x4 - core index']
  #allocation1 [shape = 'u32[144,128]{1,0:T(1,128)}', space=vmem, size = 0x12000, scoped, tag = 'internal scratch']
  %s0 = inlined_call_operand.vmem [shape: f32[2,3,128], index: 0, kind: input, shape index: {}]
  %s1 = inlined_call_operand.hbm [shape: f32[9,128,128], index: 1, kind: input, shape index: {}]
  %s2 = inlined_call_operand.vmem [shape: f32[9,30,3], index: 2, kind: input, shape index: {}]
  %s3 = inlined_call_operand.vmem [shape: f32[30,1], index: 3, kind: input, shape index: {}]
  %s4 = inlined_call_operand.vmem [shape: f32[9,20,30], index: 4, kind: input, shape index: {}]
  %s5 = inlined_call_operand.vmem [shape: f32[20,1], index: 5, kind: input, shape index: {}]
  %s6 = inlined_call_operand.vmem [shape: f32[9,10,20], index: 6, kind: input, shape index: {}]
  %s7 = inlined_call_operand.vmem [shape: f32[10,1], index: 7, kind: input, shape index: {}]
  %s8 = inlined_call_operand.hbm [shape: f32[10,128,128], index: 8, kind: input, shape index: {}]
  %s9 = inlined_call_operand.vmem [shape: f32[1,128], index: 9, kind: input, shape index: {}]
  %s10 = inlined_call_operand.vmem [shape: f32[128,128], index: 10, kind: input, shape index: {}]
  %s11 = inlined_call_operand.hbm [shape: f32[1,128], index: 11, kind: input, shape index: {}]
  %s12 = inlined_call_operand.vmem [shape: f32[128,128], index: 12, kind: input, shape index: {}]
  %s13 = inlined_call_operand.hbm [shape: f32[1,128], index: 13, kind: input, shape index: {}]
  %s14 = inlined_call_operand.hbm [shape: f32[128,128], index: 14, kind: input, shape index: {}]
  %s15 = inlined_call_operand.hbm [shape: f32[1,128], index: 15, kind: input, shape index: {}]
  %s16 = inlined_call_operand.hbm [shape: f32[128,128], index: 16, kind: input, shape index: {}]
  %s17 = inlined_call_operand.hbm [shape: f32[1,128], index: 17, kind: input, shape index: {}]
  %s18 = inlined_call_operand.hbm [shape: f32[2,1,128], index: 18, kind: output, shape index: {}]
  %s19 = sld [smem:[#allocation0]]
  $region137: #{dueling_dqn_forward.1} parent=0
    _
  %s21 = ssub.s32 1, %s19
  %s22 = scalar_select 0, %s21, %s19
  $region1: #{dueling_dqn_forward.1} parent=0
    #allocation2 [shape = 'u8[589824]{0}', space=vmem, size = 0x90000, scoped, tag = 'input window, operand 1, single buffered']
    #allocation3 [shape = 's32[2]{0}', space=sflag, size = 0x8, scoped, tag = 'scoped memory for dueling_dqn_forward.1']
    #allocation4 [shape = 's32[2]{0}', space=sflag, size = 0x8, scoped, tag = 'scoped memory for dueling_dqn_forward.1']
    #allocation5 [shape = 'u8[655360]{0}', space=vmem, size = 0xa0000, scoped, tag = 'input window, operand 8, single buffered']
    #allocation6 [shape = 's32[1]{0}', space=sflag, size = 0x4, scoped, tag = 'scoped memory for dueling_dqn_forward.1']
    #allocation7 [shape = 'u8[512]{0}', space=vmem, size = 0x400, scoped, tag = 'input window, operand 11, single buffered']
    #allocation8 [shape = 'u8[512]{0}', space=vmem, size = 0x400, scoped, tag = 'input window, operand 13, single buffered']
    #allocation9 [shape = 's32[1]{0}', space=sflag, size = 0x4, scoped, tag = 'scoped memory for dueling_dqn_forward.1']
    #allocation10 [shape = 'u8[65536]{0}', space=vmem, size = 0x10000, scoped, tag = 'input window, operand 14, single buffered']
    #allocation11 [shape = 'u8[512]{0}', space=vmem, size = 0x400, scoped, tag = 'input window, operand 15, single buffered']
    #allocation12 [shape = 's32[1]{0}', space=sflag, size = 0x4, scoped, tag = 'scoped memory for dueling_dqn_forward.1']
    #allocation13 [shape = 'u8[65536]{0}', space=vmem, size = 0x10000, scoped, tag = 'input window, operand 16, single buffered']
    #allocation14 [shape = 'u8[512]{0}', space=vmem, size = 0x400, scoped, tag = 'input window, operand 17, single buffered']
    #allocation15 [shape = 's32[1]{0}', space=sflag, size = 0x4, scoped, tag = 'scoped memory for dueling_dqn_forward.1']
    #allocation16 [shape = 'u8[1024]{0}', space=vmem, size = 0x400, scoped, tag = 'output window, operand 0']
    %23 = vsyncpa [#allocation3], 0
    %24 = vsyncpa [#allocation6], 0
    %25 = vsyncpa [#allocation9], 0
    %26 = vsyncpa [#allocation12], 0
    %27 = vsyncpa [#allocation15], 0
    %28 = vsyncpa [#allocation4], 0
    %s29 = scalar_lea.sflag [#allocation4], 1
    %30 = vsyncpa %s29, 0
    loop: start=0, step=1, limit=4
    $region2: #{dueling_dqn_forward.1} parent=1 // loop_pre_header
      _
    $region3: #{dueling_dqn_forward.1} parent=1 // loop_header
      %s32 = sphi 0, %s36
      %p33 = scmp.ge.s32.totalorder %s32, 4
      %s42 = sphi 0, %s44
      %s45 = sphi 0, %s42
      %s46 = sphi 0, %s45
      %s62 = sphi 0, %s46
      %s66 = sphi 0, %s66
      %s68 = sphi 0, %s66
      %s69 = sphi 0, %s68
      %s83 = sphi 0, %s69
      %s87 = sphi 0, %s87
      %s89 = sphi 0, %s87
      %s90 = sphi 0, %s89
      %s104 = sphi 0, %s90
      %s108 = sphi 0, %s108
      %s110 = sphi 0, %s108
      %s111 = sphi 0, %s110
      %s125 = sphi 0, %s111
      %s129 = sphi 0, %s129
      %s131 = sphi 0, %s129
      %s132 = sphi 0, %s131
      %s146 = sphi 0, %s132
      %s150 = sphi 0, %s150
      %s152 = sphi 0, %s150
      %s153 = sphi 0, %s152
      %s167 = sphi 0, %s153
      %s171 = sphi 0, %s171
      %s173 = sphi 0, %s171
      %s174 = sphi 0, %s173
      %s188 = sphi 0, %s174
      %s192 = sphi 0, %s192
      %s194 = sphi 0, %s192
      %s195 = sphi 0, %s194
      %s209 = sphi 0, %s195
      %s213 = sphi 0, %s213
      %s215 = sphi 0, %s213
      %s216 = sphi 0, %s215
      %s230 = sphi 0, %s216
      %s234 = sphi 0, %s234
      %s236 = sphi 0, %s234
      %s237 = sphi 0, %s236
      %s251 = sphi 0, %s237
      %s255 = sphi 0, %s255
      %s257 = sphi 0, %s255
      %s258 = sphi 0, %s257
      %s272 = sphi 0, %s258
      %s276 = sphi 0, %s276
      %s278 = sphi 0, %s276
      %s279 = sphi 0, %s278
      %s293 = sphi 0, %s279
      %s297 = sphi 0, %s297
      %s299 = sphi 0, %s297
      %s300 = sphi 0, %s299
      %s314 = sphi 0, %s300
      %s318 = sphi 0, %s318
      %s320 = sphi 0, %s318
      %s321 = sphi 0, %s320
      %s335 = sphi 0, %s321
      %s339 = sphi 0, %s339
      %s341 = sphi 0, %s339
      %s342 = sphi 0, %s341
      %s356 = sphi 0, %s342
      %s360 = sphi 0, %s360
      %s362 = sphi 0, %s360
      %s363 = sphi 0, %s362
      %s377 = sphi 0, %s363
      %s381 = sphi 0, %s381
      %s383 = sphi 0, %s381
      %s384 = sphi 0, %s383
      %s398 = sphi 0, %s384
      %s402 = sphi 0, %s402
      %s404 = sphi 0, %s402
      %s405 = sphi 0, %s404
      %s419 = sphi 0, %s405
      %s425 = sphi 0, %s427
      %s428 = sphi 0, %s425
      %s429 = sphi 0, %s428
      %s445 = sphi 0, %s429
    $region4: #{dueling_dqn_forward.1} parent=1 // loop_header_branch
      %35 = sbr.rel (%p33) target = $region8
    $region5: #{dueling_dqn_forward.1} parent=1 // loop_body
      %s37 = ssub.s32 %s32, 1
      %s38 = ssub.s32 %s32, 2
      %s39 = sadd.s32 %s32, 1
      %s40 = ssub.s32 %s32, %s39
      %p41 = scmp.eq.s32.totalorder %s40, 0
      %s43 = sadd.s32 %s42, 1
      %s44 = scalar_select %p41, %s42, %s43
      %p47 = pneg %p41
      %p48 = scmp.eq.s32.totalorder %s32, 1
      %p49 = por %p47, %p48
      %p50 = scmp.ne.s32.totalorder %s42, %s45
      %p51 = scmp.eq.s32.totalorder %s32, 0
      %p52 = por %p50, %p51
      %p53 = scmp.ne.s32.totalorder %s42, %s45
      %p54 = scmp.eq.s32.totalorder %s37, 1
      %p55 = por %p53, %p54
      %p56 = scmp.ne.s32.totalorder %s45, %s46
      %p57 = scmp.eq.s32.totalorder %s37, 0
      %p58 = por %p56, %p57
      %p59 = scmp.ne.s32.totalorder %s45, %s46
      %p60 = scmp.eq.s32.totalorder %s38, 1
      %p61 = por %p59, %p60
      %p63 = scmp.ne.s32.totalorder %s46, %s62
      %p64 = scmp.eq.s32.totalorder %s38, 0
      %p65 = por %p63, %p64
      %s67 = sadd.s32 %s66, 1
      %p70 = scmp.eq.s32.totalorder %s32, 1
      %p71 = scmp.ne.s32.totalorder %s66, %s68
      %p72 = scmp.eq.s32.totalorder %s32, 0
      %p73 = por %p71, %p72
      %p74 = scmp.ne.s32.totalorder %s66, %s68
      %p75 = scmp.eq.s32.totalorder %s37, 1
      %p76 = por %p74, %p75
      %p77 = scmp.ne.s32.totalorder %s68, %s69
      %p78 = scmp.eq.s32.totalorder %s37, 0
      %p79 = por %p77, %p78
      %p80 = scmp.ne.s32.totalorder %s68, %s69
      %p81 = scmp.eq.s32.totalorder %s38, 1
      %p82 = por %p80, %p81
      %p84 = scmp.ne.s32.totalorder %s69, %s83
      %p85 = scmp.eq.s32.totalorder %s38, 0
      %p86 = por %p84, %p85
      %s88 = sadd.s32 %s87, 1
      %p91 = scmp.eq.s32.totalorder %s32, 1
      %p92 = scmp.ne.s32.totalorder %s87, %s89
      %p93 = scmp.eq.s32.totalorder %s32, 0
      %p94 = por %p92, %p93
      %p95 = scmp.ne.s32.totalorder %s87, %s89
      %p96 = scmp.eq.s32.totalorder %s37, 1
      %p97 = por %p95, %p96
      %p98 = scmp.ne.s32.totalorder %s89, %s90
      %p99 = scmp.eq.s32.totalorder %s37, 0
      %p100 = por %p98, %p99
      %p101 = scmp.ne.s32.totalorder %s89, %s90
      %p102 = scmp.eq.s32.totalorder %s38, 1
      %p103 = por %p101, %p102
      %p105 = scmp.ne.s32.totalorder %s90, %s104
      %p106 = scmp.eq.s32.totalorder %s38, 0
      %p107 = por %p105, %p106
      %s109 = sadd.s32 %s108, 1
      %p112 = scmp.eq.s32.totalorder %s32, 1
      %p113 = scmp.ne.s32.totalorder %s108, %s110
      %p114 = scmp.eq.s32.totalorder %s32, 0
      %p115 = por %p113, %p114
      %p116 = scmp.ne.s32.totalorder %s108, %s110
      %p117 = scmp.eq.s32.totalorder %s37, 1
      %p118 = por %p116, %p117
      %p119 = scmp.ne.s32.totalorder %s110, %s111
      %p120 = scmp.eq.s32.totalorder %s37, 0
      %p121 = por %p119, %p120
      %p122 = scmp.ne.s32.totalorder %s110, %s111
      %p123 = scmp.eq.s32.totalorder %s38, 1
      %p124 = por %p122, %p123
      %p126 = scmp.ne.s32.totalorder %s111, %s125
      %p127 = scmp.eq.s32.totalorder %s38, 0
      %p128 = por %p126, %p127
      %s130 = sadd.s32 %s129, 1
      %p133 = scmp.eq.s32.totalorder %s32, 1
      %p134 = scmp.ne.s32.totalorder %s129, %s131
      %p135 = scmp.eq.s32.totalorder %s32, 0
      %p136 = por %p134, %p135
      %p137 = scmp.ne.s32.totalorder %s129, %s131
      %p138 = scmp.eq.s32.totalorder %s37, 1
      %p139 = por %p137, %p138
      %p140 = scmp.ne.s32.totalorder %s131, %s132
      %p141 = scmp.eq.s32.totalorder %s37, 0
      %p142 = por %p140, %p141
      %p143 = scmp.ne.s32.totalorder %s131, %s132
      %p144 = scmp.eq.s32.totalorder %s38, 1
      %p145 = por %p143, %p144
      %p147 = scmp.ne.s32.totalorder %s132, %s146
      %p148 = scmp.eq.s32.totalorder %s38, 0
      %p149 = por %p147, %p148
      %s151 = sadd.s32 %s150, 1
      %p154 = scmp.eq.s32.totalorder %s32, 1
      %p155 = scmp.ne.s32.totalorder %s150, %s152
      %p156 = scmp.eq.s32.totalorder %s32, 0
      %p157 = por %p155, %p156
      %p158 = scmp.ne.s32.totalorder %s150, %s152
      %p159 = scmp.eq.s32.totalorder %s37, 1
      %p160 = por %p158, %p159
      %p161 = scmp.ne.s32.totalorder %s152, %s153
      %p162 = scmp.eq.s32.totalorder %s37, 0
      %p163 = por %p161, %p162
      %p164 = scmp.ne.s32.totalorder %s152, %s153
      %p165 = scmp.eq.s32.totalorder %s38, 1
      %p166 = por %p164, %p165
      %p168 = scmp.ne.s32.totalorder %s153, %s167
      %p169 = scmp.eq.s32.totalorder %s38, 0
      %p170 = por %p168, %p169
      %s172 = sadd.s32 %s171, 1
      %p175 = scmp.eq.s32.totalorder %s32, 1
      %p176 = scmp.ne.s32.totalorder %s171, %s173
      %p177 = scmp.eq.s32.totalorder %s32, 0
      %p178 = por %p176, %p177
      %p179 = scmp.ne.s32.totalorder %s171, %s173
      %p180 = scmp.eq.s32.totalorder %s37, 1
      %p181 = por %p179, %p180
      %p182 = scmp.ne.s32.totalorder %s173, %s174
      %p183 = scmp.eq.s32.totalorder %s37, 0
      %p184 = por %p182, %p183
      %p185 = scmp.ne.s32.totalorder %s173, %s174
      %p186 = scmp.eq.s32.totalorder %s38, 1
      %p187 = por %p185, %p186
      %p189 = scmp.ne.s32.totalorder %s174, %s188
      %p190 = scmp.eq.s32.totalorder %s38, 0
      %p191 = por %p189, %p190
      %s193 = sadd.s32 %s192, 1
      %p196 = scmp.eq.s32.totalorder %s32, 1
      %p197 = scmp.ne.s32.totalorder %s192, %s194
      %p198 = scmp.eq.s32.totalorder %s32, 0
      %p199 = por %p197, %p198
      %p200 = scmp.ne.s32.totalorder %s192, %s194
      %p201 = scmp.eq.s32.totalorder %s37, 1
      %p202 = por %p200, %p201
      %p203 = scmp.ne.s32.totalorder %s194, %s195
      %p204 = scmp.eq.s32.totalorder %s37, 0
      %p205 = por %p203, %p204
      %p206 = scmp.ne.s32.totalorder %s194, %s195
      %p207 = scmp.eq.s32.totalorder %s38, 1
      %p208 = por %p206, %p207
      %p210 = scmp.ne.s32.totalorder %s195, %s209
      %p211 = scmp.eq.s32.totalorder %s38, 0
      %p212 = por %p210, %p211
      %s214 = sadd.s32 %s213, 1
      %p217 = scmp.eq.s32.totalorder %s32, 1
      %p218 = scmp.ne.s32.totalorder %s213, %s215
      %p219 = scmp.eq.s32.totalorder %s32, 0
      %p220 = por %p218, %p219
      %p221 = scmp.ne.s32.totalorder %s213, %s215
      %p222 = scmp.eq.s32.totalorder %s37, 1
      %p223 = por %p221, %p222
      %p224 = scmp.ne.s32.totalorder %s215, %s216
      %p225 = scmp.eq.s32.totalorder %s37, 0
      %p226 = por %p224, %p225
      %p227 = scmp.ne.s32.totalorder %s215, %s216
      %p228 = scmp.eq.s32.totalorder %s38, 1
      %p229 = por %p227, %p228
      %p231 = scmp.ne.s32.totalorder %s216, %s230
      %p232 = scmp.eq.s32.totalorder %s38, 0
      %p233 = por %p231, %p232
      %s235 = sadd.s32 %s234, 1
      %p238 = scmp.eq.s32.totalorder %s32, 1
      %p239 = scmp.ne.s32.totalorder %s234, %s236
      %p240 = scmp.eq.s32.totalorder %s32, 0
      %p241 = por %p239, %p240
      %p242 = scmp.ne.s32.totalorder %s234, %s236
      %p243 = scmp.eq.s32.totalorder %s37, 1
      %p244 = por %p242, %p243
      %p245 = scmp.ne.s32.totalorder %s236, %s237
      %p246 = scmp.eq.s32.totalorder %s37, 0
      %p247 = por %p245, %p246
      %p248 = scmp.ne.s32.totalorder %s236, %s237
      %p249 = scmp.eq.s32.totalorder %s38, 1
      %p250 = por %p248, %p249
      %p252 = scmp.ne.s32.totalorder %s237, %s251
      %p253 = scmp.eq.s32.totalorder %s38, 0
      %p254 = por %p252, %p253
      %s256 = sadd.s32 %s255, 1
      %p259 = scmp.eq.s32.totalorder %s32, 1
      %p260 = scmp.ne.s32.totalorder %s255, %s257
      %p261 = scmp.eq.s32.totalorder %s32, 0
      %p262 = por %p260, %p261
      %p263 = scmp.ne.s32.totalorder %s255, %s257
      %p264 = scmp.eq.s32.totalorder %s37, 1
      %p265 = por %p263, %p264
      %p266 = scmp.ne.s32.totalorder %s257, %s258
      %p267 = scmp.eq.s32.totalorder %s37, 0
      %p268 = por %p266, %p267
      %p269 = scmp.ne.s32.totalorder %s257, %s258
      %p270 = scmp.eq.s32.totalorder %s38, 1
      %p271 = por %p269, %p270
      %p273 = scmp.ne.s32.totalorder %s258, %s272
      %p274 = scmp.eq.s32.totalorder %s38, 0
      %p275 = por %p273, %p274
      %s277 = sadd.s32 %s276, 1
      %p280 = scmp.eq.s32.totalorder %s32, 1
      %p281 = scmp.ne.s32.totalorder %s276, %s278
      %p282 = scmp.eq.s32.totalorder %s32, 0
      %p283 = por %p281, %p282
      %p284 = scmp.ne.s32.totalorder %s276, %s278
      %p285 = scmp.eq.s32.totalorder %s37, 1
      %p286 = por %p284, %p285
      %p287 = scmp.ne.s32.totalorder %s278, %s279
      %p288 = scmp.eq.s32.totalorder %s37, 0
      %p289 = por %p287, %p288
      %p290 = scmp.ne.s32.totalorder %s278, %s279
      %p291 = scmp.eq.s32.totalorder %s38, 1
      %p292 = por %p290, %p291
      %p294 = scmp.ne.s32.totalorder %s279, %s293
      %p295 = scmp.eq.s32.totalorder %s38, 0
      %p296 = por %p294, %p295
      %s298 = sadd.s32 %s297, 1
      %p301 = scmp.eq.s32.totalorder %s32, 1
      %p302 = scmp.ne.s32.totalorder %s297, %s299
      %p303 = scmp.eq.s32.totalorder %s32, 0
      %p304 = por %p302, %p303
      %p305 = scmp.ne.s32.totalorder %s297, %s299
      %p306 = scmp.eq.s32.totalorder %s37, 1
      %p307 = por %p305, %p306
      %p308 = scmp.ne.s32.totalorder %s299, %s300
      %p309 = scmp.eq.s32.totalorder %s37, 0
      %p310 = por %p308, %p309
      %p311 = scmp.ne.s32.totalorder %s299, %s300
      %p312 = scmp.eq.s32.totalorder %s38, 1
      %p313 = por %p311, %p312
      %p315 = scmp.ne.s32.totalorder %s300, %s314
      %p316 = scmp.eq.s32.totalorder %s38, 0
      %p317 = por %p315, %p316
      %s319 = sadd.s32 %s318, 1
      %p322 = scmp.eq.s32.totalorder %s32, 1
      %p323 = scmp.ne.s32.totalorder %s318, %s320
      %p324 = scmp.eq.s32.totalorder %s32, 0
      %p325 = por %p323, %p324
      %p326 = scmp.ne.s32.totalorder %s318, %s320
      %p327 = scmp.eq.s32.totalorder %s37, 1
      %p328 = por %p326, %p327
      %p329 = scmp.ne.s32.totalorder %s320, %s321
      %p330 = scmp.eq.s32.totalorder %s37, 0
      %p331 = por %p329, %p330
      %p332 = scmp.ne.s32.totalorder %s320, %s321
      %p333 = scmp.eq.s32.totalorder %s38, 1
      %p334 = por %p332, %p333
      %p336 = scmp.ne.s32.totalorder %s321, %s335
      %p337 = scmp.eq.s32.totalorder %s38, 0
      %p338 = por %p336, %p337
      %s340 = sadd.s32 %s339, 1
      %p343 = scmp.eq.s32.totalorder %s32, 1
      %p344 = scmp.ne.s32.totalorder %s339, %s341
      %p345 = scmp.eq.s32.totalorder %s32, 0
      %p346 = por %p344, %p345
      %p347 = scmp.ne.s32.totalorder %s339, %s341
      %p348 = scmp.eq.s32.totalorder %s37, 1
      %p349 = por %p347, %p348
      %p350 = scmp.ne.s32.totalorder %s341, %s342
      %p351 = scmp.eq.s32.totalorder %s37, 0
      %p352 = por %p350, %p351
      %p353 = scmp.ne.s32.totalorder %s341, %s342
      %p354 = scmp.eq.s32.totalorder %s38, 1
      %p355 = por %p353, %p354
      %p357 = scmp.ne.s32.totalorder %s342, %s356
      %p358 = scmp.eq.s32.totalorder %s38, 0
      %p359 = por %p357, %p358
      %s361 = sadd.s32 %s360, 1
      %p364 = scmp.eq.s32.totalorder %s32, 1
      %p365 = scmp.ne.s32.totalorder %s360, %s362
      %p366 = scmp.eq.s32.totalorder %s32, 0
      %p367 = por %p365, %p366
      %p368 = scmp.ne.s32.totalorder %s360, %s362
      %p369 = scmp.eq.s32.totalorder %s37, 1
      %p370 = por %p368, %p369
      %p371 = scmp.ne.s32.totalorder %s362, %s363
      %p372 = scmp.eq.s32.totalorder %s37, 0
      %p373 = por %p371, %p372
      %p374 = scmp.ne.s32.totalorder %s362, %s363
      %p375 = scmp.eq.s32.totalorder %s38, 1
      %p376 = por %p374, %p375
      %p378 = scmp.ne.s32.totalorder %s363, %s377
      %p379 = scmp.eq.s32.totalorder %s38, 0
      %p380 = por %p378, %p379
      %s382 = sadd.s32 %s381, 1
      %p385 = scmp.eq.s32.totalorder %s32, 1
      %p386 = scmp.ne.s32.totalorder %s381, %s383
      %p387 = scmp.eq.s32.totalorder %s32, 0
      %p388 = por %p386, %p387
      %p389 = scmp.ne.s32.totalorder %s381, %s383
      %p390 = scmp.eq.s32.totalorder %s37, 1
      %p391 = por %p389, %p390
      %p392 = scmp.ne.s32.totalorder %s383, %s384
      %p393 = scmp.eq.s32.totalorder %s37, 0
      %p394 = por %p392, %p393
      %p395 = scmp.ne.s32.totalorder %s383, %s384
      %p396 = scmp.eq.s32.totalorder %s38, 1
      %p397 = por %p395, %p396
      %p399 = scmp.ne.s32.totalorder %s384, %s398
      %p400 = scmp.eq.s32.totalorder %s38, 0
      %p401 = por %p399, %p400
      %s403 = sadd.s32 %s402, 1
      %p406 = scmp.eq.s32.totalorder %s32, 1
      %p407 = scmp.ne.s32.totalorder %s402, %s404
      %p408 = scmp.eq.s32.totalorder %s32, 0
      %p409 = por %p407, %p408
      %p410 = scmp.ne.s32.totalorder %s402, %s404
      %p411 = scmp.eq.s32.totalorder %s37, 1
      %p412 = por %p410, %p411
      %p413 = scmp.ne.s32.totalorder %s404, %s405
      %p414 = scmp.eq.s32.totalorder %s37, 0
      %p415 = por %p413, %p414
      %p416 = scmp.ne.s32.totalorder %s404, %s405
      %p417 = scmp.eq.s32.totalorder %s38, 1
      %p418 = por %p416, %p417
      %p420 = scmp.ne.s32.totalorder %s405, %s419
      %p421 = scmp.eq.s32.totalorder %s38, 0
      %p422 = por %p420, %p421
      %s423 = ssub.s32 %s32, %s39
      %p424 = scmp.eq.s32.totalorder %s423, 0
      %s426 = sadd.s32 %s425, 1
      %s427 = scalar_select %p424, %s425, %s426
      %p430 = pneg %p424
      %p431 = scmp.eq.s32.totalorder %s32, 1
      %p432 = por %p430, %p431
      %p433 = scmp.ne.s32.totalorder %s425, %s428
      %p434 = scmp.eq.s32.totalorder %s32, 0
      %p435 = por %p433, %p434
      %p436 = scmp.ne.s32.totalorder %s425, %s428
      %p437 = scmp.eq.s32.totalorder %s37, 1
      %p438 = por %p436, %p437
      %p439 = scmp.ne.s32.totalorder %s428, %s429
      %p440 = scmp.eq.s32.totalorder %s37, 0
      %p441 = por %p439, %p440
      %p442 = scmp.ne.s32.totalorder %s428, %s429
      %p443 = scmp.eq.s32.totalorder %s38, 1
      %p444 = por %p442, %p443
      %p446 = scmp.ne.s32.totalorder %s429, %s445
      %p447 = scmp.eq.s32.totalorder %s38, 0
      %p448 = por %p446, %p447
      %p449 = scmp.le.s32.totalorder 1, %s32
      %p450 = scmp.lt.s32.totalorder %s32, 3
      %p451 = pnand %p449, %p450
      %p452 = pneg %p451
      // Predicated region
      $region9: #{dueling_dqn_forward.1} parent=5 // pred_check
        _
      $region10: #{dueling_dqn_forward.1} parent=5 // pred_check_branch
        %454 = sbr.rel (%p451) target = $region12
      $region11: #{dueling_dqn_forward.1} parent=5 // pred_region
        %s455 = ssub.s32 %s32, 1
        // Predicated region
        $region13: #{dueling_dqn_forward.1} parent=11 // pred_check
          %p456 = pneg %p79
        $region14: #{dueling_dqn_forward.1} parent=11 // pred_check_branch
          %458 = sbr.rel (%p456) target = $region16
        $region15: #{dueling_dqn_forward.1} parent=11 // pred_region
          %s460 = ssub.s32 18432, 18432
          %461 = vsyncadd [#allocation3], %s460
          %s462 = sshll.u32 [#allocation2], 4
          %s463 = int_to_ptr.vmem [resolvable:$true] %s462
          %468 = dma.hbm_to_vmem [thread:$0]  %s1, 18432, %s463, [#allocation3], 128, 128, 8
        $region16: #{dueling_dqn_forward.1} parent=11 // pred_fallthru
          _
        // Predicated region
        $region17: #{dueling_dqn_forward.1} parent=11 // pred_check
          %p469 = pneg %p100
        $region18: #{dueling_dqn_forward.1} parent=11 // pred_check_branch
          %471 = sbr.rel (%p469) target = $region20
        $region19: #{dueling_dqn_forward.1} parent=11 // pred_region
          _
        $region20: #{dueling_dqn_forward.1} parent=11 // pred_fallthru
          _
        // Predicated region
        $region21: #{dueling_dqn_forward.1} parent=11 // pred_check
          %p472 = pneg %p121
        $region22: #{dueling_dqn_forward.1} parent=11 // pred_check_branch
          %474 = sbr.rel (%p472) target = $region24
        $region23: #{dueling_dqn_forward.1} parent=11 // pred_region
          _
        $region24: #{dueling_dqn_forward.1} parent=11 // pred_fallthru
          _
        // Predicated region
        $region25: #{dueling_dqn_forward.1} parent=11 // pred_check
          %p475 = pneg %p142
        $region26: #{dueling_dqn_forward.1} parent=11 // pred_check_branch
          %477 = sbr.rel (%p475) target = $region28
        $region27: #{dueling_dqn_forward.1} parent=11 // pred_region
          _
        $region28: #{dueling_dqn_forward.1} parent=11 // pred_fallthru
          _
        // Predicated region
        $region29: #{dueling_dqn_forward.1} parent=11 // pred_check
          %p478 = pneg %p163
        $region30: #{dueling_dqn_forward.1} parent=11 // pred_check_branch
          %480 = sbr.rel (%p478) target = $region32
        $region31: #{dueling_dqn_forward.1} parent=11 // pred_region
          _
        $region32: #{dueling_dqn_forward.1} parent=11 // pred_fallthru
          _
        // Predicated region
        $region33: #{dueling_dqn_forward.1} parent=11 // pred_check
          %p481 = pneg %p184
        $region34: #{dueling_dqn_forward.1} parent=11 // pred_check_branch
          %483 = sbr.rel (%p481) target = $region36
        $region35: #{dueling_dqn_forward.1} parent=11 // pred_region
          _
        $region36: #{dueling_dqn_forward.1} parent=11 // pred_fallthru
          _
        // Predicated region
        $region37: #{dueling_dqn_forward.1} parent=11 // pred_check
          %p484 = pneg %p205
        $region38: #{dueling_dqn_forward.1} parent=11 // pred_check_branch
          %486 = sbr.rel (%p484) target = $region40
        $region39: #{dueling_dqn_forward.1} parent=11 // pred_region
          _
        $region40: #{dueling_dqn_forward.1} parent=11 // pred_fallthru
          _
        // Predicated region
        $region41: #{dueling_dqn_forward.1} parent=11 // pred_check
          %p487 = pneg %p226
        $region42: #{dueling_dqn_forward.1} parent=11 // pred_check_branch
          %489 = sbr.rel (%p487) target = $region44
        $region43: #{dueling_dqn_forward.1} parent=11 // pred_region
          %s491 = ssub.s32 20480, 20480
          %492 = vsyncadd [#allocation6], %s491
          %s493 = sshll.u32 [#allocation5], 4
          %s494 = int_to_ptr.vmem [resolvable:$true] %s493
          %499 = dma.hbm_to_vmem [thread:$0]  %s8, 20480, %s494, [#allocation6], 128, 128, 8
        $region44: #{dueling_dqn_forward.1} parent=11 // pred_fallthru
          _
        // Predicated region
        $region45: #{dueling_dqn_forward.1} parent=11 // pred_check
          %p500 = pneg %p247
        $region46: #{dueling_dqn_forward.1} parent=11 // pred_check_branch
          %502 = sbr.rel (%p500) target = $region48
        $region47: #{dueling_dqn_forward.1} parent=11 // pred_region
          _
        $region48: #{dueling_dqn_forward.1} parent=11 // pred_fallthru
          _
        // Predicated region
        $region49: #{dueling_dqn_forward.1} parent=11 // pred_check
          %p503 = pneg %p268
        $region50: #{dueling_dqn_forward.1} parent=11 // pred_check_branch
          %505 = sbr.rel (%p503) target = $region52
        $region51: #{dueling_dqn_forward.1} parent=11 // pred_region
          _
        $region52: #{dueling_dqn_forward.1} parent=11 // pred_fallthru
          _
        // Predicated region
        $region53: #{dueling_dqn_forward.1} parent=11 // pred_check
          %p506 = pneg %p289
        $region54: #{dueling_dqn_forward.1} parent=11 // pred_check_branch
          %508 = sbr.rel (%p506) target = $region56
        $region55: #{dueling_dqn_forward.1} parent=11 // pred_region
          %s510 = ssub.s32 16, 16
          %511 = vsyncadd [#allocation6], %s510
          %s513 = sshll.u32 [#allocation7], 4
          %s514 = int_to_ptr.vmem [resolvable:$true] %s513
          %516 = dma.hbm_to_vmem [thread:$0]  %s11, 16, %s514, [#allocation6]
        $region56: #{dueling_dqn_forward.1} parent=11 // pred_fallthru
          _
        // Predicated region
        $region57: #{dueling_dqn_forward.1} parent=11 // pred_check
          %p517 = pneg %p310
        $region58: #{dueling_dqn_forward.1} parent=11 // pred_check_branch
          %519 = sbr.rel (%p517) target = $region60
        $region59: #{dueling_dqn_forward.1} parent=11 // pred_region
          _
        $region60: #{dueling_dqn_forward.1} parent=11 // pred_fallthru
          _
        // Predicated region
        $region61: #{dueling_dqn_forward.1} parent=11 // pred_check
          %p520 = pneg %p331
        $region62: #{dueling_dqn_forward.1} parent=11 // pred_check_branch
          %522 = sbr.rel (%p520) target = $region64
        $region63: #{dueling_dqn_forward.1} parent=11 // pred_region
          %s524 = ssub.s32 16, 16
          %525 = vsyncadd [#allocation9], %s524
          %s527 = sshll.u32 [#allocation8], 4
          %s528 = int_to_ptr.vmem [resolvable:$true] %s527
          %530 = dma.hbm_to_vmem [thread:$0]  %s13, 16, %s528, [#allocation9]
        $region64: #{dueling_dqn_forward.1} parent=11 // pred_fallthru
          _
        // Predicated region
        $region65: #{dueling_dqn_forward.1} parent=11 // pred_check
          %p531 = pneg %p352
        $region66: #{dueling_dqn_forward.1} parent=11 // pred_check_branch
          %533 = sbr.rel (%p531) target = $region68
        $region67: #{dueling_dqn_forward.1} parent=11 // pred_region
          %s535 = ssub.s32 2048, 2048
          %536 = vsyncadd [#allocation9], %s535
          %s537 = sshll.u32 [#allocation10], 4
          %s538 = int_to_ptr.vmem [resolvable:$true] %s537
          %543 = dma.hbm_to_vmem [thread:$0]  %s14, 2048, %s538, [#allocation9], 128, 128, 8
        $region68: #{dueling_dqn_forward.1} parent=11 // pred_fallthru
          _
        // Predicated region
        $region69: #{dueling_dqn_forward.1} parent=11 // pred_check
          %p544 = pneg %p373
        $region70: #{dueling_dqn_forward.1} parent=11 // pred_check_branch
          %546 = sbr.rel (%p544) target = $region72
        $region71: #{dueling_dqn_forward.1} parent=11 // pred_region
          %s548 = ssub.s32 16, 16
          %549 = vsyncadd [#allocation12], %s548
          %s551 = sshll.u32 [#allocation11], 4
          %s552 = int_to_ptr.vmem [resolvable:$true] %s551
          %554 = dma.hbm_to_vmem [thread:$0]  %s15, 16, %s552, [#allocation12]
        $region72: #{dueling_dqn_forward.1} parent=11 // pred_fallthru
          _
        // Predicated region
        $region73: #{dueling_dqn_forward.1} parent=11 // pred_check
          %p555 = pneg %p394
        $region74: #{dueling_dqn_forward.1} parent=11 // pred_check_branch
          %557 = sbr.rel (%p555) target = $region76
        $region75: #{dueling_dqn_forward.1} parent=11 // pred_region
          %s559 = ssub.s32 2048, 2048
          %560 = vsyncadd [#allocation12], %s559
          %s561 = sshll.u32 [#allocation13], 4
          %s562 = int_to_ptr.vmem [resolvable:$true] %s561
          %567 = dma.hbm_to_vmem [thread:$0]  %s16, 2048, %s562, [#allocation12], 128, 128, 8
        $region76: #{dueling_dqn_forward.1} parent=11 // pred_fallthru
          _
        // Predicated region
        $region77: #{dueling_dqn_forward.1} parent=11 // pred_check
          %p568 = pneg %p415
        $region78: #{dueling_dqn_forward.1} parent=11 // pred_check_branch
          %570 = sbr.rel (%p568) target = $region80
        $region79: #{dueling_dqn_forward.1} parent=11 // pred_region
          %s572 = ssub.s32 16, 16
          %573 = vsyncadd [#allocation15], %s572
          %s575 = sshll.u32 [#allocation14], 4
          %s576 = int_to_ptr.vmem [resolvable:$true] %s575
          %578 = dma.hbm_to_vmem [thread:$0]  %s17, 16, %s576, [#allocation15]
        $region80: #{dueling_dqn_forward.1} parent=11 // pred_fallthru
          _
      $region12: #{dueling_dqn_forward.1} parent=5 // pred_fallthru
        _
      %p579 = scmp.lt.s32.totalorder %s32, 2
      // Predicated region
      $region81: #{dueling_dqn_forward.1} parent=5 // pred_check
        %p580 = pneg %p579
      $region82: #{dueling_dqn_forward.1} parent=5 // pred_check_branch
        %582 = sbr.rel (%p580) target = $region84
      $region83: #{dueling_dqn_forward.1} parent=5 // pred_region
        // Predicated region
        $region85: #{dueling_dqn_forward.1} parent=83 // pred_check
          %p583 = pneg %p52
        $region86: #{dueling_dqn_forward.1} parent=83 // pred_check_branch
          %585 = sbr.rel (%p583) target = $region88
        $region87: #{dueling_dqn_forward.1} parent=83 // pred_region
          %p586 = scmp.lt.s32.totalorder %s32, 1
          %s587 = scalar_select %p586, %s32, 1
          %s588 = smul.addr %s587, 4
          %s589 = scalar_lea.vmem %s0, %s588
        $region88: #{dueling_dqn_forward.1} parent=83 // pred_fallthru
          _
      $region84: #{dueling_dqn_forward.1} parent=5 // pred_fallthru
        _
      %p590 = scmp.le.s32.totalorder 1, %s32
      %p591 = scmp.lt.s32.totalorder %s32, 3
      %p592 = pnand %p590, %p591
      %p593 = pneg %p592
      // Predicated region
      $region89: #{dueling_dqn_forward.1} parent=5 // pred_check
        _
      $region90: #{dueling_dqn_forward.1} parent=5 // pred_check_branch
        %595 = sbr.rel (%p592) target = $region92
      $region91: #{dueling_dqn_forward.1} parent=5 // pred_region
        %s596 = ssub.s32 %s32, 1
        // Predicated region
        $region93: #{dueling_dqn_forward.1} parent=91 // pred_check
          %p597 = pneg %p79
        $region94: #{dueling_dqn_forward.1} parent=91 // pred_check_branch
          %599 = sbr.rel (%p597) target = $region96
        $region95: #{dueling_dqn_forward.1} parent=91 // pred_region
          %600 = dma.done [#allocation3], 18432
        $region96: #{dueling_dqn_forward.1} parent=91 // pred_fallthru
          _
        // Predicated region
        $region97: #{dueling_dqn_forward.1} parent=91 // pred_check
          %p601 = pneg %p226
        $region98: #{dueling_dqn_forward.1} parent=91 // pred_check_branch
          %603 = sbr.rel (%p601) target = $region100
        $region99: #{dueling_dqn_forward.1} parent=91 // pred_region
          %604 = dma.done [#allocation6], 20480
        $region100: #{dueling_dqn_forward.1} parent=91 // pred_fallthru
          _
        // Predicated region
        $region101: #{dueling_dqn_forward.1} parent=91 // pred_check
          %p605 = pneg %p289
        $region102: #{dueling_dqn_forward.1} parent=91 // pred_check_branch
          %607 = sbr.rel (%p605) target = $region104
        $region103: #{dueling_dqn_forward.1} parent=91 // pred_region
          %608 = dma.done [#allocation6], 16
        $region104: #{dueling_dqn_forward.1} parent=91 // pred_fallthru
          _
        // Predicated region
        $region105: #{dueling_dqn_forward.1} parent=91 // pred_check
          %p609 = pneg %p331
        $region106: #{dueling_dqn_forward.1} parent=91 // pred_check_branch
          %611 = sbr.rel (%p609) target = $region108
        $region107: #{dueling_dqn_forward.1} parent=91 // pred_region
          %612 = dma.done [#allocation9], 16
        $region108: #{dueling_dqn_forward.1} parent=91 // pred_fallthru
          _
        // Predicated region
        $region109: #{dueling_dqn_forward.1} parent=91 // pred_check
          %p613 = pneg %p352
        $region110: #{dueling_dqn_forward.1} parent=91 // pred_check_branch
          %615 = sbr.rel (%p613) target = $region112
        $region111: #{dueling_dqn_forward.1} parent=91 // pred_region
          %616 = dma.done [#allocation9], 2048
        $region112: #{dueling_dqn_forward.1} parent=91 // pred_fallthru
          _
        // Predicated region
        $region113: #{dueling_dqn_forward.1} parent=91 // pred_check
          %p617 = pneg %p373
        $region114: #{dueling_dqn_forward.1} parent=91 // pred_check_branch
          %619 = sbr.rel (%p617) target = $region116
        $region115: #{dueling_dqn_forward.1} parent=91 // pred_region
          %620 = dma.done [#allocation12], 16
        $region116: #{dueling_dqn_forward.1} parent=91 // pred_fallthru
          _
        // Predicated region
        $region117: #{dueling_dqn_forward.1} parent=91 // pred_check
          %p621 = pneg %p394
        $region118: #{dueling_dqn_forward.1} parent=91 // pred_check_branch
          %623 = sbr.rel (%p621) target = $region120
        $region119: #{dueling_dqn_forward.1} parent=91 // pred_region
          %624 = dma.done [#allocation12], 2048
        $region120: #{dueling_dqn_forward.1} parent=91 // pred_fallthru
          _
        // Predicated region
        $region121: #{dueling_dqn_forward.1} parent=91 // pred_check
          %p625 = pneg %p415
        $region122: #{dueling_dqn_forward.1} parent=91 // pred_check_branch
          %627 = sbr.rel (%p625) target = $region124
        $region123: #{dueling_dqn_forward.1} parent=91 // pred_region
          %628 = dma.done [#allocation15], 16
        $region124: #{dueling_dqn_forward.1} parent=91 // pred_fallthru
          _
        %p629 = scmp.lt.s32.totalorder %s37, 1
        %s630 = scalar_select %p629, %s37, 1
        %s631 = smul.addr %s630, 4
        %s632 = scalar_lea.vmem %s0, %s631
        %p633 = pneg %p58
        %p634 = pneg %p55
        %p635 = pneg %p79
        %p636 = pneg %p76
        %p637 = pneg %p100
        %p638 = pneg %p97
        %p639 = pneg %p121
        %p640 = pneg %p118
        %p641 = pneg %p142
        %p642 = pneg %p139
        %p643 = pneg %p163
        %p644 = pneg %p160
        %p645 = pneg %p184
        %p646 = pneg %p181
        %p647 = pneg %p205
        %p648 = pneg %p202
        %p649 = pneg %p226
        %p650 = pneg %p223
        %p651 = pneg %p247
        %p652 = pneg %p244
        %p653 = pneg %p268
        %p654 = pneg %p265
        %p655 = pneg %p289
        %p656 = pneg %p286
        %p657 = pneg %p310
        %p658 = pneg %p307
        %p659 = pneg %p331
        %p660 = pneg %p328
        %p661 = pneg %p352
        %p662 = pneg %p349
        %p663 = pneg %p373
        %p664 = pneg %p370
        %p665 = pneg %p394
        %p666 = pneg %p391
        %p667 = pneg %p415
        %p668 = pneg %p412
        %p669 = pneg %p441
        %p670 = pneg %p438
        %s671 = sand.u32 %s428, 1
        %s672 = scalar_lea.sflag [#allocation4], %s671
        %s673 = sand.u32 %s428, 1
        %s674 = scalar_lea.vmem [#allocation16], %s673
        %p675 = scmp.lt.s32.totalorder %s37, 1
        %s676 = scalar_select %p675, %s37, 1
        %s677 = smul.addr %s676, 4
        %s678 = scalar_lea.vmem %s0, %s677
        %v679 = vld [vmem:[%s678] sm:$0x7]
        %v680 = vld [vmem:[#allocation2] sm:$0xff]
        %v681 = vld [vmem:[#allocation2 + $0x8] sm:$0xff]
        %v682 = vld [vmem:[#allocation2 + $0x10] sm:$0xff]
        %v683 = vld [vmem:[#allocation2 + $0x18] sm:$0xff]
        %v684 = vld [vmem:[#allocation2 + $0x20] sm:$0xff]
        %v685 = vld [vmem:[#allocation2 + $0x28] sm:$0xff]
        %v686 = vld [vmem:[#allocation2 + $0x30] sm:$0xff]
        %v687 = vld [vmem:[#allocation2 + $0x38] sm:$0xff]
        %v688 = vld [vmem:[#allocation2 + $0x40] sm:$0xff]
        %v689 = vld [vmem:[#allocation2 + $0x48] sm:$0xff]
        %v690 = vld [vmem:[#allocation2 + $0x50] sm:$0xff]
        %v691 = vld [vmem:[#allocation2 + $0x58] sm:$0xff]
        %v692 = vld [vmem:[#allocation2 + $0x60] sm:$0xff]
        %v693 = vld [vmem:[#allocation2 + $0x68] sm:$0xff]
        %v694 = vld [vmem:[#allocation2 + $0x70] sm:$0xff]
        %v695 = vld [vmem:[#allocation2 + $0x78] sm:$0xff]
        %696 = vmatprep.subr.mxu0 0.0
        %697 = vmatpush1.msra.mxu0 %v680
        %698 = vmatprep.subr.mxu0 0.0
        %699 = vmatpush1.msra.mxu0 %v681
        %700 = vmatprep.subr.mxu0 0.0
        %701 = vmatpush1.msra.mxu0 %v682
        %702 = vmatprep.subr.mxu0 0.0
        %703 = vmatpush1.msra.mxu0 %v683
        %704 = vmatprep.subr.mxu0 0.0
        %705 = vmatpush1.msra.mxu0 %v684
        %706 = vmatprep.subr.mxu0 0.0
        %707 = vmatpush1.msra.mxu0 %v685
        %708 = vmatprep.subr.mxu0 0.0
        %709 = vmatpush1.msra.mxu0 %v686
        %710 = vmatprep.subr.mxu0 0.0
        %711 = vmatpush1.msra.mxu0 %v687
        %712 = vmatprep.subr.mxu0 0.0
        %713 = vmatpush1.msra.mxu0 %v688
        %714 = vmatprep.subr.mxu0 0.0
        %715 = vmatpush1.msra.mxu0 %v689
        %716 = vmatprep.subr.mxu0 0.0
        %717 = vmatpush1.msra.mxu0 %v690
        %718 = vmatprep.subr.mxu0 0.0
        %719 = vmatpush1.msra.mxu0 %v691
        %720 = vmatprep.subr.mxu0 0.0
        %721 = vmatpush1.msra.mxu0 %v692
        %722 = vmatprep.subr.mxu0 0.0
        %723 = vmatpush1.msra.mxu0 %v693
        %724 = vmatprep.subr.mxu0 0.0
        %725 = vmatpush1.msra.mxu0 %v694
        %726 = vmatprep.subr.mxu0 0.0
        %727 = vmatpush1.msra.mxu0 %v695
        %728 = vmatprep.subr.mxu0 0.0
        %729 = vmatpush1.msra.mxu0 0.0
        %730 = vmatprep.subr.mxu0 0.0
        %731 = vmatpush1.msra.mxu0 0.0
        %732 = vmatprep.subr.mxu0 0.0
        %733 = vmatpush1.msra.mxu0 0.0
        %734 = vmatprep.subr.mxu0 0.0
        %735 = vmatpush1.msra.mxu0 0.0
        %736 = vmatprep.subr.mxu0 0.0
        %737 = vmatpush1.msra.mxu0 0.0
        %738 = vmatprep.subr.mxu0 0.0
        %739 = vmatpush1.msra.mxu0 0.0
        %740 = vmatprep.subr.mxu0 0.0
        %741 = vmatpush1.msra.mxu0 0.0
        %742 = vmatprep.subr.mxu0 0.0
        %743 = vmatpush1.msra.mxu0 0.0
        %744 = vmatprep.subr.mxu0 0.0
        %745 = vmatpush1.msra.mxu0 0.0
        %746 = vmatprep.subr.mxu0 0.0
        %747 = vmatpush1.msra.mxu0 0.0
        %748 = vmatprep.subr.mxu0 0.0
        %749 = vmatpush1.msra.mxu0 0.0
        %750 = vmatprep.subr.mxu0 0.0
        %751 = vmatpush1.msra.mxu0 0.0
        %752 = vmatprep.subr.mxu0 0.0
        %753 = vmatpush1.msra.mxu0 0.0
        %754 = vmatprep.subr.mxu0 0.0
        %755 = vmatpush1.msra.mxu0 0.0
        %756 = vmatprep.subr.mxu0 0.0
        %757 = vmatpush1.msra.mxu0 0.0
        %758 = vmatprep.subr.mxu0 0.0
        %759 = vmatpush1.msra.mxu0 0.0
        %760 = vmatprep.mubr.f32.mxu0 0.0
        %761 = vmatmul.mubr.f32.gmra.mrb[0].mxu0 %v679
        %v762 = vpop.f32.mrb[0].mxu0
        %v763 = vadd.f32 0.0, %v762
        %v764 = vpop.f32.mrb[0].mxu0
        %765 = vdwg.mxu0
        %v766 = vld [vmem:[%s2] sm:$0xff]
        %v767 = vld [vmem:[%s2 + $0x8] sm:$0xff]
        %v768 = vld [vmem:[%s2 + $0x10] sm:$0xff]
        %v769 = vld [vmem:[%s2 + $0x18] sm:$0x3f]
        %s770 = scalar_lea.vmem [#allocation2], 128
        %v771 = vld [vmem:[%s770] sm:$0xff]
        %v772 = vld [vmem:[%s770 + $0x8] sm:$0xff]
        %v773 = vld [vmem:[%s770 + $0x10] sm:$0xff]
        %v774 = vld [vmem:[%s770 + $0x18] sm:$0xff]
        %v775 = vld [vmem:[%s770 + $0x20] sm:$0xff]
        %v776 = vld [vmem:[%s770 + $0x28] sm:$0xff]
        %v777 = vld [vmem:[%s770 + $0x30] sm:$0xff]
        %v778 = vld [vmem:[%s770 + $0x38] sm:$0xff]
        %v779 = vld [vmem:[%s770 + $0x40] sm:$0xff]
        %v780 = vld [vmem:[%s770 + $0x48] sm:$0xff]
        %v781 = vld [vmem:[%s770 + $0x50] sm:$0xff]
        %v782 = vld [vmem:[%s770 + $0x58] sm:$0xff]
        %v783 = vld [vmem:[%s770 + $0x60] sm:$0xff]
        %v784 = vld [vmem:[%s770 + $0x68] sm:$0xff]
        %v785 = vld [vmem:[%s770 + $0x70] sm:$0xff]
        %v786 = vld [vmem:[%s770 + $0x78] sm:$0xff]
        %787 = vmatprep.subr.mxu0 0.0
        %788 = vmatpush1.msra.mxu0 %v771
        %789 = vmatprep.subr.mxu0 0.0
        %790 = vmatpush1.msra.mxu0 %v772
        %791 = vmatprep.subr.mxu0 0.0
        %792 = vmatpush1.msra.mxu0 %v773
        %793 = vmatprep.subr.mxu0 0.0
        %794 = vmatpush1.msra.mxu0 %v774
        %795 = vmatprep.subr.mxu0 0.0
        %796 = vmatpush1.msra.mxu0 %v775
        %797 = vmatprep.subr.mxu0 0.0
        %798 = vmatpush1.msra.mxu0 %v776
        %799 = vmatprep.subr.mxu0 0.0
        %800 = vmatpush1.msra.mxu0 %v777
        %801 = vmatprep.subr.mxu0 0.0
        %802 = vmatpush1.msra.mxu0 %v778
        %803 = vmatprep.subr.mxu0 0.0
        %804 = vmatpush1.msra.mxu0 %v779
        %805 = vmatprep.subr.mxu0 0.0
        %806 = vmatpush1.msra.mxu0 %v780
        %807 = vmatprep.subr.mxu0 0.0
        %808 = vmatpush1.msra.mxu0 %v781
        %809 = vmatprep.subr.mxu0 0.0
        %810 = vmatpush1.msra.mxu0 %v782
        %811 = vmatprep.subr.mxu0 0.0
        %812 = vmatpush1.msra.mxu0 %v783
        %813 = vmatprep.subr.mxu0 0.0
        %814 = vmatpush1.msra.mxu0 %v784
        %815 = vmatprep.subr.mxu0 0.0
        %816 = vmatpush1.msra.mxu0 %v785
        %817 = vmatprep.subr.mxu0 0.0
        %818 = vmatpush1.msra.mxu0 %v786
        %819 = vmatprep.subr.mxu0 0.0
        %820 = vmatpush1.msra.mxu0 0.0
        %821 = vmatprep.subr.mxu0 0.0
        %822 = vmatpush1.msra.mxu0 0.0
        %823 = vmatprep.subr.mxu0 0.0
        %824 = vmatpush1.msra.mxu0 0.0
        %825 = vmatprep.subr.mxu0 0.0
        %826 = vmatpush1.msra.mxu0 0.0
        %827 = vmatprep.subr.mxu0 0.0
        %828 = vmatpush1.msra.mxu0 0.0
        %829 = vmatprep.subr.mxu0 0.0
        %830 = vmatpush1.msra.mxu0 0.0
        %831 = vmatprep.subr.mxu0 0.0
        %832 = vmatpush1.msra.mxu0 0.0
        %833 = vmatprep.subr.mxu0 0.0
        %834 = vmatpush1.msra.mxu0 0.0
        %835 = vmatprep.subr.mxu0 0.0
        %836 = vmatpush1.msra.mxu0 0.0
        %837 = vmatprep.subr.mxu0 0.0
        %838 = vmatpush1.msra.mxu0 0.0
        %839 = vmatprep.subr.mxu0 0.0
        %840 = vmatpush1.msra.mxu0 0.0
        %841 = vmatprep.subr.mxu0 0.0
        %842 = vmatpush1.msra.mxu0 0.0
        %843 = vmatprep.subr.mxu0 0.0
        %844 = vmatpush1.msra.mxu0 0.0
        %845 = vmatprep.subr.mxu0 0.0
        %846 = vmatpush1.msra.mxu0 0.0
        %847 = vmatprep.subr.mxu0 0.0
        %848 = vmatpush1.msra.mxu0 0.0
        %849 = vmatprep.subr.mxu0 0.0
        %850 = vmatpush1.msra.mxu0 0.0
        %851 = vmatprep.mubr.f32.mxu0 0.0
        %852 = vmatmul.mubr.f32.gmra.mrb[0].mxu0 %v679
        %v853 = vpop.f32.mrb[0].mxu0
        %v854 = vadd.f32 0.0, %v853
        %v855 = vpop.f32.mrb[0].mxu0
        %856 = vdwg.mxu0
        %s857 = scalar_lea.vmem %s2, 32
        %v858 = vld [vmem:[%s857] sm:$0xff]
        %v859 = vld [vmem:[%s857 + $0x8] sm:$0xff]
        %v860 = vld [vmem:[%s857 + $0x10] sm:$0xff]
        %v861 = vld [vmem:[%s857 + $0x18] sm:$0x3f]
        %vm862 = vcmask 23552
        %v864 = vsel %vm862, %v858, 0
        %v867 = vsel %vm862, %v859, 0
        %v870 = vsel %vm862, %v860, 0
        %v873 = vsel %vm862, %v861, 0
        %vm875 = vcmask 1042432
        %v877 = vsel %vm875, %v854, 0
        %879 = vmatprep.subr.mxu0 0.0
        %880 = vmatpush1.msra.mxu0 %v877
        %881 = vmatprep.subr.mxu0 0.0
        %882 = vmatpush1.msra.mxu0 0.0
        %883 = vmatprep.subr.mxu0 0.0
        %884 = vmatpush1.msra.mxu0 0.0
        %885 = vmatprep.subr.mxu0 0.0
        %886 = vmatpush1.msra.mxu0 0.0
        %887 = vmatprep.subr.mxu0 0.0
        %888 = vmatpush1.msra.mxu0 0.0
        %889 = vmatprep.subr.mxu0 0.0
        %890 = vmatpush1.msra.mxu0 0.0
        %891 = vmatprep.subr.mxu0 0.0
        %892 = vmatpush1.msra.mxu0 0.0
        %893 = vmatprep.subr.mxu0 0.0
        %894 = vmatpush1.msra.mxu0 0.0
        %895 = vmatprep.subr.mxu0 0.0
        %896 = vmatpush1.msra.mxu0 0.0
        %897 = vmatprep.subr.mxu0 0.0
        %898 = vmatpush1.msra.mxu0 0.0
        %899 = vmatprep.subr.mxu0 0.0
        %900 = vmatpush1.msra.mxu0 0.0
        %901 = vmatprep.subr.mxu0 0.0
        %902 = vmatpush1.msra.mxu0 0.0
        %903 = vmatprep.subr.mxu0 0.0
        %904 = vmatpush1.msra.mxu0 0.0
        %905 = vmatprep.subr.mxu0 0.0
        %906 = vmatpush1.msra.mxu0 0.0
        %907 = vmatprep.subr.mxu0 0.0
        %908 = vmatpush1.msra.mxu0 0.0
        %909 = vmatprep.subr.mxu0 0.0
        %910 = vmatpush1.msra.mxu0 0.0
        %911 = vmatprep.subr.mxu0 0.0
        %912 = vmatpush1.msra.mxu0 0.0
        %913 = vmatprep.subr.mxu0 0.0
        %914 = vmatpush1.msra.mxu0 0.0
        %915 = vmatprep.subr.mxu0 0.0
        %916 = vmatpush1.msra.mxu0 0.0
        %917 = vmatprep.subr.mxu0 0.0
        %918 = vmatpush1.msra.mxu0 0.0
        %919 = vmatprep.subr.mxu0 0.0
        %920 = vmatpush1.msra.mxu0 0.0
        %921 = vmatprep.subr.mxu0 0.0
        %922 = vmatpush1.msra.mxu0 0.0
        %923 = vmatprep.subr.mxu0 0.0
        %924 = vmatpush1.msra.mxu0 0.0
        %925 = vmatprep.subr.mxu0 0.0
        %926 = vmatpush1.msra.mxu0 0.0
        %927 = vmatprep.subr.mxu0 0.0
        %928 = vmatpush1.msra.mxu0 0.0
        %929 = vmatprep.subr.mxu0 0.0
        %930 = vmatpush1.msra.mxu0 0.0
        %931 = vmatprep.subr.mxu0 0.0
        %932 = vmatpush1.msra.mxu0 0.0
        %933 = vmatprep.subr.mxu0 0.0
        %934 = vmatpush1.msra.mxu0 0.0
        %935 = vmatprep.subr.mxu0 0.0
        %936 = vmatpush1.msra.mxu0 0.0
        %937 = vmatprep.subr.mxu0 0.0
        %938 = vmatpush1.msra.mxu0 0.0
        %939 = vmatprep.subr.mxu0 0.0
        %940 = vmatpush1.msra.mxu0 0.0
        %941 = vmatprep.subr.mxu0 0.0
        %942 = vmatpush1.msra.mxu0 0.0
        %943 = vmatprep.mubr.f32.mxu0 0.0
        %944 = vmatmul.mubr.f32.gmra.mrb[0].mxu0 %v864
        %v945 = vpop.f32.mrb[0].mxu0
        %v946 = vadd.f32 0.0, %v945
        %v947 = vpop.f32.mrb[0].mxu0
        %948 = vmatprep.mubr.f32.mxu0 0.0
        %949 = vmatmul.mubr.f32.gmra.mrb[0].mxu0 %v867
        %v950 = vpop.f32.mrb[0].mxu0
        %v951 = vadd.f32 0.0, %v950
        %v952 = vpop.f32.mrb[0].mxu0
        %953 = vmatprep.mubr.f32.mxu0 0.0
        %954 = vmatmul.mubr.f32.gmra.mrb[0].mxu0 %v870
        %v955 = vpop.f32.mrb[0].mxu0
        %v956 = vadd.f32 0.0, %v955
        %v957 = vpop.f32.mrb[0].mxu0
        %958 = vmatprep.mubr.f32.mxu0 0.0
        %959 = vmatmul.mubr.f32.gmra.mrb[0].mxu0 %v873
        %v960 = vpop.f32.mrb[0].mxu0
        %v961 = vadd.f32 0.0, %v960
        %v962 = vpop.f32.mrb[0].mxu0
        %963 = vdwg.mxu0
        %v965 = vsel %vm862, %v766, 0
        %v968 = vsel %vm862, %v767, 0
        %v971 = vsel %vm862, %v768, 0
        %v974 = vsel %vm862, %v769, 0
        %v977 = vsel %vm875, %v763, 0
        %979 = vmatprep.subr.mxu0 0.0
        %980 = vmatpush1.msra.mxu0 %v977
        %981 = vmatprep.subr.mxu0 0.0
        %982 = vmatpush1.msra.mxu0 0.0
        %983 = vmatprep.subr.mxu0 0.0
        %984 = vmatpush1.msra.mxu0 0.0
        %985 = vmatprep.subr.mxu0 0.0
        %986 = vmatpush1.msra.mxu0 0.0
        %987 = vmatprep.subr.mxu0 0.0
        %988 = vmatpush1.msra.mxu0 0.0
        %989 = vmatprep.subr.mxu0 0.0
        %990 = vmatpush1.msra.mxu0 0.0
        %991 = vmatprep.subr.mxu0 0.0
        %992 = vmatpush1.msra.mxu0 0.0
        %993 = vmatprep.subr.mxu0 0.0
        %994 = vmatpush1.msra.mxu0 0.0
        %995 = vmatprep.subr.mxu0 0.0
        %996 = vmatpush1.msra.mxu0 0.0
        %997 = vmatprep.subr.mxu0 0.0
        %998 = vmatpush1.msra.mxu0 0.0
        %999 = vmatprep.subr.mxu0 0.0
        %1000 = vmatpush1.msra.mxu0 0.0
        %1001 = vmatprep.subr.mxu0 0.0
        %1002 = vmatpush1.msra.mxu0 0.0
        %1003 = vmatprep.subr.mxu0 0.0
        %1004 = vmatpush1.msra.mxu0 0.0
        %1005 = vmatprep.subr.mxu0 0.0
        %1006 = vmatpush1.msra.mxu0 0.0
        %1007 = vmatprep.subr.mxu0 0.0
        %1008 = vmatpush1.msra.mxu0 0.0
        %1009 = vmatprep.subr.mxu0 0.0
        %1010 = vmatpush1.msra.mxu0 0.0
        %1011 = vmatprep.subr.mxu0 0.0
        %1012 = vmatpush1.msra.mxu0 0.0
        %1013 = vmatprep.subr.mxu0 0.0
        %1014 = vmatpush1.msra.mxu0 0.0
        %1015 = vmatprep.subr.mxu0 0.0
        %1016 = vmatpush1.msra.mxu0 0.0
        %1017 = vmatprep.subr.mxu0 0.0
        %1018 = vmatpush1.msra.mxu0 0.0
        %1019 = vmatprep.subr.mxu0 0.0
        %1020 = vmatpush1.msra.mxu0 0.0
        %1021 = vmatprep.subr.mxu0 0.0
        %1022 = vmatpush1.msra.mxu0 0.0
        %1023 = vmatprep.subr.mxu0 0.0
        %1024 = vmatpush1.msra.mxu0 0.0
        %1025 = vmatprep.subr.mxu0 0.0
        %1026 = vmatpush1.msra.mxu0 0.0
        %1027 = vmatprep.subr.mxu0 0.0
        %1028 = vmatpush1.msra.mxu0 0.0
        %1029 = vmatprep.subr.mxu0 0.0
        %1030 = vmatpush1.msra.mxu0 0.0
        %1031 = vmatprep.subr.mxu0 0.0
        %1032 = vmatpush1.msra.mxu0 0.0
        %1033 = vmatprep.subr.mxu0 0.0
        %1034 = vmatpush1.msra.mxu0 0.0
        %1035 = vmatprep.subr.mxu0 0.0
        %1036 = vmatpush1.msra.mxu0 0.0
        %1037 = vmatprep.subr.mxu0 0.0
        %1038 = vmatpush1.msra.mxu0 0.0
        %1039 = vmatprep.subr.mxu0 0.0
        %1040 = vmatpush1.msra.mxu0 0.0
        %1041 = vmatprep.subr.mxu0 0.0
        %1042 = vmatpush1.msra.mxu0 0.0
        %1043 = vmatprep.mubr.f32.mxu0 0.0
        %1044 = vmatmul.mubr.f32.gmra.mrb[0].mxu0 %v965
        %v1045 = vpop.f32.mrb[0].mxu0
        %v1046 = vadd.f32 %v946, %v1045
        %v1047 = vpop.f32.mrb[0].mxu0
        %1048 = vmatprep.mubr.f32.mxu0 0.0
        %1049 = vmatmul.mubr.f32.gmra.mrb[0].mxu0 %v968
        %v1050 = vpop.f32.mrb[0].mxu0
        %v1051 = vadd.f32 %v951, %v1050
        %v1052 = vpop.f32.mrb[0].mxu0
        %1053 = vmatprep.mubr.f32.mxu0 0.0
        %1054 = vmatmul.mubr.f32.gmra.mrb[0].mxu0 %v971
        %v1055 = vpop.f32.mrb[0].mxu0
        %v1056 = vadd.f32 %v956, %v1055
        %v1057 = vpop.f32.mrb[0].mxu0
        %1058 = vmatprep.mubr.f32.mxu0 0.0
        %1059 = vmatmul.mubr.f32.gmra.mrb[0].mxu0 %v974
        %v1060 = vpop.f32.mrb[0].mxu0
        %v1061 = vadd.f32 %v961, %v1060
        %v1062 = vpop.f32.mrb[0].mxu0
        %1063 = vdwg.mxu0
        %s1064 = scalar_lea.vmem [#allocation2], 256
        %v1065 = vld [vmem:[%s1064] sm:$0xff]
        %v1066 = vld [vmem:[%s1064 + $0x8] sm:$0xff]
        %v1067 = vld [vmem:[%s1064 + $0x10] sm:$0xff]
        %v1068 = vld [vmem:[%s1064 + $0x18] sm:$0xff]
        %v1069 = vld [vmem:[%s1064 + $0x20] sm:$0xff]
        %v1070 = vld [vmem:[%s1064 + $0x28] sm:$0xff]
        %v1071 = vld [vmem:[%s1064 + $0x30] sm:$0xff]
        %v1072 = vld [vmem:[%s1064 + $0x38] sm:$0xff]
        %v1073 = vld [vmem:[%s1064 + $0x40] sm:$0xff]
        %v1074 = vld [vmem:[%s1064 + $0x48] sm:$0xff]
        %v1075 = vld [vmem:[%s1064 + $0x50] sm:$0xff]
        %v1076 = vld [vmem:[%s1064 + $0x58] sm:$0xff]
        %v1077 = vld [vmem:[%s1064 + $0x60] sm:$0xff]
        %v1078 = vld [vmem:[%s1064 + $0x68] sm:$0xff]
        %v1079 = vld [vmem:[%s1064 + $0x70] sm:$0xff]
        %v1080 = vld [vmem:[%s1064 + $0x78] sm:$0xff]
        %1081 = vmatprep.subr.mxu0 0.0
        %1082 = vmatpush1.msra.mxu0 %v1065
        %1083 = vmatprep.subr.mxu0 0.0
        %1084 = vmatpush1.msra.mxu0 %v1066
        %1085 = vmatprep.subr.mxu0 0.0
        %1086 = vmatpush1.msra.mxu0 %v1067
        %1087 = vmatprep.subr.mxu0 0.0
        %1088 = vmatpush1.msra.mxu0 %v1068
        %1089 = vmatprep.subr.mxu0 0.0
        %1090 = vmatpush1.msra.mxu0 %v1069
        %1091 = vmatprep.subr.mxu0 0.0
        %1092 = vmatpush1.msra.mxu0 %v1070
        %1093 = vmatprep.subr.mxu0 0.0
        %1094 = vmatpush1.msra.mxu0 %v1071
        %1095 = vmatprep.subr.mxu0 0.0
        %1096 = vmatpush1.msra.mxu0 %v1072
        %1097 = vmatprep.subr.mxu0 0.0
        %1098 = vmatpush1.msra.mxu0 %v1073
        %1099 = vmatprep.subr.mxu0 0.0
        %1100 = vmatpush1.msra.mxu0 %v1074
        %1101 = vmatprep.subr.mxu0 0.0
        %1102 = vmatpush1.msra.mxu0 %v1075
        %1103 = vmatprep.subr.mxu0 0.0
        %1104 = vmatpush1.msra.mxu0 %v1076
        %1105 = vmatprep.subr.mxu0 0.0
        %1106 = vmatpush1.msra.mxu0 %v1077
        %1107 = vmatprep.subr.mxu0 0.0
        %1108 = vmatpush1.msra.mxu0 %v1078
        %1109 = vmatprep.subr.mxu0 0.0
        %1110 = vmatpush1.msra.mxu0 %v1079
        %1111 = vmatprep.subr.mxu0 0.0
        %1112 = vmatpush1.msra.mxu0 %v1080
        %1113 = vmatprep.subr.mxu0 0.0
        %1114 = vmatpush1.msra.mxu0 0.0
        %1115 = vmatprep.subr.mxu0 0.0
        %1116 = vmatpush1.msra.mxu0 0.0
        %1117 = vmatprep.subr.mxu0 0.0
        %1118 = vmatpush1.msra.mxu0 0.0
        %1119 = vmatprep.subr.mxu0 0.0
        %1120 = vmatpush1.msra.mxu0 0.0
        %1121 = vmatprep.subr.mxu0 0.0
        %1122 = vmatpush1.msra.mxu0 0.0
        %1123 = vmatprep.subr.mxu0 0.0
        %1124 = vmatpush1.msra.mxu0 0.0
        %1125 = vmatprep.subr.mxu0 0.0
        %1126 = vmatpush1.msra.mxu0 0.0
        %1127 = vmatprep.subr.mxu0 0.0
        %1128 = vmatpush1.msra.mxu0 0.0
        %1129 = vmatprep.subr.mxu0 0.0
        %1130 = vmatpush1.msra.mxu0 0.0
        %1131 = vmatprep.subr.mxu0 0.0
        %1132 = vmatpush1.msra.mxu0 0.0
        %1133 = vmatprep.subr.mxu0 0.0
        %1134 = vmatpush1.msra.mxu0 0.0
        %1135 = vmatprep.subr.mxu0 0.0
        %1136 = vmatpush1.msra.mxu0 0.0
        %1137 = vmatprep.subr.mxu0 0.0
        %1138 = vmatpush1.msra.mxu0 0.0
        %1139 = vmatprep.subr.mxu0 0.0
        %1140 = vmatpush1.msra.mxu0 0.0
        %1141 = vmatprep.subr.mxu0 0.0
        %1142 = vmatpush1.msra.mxu0 0.0
        %1143 = vmatprep.subr.mxu0 0.0
        %1144 = vmatpush1.msra.mxu0 0.0
        %1145 = vmatprep.mubr.f32.mxu0 0.0
        %1146 = vmatmul.mubr.f32.gmra.mrb[0].mxu0 %v679
        %v1147 = vpop.f32.mrb[0].mxu0
        %v1148 = vadd.f32 0.0, %v1147
        %v1149 = vpop.f32.mrb[0].mxu0
        %1150 = vdwg.mxu0
        %s1151 = scalar_lea.vmem %s2, 64
        %v1152 = vld [vmem:[%s1151] sm:$0xff]
        %v1153 = vld [vmem:[%s1151 + $0x8] sm:$0xff]
        %v1154 = vld [vmem:[%s1151 + $0x10] sm:$0xff]
        %v1155 = vld [vmem:[%s1151 + $0x18] sm:$0x3f]
        %v1157 = vsel %vm862, %v1152, 0
        %v1160 = vsel %vm862, %v1153, 0
        %v1163 = vsel %vm862, %v1154, 0
        %v1166 = vsel %vm862, %v1155, 0
        %v1169 = vsel %vm875, %v1148, 0
        %1171 = vmatprep.subr.mxu0 0.0
        %1172 = vmatpush1.msra.mxu0 %v1169
        %1173 = vmatprep.subr.mxu0 0.0
        %1174 = vmatpush1.msra.mxu0 0.0
        %1175 = vmatprep.subr.mxu0 0.0
        %1176 = vmatpush1.msra.mxu0 0.0
        %1177 = vmatprep.subr.mxu0 0.0
        %1178 = vmatpush1.msra.mxu0 0.0
        %1179 = vmatprep.subr.mxu0 0.0
        %1180 = vmatpush1.msra.mxu0 0.0
        %1181 = vmatprep.subr.mxu0 0.0
        %1182 = vmatpush1.msra.mxu0 0.0
        %1183 = vmatprep.subr.mxu0 0.0
        %1184 = vmatpush1.msra.mxu0 0.0
        %1185 = vmatprep.subr.mxu0 0.0
        %1186 = vmatpush1.msra.mxu0 0.0
        %1187 = vmatprep.subr.mxu0 0.0
        %1188 = vmatpush1.msra.mxu0 0.0
        %1189 = vmatprep.subr.mxu0 0.0
        %1190 = vmatpush1.msra.mxu0 0.0
        %1191 = vmatprep.subr.mxu0 0.0
        %1192 = vmatpush1.msra.mxu0 0.0
        %1193 = vmatprep.subr.mxu0 0.0
        %1194 = vmatpush1.msra.mxu0 0.0
        %1195 = vmatprep.subr.mxu0 0.0
        %1196 = vmatpush1.msra.mxu0 0.0
        %1197 = vmatprep.subr.mxu0 0.0
        %1198 = vmatpush1.msra.mxu0 0.0
        %1199 = vmatprep.subr.mxu0 0.0
        %1200 = vmatpush1.msra.mxu0 0.0
        %1201 = vmatprep.subr.mxu0 0.0
        %1202 = vmatpush1.msra.mxu0 0.0
        %1203 = vmatprep.subr.mxu0 0.0
        %1204 = vmatpush1.msra.mxu0 0.0
        %1205 = vmatprep.subr.mxu0 0.0
        %1206 = vmatpush1.msra.mxu0 0.0
        %1207 = vmatprep.subr.mxu0 0.0
        %1208 = vmatpush1.msra.mxu0 0.0
        %1209 = vmatprep.subr.mxu0 0.0
        %1210 = vmatpush1.msra.mxu0 0.0
        %1211 = vmatprep.subr.mxu0 0.0
        %1212 = vmatpush1.msra.mxu0 0.0
        %1213 = vmatprep.subr.mxu0 0.0
        %1214 = vmatpush1.msra.mxu0 0.0
        %1215 = vmatprep.subr.mxu0 0.0
        %1216 = vmatpush1.msra.mxu0 0.0
        %1217 = vmatprep.subr.mxu0 0.0
        %1218 = vmatpush1.msra.mxu0 0.0
        %1219 = vmatprep.subr.mxu0 0.0
        %1220 = vmatpush1.msra.mxu0 0.0
        %1221 = vmatprep.subr.mxu0 0.0
        %1222 = vmatpush1.msra.mxu0 0.0
        %1223 = vmatprep.subr.mxu0 0.0
        %1224 = vmatpush1.msra.mxu0 0.0
        %1225 = vmatprep.subr.mxu0 0.0
        %1226 = vmatpush1.msra.mxu0 0.0
        %1227 = vmatprep.subr.mxu0 0.0
        %1228 = vmatpush1.msra.mxu0 0.0
        %1229 = vmatprep.subr.mxu0 0.0
        %1230 = vmatpush1.msra.mxu0 0.0
        %1231 = vmatprep.subr.mxu0 0.0
        %1232 = vmatpush1.msra.mxu0 0.0
        %1233 = vmatprep.subr.mxu0 0.0
        %1234 = vmatpush1.msra.mxu0 0.0
        %1235 = vmatprep.mubr.f32.mxu0 0.0
        %1236 = vmatmul.mubr.f32.gmra.mrb[0].mxu0 %v1157
        %v1237 = vpop.f32.mrb[0].mxu0
        %v1238 = vadd.f32 0.0, %v1237
        %v1239 = vpop.f32.mrb[0].mxu0
        %1240 = vmatprep.mubr.f32.mxu0 0.0
        %1241 = vmatmul.mubr.f32.gmra.mrb[0].mxu0 %v1160
        %v1242 = vpop.f32.mrb[0].mxu0
        %v1243 = vadd.f32 0.0, %v1242
        %v1244 = vpop.f32.mrb[0].mxu0
        %1245 = vmatprep.mubr.f32.mxu0 0.0
        %1246 = vmatmul.mubr.f32.gmra.mrb[0].mxu0 %v1163
        %v1247 = vpop.f32.mrb[0].mxu0
        %v1248 = vadd.f32 0.0, %v1247
        %v1249 = vpop.f32.mrb[0].mxu0
        %1250 = vmatprep.mubr.f32.mxu0 0.0
        %1251 = vmatmul.mubr.f32.gmra.mrb[0].mxu0 %v1166
        %v1252 = vpop.f32.mrb[0].mxu0
        %v1253 = vadd.f32 0.0, %v1252
        %v1254 = vpop.f32.mrb[0].mxu0
        %1255 = vdwg.mxu0
        %v1256 = vadd.f32 %v1046, %v1238
        %v1257 = vadd.f32 %v1051, %v1243
        %v1258 = vadd.f32 %v1056, %v1248
        %v1259 = vadd.f32 %v1061, %v1253
        %s1260 = scalar_lea.vmem [#allocation2], 384
        %v1261 = vld [vmem:[%s1260] sm:$0xff]
        %v1262 = vld [vmem:[%s1260 + $0x8] sm:$0xff]
        %v1263 = vld [vmem:[%s1260 + $0x10] sm:$0xff]
        %v1264 = vld [vmem:[%s1260 + $0x18] sm:$0xff]
        %v1265 = vld [vmem:[%s1260 + $0x20] sm:$0xff]
        %v1266 = vld [vmem:[%s1260 + $0x28] sm:$0xff]
        %v1267 = vld [vmem:[%s1260 + $0x30] sm:$0xff]
        %v1268 = vld [vmem:[%s1260 + $0x38] sm:$0xff]
        %v1269 = vld [vmem:[%s1260 + $0x40] sm:$0xff]
        %v1270 = vld [vmem:[%s1260 + $0x48] sm:$0xff]
        %v1271 = vld [vmem:[%s1260 + $0x50] sm:$0xff]
        %v1272 = vld [vmem:[%s1260 + $0x58] sm:$0xff]
        %v1273 = vld [vmem:[%s1260 + $0x60] sm:$0xff]
        %v1274 = vld [vmem:[%s1260 + $0x68] sm:$0xff]
        %v1275 = vld [vmem:[%s1260 + $0x70] sm:$0xff]
        %v1276 = vld [vmem:[%s1260 + $0x78] sm:$0xff]
        %1277 = vmatprep.subr.mxu0 0.0
        %1278 = vmatpush1.msra.mxu0 %v1261
        %1279 = vmatprep.subr.mxu0 0.0
        %1280 = vmatpush1.msra.mxu0 %v1262
        %1281 = vmatprep.subr.mxu0 0.0
        %1282 = vmatpush1.msra.mxu0 %v1263
        %1283 = vmatprep.subr.mxu0 0.0
        %1284 = vmatpush1.msra.mxu0 %v1264
        %1285 = vmatprep.subr.mxu0 0.0
        %1286 = vmatpush1.msra.mxu0 %v1265
        %1287 = vmatprep.subr.mxu0 0.0
        %1288 = vmatpush1.msra.mxu0 %v1266
        %1289 = vmatprep.subr.mxu0 0.0
        %1290 = vmatpush1.msra.mxu0 %v1267
        %1291 = vmatprep.subr.mxu0 0.0
        %1292 = vmatpush1.msra.mxu0 %v1268
        %1293 = vmatprep.subr.mxu0 0.0
        %1294 = vmatpush1.msra.mxu0 %v1269
        %1295 = vmatprep.subr.mxu0 0.0
        %1296 = vmatpush1.msra.mxu0 %v1270
        %1297 = vmatprep.subr.mxu0 0.0
        %1298 = vmatpush1.msra.mxu0 %v1271
        %1299 = vmatprep.subr.mxu0 0.0
        %1300 = vmatpush1.msra.mxu0 %v1272
        %1301 = vmatprep.subr.mxu0 0.0
        %1302 = vmatpush1.msra.mxu0 %v1273
        %1303 = vmatprep.subr.mxu0 0.0
        %1304 = vmatpush1.msra.mxu0 %v1274
        %1305 = vmatprep.subr.mxu0 0.0
        %1306 = vmatpush1.msra.mxu0 %v1275
        %1307 = vmatprep.subr.mxu0 0.0
        %1308 = vmatpush1.msra.mxu0 %v1276
        %1309 = vmatprep.subr.mxu0 0.0
        %1310 = vmatpush1.msra.mxu0 0.0
        %1311 = vmatprep.subr.mxu0 0.0
        %1312 = vmatpush1.msra.mxu0 0.0
        %1313 = vmatprep.subr.mxu0 0.0
        %1314 = vmatpush1.msra.mxu0 0.0
        %1315 = vmatprep.subr.mxu0 0.0
        %1316 = vmatpush1.msra.mxu0 0.0
        %1317 = vmatprep.subr.mxu0 0.0
        %1318 = vmatpush1.msra.mxu0 0.0
        %1319 = vmatprep.subr.mxu0 0.0
        %1320 = vmatpush1.msra.mxu0 0.0
        %1321 = vmatprep.subr.mxu0 0.0
        %1322 = vmatpush1.msra.mxu0 0.0
        %1323 = vmatprep.subr.mxu0 0.0
        %1324 = vmatpush1.msra.mxu0 0.0
        %1325 = vmatprep.subr.mxu0 0.0
        %1326 = vmatpush1.msra.mxu0 0.0
        %1327 = vmatprep.subr.mxu0 0.0
        %1328 = vmatpush1.msra.mxu0 0.0
        %1329 = vmatprep.subr.mxu0 0.0
        %1330 = vmatpush1.msra.mxu0 0.0
        %1331 = vmatprep.subr.mxu0 0.0
        %1332 = vmatpush1.msra.mxu0 0.0
        %1333 = vmatprep.subr.mxu0 0.0
        %1334 = vmatpush1.msra.mxu0 0.0
        %1335 = vmatprep.subr.mxu0 0.0
        %1336 = vmatpush1.msra.mxu0 0.0
        %1337 = vmatprep.subr.mxu0 0.0
        %1338 = vmatpush1.msra.mxu0 0.0
        %1339 = vmatprep.subr.mxu0 0.0
        %1340 = vmatpush1.msra.mxu0 0.0
        %1341 = vmatprep.mubr.f32.mxu0 0.0
        %1342 = vmatmul.mubr.f32.gmra.mrb[0].mxu0 %v679
        %v1343 = vpop.f32.mrb[0].mxu0
        %v1344 = vadd.f32 0.0, %v1343
        %v1345 = vpop.f32.mrb[0].mxu0
        %1346 = vdwg.mxu0
        %s1347 = scalar_lea.vmem %s2, 96
        %v1348 = vld [vmem:[%s1347] sm:$0xff]
        %v1349 = vld [vmem:[%s1347 + $0x8] sm:$0xff]
        %v1350 = vld [vmem:[%s1347 + $0x10] sm:$0xff]
        %v1351 = vld [vmem:[%s1347 + $0x18] sm:$0x3f]
        %v1353 = vsel %vm862, %v1348, 0
        %v1356 = vsel %vm862, %v1349, 0
        %v1359 = vsel %vm862, %v1350, 0
        %v1362 = vsel %vm862, %v1351, 0
        %v1365 = vsel %vm875, %v1344, 0
        %1367 = vmatprep.subr.mxu0 0.0
        %1368 = vmatpush1.msra.mxu0 %v1365
        %1369 = vmatprep.subr.mxu0 0.0
        %1370 = vmatpush1.msra.mxu0 0.0
        %1371 = vmatprep.subr.mxu0 0.0
        %1372 = vmatpush1.msra.mxu0 0.0
        %1373 = vmatprep.subr.mxu0 0.0
        %1374 = vmatpush1.msra.mxu0 0.0
        %1375 = vmatprep.subr.mxu0 0.0
        %1376 = vmatpush1.msra.mxu0 0.0
        %1377 = vmatprep.subr.mxu0 0.0
        %1378 = vmatpush1.msra.mxu0 0.0
        %1379 = vmatprep.subr.mxu0 0.0
        %1380 = vmatpush1.msra.mxu0 0.0
        %1381 = vmatprep.subr.mxu0 0.0
        %1382 = vmatpush1.msra.mxu0 0.0
        %1383 = vmatprep.subr.mxu0 0.0
        %1384 = vmatpush1.msra.mxu0 0.0
        %1385 = vmatprep.subr.mxu0 0.0
        %1386 = vmatpush1.msra.mxu0 0.0
        %1387 = vmatprep.subr.mxu0 0.0
        %1388 = vmatpush1.msra.mxu0 0.0
        %1389 = vmatprep.subr.mxu0 0.0
        %1390 = vmatpush1.msra.mxu0 0.0
        %1391 = vmatprep.subr.mxu0 0.0
        %1392 = vmatpush1.msra.mxu0 0.0
        %1393 = vmatprep.subr.mxu0 0.0
        %1394 = vmatpush1.msra.mxu0 0.0
        %1395 = vmatprep.subr.mxu0 0.0
        %1396 = vmatpush1.msra.mxu0 0.0
        %1397 = vmatprep.subr.mxu0 0.0
        %1398 = vmatpush1.msra.mxu0 0.0
        %1399 = vmatprep.subr.mxu0 0.0
        %1400 = vmatpush1.msra.mxu0 0.0
        %1401 = vmatprep.subr.mxu0 0.0
        %1402 = vmatpush1.msra.mxu0 0.0
        %1403 = vmatprep.subr.mxu0 0.0
        %1404 = vmatpush1.msra.mxu0 0.0
        %1405 = vmatprep.subr.mxu0 0.0
        %1406 = vmatpush1.msra.mxu0 0.0
        %1407 = vmatprep.subr.mxu0 0.0
        %1408 = vmatpush1.msra.mxu0 0.0
        %1409 = vmatprep.subr.mxu0 0.0
        %1410 = vmatpush1.msra.mxu0 0.0
        %1411 = vmatprep.subr.mxu0 0.0
        %1412 = vmatpush1.msra.mxu0 0.0
        %1413 = vmatprep.subr.mxu0 0.0
        %1414 = vmatpush1.msra.mxu0 0.0
        %1415 = vmatprep.subr.mxu0 0.0
        %1416 = vmatpush1.msra.mxu0 0.0
        %1417 = vmatprep.subr.mxu0 0.0
        %1418 = vmatpush1.msra.mxu0 0.0
        %1419 = vmatprep.subr.mxu0 0.0
        %1420 = vmatpush1.msra.mxu0 0.0
        %1421 = vmatprep.subr.mxu0 0.0
        %1422 = vmatpush1.msra.mxu0 0.0
        %1423 = vmatprep.subr.mxu0 0.0
        %1424 = vmatpush1.msra.mxu0 0.0
        %1425 = vmatprep.subr.mxu0 0.0
        %1426 = vmatpush1.msra.mxu0 0.0
        %1427 = vmatprep.subr.mxu0 0.0
        %1428 = vmatpush1.msra.mxu0 0.0
        %1429 = vmatprep.subr.mxu0 0.0
        %1430 = vmatpush1.msra.mxu0 0.0
        %1431 = vmatprep.mubr.f32.mxu0 0.0
        %1432 = vmatmul.mubr.f32.gmra.mrb[0].mxu0 %v1353
        %v1433 = vpop.f32.mrb[0].mxu0
        %v1434 = vadd.f32 0.0, %v1433
        %v1435 = vpop.f32.mrb[0].mxu0
        %1436 = vmatprep.mubr.f32.mxu0 0.0
        %1437 = vmatmul.mubr.f32.gmra.mrb[0].mxu0 %v1356
        %v1438 = vpop.f32.mrb[0].mxu0
        %v1439 = vadd.f32 0.0, %v1438
        %v1440 = vpop.f32.mrb[0].mxu0
        %1441 = vmatprep.mubr.f32.mxu0 0.0
        %1442 = vmatmul.mubr.f32.gmra.mrb[0].mxu0 %v1359
        %v1443 = vpop.f32.mrb[0].mxu0
        %v1444 = vadd.f32 0.0, %v1443
        %v1445 = vpop.f32.mrb[0].mxu0
        %1446 = vmatprep.mubr.f32.mxu0 0.0
        %1447 = vmatmul.mubr.f32.gmra.mrb[0].mxu0 %v1362
        %v1448 = vpop.f32.mrb[0].mxu0
        %v1449 = vadd.f32 0.0, %v1448
        %v1450 = vpop.f32.mrb[0].mxu0
        %1451 = vdwg.mxu0
        %v1452 = vadd.f32 %v1256, %v1434
        %v1453 = vadd.f32 %v1257, %v1439
        %v1454 = vadd.f32 %v1258, %v1444
        %v1455 = vadd.f32 %v1259, %v1449
        %s1456 = scalar_lea.vmem [#allocation2], 512
        %v1457 = vld [vmem:[%s1456] sm:$0xff]
        %v1458 = vld [vmem:[%s1456 + $0x8] sm:$0xff]
        %v1459 = vld [vmem:[%s1456 + $0x10] sm:$0xff]
        %v1460 = vld [vmem:[%s1456 + $0x18] sm:$0xff]
        %v1461 = vld [vmem:[%s1456 + $0x20] sm:$0xff]
        %v1462 = vld [vmem:[%s1456 + $0x28] sm:$0xff]
        %v1463 = vld [vmem:[%s1456 + $0x30] sm:$0xff]
        %v1464 = vld [vmem:[%s1456 + $0x38] sm:$0xff]
        %v1465 = vld [vmem:[%s1456 + $0x40] sm:$0xff]
        %v1466 = vld [vmem:[%s1456 + $0x48] sm:$0xff]
        %v1467 = vld [vmem:[%s1456 + $0x50] sm:$0xff]
        %v1468 = vld [vmem:[%s1456 + $0x58] sm:$0xff]
        %v1469 = vld [vmem:[%s1456 + $0x60] sm:$0xff]
        %v1470 = vld [vmem:[%s1456 + $0x68] sm:$0xff]
        %v1471 = vld [vmem:[%s1456 + $0x70] sm:$0xff]
        %v1472 = vld [vmem:[%s1456 + $0x78] sm:$0xff]
        %1473 = vmatprep.subr.mxu0 0.0
        %1474 = vmatpush1.msra.mxu0 %v1457
        %1475 = vmatprep.subr.mxu0 0.0
        %1476 = vmatpush1.msra.mxu0 %v1458
        %1477 = vmatprep.subr.mxu0 0.0
        %1478 = vmatpush1.msra.mxu0 %v1459
        %1479 = vmatprep.subr.mxu0 0.0
        %1480 = vmatpush1.msra.mxu0 %v1460
        %1481 = vmatprep.subr.mxu0 0.0
        %1482 = vmatpush1.msra.mxu0 %v1461
        %1483 = vmatprep.subr.mxu0 0.0
        %1484 = vmatpush1.msra.mxu0 %v1462
        %1485 = vmatprep.subr.mxu0 0.0
        %1486 = vmatpush1.msra.mxu0 %v1463
        %1487 = vmatprep.subr.mxu0 0.0
        %1488 = vmatpush1.msra.mxu0 %v1464
        %1489 = vmatprep.subr.mxu0 0.0
        %1490 = vmatpush1.msra.mxu0 %v1465
        %1491 = vmatprep.subr.mxu0 0.0
        %1492 = vmatpush1.msra.mxu0 %v1466
        %1493 = vmatprep.subr.mxu0 0.0
        %1494 = vmatpush1.msra.mxu0 %v1467
        %1495 = vmatprep.subr.mxu0 0.0
        %1496 = vmatpush1.msra.mxu0 %v1468
        %1497 = vmatprep.subr.mxu0 0.0
        %1498 = vmatpush1.msra.mxu0 %v1469
        %1499 = vmatprep.subr.mxu0 0.0
        %1500 = vmatpush1.msra.mxu0 %v1470
        %1501 = vmatprep.subr.mxu0 0.0
        %1502 = vmatpush1.msra.mxu0 %v1471
        %1503 = vmatprep.subr.mxu0 0.0
        %1504 = vmatpush1.msra.mxu0 %v1472
        %1505 = vmatprep.subr.mxu0 0.0
        %1506 = vmatpush1.msra.mxu0 0.0
        %1507 = vmatprep.subr.mxu0 0.0
        %1508 = vmatpush1.msra.mxu0 0.0
        %1509 = vmatprep.subr.mxu0 0.0
        %1510 = vmatpush1.msra.mxu0 0.0
        %1511 = vmatprep.subr.mxu0 0.0
        %1512 = vmatpush1.msra.mxu0 0.0
        %1513 = vmatprep.subr.mxu0 0.0
        %1514 = vmatpush1.msra.mxu0 0.0
        %1515 = vmatprep.subr.mxu0 0.0
        %1516 = vmatpush1.msra.mxu0 0.0
        %1517 = vmatprep.subr.mxu0 0.0
        %1518 = vmatpush1.msra.mxu0 0.0
        %1519 = vmatprep.subr.mxu0 0.0
        %1520 = vmatpush1.msra.mxu0 0.0
        %1521 = vmatprep.subr.mxu0 0.0
        %1522 = vmatpush1.msra.mxu0 0.0
        %1523 = vmatprep.subr.mxu0 0.0
        %1524 = vmatpush1.msra.mxu0 0.0
        %1525 = vmatprep.subr.mxu0 0.0
        %1526 = vmatpush1.msra.mxu0 0.0
        %1527 = vmatprep.subr.mxu0 0.0
        %1528 = vmatpush1.msra.mxu0 0.0
        %1529 = vmatprep.subr.mxu0 0.0
        %1530 = vmatpush1.msra.mxu0 0.0
        %1531 = vmatprep.subr.mxu0 0.0
        %1532 = vmatpush1.msra.mxu0 0.0
        %1533 = vmatprep.subr.mxu0 0.0
        %1534 = vmatpush1.msra.mxu0 0.0
        %1535 = vmatprep.subr.mxu0 0.0
        %1536 = vmatpush1.msra.mxu0 0.0
        %1537 = vmatprep.mubr.f32.mxu0 0.0
        %1538 = vmatmul.mubr.f32.gmra.mrb[0].mxu0 %v679
        %v1539 = vpop.f32.mrb[0].mxu0
        %v1540 = vadd.f32 0.0, %v1539
        %v1541 = vpop.f32.mrb[0].mxu0
        %1542 = vdwg.mxu0
        %s1543 = scalar_lea.vmem %s2, 128
        %v1544 = vld [vmem:[%s1543] sm:$0xff]
        %v1545 = vld [vmem:[%s1543 + $0x8] sm:$0xff]
        %v1546 = vld [vmem:[%s1543 + $0x10] sm:$0xff]
        %v1547 = vld [vmem:[%s1543 + $0x18] sm:$0x3f]
        %v1549 = vsel %vm862, %v1544, 0
        %v1552 = vsel %vm862, %v1545, 0
        %v1555 = vsel %vm862, %v1546, 0
        %v1558 = vsel %vm862, %v1547, 0
        %v1561 = vsel %vm875, %v1540, 0
        %1563 = vmatprep.subr.mxu0 0.0
        %1564 = vmatpush1.msra.mxu0 %v1561
        %1565 = vmatprep.subr.mxu0 0.0
        %1566 = vmatpush1.msra.mxu0 0.0
        %1567 = vmatprep.subr.mxu0 0.0
        %1568 = vmatpush1.msra.mxu0 0.0
        %1569 = vmatprep.subr.mxu0 0.0
        %1570 = vmatpush1.msra.mxu0 0.0
        %1571 = vmatprep.subr.mxu0 0.0
        %1572 = vmatpush1.msra.mxu0 0.0
        %1573 = vmatprep.subr.mxu0 0.0
        %1574 = vmatpush1.msra.mxu0 0.0
        %1575 = vmatprep.subr.mxu0 0.0
        %1576 = vmatpush1.msra.mxu0 0.0
        %1577 = vmatprep.subr.mxu0 0.0
        %1578 = vmatpush1.msra.mxu0 0.0
        %1579 = vmatprep.subr.mxu0 0.0
        %1580 = vmatpush1.msra.mxu0 0.0
        %1581 = vmatprep.subr.mxu0 0.0
        %1582 = vmatpush1.msra.mxu0 0.0
        %1583 = vmatprep.subr.mxu0 0.0
        %1584 = vmatpush1.msra.mxu0 0.0
        %1585 = vmatprep.subr.mxu0 0.0
        %1586 = vmatpush1.msra.mxu0 0.0
        %1587 = vmatprep.subr.mxu0 0.0
        %1588 = vmatpush1.msra.mxu0 0.0
        %1589 = vmatprep.subr.mxu0 0.0
        %1590 = vmatpush1.msra.mxu0 0.0
        %1591 = vmatprep.subr.mxu0 0.0
        %1592 = vmatpush1.msra.mxu0 0.0
        %1593 = vmatprep.subr.mxu0 0.0
        %1594 = vmatpush1.msra.mxu0 0.0
        %1595 = vmatprep.subr.mxu0 0.0
        %1596 = vmatpush1.msra.mxu0 0.0
        %1597 = vmatprep.subr.mxu0 0.0
        %1598 = vmatpush1.msra.mxu0 0.0
        %1599 = vmatprep.subr.mxu0 0.0
        %1600 = vmatpush1.msra.mxu0 0.0
        %1601 = vmatprep.subr.mxu0 0.0
        %1602 = vmatpush1.msra.mxu0 0.0
        %1603 = vmatprep.subr.mxu0 0.0
        %1604 = vmatpush1.msra.mxu0 0.0
        %1605 = vmatprep.subr.mxu0 0.0
        %1606 = vmatpush1.msra.mxu0 0.0
        %1607 = vmatprep.subr.mxu0 0.0
        %1608 = vmatpush1.msra.mxu0 0.0
        %1609 = vmatprep.subr.mxu0 0.0
        %1610 = vmatpush1.msra.mxu0 0.0
        %1611 = vmatprep.subr.mxu0 0.0
        %1612 = vmatpush1.msra.mxu0 0.0
        %1613 = vmatprep.subr.mxu0 0.0
        %1614 = vmatpush1.msra.mxu0 0.0
        %1615 = vmatprep.subr.mxu0 0.0
        %1616 = vmatpush1.msra.mxu0 0.0
        %1617 = vmatprep.subr.mxu0 0.0
        %1618 = vmatpush1.msra.mxu0 0.0
        %1619 = vmatprep.subr.mxu0 0.0
        %1620 = vmatpush1.msra.mxu0 0.0
        %1621 = vmatprep.subr.mxu0 0.0
        %1622 = vmatpush1.msra.mxu0 0.0
        %1623 = vmatprep.subr.mxu0 0.0
        %1624 = vmatpush1.msra.mxu0 0.0
        %1625 = vmatprep.subr.mxu0 0.0
        %1626 = vmatpush1.msra.mxu0 0.0
        %1627 = vmatprep.mubr.f32.mxu0 0.0
        %1628 = vmatmul.mubr.f32.gmra.mrb[0].mxu0 %v1549
        %v1629 = vpop.f32.mrb[0].mxu0
        %v1630 = vadd.f32 0.0, %v1629
        %v1631 = vpop.f32.mrb[0].mxu0
        %1632 = vmatprep.mubr.f32.mxu0 0.0
        %1633 = vmatmul.mubr.f32.gmra.mrb[0].mxu0 %v1552
        %v1634 = vpop.f32.mrb[0].mxu0
        %v1635 = vadd.f32 0.0, %v1634
        %v1636 = vpop.f32.mrb[0].mxu0
        %1637 = vmatprep.mubr.f32.mxu0 0.0
        %1638 = vmatmul.mubr.f32.gmra.mrb[0].mxu0 %v1555
        %v1639 = vpop.f32.mrb[0].mxu0
        %v1640 = vadd.f32 0.0, %v1639
        %v1641 = vpop.f32.mrb[0].mxu0
        %1642 = vmatprep.mubr.f32.mxu0 0.0
        %1643 = vmatmul.mubr.f32.gmra.mrb[0].mxu0 %v1558
        %v1644 = vpop.f32.mrb[0].mxu0
        %v1645 = vadd.f32 0.0, %v1644
        %v1646 = vpop.f32.mrb[0].mxu0
        %1647 = vdwg.mxu0
        %v1648 = vadd.f32 %v1452, %v1630
        %v1649 = vadd.f32 %v1453, %v1635
        %v1650 = vadd.f32 %v1454, %v1640
        %v1651 = vadd.f32 %v1455, %v1645
        %s1652 = scalar_lea.vmem [#allocation2], 640
        %v1653 = vld [vmem:[%s1652] sm:$0xff]
        %v1654 = vld [vmem:[%s1652 + $0x8] sm:$0xff]
        %v1655 = vld [vmem:[%s1652 + $0x10] sm:$0xff]
        %v1656 = vld [vmem:[%s1652 + $0x18] sm:$0xff]
        %v1657 = vld [vmem:[%s1652 + $0x20] sm:$0xff]
        %v1658 = vld [vmem:[%s1652 + $0x28] sm:$0xff]
        %v1659 = vld [vmem:[%s1652 + $0x30] sm:$0xff]
        %v1660 = vld [vmem:[%s1652 + $0x38] sm:$0xff]
        %v1661 = vld [vmem:[%s1652 + $0x40] sm:$0xff]
        %v1662 = vld [vmem:[%s1652 + $0x48] sm:$0xff]
        %v1663 = vld [vmem:[%s1652 + $0x50] sm:$0xff]
        %v1664 = vld [vmem:[%s1652 + $0x58] sm:$0xff]
        %v1665 = vld [vmem:[%s1652 + $0x60] sm:$0xff]
        %v1666 = vld [vmem:[%s1652 + $0x68] sm:$0xff]
        %v1667 = vld [vmem:[%s1652 + $0x70] sm:$0xff]
        %v1668 = vld [vmem:[%s1652 + $0x78] sm:$0xff]
        %1669 = vmatprep.subr.mxu0 0.0
        %1670 = vmatpush1.msra.mxu0 %v1653
        %1671 = vmatprep.subr.mxu0 0.0
        %1672 = vmatpush1.msra.mxu0 %v1654
        %1673 = vmatprep.subr.mxu0 0.0
        %1674 = vmatpush1.msra.mxu0 %v1655
        %1675 = vmatprep.subr.mxu0 0.0
        %1676 = vmatpush1.msra.mxu0 %v1656
        %1677 = vmatprep.subr.mxu0 0.0
        %1678 = vmatpush1.msra.mxu0 %v1657
        %1679 = vmatprep.subr.mxu0 0.0
        %1680 = vmatpush1.msra.mxu0 %v1658
        %1681 = vmatprep.subr.mxu0 0.0
        %1682 = vmatpush1.msra.mxu0 %v1659
        %1683 = vmatprep.subr.mxu0 0.0
        %1684 = vmatpush1.msra.mxu0 %v1660
        %1685 = vmatprep.subr.mxu0 0.0
        %1686 = vmatpush1.msra.mxu0 %v1661
        %1687 = vmatprep.subr.mxu0 0.0
        %1688 = vmatpush1.msra.mxu0 %v1662
        %1689 = vmatprep.subr.mxu0 0.0
        %1690 = vmatpush1.msra.mxu0 %v1663
        %1691 = vmatprep.subr.mxu0 0.0
        %1692 = vmatpush1.msra.mxu0 %v1664
        %1693 = vmatprep.subr.mxu0 0.0
        %1694 = vmatpush1.msra.mxu0 %v1665
        %1695 = vmatprep.subr.mxu0 0.0
        %1696 = vmatpush1.msra.mxu0 %v1666
        %1697 = vmatprep.subr.mxu0 0.0
        %1698 = vmatpush1.msra.mxu0 %v1667
        %1699 = vmatprep.subr.mxu0 0.0
        %1700 = vmatpush1.msra.mxu0 %v1668
        %1701 = vmatprep.subr.mxu0 0.0
        %1702 = vmatpush1.msra.mxu0 0.0
        %1703 = vmatprep.subr.mxu0 0.0
        %1704 = vmatpush1.msra.mxu0 0.0
        %1705 = vmatprep.subr.mxu0 0.0
        %1706 = vmatpush1.msra.mxu0 0.0
        %1707 = vmatprep.subr.mxu0 0.0
        %1708 = vmatpush1.msra.mxu0 0.0
        %1709 = vmatprep.subr.mxu0 0.0
        %1710 = vmatpush1.msra.mxu0 0.0
        %1711 = vmatprep.subr.mxu0 0.0
        %1712 = vmatpush1.msra.mxu0 0.0
        %1713 = vmatprep.subr.mxu0 0.0
        %1714 = vmatpush1.msra.mxu0 0.0
        %1715 = vmatprep.subr.mxu0 0.0
        %1716 = vmatpush1.msra.mxu0 0.0
        %1717 = vmatprep.subr.mxu0 0.0
        %1718 = vmatpush1.msra.mxu0 0.0
        %1719 = vmatprep.subr.mxu0 0.0
        %1720 = vmatpush1.msra.mxu0 0.0
        %1721 = vmatprep.subr.mxu0 0.0
        %1722 = vmatpush1.msra.mxu0 0.0
        %1723 = vmatprep.subr.mxu0 0.0
        %1724 = vmatpush1.msra.mxu0 0.0
        %1725 = vmatprep.subr.mxu0 0.0
        %1726 = vmatpush1.msra.mxu0 0.0
        %1727 = vmatprep.subr.mxu0 0.0
        %1728 = vmatpush1.msra.mxu0 0.0
        %1729 = vmatprep.subr.mxu0 0.0
        %1730 = vmatpush1.msra.mxu0 0.0
        %1731 = vmatprep.subr.mxu0 0.0
        %1732 = vmatpush1.msra.mxu0 0.0
        %1733 = vmatprep.mubr.f32.mxu0 0.0
        %1734 = vmatmul.mubr.f32.gmra.mrb[0].mxu0 %v679
        %v1735 = vpop.f32.mrb[0].mxu0
        %v1736 = vadd.f32 0.0, %v1735
        %v1737 = vpop.f32.mrb[0].mxu0
        %1738 = vdwg.mxu0
        %s1739 = scalar_lea.vmem %s2, 160
        %v1740 = vld [vmem:[%s1739] sm:$0xff]
        %v1741 = vld [vmem:[%s1739 + $0x8] sm:$0xff]
        %v1742 = vld [vmem:[%s1739 + $0x10] sm:$0xff]
        %v1743 = vld [vmem:[%s1739 + $0x18] sm:$0x3f]
        %v1745 = vsel %vm862, %v1740, 0
        %v1748 = vsel %vm862, %v1741, 0
        %v1751 = vsel %vm862, %v1742, 0
        %v1754 = vsel %vm862, %v1743, 0
        %v1757 = vsel %vm875, %v1736, 0
        %1759 = vmatprep.subr.mxu0 0.0
        %1760 = vmatpush1.msra.mxu0 %v1757
        %1761 = vmatprep.subr.mxu0 0.0
        %1762 = vmatpush1.msra.mxu0 0.0
        %1763 = vmatprep.subr.mxu0 0.0
        %1764 = vmatpush1.msra.mxu0 0.0
        %1765 = vmatprep.subr.mxu0 0.0
        %1766 = vmatpush1.msra.mxu0 0.0
        %1767 = vmatprep.subr.mxu0 0.0
        %1768 = vmatpush1.msra.mxu0 0.0
        %1769 = vmatprep.subr.mxu0 0.0
        %1770 = vmatpush1.msra.mxu0 0.0
        %1771 = vmatprep.subr.mxu0 0.0
        %1772 = vmatpush1.msra.mxu0 0.0
        %1773 = vmatprep.subr.mxu0 0.0
        %1774 = vmatpush1.msra.mxu0 0.0
        %1775 = vmatprep.subr.mxu0 0.0
        %1776 = vmatpush1.msra.mxu0 0.0
        %1777 = vmatprep.subr.mxu0 0.0
        %1778 = vmatpush1.msra.mxu0 0.0
        %1779 = vmatprep.subr.mxu0 0.0
        %1780 = vmatpush1.msra.mxu0 0.0
        %1781 = vmatprep.subr.mxu0 0.0
        %1782 = vmatpush1.msra.mxu0 0.0
        %1783 = vmatprep.subr.mxu0 0.0
        %1784 = vmatpush1.msra.mxu0 0.0
        %1785 = vmatprep.subr.mxu0 0.0
        %1786 = vmatpush1.msra.mxu0 0.0
        %1787 = vmatprep.subr.mxu0 0.0
        %1788 = vmatpush1.msra.mxu0 0.0
        %1789 = vmatprep.subr.mxu0 0.0
        %1790 = vmatpush1.msra.mxu0 0.0
        %1791 = vmatprep.subr.mxu0 0.0
        %1792 = vmatpush1.msra.mxu0 0.0
        %1793 = vmatprep.subr.mxu0 0.0
        %1794 = vmatpush1.msra.mxu0 0.0
        %1795 = vmatprep.subr.mxu0 0.0
        %1796 = vmatpush1.msra.mxu0 0.0
        %1797 = vmatprep.subr.mxu0 0.0
        %1798 = vmatpush1.msra.mxu0 0.0
        %1799 = vmatprep.subr.mxu0 0.0
        %1800 = vmatpush1.msra.mxu0 0.0
        %1801 = vmatprep.subr.mxu0 0.0
        %1802 = vmatpush1.msra.mxu0 0.0
        %1803 = vmatprep.subr.mxu0 0.0
        %1804 = vmatpush1.msra.mxu0 0.0
        %1805 = vmatprep.subr.mxu0 0.0
        %1806 = vmatpush1.msra.mxu0 0.0
        %1807 = vmatprep.subr.mxu0 0.0
        %1808 = vmatpush1.msra.mxu0 0.0
        %1809 = vmatprep.subr.mxu0 0.0
        %1810 = vmatpush1.msra.mxu0 0.0
        %1811 = vmatprep.subr.mxu0 0.0
        %1812 = vmatpush1.msra.mxu0 0.0
        %1813 = vmatprep.subr.mxu0 0.0
        %1814 = vmatpush1.msra.mxu0 0.0
        %1815 = vmatprep.subr.mxu0 0.0
        %1816 = vmatpush1.msra.mxu0 0.0
        %1817 = vmatprep.subr.mxu0 0.0
        %1818 = vmatpush1.msra.mxu0 0.0
        %1819 = vmatprep.subr.mxu0 0.0
        %1820 = vmatpush1.msra.mxu0 0.0
        %1821 = vmatprep.subr.mxu0 0.0
        %1822 = vmatpush1.msra.mxu0 0.0
        %1823 = vmatprep.mubr.f32.mxu0 0.0
        %1824 = vmatmul.mubr.f32.gmra.mrb[0].mxu0 %v1745
        %v1825 = vpop.f32.mrb[0].mxu0
        %v1826 = vadd.f32 0.0, %v1825
        %v1827 = vpop.f32.mrb[0].mxu0
        %1828 = vmatprep.mubr.f32.mxu0 0.0
        %1829 = vmatmul.mubr.f32.gmra.mrb[0].mxu0 %v1748
        %v1830 = vpop.f32.mrb[0].mxu0
        %v1831 = vadd.f32 0.0, %v1830
        %v1832 = vpop.f32.mrb[0].mxu0
        %1833 = vmatprep.mubr.f32.mxu0 0.0
        %1834 = vmatmul.mubr.f32.gmra.mrb[0].mxu0 %v1751
        %v1835 = vpop.f32.mrb[0].mxu0
        %v1836 = vadd.f32 0.0, %v1835
        %v1837 = vpop.f32.mrb[0].mxu0
        %1838 = vmatprep.mubr.f32.mxu0 0.0
        %1839 = vmatmul.mubr.f32.gmra.mrb[0].mxu0 %v1754
        %v1840 = vpop.f32.mrb[0].mxu0
        %v1841 = vadd.f32 0.0, %v1840
        %v1842 = vpop.f32.mrb[0].mxu0
        %1843 = vdwg.mxu0
        %v1844 = vadd.f32 %v1648, %v1826
        %v1845 = vadd.f32 %v1649, %v1831
        %v1846 = vadd.f32 %v1650, %v1836
        %v1847 = vadd.f32 %v1651, %v1841
        %s1848 = scalar_lea.vmem [#allocation2], 768
        %v1849 = vld [vmem:[%s1848] sm:$0xff]
        %v1850 = vld [vmem:[%s1848 + $0x8] sm:$0xff]
        %v1851 = vld [vmem:[%s1848 + $0x10] sm:$0xff]
        %v1852 = vld [vmem:[%s1848 + $0x18] sm:$0xff]
        %v1853 = vld [vmem:[%s1848 + $0x20] sm:$0xff]
        %v1854 = vld [vmem:[%s1848 + $0x28] sm:$0xff]
        %v1855 = vld [vmem:[%s1848 + $0x30] sm:$0xff]
        %v1856 = vld [vmem:[%s1848 + $0x38] sm:$0xff]
        %v1857 = vld [vmem:[%s1848 + $0x40] sm:$0xff]
        %v1858 = vld [vmem:[%s1848 + $0x48] sm:$0xff]
        %v1859 = vld [vmem:[%s1848 + $0x50] sm:$0xff]
        %v1860 = vld [vmem:[%s1848 + $0x58] sm:$0xff]
        %v1861 = vld [vmem:[%s1848 + $0x60] sm:$0xff]
        %v1862 = vld [vmem:[%s1848 + $0x68] sm:$0xff]
        %v1863 = vld [vmem:[%s1848 + $0x70] sm:$0xff]
        %v1864 = vld [vmem:[%s1848 + $0x78] sm:$0xff]
        %1865 = vmatprep.subr.mxu0 0.0
        %1866 = vmatpush1.msra.mxu0 %v1849
        %1867 = vmatprep.subr.mxu0 0.0
        %1868 = vmatpush1.msra.mxu0 %v1850
        %1869 = vmatprep.subr.mxu0 0.0
        %1870 = vmatpush1.msra.mxu0 %v1851
        %1871 = vmatprep.subr.mxu0 0.0
        %1872 = vmatpush1.msra.mxu0 %v1852
        %1873 = vmatprep.subr.mxu0 0.0
        %1874 = vmatpush1.msra.mxu0 %v1853
        %1875 = vmatprep.subr.mxu0 0.0
        %1876 = vmatpush1.msra.mxu0 %v1854
        %1877 = vmatprep.subr.mxu0 0.0
        %1878 = vmatpush1.msra.mxu0 %v1855
        %1879 = vmatprep.subr.mxu0 0.0
        %1880 = vmatpush1.msra.mxu0 %v1856
        %1881 = vmatprep.subr.mxu0 0.0
        %1882 = vmatpush1.msra.mxu0 %v1857
        %1883 = vmatprep.subr.mxu0 0.0
        %1884 = vmatpush1.msra.mxu0 %v1858
        %1885 = vmatprep.subr.mxu0 0.0
        %1886 = vmatpush1.msra.mxu0 %v1859
        %1887 = vmatprep.subr.mxu0 0.0
        %1888 = vmatpush1.msra.mxu0 %v1860
        %1889 = vmatprep.subr.mxu0 0.0
        %1890 = vmatpush1.msra.mxu0 %v1861
        %1891 = vmatprep.subr.mxu0 0.0
        %1892 = vmatpush1.msra.mxu0 %v1862
        %1893 = vmatprep.subr.mxu0 0.0
        %1894 = vmatpush1.msra.mxu0 %v1863
        %1895 = vmatprep.subr.mxu0 0.0
        %1896 = vmatpush1.msra.mxu0 %v1864
        %1897 = vmatprep.subr.mxu0 0.0
        %1898 = vmatpush1.msra.mxu0 0.0
        %1899 = vmatprep.subr.mxu0 0.0
        %1900 = vmatpush1.msra.mxu0 0.0
        %1901 = vmatprep.subr.mxu0 0.0
        %1902 = vmatpush1.msra.mxu0 0.0
        %1903 = vmatprep.subr.mxu0 0.0
        %1904 = vmatpush1.msra.mxu0 0.0
        %1905 = vmatprep.subr.mxu0 0.0
        %1906 = vmatpush1.msra.mxu0 0.0
        %1907 = vmatprep.subr.mxu0 0.0
        %1908 = vmatpush1.msra.mxu0 0.0
        %1909 = vmatprep.subr.mxu0 0.0
        %1910 = vmatpush1.msra.mxu0 0.0
        %1911 = vmatprep.subr.mxu0 0.0
        %1912 = vmatpush1.msra.mxu0 0.0
        %1913 = vmatprep.subr.mxu0 0.0
        %1914 = vmatpush1.msra.mxu0 0.0
        %1915 = vmatprep.subr.mxu0 0.0
        %1916 = vmatpush1.msra.mxu0 0.0
        %1917 = vmatprep.subr.mxu0 0.0
        %1918 = vmatpush1.msra.mxu0 0.0
        %1919 = vmatprep.subr.mxu0 0.0
        %1920 = vmatpush1.msra.mxu0 0.0
        %1921 = vmatprep.subr.mxu0 0.0
        %1922 = vmatpush1.msra.mxu0 0.0
        %1923 = vmatprep.subr.mxu0 0.0
        %1924 = vmatpush1.msra.mxu0 0.0
        %1925 = vmatprep.subr.mxu0 0.0
        %1926 = vmatpush1.msra.mxu0 0.0
        %1927 = vmatprep.subr.mxu0 0.0
        %1928 = vmatpush1.msra.mxu0 0.0
        %1929 = vmatprep.mubr.f32.mxu0 0.0
        %1930 = vmatmul.mubr.f32.gmra.mrb[0].mxu0 %v679
        %v1931 = vpop.f32.mrb[0].mxu0
        %v1932 = vadd.f32 0.0, %v1931
        %v1933 = vpop.f32.mrb[0].mxu0
        %1934 = vdwg.mxu0
        %s1935 = scalar_lea.vmem %s2, 192
        %v1936 = vld [vmem:[%s1935] sm:$0xff]
        %v1937 = vld [vmem:[%s1935 + $0x8] sm:$0xff]
        %v1938 = vld [vmem:[%s1935 + $0x10] sm:$0xff]
        %v1939 = vld [vmem:[%s1935 + $0x18] sm:$0x3f]
        %v1941 = vsel %vm862, %v1936, 0
        %v1944 = vsel %vm862, %v1937, 0
        %v1947 = vsel %vm862, %v1938, 0
        %v1950 = vsel %vm862, %v1939, 0
        %v1953 = vsel %vm875, %v1932, 0
        %1955 = vmatprep.subr.mxu0 0.0
        %1956 = vmatpush1.msra.mxu0 %v1953
        %1957 = vmatprep.subr.mxu0 0.0
        %1958 = vmatpush1.msra.mxu0 0.0
        %1959 = vmatprep.subr.mxu0 0.0
        %1960 = vmatpush1.msra.mxu0 0.0
        %1961 = vmatprep.subr.mxu0 0.0
        %1962 = vmatpush1.msra.mxu0 0.0
        %1963 = vmatprep.subr.mxu0 0.0
        %1964 = vmatpush1.msra.mxu0 0.0
        %1965 = vmatprep.subr.mxu0 0.0
        %1966 = vmatpush1.msra.mxu0 0.0
        %1967 = vmatprep.subr.mxu0 0.0
        %1968 = vmatpush1.msra.mxu0 0.0
        %1969 = vmatprep.subr.mxu0 0.0
        %1970 = vmatpush1.msra.mxu0 0.0
        %1971 = vmatprep.subr.mxu0 0.0
        %1972 = vmatpush1.msra.mxu0 0.0
        %1973 = vmatprep.subr.mxu0 0.0
        %1974 = vmatpush1.msra.mxu0 0.0
        %1975 = vmatprep.subr.mxu0 0.0
        %1976 = vmatpush1.msra.mxu0 0.0
        %1977 = vmatprep.subr.mxu0 0.0
        %1978 = vmatpush1.msra.mxu0 0.0
        %1979 = vmatprep.subr.mxu0 0.0
        %1980 = vmatpush1.msra.mxu0 0.0
        %1981 = vmatprep.subr.mxu0 0.0
        %1982 = vmatpush1.msra.mxu0 0.0
        %1983 = vmatprep.subr.mxu0 0.0
        %1984 = vmatpush1.msra.mxu0 0.0
        %1985 = vmatprep.subr.mxu0 0.0
        %1986 = vmatpush1.msra.mxu0 0.0
        %1987 = vmatprep.subr.mxu0 0.0
        %1988 = vmatpush1.msra.mxu0 0.0
        %1989 = vmatprep.subr.mxu0 0.0
        %1990 = vmatpush1.msra.mxu0 0.0
        %1991 = vmatprep.subr.mxu0 0.0
        %1992 = vmatpush1.msra.mxu0 0.0
        %1993 = vmatprep.subr.mxu0 0.0
        %1994 = vmatpush1.msra.mxu0 0.0
        %1995 = vmatprep.subr.mxu0 0.0
        %1996 = vmatpush1.msra.mxu0 0.0
        %1997 = vmatprep.subr.mxu0 0.0
        %1998 = vmatpush1.msra.mxu0 0.0
        %1999 = vmatprep.subr.mxu0 0.0
        %2000 = vmatpush1.msra.mxu0 0.0
        %2001 = vmatprep.subr.mxu0 0.0
        %2002 = vmatpush1.msra.mxu0 0.0
        %2003 = vmatprep.subr.mxu0 0.0
        %2004 = vmatpush1.msra.mxu0 0.0
        %2005 = vmatprep.subr.mxu0 0.0
        %2006 = vmatpush1.msra.mxu0 0.0
        %2007 = vmatprep.subr.mxu0 0.0
        %2008 = vmatpush1.msra.mxu0 0.0
        %2009 = vmatprep.subr.mxu0 0.0
        %2010 = vmatpush1.msra.mxu0 0.0
        %2011 = vmatprep.subr.mxu0 0.0
        %2012 = vmatpush1.msra.mxu0 0.0
        %2013 = vmatprep.subr.mxu0 0.0
        %2014 = vmatpush1.msra.mxu0 0.0
        %2015 = vmatprep.subr.mxu0 0.0
        %2016 = vmatpush1.msra.mxu0 0.0
        %2017 = vmatprep.subr.mxu0 0.0
        %2018 = vmatpush1.msra.mxu0 0.0
        %2019 = vmatprep.mubr.f32.mxu0 0.0
        %2020 = vmatmul.mubr.f32.gmra.mrb[0].mxu0 %v1941
        %v2021 = vpop.f32.mrb[0].mxu0
        %v2022 = vadd.f32 0.0, %v2021
        %v2023 = vpop.f32.mrb[0].mxu0
        %2024 = vmatprep.mubr.f32.mxu0 0.0
        %2025 = vmatmul.mubr.f32.gmra.mrb[0].mxu0 %v1944
        %v2026 = vpop.f32.mrb[0].mxu0
        %v2027 = vadd.f32 0.0, %v2026
        %v2028 = vpop.f32.mrb[0].mxu0
        %2029 = vmatprep.mubr.f32.mxu0 0.0
        %2030 = vmatmul.mubr.f32.gmra.mrb[0].mxu0 %v1947
        %v2031 = vpop.f32.mrb[0].mxu0
        %v2032 = vadd.f32 0.0, %v2031
        %v2033 = vpop.f32.mrb[0].mxu0
        %2034 = vmatprep.mubr.f32.mxu0 0.0
        %2035 = vmatmul.mubr.f32.gmra.mrb[0].mxu0 %v1950
        %v2036 = vpop.f32.mrb[0].mxu0
        %v2037 = vadd.f32 0.0, %v2036
        %v2038 = vpop.f32.mrb[0].mxu0
        %2039 = vdwg.mxu0
        %v2040 = vadd.f32 %v1844, %v2022
        %v2041 = vadd.f32 %v1845, %v2027
        %v2042 = vadd.f32 %v1846, %v2032
        %v2043 = vadd.f32 %v1847, %v2037
        %s2044 = scalar_lea.vmem [#allocation2], 896
        %v2045 = vld [vmem:[%s2044] sm:$0xff]
        %v2046 = vld [vmem:[%s2044 + $0x8] sm:$0xff]
        %v2047 = vld [vmem:[%s2044 + $0x10] sm:$0xff]
        %v2048 = vld [vmem:[%s2044 + $0x18] sm:$0xff]
        %v2049 = vld [vmem:[%s2044 + $0x20] sm:$0xff]
        %v2050 = vld [vmem:[%s2044 + $0x28] sm:$0xff]
        %v2051 = vld [vmem:[%s2044 + $0x30] sm:$0xff]
        %v2052 = vld [vmem:[%s2044 + $0x38] sm:$0xff]
        %v2053 = vld [vmem:[%s2044 + $0x40] sm:$0xff]
        %v2054 = vld [vmem:[%s2044 + $0x48] sm:$0xff]
        %v2055 = vld [vmem:[%s2044 + $0x50] sm:$0xff]
        %v2056 = vld [vmem:[%s2044 + $0x58] sm:$0xff]
        %v2057 = vld [vmem:[%s2044 + $0x60] sm:$0xff]
        %v2058 = vld [vmem:[%s2044 + $0x68] sm:$0xff]
        %v2059 = vld [vmem:[%s2044 + $0x70] sm:$0xff]
        %v2060 = vld [vmem:[%s2044 + $0x78] sm:$0xff]
        %2061 = vmatprep.subr.mxu0 0.0
        %2062 = vmatpush1.msra.mxu0 %v2045
        %2063 = vmatprep.subr.mxu0 0.0
        %2064 = vmatpush1.msra.mxu0 %v2046
        %2065 = vmatprep.subr.mxu0 0.0
        %2066 = vmatpush1.msra.mxu0 %v2047
        %2067 = vmatprep.subr.mxu0 0.0
        %2068 = vmatpush1.msra.mxu0 %v2048
        %2069 = vmatprep.subr.mxu0 0.0
        %2070 = vmatpush1.msra.mxu0 %v2049
        %2071 = vmatprep.subr.mxu0 0.0
        %2072 = vmatpush1.msra.mxu0 %v2050
        %2073 = vmatprep.subr.mxu0 0.0
        %2074 = vmatpush1.msra.mxu0 %v2051
        %2075 = vmatprep.subr.mxu0 0.0
        %2076 = vmatpush1.msra.mxu0 %v2052
        %2077 = vmatprep.subr.mxu0 0.0
        %2078 = vmatpush1.msra.mxu0 %v2053
        %2079 = vmatprep.subr.mxu0 0.0
        %2080 = vmatpush1.msra.mxu0 %v2054
        %2081 = vmatprep.subr.mxu0 0.0
        %2082 = vmatpush1.msra.mxu0 %v2055
        %2083 = vmatprep.subr.mxu0 0.0
        %2084 = vmatpush1.msra.mxu0 %v2056
        %2085 = vmatprep.subr.mxu0 0.0
        %2086 = vmatpush1.msra.mxu0 %v2057
        %2087 = vmatprep.subr.mxu0 0.0
        %2088 = vmatpush1.msra.mxu0 %v2058
        %2089 = vmatprep.subr.mxu0 0.0
        %2090 = vmatpush1.msra.mxu0 %v2059
        %2091 = vmatprep.subr.mxu0 0.0
        %2092 = vmatpush1.msra.mxu0 %v2060
        %2093 = vmatprep.subr.mxu0 0.0
        %2094 = vmatpush1.msra.mxu0 0.0
        %2095 = vmatprep.subr.mxu0 0.0
        %2096 = vmatpush1.msra.mxu0 0.0
        %2097 = vmatprep.subr.mxu0 0.0
        %2098 = vmatpush1.msra.mxu0 0.0
        %2099 = vmatprep.subr.mxu0 0.0
        %2100 = vmatpush1.msra.mxu0 0.0
        %2101 = vmatprep.subr.mxu0 0.0
        %2102 = vmatpush1.msra.mxu0 0.0
        %2103 = vmatprep.subr.mxu0 0.0
        %2104 = vmatpush1.msra.mxu0 0.0
        %2105 = vmatprep.subr.mxu0 0.0
        %2106 = vmatpush1.msra.mxu0 0.0
        %2107 = vmatprep.subr.mxu0 0.0
        %2108 = vmatpush1.msra.mxu0 0.0
        %2109 = vmatprep.subr.mxu0 0.0
        %2110 = vmatpush1.msra.mxu0 0.0
        %2111 = vmatprep.subr.mxu0 0.0
        %2112 = vmatpush1.msra.mxu0 0.0
        %2113 = vmatprep.subr.mxu0 0.0
        %2114 = vmatpush1.msra.mxu0 0.0
        %2115 = vmatprep.subr.mxu0 0.0
        %2116 = vmatpush1.msra.mxu0 0.0
        %2117 = vmatprep.subr.mxu0 0.0
        %2118 = vmatpush1.msra.mxu0 0.0
        %2119 = vmatprep.subr.mxu0 0.0
        %2120 = vmatpush1.msra.mxu0 0.0
        %2121 = vmatprep.subr.mxu0 0.0
        %2122 = vmatpush1.msra.mxu0 0.0
        %2123 = vmatprep.subr.mxu0 0.0
        %2124 = vmatpush1.msra.mxu0 0.0
        %2125 = vmatprep.mubr.f32.mxu0 0.0
        %2126 = vmatmul.mubr.f32.gmra.mrb[0].mxu0 %v679
        %v2127 = vpop.f32.mrb[0].mxu0
        %v2128 = vadd.f32 0.0, %v2127
        %v2129 = vpop.f32.mrb[0].mxu0
        %2130 = vdwg.mxu0
        %s2131 = scalar_lea.vmem %s2, 224
        %v2132 = vld [vmem:[%s2131] sm:$0xff]
        %v2133 = vld [vmem:[%s2131 + $0x8] sm:$0xff]
        %v2134 = vld [vmem:[%s2131 + $0x10] sm:$0xff]
        %v2135 = vld [vmem:[%s2131 + $0x18] sm:$0x3f]
        %v2137 = vsel %vm862, %v2132, 0
        %v2140 = vsel %vm862, %v2133, 0
        %v2143 = vsel %vm862, %v2134, 0
        %v2146 = vsel %vm862, %v2135, 0
        %v2149 = vsel %vm875, %v2128, 0
        %2151 = vmatprep.subr.mxu0 0.0
        %2152 = vmatpush1.msra.mxu0 %v2149
        %2153 = vmatprep.subr.mxu0 0.0
        %2154 = vmatpush1.msra.mxu0 0.0
        %2155 = vmatprep.subr.mxu0 0.0
        %2156 = vmatpush1.msra.mxu0 0.0
        %2157 = vmatprep.subr.mxu0 0.0
        %2158 = vmatpush1.msra.mxu0 0.0
        %2159 = vmatprep.subr.mxu0 0.0
        %2160 = vmatpush1.msra.mxu0 0.0
        %2161 = vmatprep.subr.mxu0 0.0
        %2162 = vmatpush1.msra.mxu0 0.0
        %2163 = vmatprep.subr.mxu0 0.0
        %2164 = vmatpush1.msra.mxu0 0.0
        %2165 = vmatprep.subr.mxu0 0.0
        %2166 = vmatpush1.msra.mxu0 0.0
        %2167 = vmatprep.subr.mxu0 0.0
        %2168 = vmatpush1.msra.mxu0 0.0
        %2169 = vmatprep.subr.mxu0 0.0
        %2170 = vmatpush1.msra.mxu0 0.0
        %2171 = vmatprep.subr.mxu0 0.0
        %2172 = vmatpush1.msra.mxu0 0.0
        %2173 = vmatprep.subr.mxu0 0.0
        %2174 = vmatpush1.msra.mxu0 0.0
        %2175 = vmatprep.subr.mxu0 0.0
        %2176 = vmatpush1.msra.mxu0 0.0
        %2177 = vmatprep.subr.mxu0 0.0
        %2178 = vmatpush1.msra.mxu0 0.0
        %2179 = vmatprep.subr.mxu0 0.0
        %2180 = vmatpush1.msra.mxu0 0.0
        %2181 = vmatprep.subr.mxu0 0.0
        %2182 = vmatpush1.msra.mxu0 0.0
        %2183 = vmatprep.subr.mxu0 0.0
        %2184 = vmatpush1.msra.mxu0 0.0
        %2185 = vmatprep.subr.mxu0 0.0
        %2186 = vmatpush1.msra.mxu0 0.0
        %2187 = vmatprep.subr.mxu0 0.0
        %2188 = vmatpush1.msra.mxu0 0.0
        %2189 = vmatprep.subr.mxu0 0.0
        %2190 = vmatpush1.msra.mxu0 0.0
        %2191 = vmatprep.subr.mxu0 0.0
        %2192 = vmatpush1.msra.mxu0 0.0
        %2193 = vmatprep.subr.mxu0 0.0
        %2194 = vmatpush1.msra.mxu0 0.0
        %2195 = vmatprep.subr.mxu0 0.0
        %2196 = vmatpush1.msra.mxu0 0.0
        %2197 = vmatprep.subr.mxu0 0.0
        %2198 = vmatpush1.msra.mxu0 0.0
        %2199 = vmatprep.subr.mxu0 0.0
        %2200 = vmatpush1.msra.mxu0 0.0
        %2201 = vmatprep.subr.mxu0 0.0
        %2202 = vmatpush1.msra.mxu0 0.0
        %2203 = vmatprep.subr.mxu0 0.0
        %2204 = vmatpush1.msra.mxu0 0.0
        %2205 = vmatprep.subr.mxu0 0.0
        %2206 = vmatpush1.msra.mxu0 0.0
        %2207 = vmatprep.subr.mxu0 0.0
        %2208 = vmatpush1.msra.mxu0 0.0
        %2209 = vmatprep.subr.mxu0 0.0
        %2210 = vmatpush1.msra.mxu0 0.0
        %2211 = vmatprep.subr.mxu0 0.0
        %2212 = vmatpush1.msra.mxu0 0.0
        %2213 = vmatprep.subr.mxu0 0.0
        %2214 = vmatpush1.msra.mxu0 0.0
        %2215 = vmatprep.mubr.f32.mxu0 0.0
        %2216 = vmatmul.mubr.f32.gmra.mrb[0].mxu0 %v2137
        %v2217 = vpop.f32.mrb[0].mxu0
        %v2218 = vadd.f32 0.0, %v2217
        %v2219 = vpop.f32.mrb[0].mxu0
        %2220 = vmatprep.mubr.f32.mxu0 0.0
        %2221 = vmatmul.mubr.f32.gmra.mrb[0].mxu0 %v2140
        %v2222 = vpop.f32.mrb[0].mxu0
        %v2223 = vadd.f32 0.0, %v2222
        %v2224 = vpop.f32.mrb[0].mxu0
        %2225 = vmatprep.mubr.f32.mxu0 0.0
        %2226 = vmatmul.mubr.f32.gmra.mrb[0].mxu0 %v2143
        %v2227 = vpop.f32.mrb[0].mxu0
        %v2228 = vadd.f32 0.0, %v2227
        %v2229 = vpop.f32.mrb[0].mxu0
        %2230 = vmatprep.mubr.f32.mxu0 0.0
        %2231 = vmatmul.mubr.f32.gmra.mrb[0].mxu0 %v2146
        %v2232 = vpop.f32.mrb[0].mxu0
        %v2233 = vadd.f32 0.0, %v2232
        %v2234 = vpop.f32.mrb[0].mxu0
        %2235 = vdwg.mxu0
        %v2236 = vadd.f32 %v2040, %v2218
        %v2237 = vadd.f32 %v2041, %v2223
        %v2238 = vadd.f32 %v2042, %v2228
        %v2239 = vadd.f32 %v2043, %v2233
        %s2240 = scalar_lea.vmem [#allocation2], 1024
        %v2241 = vld [vmem:[%s2240] sm:$0xff]
        %v2242 = vld [vmem:[%s2240 + $0x8] sm:$0xff]
        %v2243 = vld [vmem:[%s2240 + $0x10] sm:$0xff]
        %v2244 = vld [vmem:[%s2240 + $0x18] sm:$0xff]
        %v2245 = vld [vmem:[%s2240 + $0x20] sm:$0xff]
        %v2246 = vld [vmem:[%s2240 + $0x28] sm:$0xff]
        %v2247 = vld [vmem:[%s2240 + $0x30] sm:$0xff]
        %v2248 = vld [vmem:[%s2240 + $0x38] sm:$0xff]
        %v2249 = vld [vmem:[%s2240 + $0x40] sm:$0xff]
        %v2250 = vld [vmem:[%s2240 + $0x48] sm:$0xff]
        %v2251 = vld [vmem:[%s2240 + $0x50] sm:$0xff]
        %v2252 = vld [vmem:[%s2240 + $0x58] sm:$0xff]
        %v2253 = vld [vmem:[%s2240 + $0x60] sm:$0xff]
        %v2254 = vld [vmem:[%s2240 + $0x68] sm:$0xff]
        %v2255 = vld [vmem:[%s2240 + $0x70] sm:$0xff]
        %v2256 = vld [vmem:[%s2240 + $0x78] sm:$0xff]
        %2257 = vmatprep.subr.mxu0 0.0
        %2258 = vmatpush1.msra.mxu0 %v2241
        %2259 = vmatprep.subr.mxu0 0.0
        %2260 = vmatpush1.msra.mxu0 %v2242
        %2261 = vmatprep.subr.mxu0 0.0
        %2262 = vmatpush1.msra.mxu0 %v2243
        %2263 = vmatprep.subr.mxu0 0.0
        %2264 = vmatpush1.msra.mxu0 %v2244
        %2265 = vmatprep.subr.mxu0 0.0
        %2266 = vmatpush1.msra.mxu0 %v2245
        %2267 = vmatprep.subr.mxu0 0.0
        %2268 = vmatpush1.msra.mxu0 %v2246
        %2269 = vmatprep.subr.mxu0 0.0
        %2270 = vmatpush1.msra.mxu0 %v2247
        %2271 = vmatprep.subr.mxu0 0.0
        %2272 = vmatpush1.msra.mxu0 %v2248
        %2273 = vmatprep.subr.mxu0 0.0
        %2274 = vmatpush1.msra.mxu0 %v2249
        %2275 = vmatprep.subr.mxu0 0.0
        %2276 = vmatpush1.msra.mxu0 %v2250
        %2277 = vmatprep.subr.mxu0 0.0
        %2278 = vmatpush1.msra.mxu0 %v2251
        %2279 = vmatprep.subr.mxu0 0.0
        %2280 = vmatpush1.msra.mxu0 %v2252
        %2281 = vmatprep.subr.mxu0 0.0
        %2282 = vmatpush1.msra.mxu0 %v2253
        %2283 = vmatprep.subr.mxu0 0.0
        %2284 = vmatpush1.msra.mxu0 %v2254
        %2285 = vmatprep.subr.mxu0 0.0
        %2286 = vmatpush1.msra.mxu0 %v2255
        %2287 = vmatprep.subr.mxu0 0.0
        %2288 = vmatpush1.msra.mxu0 %v2256
        %2289 = vmatprep.subr.mxu0 0.0
        %2290 = vmatpush1.msra.mxu0 0.0
        %2291 = vmatprep.subr.mxu0 0.0
        %2292 = vmatpush1.msra.mxu0 0.0
        %2293 = vmatprep.subr.mxu0 0.0
        %2294 = vmatpush1.msra.mxu0 0.0
        %2295 = vmatprep.subr.mxu0 0.0
        %2296 = vmatpush1.msra.mxu0 0.0
        %2297 = vmatprep.subr.mxu0 0.0
        %2298 = vmatpush1.msra.mxu0 0.0
        %2299 = vmatprep.subr.mxu0 0.0
        %2300 = vmatpush1.msra.mxu0 0.0
        %2301 = vmatprep.subr.mxu0 0.0
        %2302 = vmatpush1.msra.mxu0 0.0
        %2303 = vmatprep.subr.mxu0 0.0
        %2304 = vmatpush1.msra.mxu0 0.0
        %2305 = vmatprep.subr.mxu0 0.0
        %2306 = vmatpush1.msra.mxu0 0.0
        %2307 = vmatprep.subr.mxu0 0.0
        %2308 = vmatpush1.msra.mxu0 0.0
        %2309 = vmatprep.subr.mxu0 0.0
        %2310 = vmatpush1.msra.mxu0 0.0
        %2311 = vmatprep.subr.mxu0 0.0
        %2312 = vmatpush1.msra.mxu0 0.0
        %2313 = vmatprep.subr.mxu0 0.0
        %2314 = vmatpush1.msra.mxu0 0.0
        %2315 = vmatprep.subr.mxu0 0.0
        %2316 = vmatpush1.msra.mxu0 0.0
        %2317 = vmatprep.subr.mxu0 0.0
        %2318 = vmatpush1.msra.mxu0 0.0
        %2319 = vmatprep.subr.mxu0 0.0
        %2320 = vmatpush1.msra.mxu0 0.0
        %2321 = vmatprep.mubr.f32.mxu0 0.0
        %2322 = vmatmul.mubr.f32.gmra.mrb[0].mxu0 %v679
        %v2323 = vpop.f32.mrb[0].mxu0
        %v2324 = vadd.f32 0.0, %v2323
        %v2325 = vpop.f32.mrb[0].mxu0
        %2326 = vdwg.mxu0
        %s2327 = scalar_lea.vmem %s2, 256
        %v2328 = vld [vmem:[%s2327] sm:$0xff]
        %v2329 = vld [vmem:[%s2327 + $0x8] sm:$0xff]
        %v2330 = vld [vmem:[%s2327 + $0x10] sm:$0xff]
        %v2331 = vld [vmem:[%s2327 + $0x18] sm:$0x3f]
        %v2333 = vsel %vm862, %v2328, 0
        %v2336 = vsel %vm862, %v2329, 0
        %v2339 = vsel %vm862, %v2330, 0
        %v2342 = vsel %vm862, %v2331, 0
        %v2345 = vsel %vm875, %v2324, 0
        %2347 = vmatprep.subr.mxu0 0.0
        %2348 = vmatpush1.msra.mxu0 %v2345
        %2349 = vmatprep.subr.mxu0 0.0
        %2350 = vmatpush1.msra.mxu0 0.0
        %2351 = vmatprep.subr.mxu0 0.0
        %2352 = vmatpush1.msra.mxu0 0.0
        %2353 = vmatprep.subr.mxu0 0.0
        %2354 = vmatpush1.msra.mxu0 0.0
        %2355 = vmatprep.subr.mxu0 0.0
        %2356 = vmatpush1.msra.mxu0 0.0
        %2357 = vmatprep.subr.mxu0 0.0
        %2358 = vmatpush1.msra.mxu0 0.0
        %2359 = vmatprep.subr.mxu0 0.0
        %2360 = vmatpush1.msra.mxu0 0.0
        %2361 = vmatprep.subr.mxu0 0.0
        %2362 = vmatpush1.msra.mxu0 0.0
        %2363 = vmatprep.subr.mxu0 0.0
        %2364 = vmatpush1.msra.mxu0 0.0
        %2365 = vmatprep.subr.mxu0 0.0
        %2366 = vmatpush1.msra.mxu0 0.0
        %2367 = vmatprep.subr.mxu0 0.0
        %2368 = vmatpush1.msra.mxu0 0.0
        %2369 = vmatprep.subr.mxu0 0.0
        %2370 = vmatpush1.msra.mxu0 0.0
        %2371 = vmatprep.subr.mxu0 0.0
        %2372 = vmatpush1.msra.mxu0 0.0
        %2373 = vmatprep.subr.mxu0 0.0
        %2374 = vmatpush1.msra.mxu0 0.0
        %2375 = vmatprep.subr.mxu0 0.0
        %2376 = vmatpush1.msra.mxu0 0.0
        %2377 = vmatprep.subr.mxu0 0.0
        %2378 = vmatpush1.msra.mxu0 0.0
        %2379 = vmatprep.subr.mxu0 0.0
        %2380 = vmatpush1.msra.mxu0 0.0
        %2381 = vmatprep.subr.mxu0 0.0
        %2382 = vmatpush1.msra.mxu0 0.0
        %2383 = vmatprep.subr.mxu0 0.0
        %2384 = vmatpush1.msra.mxu0 0.0
        %2385 = vmatprep.subr.mxu0 0.0
        %2386 = vmatpush1.msra.mxu0 0.0
        %2387 = vmatprep.subr.mxu0 0.0
        %2388 = vmatpush1.msra.mxu0 0.0
        %2389 = vmatprep.subr.mxu0 0.0
        %2390 = vmatpush1.msra.mxu0 0.0
        %2391 = vmatprep.subr.mxu0 0.0
        %2392 = vmatpush1.msra.mxu0 0.0
        %2393 = vmatprep.subr.mxu0 0.0
        %2394 = vmatpush1.msra.mxu0 0.0
        %2395 = vmatprep.subr.mxu0 0.0
        %2396 = vmatpush1.msra.mxu0 0.0
        %2397 = vmatprep.subr.mxu0 0.0
        %2398 = vmatpush1.msra.mxu0 0.0
        %2399 = vmatprep.subr.mxu0 0.0
        %2400 = vmatpush1.msra.mxu0 0.0
        %2401 = vmatprep.subr.mxu0 0.0
        %2402 = vmatpush1.msra.mxu0 0.0
        %2403 = vmatprep.subr.mxu0 0.0
        %2404 = vmatpush1.msra.mxu0 0.0
        %2405 = vmatprep.subr.mxu0 0.0
        %2406 = vmatpush1.msra.mxu0 0.0
        %2407 = vmatprep.subr.mxu0 0.0
        %2408 = vmatpush1.msra.mxu0 0.0
        %2409 = vmatprep.subr.mxu0 0.0
        %2410 = vmatpush1.msra.mxu0 0.0
        %2411 = vmatprep.mubr.f32.mxu0 0.0
        %2412 = vmatmul.mubr.f32.gmra.mrb[0].mxu0 %v2333
        %v2413 = vpop.f32.mrb[0].mxu0
        %v2414 = vadd.f32 0.0, %v2413
        %v2415 = vpop.f32.mrb[0].mxu0
        %2416 = vmatprep.mubr.f32.mxu0 0.0
        %2417 = vmatmul.mubr.f32.gmra.mrb[0].mxu0 %v2336
        %v2418 = vpop.f32.mrb[0].mxu0
        %v2419 = vadd.f32 0.0, %v2418
        %v2420 = vpop.f32.mrb[0].mxu0
        %2421 = vmatprep.mubr.f32.mxu0 0.0
        %2422 = vmatmul.mubr.f32.gmra.mrb[0].mxu0 %v2339
        %v2423 = vpop.f32.mrb[0].mxu0
        %v2424 = vadd.f32 0.0, %v2423
        %v2425 = vpop.f32.mrb[0].mxu0
        %2426 = vmatprep.mubr.f32.mxu0 0.0
        %2427 = vmatmul.mubr.f32.gmra.mrb[0].mxu0 %v2342
        %v2428 = vpop.f32.mrb[0].mxu0
        %v2429 = vadd.f32 0.0, %v2428
        %v2430 = vpop.f32.mrb[0].mxu0
        %2431 = vdwg.mxu0
        %v2432 = vadd.f32 %v2236, %v2414
        %v2433 = vadd.f32 %v2237, %v2419
        %v2434 = vadd.f32 %v2238, %v2424
        %v2435 = vadd.f32 %v2239, %v2429
        %v2436 = vld [vmem:[%s3] sm:$0xff]
        %v2437 = vld [vmem:[%s3 + $0x8] sm:$0xff]
        %v2438 = vld [vmem:[%s3 + $0x10] sm:$0xff]
        %v2439 = vld [vmem:[%s3 + $0x18] sm:$0x3f]
        %2441 = vset.pattern.permute.xlu0 0
        %2442 = vperm.xlu0 %2441, %v2436
        %v2443 = vpop.permute.xlu0 %2442
        %2446 = vset.pattern.permute.xlu0 0
        %2447 = vperm.xlu0 %2446, %v2437
        %v2448 = vpop.permute.xlu0 %2447
        %2451 = vset.pattern.permute.xlu0 0
        %2452 = vperm.xlu0 %2451, %v2438
        %v2453 = vpop.permute.xlu0 %2452
        %2456 = vset.pattern.permute.xlu0 0
        %2457 = vperm.xlu0 %2456, %v2439
        %v2458 = vpop.permute.xlu0 %2457
        %v2460 = vadd.f32 %v2432, %v2443
        %v2461 = vadd.f32 %v2433, %v2448
        %v2462 = vadd.f32 %v2434, %v2453
        %v2463 = vadd.f32 %v2435, %v2458
        %v2464 = vtanh.pop %v2460
        %v2465 = vtanh.pop %v2461
        %v2466 = vtanh.pop %v2462
        %v2467 = vtanh.pop %v2463
        %2468 = vmatprep.subr.mxu0 0.0
        %2469 = vmatpush1.msra.mxu0 %v680
        %2470 = vmatprep.subr.mxu0 0.0
        %2471 = vmatpush1.msra.mxu0 %v681
        %2472 = vmatprep.subr.mxu0 0.0
        %2473 = vmatpush1.msra.mxu0 %v682
        %2474 = vmatprep.subr.mxu0 0.0
        %2475 = vmatpush1.msra.mxu0 %v683
        %2476 = vmatprep.subr.mxu0 0.0
        %2477 = vmatpush1.msra.mxu0 %v684
        %2478 = vmatprep.subr.mxu0 0.0
        %2479 = vmatpush1.msra.mxu0 %v685
        %2480 = vmatprep.subr.mxu0 0.0
        %2481 = vmatpush1.msra.mxu0 %v686
        %2482 = vmatprep.subr.mxu0 0.0
        %2483 = vmatpush1.msra.mxu0 %v687
        %2484 = vmatprep.subr.mxu0 0.0
        %2485 = vmatpush1.msra.mxu0 %v688
        %2486 = vmatprep.subr.mxu0 0.0
        %2487 = vmatpush1.msra.mxu0 %v689
        %2488 = vmatprep.subr.mxu0 0.0
        %2489 = vmatpush1.msra.mxu0 %v690
        %2490 = vmatprep.subr.mxu0 0.0
        %2491 = vmatpush1.msra.mxu0 %v691
        %2492 = vmatprep.subr.mxu0 0.0
        %2493 = vmatpush1.msra.mxu0 %v692
        %2494 = vmatprep.subr.mxu0 0.0
        %2495 = vmatpush1.msra.mxu0 %v693
        %2496 = vmatprep.subr.mxu0 0.0
        %2497 = vmatpush1.msra.mxu0 %v694
        %2498 = vmatprep.subr.mxu0 0.0
        %2499 = vmatpush1.msra.mxu0 %v695
        %2500 = vmatprep.subr.mxu0 0.0
        %2501 = vmatpush1.msra.mxu0 0.0
        %2502 = vmatprep.subr.mxu0 0.0
        %2503 = vmatpush1.msra.mxu0 0.0
        %2504 = vmatprep.subr.mxu0 0.0
        %2505 = vmatpush1.msra.mxu0 0.0
        %2506 = vmatprep.subr.mxu0 0.0
        %2507 = vmatpush1.msra.mxu0 0.0
        %2508 = vmatprep.subr.mxu0 0.0
        %2509 = vmatpush1.msra.mxu0 0.0
        %2510 = vmatprep.subr.mxu0 0.0
        %2511 = vmatpush1.msra.mxu0 0.0
        %2512 = vmatprep.subr.mxu0 0.0
        %2513 = vmatpush1.msra.mxu0 0.0
        %2514 = vmatprep.subr.mxu0 0.0
        %2515 = vmatpush1.msra.mxu0 0.0
        %2516 = vmatprep.subr.mxu0 0.0
        %2517 = vmatpush1.msra.mxu0 0.0
        %2518 = vmatprep.subr.mxu0 0.0
        %2519 = vmatpush1.msra.mxu0 0.0
        %2520 = vmatprep.subr.mxu0 0.0
        %2521 = vmatpush1.msra.mxu0 0.0
        %2522 = vmatprep.subr.mxu0 0.0
        %2523 = vmatpush1.msra.mxu0 0.0
        %2524 = vmatprep.subr.mxu0 0.0
        %2525 = vmatpush1.msra.mxu0 0.0
        %2526 = vmatprep.subr.mxu0 0.0
        %2527 = vmatpush1.msra.mxu0 0.0
        %2528 = vmatprep.subr.mxu0 0.0
        %2529 = vmatpush1.msra.mxu0 0.0
        %2530 = vmatprep.subr.mxu0 0.0
        %2531 = vmatpush1.msra.mxu0 0.0
        %2532 = vmatprep.mubr.f32.mxu0 0.0
        %2533 = vmatmul.mubr.f32.gmra.mrb[0].mxu0 %v2464
        %v2534 = vpop.f32.mrb[0].mxu0
        %v2535 = vadd.f32 0.0, %v2534
        %v2536 = vpop.f32.mrb[0].mxu0
        %2537 = vmatprep.mubr.f32.mxu0 0.0
        %2538 = vmatmul.mubr.f32.gmra.mrb[0].mxu0 %v2465
        %v2539 = vpop.f32.mrb[0].mxu0
        %v2540 = vadd.f32 0.0, %v2539
        %v2541 = vpop.f32.mrb[0].mxu0
        %2542 = vmatprep.mubr.f32.mxu0 0.0
        %2543 = vmatmul.mubr.f32.gmra.mrb[0].mxu0 %v2466
        %v2544 = vpop.f32.mrb[0].mxu0
        %v2545 = vadd.f32 0.0, %v2544
        %v2546 = vpop.f32.mrb[0].mxu0
        %2547 = vmatprep.mubr.f32.mxu0 0.0
        %2548 = vmatmul.mubr.f32.gmra.mrb[0].mxu0 %v2467
        %v2549 = vpop.f32.mrb[0].mxu0
        %v2550 = vadd.f32 0.0, %v2549
        %v2551 = vpop.f32.mrb[0].mxu0
        %2552 = vdwg.mxu0
        %v2553 = vld [vmem:[%s4] sm:$0xff]
        %v2554 = vld [vmem:[%s4 + $0x8] sm:$0xff]
        %v2555 = vld [vmem:[%s4 + $0x10] sm:$0xf]
        %2556 = vmatprep.subr.mxu0 0.0
        %2557 = vmatpush1.msra.mxu0 %v771
        %2558 = vmatprep.subr.mxu0 0.0
        %2559 = vmatpush1.msra.mxu0 %v772
        %2560 = vmatprep.subr.mxu0 0.0
        %2561 = vmatpush1.msra.mxu0 %v773
        %2562 = vmatprep.subr.mxu0 0.0
        %2563 = vmatpush1.msra.mxu0 %v774
        %2564 = vmatprep.subr.mxu0 0.0
        %2565 = vmatpush1.msra.mxu0 %v775
        %2566 = vmatprep.subr.mxu0 0.0
        %2567 = vmatpush1.msra.mxu0 %v776
        %2568 = vmatprep.subr.mxu0 0.0
        %2569 = vmatpush1.msra.mxu0 %v777
        %2570 = vmatprep.subr.mxu0 0.0
        %2571 = vmatpush1.msra.mxu0 %v778
        %2572 = vmatprep.subr.mxu0 0.0
        %2573 = vmatpush1.msra.mxu0 %v779
        %2574 = vmatprep.subr.mxu0 0.0
        %2575 = vmatpush1.msra.mxu0 %v780
        %2576 = vmatprep.subr.mxu0 0.0
        %2577 = vmatpush1.msra.mxu0 %v781
        %2578 = vmatprep.subr.mxu0 0.0
        %2579 = vmatpush1.msra.mxu0 %v782
        %2580 = vmatprep.subr.mxu0 0.0
        %2581 = vmatpush1.msra.mxu0 %v783
        %2582 = vmatprep.subr.mxu0 0.0
        %2583 = vmatpush1.msra.mxu0 %v784
        %2584 = vmatprep.subr.mxu0 0.0
        %2585 = vmatpush1.msra.mxu0 %v785
        %2586 = vmatprep.subr.mxu0 0.0
        %2587 = vmatpush1.msra.mxu0 %v786
        %2588 = vmatprep.subr.mxu0 0.0
        %2589 = vmatpush1.msra.mxu0 0.0
        %2590 = vmatprep.subr.mxu0 0.0
        %2591 = vmatpush1.msra.mxu0 0.0
        %2592 = vmatprep.subr.mxu0 0.0
        %2593 = vmatpush1.msra.mxu0 0.0
        %2594 = vmatprep.subr.mxu0 0.0
        %2595 = vmatpush1.msra.mxu0 0.0
        %2596 = vmatprep.subr.mxu0 0.0
        %2597 = vmatpush1.msra.mxu0 0.0
        %2598 = vmatprep.subr.mxu0 0.0
        %2599 = vmatpush1.msra.mxu0 0.0
        %2600 = vmatprep.subr.mxu0 0.0
        %2601 = vmatpush1.msra.mxu0 0.0
        %2602 = vmatprep.subr.mxu0 0.0
        %2603 = vmatpush1.msra.mxu0 0.0
        %2604 = vmatprep.subr.mxu0 0.0
        %2605 = vmatpush1.msra.mxu0 0.0
        %2606 = vmatprep.subr.mxu0 0.0
        %2607 = vmatpush1.msra.mxu0 0.0
        %2608 = vmatprep.subr.mxu0 0.0
        %2609 = vmatpush1.msra.mxu0 0.0
        %2610 = vmatprep.subr.mxu0 0.0
        %2611 = vmatpush1.msra.mxu0 0.0
        %2612 = vmatprep.subr.mxu0 0.0
        %2613 = vmatpush1.msra.mxu0 0.0
        %2614 = vmatprep.subr.mxu0 0.0
        %2615 = vmatpush1.msra.mxu0 0.0
        %2616 = vmatprep.subr.mxu0 0.0
        %2617 = vmatpush1.msra.mxu0 0.0
        %2618 = vmatprep.subr.mxu0 0.0
        %2619 = vmatpush1.msra.mxu0 0.0
        %2620 = vmatprep.mubr.f32.mxu0 0.0
        %2621 = vmatmul.mubr.f32.gmra.mrb[0].mxu0 %v2464
        %v2622 = vpop.f32.mrb[0].mxu0
        %v2623 = vadd.f32 0.0, %v2622
        %v2624 = vpop.f32.mrb[0].mxu0
        %2625 = vmatprep.mubr.f32.mxu0 0.0
        %2626 = vmatmul.mubr.f32.gmra.mrb[0].mxu0 %v2465
        %v2627 = vpop.f32.mrb[0].mxu0
        %v2628 = vadd.f32 0.0, %v2627
        %v2629 = vpop.f32.mrb[0].mxu0
        %2630 = vmatprep.mubr.f32.mxu0 0.0
        %2631 = vmatmul.mubr.f32.gmra.mrb[0].mxu0 %v2466
        %v2632 = vpop.f32.mrb[0].mxu0
        %v2633 = vadd.f32 0.0, %v2632
        %v2634 = vpop.f32.mrb[0].mxu0
        %2635 = vmatprep.mubr.f32.mxu0 0.0
        %2636 = vmatmul.mubr.f32.gmra.mrb[0].mxu0 %v2467
        %v2637 = vpop.f32.mrb[0].mxu0
        %v2638 = vadd.f32 0.0, %v2637
        %v2639 = vpop.f32.mrb[0].mxu0
        %2640 = vdwg.mxu0
        %s2641 = scalar_lea.vmem %s4, 24
        %v2642 = vld [vmem:[%s2641] sm:$0xff]
        %v2643 = vld [vmem:[%s2641 + $0x8] sm:$0xff]
        %v2644 = vld [vmem:[%s2641 + $0x10] sm:$0xf]
        %vm2645 = vcmask 244736
        %v2647 = vsel %vm2645, %v2642, 0
        %v2650 = vsel %vm2645, %v2643, 0
        %v2653 = vsel %vm2645, %v2644, 0
        %vm2655 = vcmask 1045504
        %v2657 = vsel %vm2655, %v2638, 0
        %2659 = vmatprep.subr.mxu0 0.0
        %2660 = vmatpush1.msra.mxu0 %v2623
        %2661 = vmatprep.subr.mxu0 0.0
        %2662 = vmatpush1.msra.mxu0 %v2628
        %2663 = vmatprep.subr.mxu0 0.0
        %2664 = vmatpush1.msra.mxu0 %v2633
        %2665 = vmatprep.subr.mxu0 0.0
        %2666 = vmatpush1.msra.mxu0 %v2657
        %2667 = vmatprep.subr.mxu0 0.0
        %2668 = vmatpush1.msra.mxu0 0.0
        %2669 = vmatprep.subr.mxu0 0.0
        %2670 = vmatpush1.msra.mxu0 0.0
        %2671 = vmatprep.subr.mxu0 0.0
        %2672 = vmatpush1.msra.mxu0 0.0
        %2673 = vmatprep.subr.mxu0 0.0
        %2674 = vmatpush1.msra.mxu0 0.0
        %2675 = vmatprep.subr.mxu0 0.0
        %2676 = vmatpush1.msra.mxu0 0.0
        %2677 = vmatprep.subr.mxu0 0.0
        %2678 = vmatpush1.msra.mxu0 0.0
        %2679 = vmatprep.subr.mxu0 0.0
        %2680 = vmatpush1.msra.mxu0 0.0
        %2681 = vmatprep.subr.mxu0 0.0
        %2682 = vmatpush1.msra.mxu0 0.0
        %2683 = vmatprep.subr.mxu0 0.0
        %2684 = vmatpush1.msra.mxu0 0.0
        %2685 = vmatprep.subr.mxu0 0.0
        %2686 = vmatpush1.msra.mxu0 0.0
        %2687 = vmatprep.subr.mxu0 0.0
        %2688 = vmatpush1.msra.mxu0 0.0
        %2689 = vmatprep.subr.mxu0 0.0
        %2690 = vmatpush1.msra.mxu0 0.0
        %2691 = vmatprep.subr.mxu0 0.0
        %2692 = vmatpush1.msra.mxu0 0.0
        %2693 = vmatprep.subr.mxu0 0.0
        %2694 = vmatpush1.msra.mxu0 0.0
        %2695 = vmatprep.subr.mxu0 0.0
        %2696 = vmatpush1.msra.mxu0 0.0
        %2697 = vmatprep.subr.mxu0 0.0
        %2698 = vmatpush1.msra.mxu0 0.0
        %2699 = vmatprep.subr.mxu0 0.0
        %2700 = vmatpush1.msra.mxu0 0.0
        %2701 = vmatprep.subr.mxu0 0.0
        %2702 = vmatpush1.msra.mxu0 0.0
        %2703 = vmatprep.subr.mxu0 0.0
        %2704 = vmatpush1.msra.mxu0 0.0
        %2705 = vmatprep.subr.mxu0 0.0
        %2706 = vmatpush1.msra.mxu0 0.0
        %2707 = vmatprep.subr.mxu0 0.0
        %2708 = vmatpush1.msra.mxu0 0.0
        %2709 = vmatprep.subr.mxu0 0.0
        %2710 = vmatpush1.msra.mxu0 0.0
        %2711 = vmatprep.subr.mxu0 0.0
        %2712 = vmatpush1.msra.mxu0 0.0
        %2713 = vmatprep.subr.mxu0 0.0
        %2714 = vmatpush1.msra.mxu0 0.0
        %2715 = vmatprep.subr.mxu0 0.0
        %2716 = vmatpush1.msra.mxu0 0.0
        %2717 = vmatprep.subr.mxu0 0.0
        %2718 = vmatpush1.msra.mxu0 0.0
        %2719 = vmatprep.subr.mxu0 0.0
        %2720 = vmatpush1.msra.mxu0 0.0
        %2721 = vmatprep.subr.mxu0 0.0
        %2722 = vmatpush1.msra.mxu0 0.0
        %2723 = vmatprep.mubr.f32.mxu0 0.0
        %2724 = vmatmul.mubr.f32.gmra.mrb[0].mxu0 %v2647
        %v2725 = vpop.f32.mrb[0].mxu0
        %v2726 = vadd.f32 0.0, %v2725
        %v2727 = vpop.f32.mrb[0].mxu0
        %2728 = vmatprep.mubr.f32.mxu0 0.0
        %2729 = vmatmul.mubr.f32.gmra.mrb[0].mxu0 %v2650
        %v2730 = vpop.f32.mrb[0].mxu0
        %v2731 = vadd.f32 0.0, %v2730
        %v2732 = vpop.f32.mrb[0].mxu0
        %2733 = vmatprep.mubr.f32.mxu0 0.0
        %2734 = vmatmul.mubr.f32.gmra.mrb[0].mxu0 %v2653
        %v2735 = vpop.f32.mrb[0].mxu0
        %v2736 = vadd.f32 0.0, %v2735
        %v2737 = vpop.f32.mrb[0].mxu0
        %2738 = vdwg.mxu0
        %v2740 = vsel %vm2645, %v2553, 0
        %v2743 = vsel %vm2645, %v2554, 0
        %v2746 = vsel %vm2645, %v2555, 0
        %v2749 = vsel %vm2655, %v2550, 0
        %2751 = vmatprep.subr.mxu0 0.0
        %2752 = vmatpush1.msra.mxu0 %v2535
        %2753 = vmatprep.subr.mxu0 0.0
        %2754 = vmatpush1.msra.mxu0 %v2540
        %2755 = vmatprep.subr.mxu0 0.0
        %2756 = vmatpush1.msra.mxu0 %v2545
        %2757 = vmatprep.subr.mxu0 0.0
        %2758 = vmatpush1.msra.mxu0 %v2749
        %2759 = vmatprep.subr.mxu0 0.0
        %2760 = vmatpush1.msra.mxu0 0.0
        %2761 = vmatprep.subr.mxu0 0.0
        %2762 = vmatpush1.msra.mxu0 0.0
        %2763 = vmatprep.subr.mxu0 0.0
        %2764 = vmatpush1.msra.mxu0 0.0
        %2765 = vmatprep.subr.mxu0 0.0
        %2766 = vmatpush1.msra.mxu0 0.0
        %2767 = vmatprep.subr.mxu0 0.0
        %2768 = vmatpush1.msra.mxu0 0.0
        %2769 = vmatprep.subr.mxu0 0.0
        %2770 = vmatpush1.msra.mxu0 0.0
        %2771 = vmatprep.subr.mxu0 0.0
        %2772 = vmatpush1.msra.mxu0 0.0
        %2773 = vmatprep.subr.mxu0 0.0
        %2774 = vmatpush1.msra.mxu0 0.0
        %2775 = vmatprep.subr.mxu0 0.0
        %2776 = vmatpush1.msra.mxu0 0.0
        %2777 = vmatprep.subr.mxu0 0.0
        %2778 = vmatpush1.msra.mxu0 0.0
        %2779 = vmatprep.subr.mxu0 0.0
        %2780 = vmatpush1.msra.mxu0 0.0
        %2781 = vmatprep.subr.mxu0 0.0
        %2782 = vmatpush1.msra.mxu0 0.0
        %2783 = vmatprep.subr.mxu0 0.0
        %2784 = vmatpush1.msra.mxu0 0.0
        %2785 = vmatprep.subr.mxu0 0.0
        %2786 = vmatpush1.msra.mxu0 0.0
        %2787 = vmatprep.subr.mxu0 0.0
        %2788 = vmatpush1.msra.mxu0 0.0
        %2789 = vmatprep.subr.mxu0 0.0
        %2790 = vmatpush1.msra.mxu0 0.0
        %2791 = vmatprep.subr.mxu0 0.0
        %2792 = vmatpush1.msra.mxu0 0.0
        %2793 = vmatprep.subr.mxu0 0.0
        %2794 = vmatpush1.msra.mxu0 0.0
        %2795 = vmatprep.subr.mxu0 0.0
        %2796 = vmatpush1.msra.mxu0 0.0
        %2797 = vmatprep.subr.mxu0 0.0
        %2798 = vmatpush1.msra.mxu0 0.0
        %2799 = vmatprep.subr.mxu0 0.0
        %2800 = vmatpush1.msra.mxu0 0.0
        %2801 = vmatprep.subr.mxu0 0.0
        %2802 = vmatpush1.msra.mxu0 0.0
        %2803 = vmatprep.subr.mxu0 0.0
        %2804 = vmatpush1.msra.mxu0 0.0
        %2805 = vmatprep.subr.mxu0 0.0
        %2806 = vmatpush1.msra.mxu0 0.0
        %2807 = vmatprep.subr.mxu0 0.0
        %2808 = vmatpush1.msra.mxu0 0.0
        %2809 = vmatprep.subr.mxu0 0.0
        %2810 = vmatpush1.msra.mxu0 0.0
        %2811 = vmatprep.subr.mxu0 0.0
        %2812 = vmatpush1.msra.mxu0 0.0
        %2813 = vmatprep.subr.mxu0 0.0
        %2814 = vmatpush1.msra.mxu0 0.0
        %2815 = vmatprep.mubr.f32.mxu0 0.0
        %2816 = vmatmul.mubr.f32.gmra.mrb[0].mxu0 %v2740
        %v2817 = vpop.f32.mrb[0].mxu0
        %v2818 = vadd.f32 %v2726, %v2817
        %v2819 = vpop.f32.mrb[0].mxu0
        %2820 = vmatprep.mubr.f32.mxu0 0.0
        %2821 = vmatmul.mubr.f32.gmra.mrb[0].mxu0 %v2743
        %v2822 = vpop.f32.mrb[0].mxu0
        %v2823 = vadd.f32 %v2731, %v2822
        %v2824 = vpop.f32.mrb[0].mxu0
        %2825 = vmatprep.mubr.f32.mxu0 0.0
        %2826 = vmatmul.mubr.f32.gmra.mrb[0].mxu0 %v2746
        %v2827 = vpop.f32.mrb[0].mxu0
        %v2828 = vadd.f32 %v2736, %v2827
        %v2829 = vpop.f32.mrb[0].mxu0
        %2830 = vdwg.mxu0
        %2831 = vmatprep.subr.mxu0 0.0
        %2832 = vmatpush1.msra.mxu0 %v1065
        %2833 = vmatprep.subr.mxu0 0.0
        %2834 = vmatpush1.msra.mxu0 %v1066
        %2835 = vmatprep.subr.mxu0 0.0
        %2836 = vmatpush1.msra.mxu0 %v1067
        %2837 = vmatprep.subr.mxu0 0.0
        %2838 = vmatpush1.msra.mxu0 %v1068
        %2839 = vmatprep.subr.mxu0 0.0
        %2840 = vmatpush1.msra.mxu0 %v1069
        %2841 = vmatprep.subr.mxu0 0.0
        %2842 = vmatpush1.msra.mxu0 %v1070
        %2843 = vmatprep.subr.mxu0 0.0
        %2844 = vmatpush1.msra.mxu0 %v1071
        %2845 = vmatprep.subr.mxu0 0.0
        %2846 = vmatpush1.msra.mxu0 %v1072
        %2847 = vmatprep.subr.mxu0 0.0
        %2848 = vmatpush1.msra.mxu0 %v1073
        %2849 = vmatprep.subr.mxu0 0.0
        %2850 = vmatpush1.msra.mxu0 %v1074
        %2851 = vmatprep.subr.mxu0 0.0
        %2852 = vmatpush1.msra.mxu0 %v1075
        %2853 = vmatprep.subr.mxu0 0.0
        %2854 = vmatpush1.msra.mxu0 %v1076
        %2855 = vmatprep.subr.mxu0 0.0
        %2856 = vmatpush1.msra.mxu0 %v1077
        %2857 = vmatprep.subr.mxu0 0.0
        %2858 = vmatpush1.msra.mxu0 %v1078
        %2859 = vmatprep.subr.mxu0 0.0
        %2860 = vmatpush1.msra.mxu0 %v1079
        %2861 = vmatprep.subr.mxu0 0.0
        %2862 = vmatpush1.msra.mxu0 %v1080
        %2863 = vmatprep.subr.mxu0 0.0
        %2864 = vmatpush1.msra.mxu0 0.0
        %2865 = vmatprep.subr.mxu0 0.0
        %2866 = vmatpush1.msra.mxu0 0.0
        %2867 = vmatprep.subr.mxu0 0.0
        %2868 = vmatpush1.msra.mxu0 0.0
        %2869 = vmatprep.subr.mxu0 0.0
        %2870 = vmatpush1.msra.mxu0 0.0
        %2871 = vmatprep.subr.mxu0 0.0
        %2872 = vmatpush1.msra.mxu0 0.0
        %2873 = vmatprep.subr.mxu0 0.0
        %2874 = vmatpush1.msra.mxu0 0.0
        %2875 = vmatprep.subr.mxu0 0.0
        %2876 = vmatpush1.msra.mxu0 0.0
        %2877 = vmatprep.subr.mxu0 0.0
        %2878 = vmatpush1.msra.mxu0 0.0
        %2879 = vmatprep.subr.mxu0 0.0
        %2880 = vmatpush1.msra.mxu0 0.0
        %2881 = vmatprep.subr.mxu0 0.0
        %2882 = vmatpush1.msra.mxu0 0.0
        %2883 = vmatprep.subr.mxu0 0.0
        %2884 = vmatpush1.msra.mxu0 0.0
        %2885 = vmatprep.subr.mxu0 0.0
        %2886 = vmatpush1.msra.mxu0 0.0
        %2887 = vmatprep.subr.mxu0 0.0
        %2888 = vmatpush1.msra.mxu0 0.0
        %2889 = vmatprep.subr.mxu0 0.0
        %2890 = vmatpush1.msra.mxu0 0.0
        %2891 = vmatprep.subr.mxu0 0.0
        %2892 = vmatpush1.msra.mxu0 0.0
        %2893 = vmatprep.subr.mxu0 0.0
        %2894 = vmatpush1.msra.mxu0 0.0
        %2895 = vmatprep.mubr.f32.mxu0 0.0
        %2896 = vmatmul.mubr.f32.gmra.mrb[0].mxu0 %v2464
        %v2897 = vpop.f32.mrb[0].mxu0
        %v2898 = vadd.f32 0.0, %v2897
        %v2899 = vpop.f32.mrb[0].mxu0
        %2900 = vmatprep.mubr.f32.mxu0 0.0
        %2901 = vmatmul.mubr.f32.gmra.mrb[0].mxu0 %v2465
        %v2902 = vpop.f32.mrb[0].mxu0
        %v2903 = vadd.f32 0.0, %v2902
        %v2904 = vpop.f32.mrb[0].mxu0
        %2905 = vmatprep.mubr.f32.mxu0 0.0
        %2906 = vmatmul.mubr.f32.gmra.mrb[0].mxu0 %v2466
        %v2907 = vpop.f32.mrb[0].mxu0
        %v2908 = vadd.f32 0.0, %v2907
        %v2909 = vpop.f32.mrb[0].mxu0
        %2910 = vmatprep.mubr.f32.mxu0 0.0
        %2911 = vmatmul.mubr.f32.gmra.mrb[0].mxu0 %v2467
        %v2912 = vpop.f32.mrb[0].mxu0
        %v2913 = vadd.f32 0.0, %v2912
        %v2914 = vpop.f32.mrb[0].mxu0
        %2915 = vdwg.mxu0
        %s2916 = scalar_lea.vmem %s4, 48
        %v2917 = vld [vmem:[%s2916] sm:$0xff]
        %v2918 = vld [vmem:[%s2916 + $0x8] sm:$0xff]
        %v2919 = vld [vmem:[%s2916 + $0x10] sm:$0xf]
        %v2921 = vsel %vm2645, %v2917, 0
        %v2924 = vsel %vm2645, %v2918, 0
        %v2927 = vsel %vm2645, %v2919, 0
        %v2930 = vsel %vm2655, %v2913, 0
        %2932 = vmatprep.subr.mxu0 0.0
        %2933 = vmatpush1.msra.mxu0 %v2898
        %2934 = vmatprep.subr.mxu0 0.0
        %2935 = vmatpush1.msra.mxu0 %v2903
        %2936 = vmatprep.subr.mxu0 0.0
        %2937 = vmatpush1.msra.mxu0 %v2908
        %2938 = vmatprep.subr.mxu0 0.0
        %2939 = vmatpush1.msra.mxu0 %v2930
        %2940 = vmatprep.subr.mxu0 0.0
        %2941 = vmatpush1.msra.mxu0 0.0
        %2942 = vmatprep.subr.mxu0 0.0
        %2943 = vmatpush1.msra.mxu0 0.0
        %2944 = vmatprep.subr.mxu0 0.0
        %2945 = vmatpush1.msra.mxu0 0.0
        %2946 = vmatprep.subr.mxu0 0.0
        %2947 = vmatpush1.msra.mxu0 0.0
        %2948 = vmatprep.subr.mxu0 0.0
        %2949 = vmatpush1.msra.mxu0 0.0
        %2950 = vmatprep.subr.mxu0 0.0
        %2951 = vmatpush1.msra.mxu0 0.0
        %2952 = vmatprep.subr.mxu0 0.0
        %2953 = vmatpush1.msra.mxu0 0.0
        %2954 = vmatprep.subr.mxu0 0.0
        %2955 = vmatpush1.msra.mxu0 0.0
        %2956 = vmatprep.subr.mxu0 0.0
        %2957 = vmatpush1.msra.mxu0 0.0
        %2958 = vmatprep.subr.mxu0 0.0
        %2959 = vmatpush1.msra.mxu0 0.0
        %2960 = vmatprep.subr.mxu0 0.0
        %2961 = vmatpush1.msra.mxu0 0.0
        %2962 = vmatprep.subr.mxu0 0.0
        %2963 = vmatpush1.msra.mxu0 0.0
        %2964 = vmatprep.subr.mxu0 0.0
        %2965 = vmatpush1.msra.mxu0 0.0
        %2966 = vmatprep.subr.mxu0 0.0
        %2967 = vmatpush1.msra.mxu0 0.0
        %2968 = vmatprep.subr.mxu0 0.0
        %2969 = vmatpush1.msra.mxu0 0.0
        %2970 = vmatprep.subr.mxu0 0.0
        %2971 = vmatpush1.msra.mxu0 0.0
        %2972 = vmatprep.subr.mxu0 0.0
        %2973 = vmatpush1.msra.mxu0 0.0
        %2974 = vmatprep.subr.mxu0 0.0
        %2975 = vmatpush1.msra.mxu0 0.0
        %2976 = vmatprep.subr.mxu0 0.0
        %2977 = vmatpush1.msra.mxu0 0.0
        %2978 = vmatprep.subr.mxu0 0.0
        %2979 = vmatpush1.msra.mxu0 0.0
        %2980 = vmatprep.subr.mxu0 0.0
        %2981 = vmatpush1.msra.mxu0 0.0
        %2982 = vmatprep.subr.mxu0 0.0
        %2983 = vmatpush1.msra.mxu0 0.0
        %2984 = vmatprep.subr.mxu0 0.0
        %2985 = vmatpush1.msra.mxu0 0.0
        %2986 = vmatprep.subr.mxu0 0.0
        %2987 = vmatpush1.msra.mxu0 0.0
        %2988 = vmatprep.subr.mxu0 0.0
        %2989 = vmatpush1.msra.mxu0 0.0
        %2990 = vmatprep.subr.mxu0 0.0
        %2991 = vmatpush1.msra.mxu0 0.0
        %2992 = vmatprep.subr.mxu0 0.0
        %2993 = vmatpush1.msra.mxu0 0.0
        %2994 = vmatprep.subr.mxu0 0.0
        %2995 = vmatpush1.msra.mxu0 0.0
        %2996 = vmatprep.mubr.f32.mxu0 0.0
        %2997 = vmatmul.mubr.f32.gmra.mrb[0].mxu0 %v2921
        %v2998 = vpop.f32.mrb[0].mxu0
        %v2999 = vadd.f32 0.0, %v2998
        %v3000 = vpop.f32.mrb[0].mxu0
        %3001 = vmatprep.mubr.f32.mxu0 0.0
        %3002 = vmatmul.mubr.f32.gmra.mrb[0].mxu0 %v2924
        %v3003 = vpop.f32.mrb[0].mxu0
        %v3004 = vadd.f32 0.0, %v3003
        %v3005 = vpop.f32.mrb[0].mxu0
        %3006 = vmatprep.mubr.f32.mxu0 0.0
        %3007 = vmatmul.mubr.f32.gmra.mrb[0].mxu0 %v2927
        %v3008 = vpop.f32.mrb[0].mxu0
        %v3009 = vadd.f32 0.0, %v3008
        %v3010 = vpop.f32.mrb[0].mxu0
        %3011 = vdwg.mxu0
        %v3012 = vadd.f32 %v2818, %v2999
        %v3013 = vadd.f32 %v2823, %v3004
        %v3014 = vadd.f32 %v2828, %v3009
        %3015 = vmatprep.subr.mxu0 0.0
        %3016 = vmatpush1.msra.mxu0 %v1261
        %3017 = vmatprep.subr.mxu0 0.0
        %3018 = vmatpush1.msra.mxu0 %v1262
        %3019 = vmatprep.subr.mxu0 0.0
        %3020 = vmatpush1.msra.mxu0 %v1263
        %3021 = vmatprep.subr.mxu0 0.0
        %3022 = vmatpush1.msra.mxu0 %v1264
        %3023 = vmatprep.subr.mxu0 0.0
        %3024 = vmatpush1.msra.mxu0 %v1265
        %3025 = vmatprep.subr.mxu0 0.0
        %3026 = vmatpush1.msra.mxu0 %v1266
        %3027 = vmatprep.subr.mxu0 0.0
        %3028 = vmatpush1.msra.mxu0 %v1267
        %3029 = vmatprep.subr.mxu0 0.0
        %3030 = vmatpush1.msra.mxu0 %v1268
        %3031 = vmatprep.subr.mxu0 0.0
        %3032 = vmatpush1.msra.mxu0 %v1269
        %3033 = vmatprep.subr.mxu0 0.0
        %3034 = vmatpush1.msra.mxu0 %v1270
        %3035 = vmatprep.subr.mxu0 0.0
        %3036 = vmatpush1.msra.mxu0 %v1271
        %3037 = vmatprep.subr.mxu0 0.0
        %3038 = vmatpush1.msra.mxu0 %v1272
        %3039 = vmatprep.subr.mxu0 0.0
        %3040 = vmatpush1.msra.mxu0 %v1273
        %3041 = vmatprep.subr.mxu0 0.0
        %3042 = vmatpush1.msra.mxu0 %v1274
        %3043 = vmatprep.subr.mxu0 0.0
        %3044 = vmatpush1.msra.mxu0 %v1275
        %3045 = vmatprep.subr.mxu0 0.0
        %3046 = vmatpush1.msra.mxu0 %v1276
        %3047 = vmatprep.subr.mxu0 0.0
        %3048 = vmatpush1.msra.mxu0 0.0
        %3049 = vmatprep.subr.mxu0 0.0
        %3050 = vmatpush1.msra.mxu0 0.0
        %3051 = vmatprep.subr.mxu0 0.0
        %3052 = vmatpush1.msra.mxu0 0.0
        %3053 = vmatprep.subr.mxu0 0.0
        %3054 = vmatpush1.msra.mxu0 0.0
        %3055 = vmatprep.subr.mxu0 0.0
        %3056 = vmatpush1.msra.mxu0 0.0
        %3057 = vmatprep.subr.mxu0 0.0
        %3058 = vmatpush1.msra.mxu0 0.0
        %3059 = vmatprep.subr.mxu0 0.0
        %3060 = vmatpush1.msra.mxu0 0.0
        %3061 = vmatprep.subr.mxu0 0.0
        %3062 = vmatpush1.msra.mxu0 0.0
        %3063 = vmatprep.subr.mxu0 0.0
        %3064 = vmatpush1.msra.mxu0 0.0
        %3065 = vmatprep.subr.mxu0 0.0
        %3066 = vmatpush1.msra.mxu0 0.0
        %3067 = vmatprep.subr.mxu0 0.0
        %3068 = vmatpush1.msra.mxu0 0.0
        %3069 = vmatprep.subr.mxu0 0.0
        %3070 = vmatpush1.msra.mxu0 0.0
        %3071 = vmatprep.subr.mxu0 0.0
        %3072 = vmatpush1.msra.mxu0 0.0
        %3073 = vmatprep.subr.mxu0 0.0
        %3074 = vmatpush1.msra.mxu0 0.0
        %3075 = vmatprep.subr.mxu0 0.0
        %3076 = vmatpush1.msra.mxu0 0.0
        %3077 = vmatprep.subr.mxu0 0.0
        %3078 = vmatpush1.msra.mxu0 0.0
        %3079 = vmatprep.mubr.f32.mxu0 0.0
        %3080 = vmatmul.mubr.f32.gmra.mrb[0].mxu0 %v2464
        %v3081 = vpop.f32.mrb[0].mxu0
        %v3082 = vadd.f32 0.0, %v3081
        %v3083 = vpop.f32.mrb[0].mxu0
        %3084 = vmatprep.mubr.f32.mxu0 0.0
        %3085 = vmatmul.mubr.f32.gmra.mrb[0].mxu0 %v2465
        %v3086 = vpop.f32.mrb[0].mxu0
        %v3087 = vadd.f32 0.0, %v3086
        %v3088 = vpop.f32.mrb[0].mxu0
        %3089 = vmatprep.mubr.f32.mxu0 0.0
        %3090 = vmatmul.mubr.f32.gmra.mrb[0].mxu0 %v2466
        %v3091 = vpop.f32.mrb[0].mxu0
        %v3092 = vadd.f32 0.0, %v3091
        %v3093 = vpop.f32.mrb[0].mxu0
        %3094 = vmatprep.mubr.f32.mxu0 0.0
        %3095 = vmatmul.mubr.f32.gmra.mrb[0].mxu0 %v2467
        %v3096 = vpop.f32.mrb[0].mxu0
        %v3097 = vadd.f32 0.0, %v3096
        %v3098 = vpop.f32.mrb[0].mxu0
        %3099 = vdwg.mxu0
        %s3100 = scalar_lea.vmem %s4, 72
        %v3101 = vld [vmem:[%s3100] sm:$0xff]
        %v3102 = vld [vmem:[%s3100 + $0x8] sm:$0xff]
        %v3103 = vld [vmem:[%s3100 + $0x10] sm:$0xf]
        %v3105 = vsel %vm2645, %v3101, 0
        %v3108 = vsel %vm2645, %v3102, 0
        %v3111 = vsel %vm2645, %v3103, 0
        %v3114 = vsel %vm2655, %v3097, 0
        %3116 = vmatprep.subr.mxu0 0.0
        %3117 = vmatpush1.msra.mxu0 %v3082
        %3118 = vmatprep.subr.mxu0 0.0
        %3119 = vmatpush1.msra.mxu0 %v3087
        %3120 = vmatprep.subr.mxu0 0.0
        %3121 = vmatpush1.msra.mxu0 %v3092
        %3122 = vmatprep.subr.mxu0 0.0
        %3123 = vmatpush1.msra.mxu0 %v3114
        %3124 = vmatprep.subr.mxu0 0.0
        %3125 = vmatpush1.msra.mxu0 0.0
        %3126 = vmatprep.subr.mxu0 0.0
        %3127 = vmatpush1.msra.mxu0 0.0
        %3128 = vmatprep.subr.mxu0 0.0
        %3129 = vmatpush1.msra.mxu0 0.0
        %3130 = vmatprep.subr.mxu0 0.0
        %3131 = vmatpush1.msra.mxu0 0.0
        %3132 = vmatprep.subr.mxu0 0.0
        %3133 = vmatpush1.msra.mxu0 0.0
        %3134 = vmatprep.subr.mxu0 0.0
        %3135 = vmatpush1.msra.mxu0 0.0
        %3136 = vmatprep.subr.mxu0 0.0
        %3137 = vmatpush1.msra.mxu0 0.0
        %3138 = vmatprep.subr.mxu0 0.0
        %3139 = vmatpush1.msra.mxu0 0.0
        %3140 = vmatprep.subr.mxu0 0.0
        %3141 = vmatpush1.msra.mxu0 0.0
        %3142 = vmatprep.subr.mxu0 0.0
        %3143 = vmatpush1.msra.mxu0 0.0
        %3144 = vmatprep.subr.mxu0 0.0
        %3145 = vmatpush1.msra.mxu0 0.0
        %3146 = vmatprep.subr.mxu0 0.0
        %3147 = vmatpush1.msra.mxu0 0.0
        %3148 = vmatprep.subr.mxu0 0.0
        %3149 = vmatpush1.msra.mxu0 0.0
        %3150 = vmatprep.subr.mxu0 0.0
        %3151 = vmatpush1.msra.mxu0 0.0
        %3152 = vmatprep.subr.mxu0 0.0
        %3153 = vmatpush1.msra.mxu0 0.0
        %3154 = vmatprep.subr.mxu0 0.0
        %3155 = vmatpush1.msra.mxu0 0.0
        %3156 = vmatprep.subr.mxu0 0.0
        %3157 = vmatpush1.msra.mxu0 0.0
        %3158 = vmatprep.subr.mxu0 0.0
        %3159 = vmatpush1.msra.mxu0 0.0
        %3160 = vmatprep.subr.mxu0 0.0
        %3161 = vmatpush1.msra.mxu0 0.0
        %3162 = vmatprep.subr.mxu0 0.0
        %3163 = vmatpush1.msra.mxu0 0.0
        %3164 = vmatprep.subr.mxu0 0.0
        %3165 = vmatpush1.msra.mxu0 0.0
        %3166 = vmatprep.subr.mxu0 0.0
        %3167 = vmatpush1.msra.mxu0 0.0
        %3168 = vmatprep.subr.mxu0 0.0
        %3169 = vmatpush1.msra.mxu0 0.0
        %3170 = vmatprep.subr.mxu0 0.0
        %3171 = vmatpush1.msra.mxu0 0.0
        %3172 = vmatprep.subr.mxu0 0.0
        %3173 = vmatpush1.msra.mxu0 0.0
        %3174 = vmatprep.subr.mxu0 0.0
        %3175 = vmatpush1.msra.mxu0 0.0
        %3176 = vmatprep.subr.mxu0 0.0
        %3177 = vmatpush1.msra.mxu0 0.0
        %3178 = vmatprep.subr.mxu0 0.0
        %3179 = vmatpush1.msra.mxu0 0.0
        %3180 = vmatprep.mubr.f32.mxu0 0.0
        %3181 = vmatmul.mubr.f32.gmra.mrb[0].mxu0 %v3105
        %v3182 = vpop.f32.mrb[0].mxu0
        %v3183 = vadd.f32 0.0, %v3182
        %v3184 = vpop.f32.mrb[0].mxu0
        %3185 = vmatprep.mubr.f32.mxu0 0.0
        %3186 = vmatmul.mubr.f32.gmra.mrb[0].mxu0 %v3108
        %v3187 = vpop.f32.mrb[0].mxu0
        %v3188 = vadd.f32 0.0, %v3187
        %v3189 = vpop.f32.mrb[0].mxu0
        %3190 = vmatprep.mubr.f32.mxu0 0.0
        %3191 = vmatmul.mubr.f32.gmra.mrb[0].mxu0 %v3111
        %v3192 = vpop.f32.mrb[0].mxu0
        %v3193 = vadd.f32 0.0, %v3192
        %v3194 = vpop.f32.mrb[0].mxu0
        %3195 = vdwg.mxu0
        %v3196 = vadd.f32 %v3012, %v3183
        %v3197 = vadd.f32 %v3013, %v3188
        %v3198 = vadd.f32 %v3014, %v3193
        %3199 = vmatprep.subr.mxu0 0.0
        %3200 = vmatpush1.msra.mxu0 %v1457
        %3201 = vmatprep.subr.mxu0 0.0
        %3202 = vmatpush1.msra.mxu0 %v1458
        %3203 = vmatprep.subr.mxu0 0.0
        %3204 = vmatpush1.msra.mxu0 %v1459
        %3205 = vmatprep.subr.mxu0 0.0
        %3206 = vmatpush1.msra.mxu0 %v1460
        %3207 = vmatprep.subr.mxu0 0.0
        %3208 = vmatpush1.msra.mxu0 %v1461
        %3209 = vmatprep.subr.mxu0 0.0
        %3210 = vmatpush1.msra.mxu0 %v1462
        %3211 = vmatprep.subr.mxu0 0.0
        %3212 = vmatpush1.msra.mxu0 %v1463
        %3213 = vmatprep.subr.mxu0 0.0
        %3214 = vmatpush1.msra.mxu0 %v1464
        %3215 = vmatprep.subr.mxu0 0.0
        %3216 = vmatpush1.msra.mxu0 %v1465
        %3217 = vmatprep.subr.mxu0 0.0
        %3218 = vmatpush1.msra.mxu0 %v1466
        %3219 = vmatprep.subr.mxu0 0.0
        %3220 = vmatpush1.msra.mxu0 %v1467
        %3221 = vmatprep.subr.mxu0 0.0
        %3222 = vmatpush1.msra.mxu0 %v1468
        %3223 = vmatprep.subr.mxu0 0.0
        %3224 = vmatpush1.msra.mxu0 %v1469
        %3225 = vmatprep.subr.mxu0 0.0
        %3226 = vmatpush1.msra.mxu0 %v1470
        %3227 = vmatprep.subr.mxu0 0.0
        %3228 = vmatpush1.msra.mxu0 %v1471
        %3229 = vmatprep.subr.mxu0 0.0
        %3230 = vmatpush1.msra.mxu0 %v1472
        %3231 = vmatprep.subr.mxu0 0.0
        %3232 = vmatpush1.msra.mxu0 0.0
        %3233 = vmatprep.subr.mxu0 0.0
        %3234 = vmatpush1.msra.mxu0 0.0
        %3235 = vmatprep.subr.mxu0 0.0
        %3236 = vmatpush1.msra.mxu0 0.0
        %3237 = vmatprep.subr.mxu0 0.0
        %3238 = vmatpush1.msra.mxu0 0.0
        %3239 = vmatprep.subr.mxu0 0.0
        %3240 = vmatpush1.msra.mxu0 0.0
        %3241 = vmatprep.subr.mxu0 0.0
        %3242 = vmatpush1.msra.mxu0 0.0
        %3243 = vmatprep.subr.mxu0 0.0
        %3244 = vmatpush1.msra.mxu0 0.0
        %3245 = vmatprep.subr.mxu0 0.0
        %3246 = vmatpush1.msra.mxu0 0.0
        %3247 = vmatprep.subr.mxu0 0.0
        %3248 = vmatpush1.msra.mxu0 0.0
        %3249 = vmatprep.subr.mxu0 0.0
        %3250 = vmatpush1.msra.mxu0 0.0
        %3251 = vmatprep.subr.mxu0 0.0
        %3252 = vmatpush1.msra.mxu0 0.0
        %3253 = vmatprep.subr.mxu0 0.0
        %3254 = vmatpush1.msra.mxu0 0.0
        %3255 = vmatprep.subr.mxu0 0.0
        %3256 = vmatpush1.msra.mxu0 0.0
        %3257 = vmatprep.subr.mxu0 0.0
        %3258 = vmatpush1.msra.mxu0 0.0
        %3259 = vmatprep.subr.mxu0 0.0
        %3260 = vmatpush1.msra.mxu0 0.0
        %3261 = vmatprep.subr.mxu0 0.0
        %3262 = vmatpush1.msra.mxu0 0.0
        %3263 = vmatprep.mubr.f32.mxu0 0.0
        %3264 = vmatmul.mubr.f32.gmra.mrb[0].mxu0 %v2464
        %v3265 = vpop.f32.mrb[0].mxu0
        %v3266 = vadd.f32 0.0, %v3265
        %v3267 = vpop.f32.mrb[0].mxu0
        %3268 = vmatprep.mubr.f32.mxu0 0.0
        %3269 = vmatmul.mubr.f32.gmra.mrb[0].mxu0 %v2465
        %v3270 = vpop.f32.mrb[0].mxu0
        %v3271 = vadd.f32 0.0, %v3270
        %v3272 = vpop.f32.mrb[0].mxu0
        %3273 = vmatprep.mubr.f32.mxu0 0.0
        %3274 = vmatmul.mubr.f32.gmra.mrb[0].mxu0 %v2466
        %v3275 = vpop.f32.mrb[0].mxu0
        %v3276 = vadd.f32 0.0, %v3275
        %v3277 = vpop.f32.mrb[0].mxu0
        %3278 = vmatprep.mubr.f32.mxu0 0.0
        %3279 = vmatmul.mubr.f32.gmra.mrb[0].mxu0 %v2467
        %v3280 = vpop.f32.mrb[0].mxu0
        %v3281 = vadd.f32 0.0, %v3280
        %v3282 = vpop.f32.mrb[0].mxu0
        %3283 = vdwg.mxu0
        %s3284 = scalar_lea.vmem %s4, 96
        %v3285 = vld [vmem:[%s3284] sm:$0xff]
        %v3286 = vld [vmem:[%s3284 + $0x8] sm:$0xff]
        %v3287 = vld [vmem:[%s3284 + $0x10] sm:$0xf]
        %v3289 = vsel %vm2645, %v3285, 0
        %v3292 = vsel %vm2645, %v3286, 0
        %v3295 = vsel %vm2645, %v3287, 0
        %v3298 = vsel %vm2655, %v3281, 0
        %3300 = vmatprep.subr.mxu0 0.0
        %3301 = vmatpush1.msra.mxu0 %v3266
        %3302 = vmatprep.subr.mxu0 0.0
        %3303 = vmatpush1.msra.mxu0 %v3271
        %3304 = vmatprep.subr.mxu0 0.0
        %3305 = vmatpush1.msra.mxu0 %v3276
        %3306 = vmatprep.subr.mxu0 0.0
        %3307 = vmatpush1.msra.mxu0 %v3298
        %3308 = vmatprep.subr.mxu0 0.0
        %3309 = vmatpush1.msra.mxu0 0.0
        %3310 = vmatprep.subr.mxu0 0.0
        %3311 = vmatpush1.msra.mxu0 0.0
        %3312 = vmatprep.subr.mxu0 0.0
        %3313 = vmatpush1.msra.mxu0 0.0
        %3314 = vmatprep.subr.mxu0 0.0
        %3315 = vmatpush1.msra.mxu0 0.0
        %3316 = vmatprep.subr.mxu0 0.0
        %3317 = vmatpush1.msra.mxu0 0.0
        %3318 = vmatprep.subr.mxu0 0.0
        %3319 = vmatpush1.msra.mxu0 0.0
        %3320 = vmatprep.subr.mxu0 0.0
        %3321 = vmatpush1.msra.mxu0 0.0
        %3322 = vmatprep.subr.mxu0 0.0
        %3323 = vmatpush1.msra.mxu0 0.0
        %3324 = vmatprep.subr.mxu0 0.0
        %3325 = vmatpush1.msra.mxu0 0.0
        %3326 = vmatprep.subr.mxu0 0.0
        %3327 = vmatpush1.msra.mxu0 0.0
        %3328 = vmatprep.subr.mxu0 0.0
        %3329 = vmatpush1.msra.mxu0 0.0
        %3330 = vmatprep.subr.mxu0 0.0
        %3331 = vmatpush1.msra.mxu0 0.0
        %3332 = vmatprep.subr.mxu0 0.0
        %3333 = vmatpush1.msra.mxu0 0.0
        %3334 = vmatprep.subr.mxu0 0.0
        %3335 = vmatpush1.msra.mxu0 0.0
        %3336 = vmatprep.subr.mxu0 0.0
        %3337 = vmatpush1.msra.mxu0 0.0
        %3338 = vmatprep.subr.mxu0 0.0
        %3339 = vmatpush1.msra.mxu0 0.0
        %3340 = vmatprep.subr.mxu0 0.0
        %3341 = vmatpush1.msra.mxu0 0.0
        %3342 = vmatprep.subr.mxu0 0.0
        %3343 = vmatpush1.msra.mxu0 0.0
        %3344 = vmatprep.subr.mxu0 0.0
        %3345 = vmatpush1.msra.mxu0 0.0
        %3346 = vmatprep.subr.mxu0 0.0
        %3347 = vmatpush1.msra.mxu0 0.0
        %3348 = vmatprep.subr.mxu0 0.0
        %3349 = vmatpush1.msra.mxu0 0.0
        %3350 = vmatprep.subr.mxu0 0.0
        %3351 = vmatpush1.msra.mxu0 0.0
        %3352 = vmatprep.subr.mxu0 0.0
        %3353 = vmatpush1.msra.mxu0 0.0
        %3354 = vmatprep.subr.mxu0 0.0
        %3355 = vmatpush1.msra.mxu0 0.0
        %3356 = vmatprep.subr.mxu0 0.0
        %3357 = vmatpush1.msra.mxu0 0.0
        %3358 = vmatprep.subr.mxu0 0.0
        %3359 = vmatpush1.msra.mxu0 0.0
        %3360 = vmatprep.subr.mxu0 0.0
        %3361 = vmatpush1.msra.mxu0 0.0
        %3362 = vmatprep.subr.mxu0 0.0
        %3363 = vmatpush1.msra.mxu0 0.0
        %3364 = vmatprep.mubr.f32.mxu0 0.0
        %3365 = vmatmul.mubr.f32.gmra.mrb[0].mxu0 %v3289
        %v3366 = vpop.f32.mrb[0].mxu0
        %v3367 = vadd.f32 0.0, %v3366
        %v3368 = vpop.f32.mrb[0].mxu0
        %3369 = vmatprep.mubr.f32.mxu0 0.0
        %3370 = vmatmul.mubr.f32.gmra.mrb[0].mxu0 %v3292
        %v3371 = vpop.f32.mrb[0].mxu0
        %v3372 = vadd.f32 0.0, %v3371
        %v3373 = vpop.f32.mrb[0].mxu0
        %3374 = vmatprep.mubr.f32.mxu0 0.0
        %3375 = vmatmul.mubr.f32.gmra.mrb[0].mxu0 %v3295
        %v3376 = vpop.f32.mrb[0].mxu0
        %v3377 = vadd.f32 0.0, %v3376
        %v3378 = vpop.f32.mrb[0].mxu0
        %3379 = vdwg.mxu0
        %v3380 = vadd.f32 %v3196, %v3367
        %v3381 = vadd.f32 %v3197, %v3372
        %v3382 = vadd.f32 %v3198, %v3377
        %3383 = vmatprep.subr.mxu0 0.0
        %3384 = vmatpush1.msra.mxu0 %v1653
        %3385 = vmatprep.subr.mxu0 0.0
        %3386 = vmatpush1.msra.mxu0 %v1654
        %3387 = vmatprep.subr.mxu0 0.0
        %3388 = vmatpush1.msra.mxu0 %v1655
        %3389 = vmatprep.subr.mxu0 0.0
        %3390 = vmatpush1.msra.mxu0 %v1656
        %3391 = vmatprep.subr.mxu0 0.0
        %3392 = vmatpush1.msra.mxu0 %v1657
        %3393 = vmatprep.subr.mxu0 0.0
        %3394 = vmatpush1.msra.mxu0 %v1658
        %3395 = vmatprep.subr.mxu0 0.0
        %3396 = vmatpush1.msra.mxu0 %v1659
        %3397 = vmatprep.subr.mxu0 0.0
        %3398 = vmatpush1.msra.mxu0 %v1660
        %3399 = vmatprep.subr.mxu0 0.0
        %3400 = vmatpush1.msra.mxu0 %v1661
        %3401 = vmatprep.subr.mxu0 0.0
        %3402 = vmatpush1.msra.mxu0 %v1662
        %3403 = vmatprep.subr.mxu0 0.0
        %3404 = vmatpush1.msra.mxu0 %v1663
        %3405 = vmatprep.subr.mxu0 0.0
        %3406 = vmatpush1.msra.mxu0 %v1664
        %3407 = vmatprep.subr.mxu0 0.0
        %3408 = vmatpush1.msra.mxu0 %v1665
        %3409 = vmatprep.subr.mxu0 0.0
        %3410 = vmatpush1.msra.mxu0 %v1666
        %3411 = vmatprep.subr.mxu0 0.0
        %3412 = vmatpush1.msra.mxu0 %v1667
        %3413 = vmatprep.subr.mxu0 0.0
        %3414 = vmatpush1.msra.mxu0 %v1668
        %3415 = vmatprep.subr.mxu0 0.0
        %3416 = vmatpush1.msra.mxu0 0.0
        %3417 = vmatprep.subr.mxu0 0.0
        %3418 = vmatpush1.msra.mxu0 0.0
        %3419 = vmatprep.subr.mxu0 0.0
        %3420 = vmatpush1.msra.mxu0 0.0
        %3421 = vmatprep.subr.mxu0 0.0
        %3422 = vmatpush1.msra.mxu0 0.0
        %3423 = vmatprep.subr.mxu0 0.0
        %3424 = vmatpush1.msra.mxu0 0.0
        %3425 = vmatprep.subr.mxu0 0.0
        %3426 = vmatpush1.msra.mxu0 0.0
        %3427 = vmatprep.subr.mxu0 0.0
        %3428 = vmatpush1.msra.mxu0 0.0
        %3429 = vmatprep.subr.mxu0 0.0
        %3430 = vmatpush1.msra.mxu0 0.0
        %3431 = vmatprep.subr.mxu0 0.0
        %3432 = vmatpush1.msra.mxu0 0.0
        %3433 = vmatprep.subr.mxu0 0.0
        %3434 = vmatpush1.msra.mxu0 0.0
        %3435 = vmatprep.subr.mxu0 0.0
        %3436 = vmatpush1.msra.mxu0 0.0
        %3437 = vmatprep.subr.mxu0 0.0
        %3438 = vmatpush1.msra.mxu0 0.0
        %3439 = vmatprep.subr.mxu0 0.0
        %3440 = vmatpush1.msra.mxu0 0.0
        %3441 = vmatprep.subr.mxu0 0.0
        %3442 = vmatpush1.msra.mxu0 0.0
        %3443 = vmatprep.subr.mxu0 0.0
        %3444 = vmatpush1.msra.mxu0 0.0
        %3445 = vmatprep.subr.mxu0 0.0
        %3446 = vmatpush1.msra.mxu0 0.0
        %3447 = vmatprep.mubr.f32.mxu0 0.0
        %3448 = vmatmul.mubr.f32.gmra.mrb[0].mxu0 %v2464
        %v3449 = vpop.f32.mrb[0].mxu0
        %v3450 = vadd.f32 0.0, %v3449
        %v3451 = vpop.f32.mrb[0].mxu0
        %3452 = vmatprep.mubr.f32.mxu0 0.0
        %3453 = vmatmul.mubr.f32.gmra.mrb[0].mxu0 %v2465
        %v3454 = vpop.f32.mrb[0].mxu0
        %v3455 = vadd.f32 0.0, %v3454
        %v3456 = vpop.f32.mrb[0].mxu0
        %3457 = vmatprep.mubr.f32.mxu0 0.0
        %3458 = vmatmul.mubr.f32.gmra.mrb[0].mxu0 %v2466
        %v3459 = vpop.f32.mrb[0].mxu0
        %v3460 = vadd.f32 0.0, %v3459
        %v3461 = vpop.f32.mrb[0].mxu0
        %3462 = vmatprep.mubr.f32.mxu0 0.0
        %3463 = vmatmul.mubr.f32.gmra.mrb[0].mxu0 %v2467
        %v3464 = vpop.f32.mrb[0].mxu0
        %v3465 = vadd.f32 0.0, %v3464
        %v3466 = vpop.f32.mrb[0].mxu0
        %3467 = vdwg.mxu0
        %s3468 = scalar_lea.vmem %s4, 120
        %v3469 = vld [vmem:[%s3468] sm:$0xff]
        %v3470 = vld [vmem:[%s3468 + $0x8] sm:$0xff]
        %v3471 = vld [vmem:[%s3468 + $0x10] sm:$0xf]
        %v3473 = vsel %vm2645, %v3469, 0
        %v3476 = vsel %vm2645, %v3470, 0
        %v3479 = vsel %vm2645, %v3471, 0
        %v3482 = vsel %vm2655, %v3465, 0
        %3484 = vmatprep.subr.mxu0 0.0
        %3485 = vmatpush1.msra.mxu0 %v3450
        %3486 = vmatprep.subr.mxu0 0.0
        %3487 = vmatpush1.msra.mxu0 %v3455
        %3488 = vmatprep.subr.mxu0 0.0
        %3489 = vmatpush1.msra.mxu0 %v3460
        %3490 = vmatprep.subr.mxu0 0.0
        %3491 = vmatpush1.msra.mxu0 %v3482
        %3492 = vmatprep.subr.mxu0 0.0
        %3493 = vmatpush1.msra.mxu0 0.0
        %3494 = vmatprep.subr.mxu0 0.0
        %3495 = vmatpush1.msra.mxu0 0.0
        %3496 = vmatprep.subr.mxu0 0.0
        %3497 = vmatpush1.msra.mxu0 0.0
        %3498 = vmatprep.subr.mxu0 0.0
        %3499 = vmatpush1.msra.mxu0 0.0
        %3500 = vmatprep.subr.mxu0 0.0
        %3501 = vmatpush1.msra.mxu0 0.0
        %3502 = vmatprep.subr.mxu0 0.0
        %3503 = vmatpush1.msra.mxu0 0.0
        %3504 = vmatprep.subr.mxu0 0.0
        %3505 = vmatpush1.msra.mxu0 0.0
        %3506 = vmatprep.subr.mxu0 0.0
        %3507 = vmatpush1.msra.mxu0 0.0
        %3508 = vmatprep.subr.mxu0 0.0
        %3509 = vmatpush1.msra.mxu0 0.0
        %3510 = vmatprep.subr.mxu0 0.0
        %3511 = vmatpush1.msra.mxu0 0.0
        %3512 = vmatprep.subr.mxu0 0.0
        %3513 = vmatpush1.msra.mxu0 0.0
        %3514 = vmatprep.subr.mxu0 0.0
        %3515 = vmatpush1.msra.mxu0 0.0
        %3516 = vmatprep.subr.mxu0 0.0
        %3517 = vmatpush1.msra.mxu0 0.0
        %3518 = vmatprep.subr.mxu0 0.0
        %3519 = vmatpush1.msra.mxu0 0.0
        %3520 = vmatprep.subr.mxu0 0.0
        %3521 = vmatpush1.msra.mxu0 0.0
        %3522 = vmatprep.subr.mxu0 0.0
        %3523 = vmatpush1.msra.mxu0 0.0
        %3524 = vmatprep.subr.mxu0 0.0
        %3525 = vmatpush1.msra.mxu0 0.0
        %3526 = vmatprep.subr.mxu0 0.0
        %3527 = vmatpush1.msra.mxu0 0.0
        %3528 = vmatprep.subr.mxu0 0.0
        %3529 = vmatpush1.msra.mxu0 0.0
        %3530 = vmatprep.subr.mxu0 0.0
        %3531 = vmatpush1.msra.mxu0 0.0
        %3532 = vmatprep.subr.mxu0 0.0
        %3533 = vmatpush1.msra.mxu0 0.0
        %3534 = vmatprep.subr.mxu0 0.0
        %3535 = vmatpush1.msra.mxu0 0.0
        %3536 = vmatprep.subr.mxu0 0.0
        %3537 = vmatpush1.msra.mxu0 0.0
        %3538 = vmatprep.subr.mxu0 0.0
        %3539 = vmatpush1.msra.mxu0 0.0
        %3540 = vmatprep.subr.mxu0 0.0
        %3541 = vmatpush1.msra.mxu0 0.0
        %3542 = vmatprep.subr.mxu0 0.0
        %3543 = vmatpush1.msra.mxu0 0.0
        %3544 = vmatprep.subr.mxu0 0.0
        %3545 = vmatpush1.msra.mxu0 0.0
        %3546 = vmatprep.subr.mxu0 0.0
        %3547 = vmatpush1.msra.mxu0 0.0
        %3548 = vmatprep.mubr.f32.mxu0 0.0
        %3549 = vmatmul.mubr.f32.gmra.mrb[0].mxu0 %v3473
        %v3550 = vpop.f32.mrb[0].mxu0
        %v3551 = vadd.f32 0.0, %v3550
        %v3552 = vpop.f32.mrb[0].mxu0
        %3553 = vmatprep.mubr.f32.mxu0 0.0
        %3554 = vmatmul.mubr.f32.gmra.mrb[0].mxu0 %v3476
        %v3555 = vpop.f32.mrb[0].mxu0
        %v3556 = vadd.f32 0.0, %v3555
        %v3557 = vpop.f32.mrb[0].mxu0
        %3558 = vmatprep.mubr.f32.mxu0 0.0
        %3559 = vmatmul.mubr.f32.gmra.mrb[0].mxu0 %v3479
        %v3560 = vpop.f32.mrb[0].mxu0
        %v3561 = vadd.f32 0.0, %v3560
        %v3562 = vpop.f32.mrb[0].mxu0
        %3563 = vdwg.mxu0
        %v3564 = vadd.f32 %v3380, %v3551
        %v3565 = vadd.f32 %v3381, %v3556
        %v3566 = vadd.f32 %v3382, %v3561
        %3567 = vmatprep.subr.mxu0 0.0
        %3568 = vmatpush1.msra.mxu0 %v1849
        %3569 = vmatprep.subr.mxu0 0.0
        %3570 = vmatpush1.msra.mxu0 %v1850
        %3571 = vmatprep.subr.mxu0 0.0
        %3572 = vmatpush1.msra.mxu0 %v1851
        %3573 = vmatprep.subr.mxu0 0.0
        %3574 = vmatpush1.msra.mxu0 %v1852
        %3575 = vmatprep.subr.mxu0 0.0
        %3576 = vmatpush1.msra.mxu0 %v1853
        %3577 = vmatprep.subr.mxu0 0.0
        %3578 = vmatpush1.msra.mxu0 %v1854
        %3579 = vmatprep.subr.mxu0 0.0
        %3580 = vmatpush1.msra.mxu0 %v1855
        %3581 = vmatprep.subr.mxu0 0.0
        %3582 = vmatpush1.msra.mxu0 %v1856
        %3583 = vmatprep.subr.mxu0 0.0
        %3584 = vmatpush1.msra.mxu0 %v1857
        %3585 = vmatprep.subr.mxu0 0.0
        %3586 = vmatpush1.msra.mxu0 %v1858
        %3587 = vmatprep.subr.mxu0 0.0
        %3588 = vmatpush1.msra.mxu0 %v1859
        %3589 = vmatprep.subr.mxu0 0.0
        %3590 = vmatpush1.msra.mxu0 %v1860
        %3591 = vmatprep.subr.mxu0 0.0
        %3592 = vmatpush1.msra.mxu0 %v1861
        %3593 = vmatprep.subr.mxu0 0.0
        %3594 = vmatpush1.msra.mxu0 %v1862
        %3595 = vmatprep.subr.mxu0 0.0
        %3596 = vmatpush1.msra.mxu0 %v1863
        %3597 = vmatprep.subr.mxu0 0.0
        %3598 = vmatpush1.msra.mxu0 %v1864
        %3599 = vmatprep.subr.mxu0 0.0
        %3600 = vmatpush1.msra.mxu0 0.0
        %3601 = vmatprep.subr.mxu0 0.0
        %3602 = vmatpush1.msra.mxu0 0.0
        %3603 = vmatprep.subr.mxu0 0.0
        %3604 = vmatpush1.msra.mxu0 0.0
        %3605 = vmatprep.subr.mxu0 0.0
        %3606 = vmatpush1.msra.mxu0 0.0
        %3607 = vmatprep.subr.mxu0 0.0
        %3608 = vmatpush1.msra.mxu0 0.0
        %3609 = vmatprep.subr.mxu0 0.0
        %3610 = vmatpush1.msra.mxu0 0.0
        %3611 = vmatprep.subr.mxu0 0.0
        %3612 = vmatpush1.msra.mxu0 0.0
        %3613 = vmatprep.subr.mxu0 0.0
        %3614 = vmatpush1.msra.mxu0 0.0
        %3615 = vmatprep.subr.mxu0 0.0
        %3616 = vmatpush1.msra.mxu0 0.0
        %3617 = vmatprep.subr.mxu0 0.0
        %3618 = vmatpush1.msra.mxu0 0.0
        %3619 = vmatprep.subr.mxu0 0.0
        %3620 = vmatpush1.msra.mxu0 0.0
        %3621 = vmatprep.subr.mxu0 0.0
        %3622 = vmatpush1.msra.mxu0 0.0
        %3623 = vmatprep.subr.mxu0 0.0
        %3624 = vmatpush1.msra.mxu0 0.0
        %3625 = vmatprep.subr.mxu0 0.0
        %3626 = vmatpush1.msra.mxu0 0.0
        %3627 = vmatprep.subr.mxu0 0.0
        %3628 = vmatpush1.msra.mxu0 0.0
        %3629 = vmatprep.subr.mxu0 0.0
        %3630 = vmatpush1.msra.mxu0 0.0
        %3631 = vmatprep.mubr.f32.mxu0 0.0
        %3632 = vmatmul.mubr.f32.gmra.mrb[0].mxu0 %v2464
        %v3633 = vpop.f32.mrb[0].mxu0
        %v3634 = vadd.f32 0.0, %v3633
        %v3635 = vpop.f32.mrb[0].mxu0
        %3636 = vmatprep.mubr.f32.mxu0 0.0
        %3637 = vmatmul.mubr.f32.gmra.mrb[0].mxu0 %v2465
        %v3638 = vpop.f32.mrb[0].mxu0
        %v3639 = vadd.f32 0.0, %v3638
        %v3640 = vpop.f32.mrb[0].mxu0
        %3641 = vmatprep.mubr.f32.mxu0 0.0
        %3642 = vmatmul.mubr.f32.gmra.mrb[0].mxu0 %v2466
        %v3643 = vpop.f32.mrb[0].mxu0
        %v3644 = vadd.f32 0.0, %v3643
        %v3645 = vpop.f32.mrb[0].mxu0
        %3646 = vmatprep.mubr.f32.mxu0 0.0
        %3647 = vmatmul.mubr.f32.gmra.mrb[0].mxu0 %v2467
        %v3648 = vpop.f32.mrb[0].mxu0
        %v3649 = vadd.f32 0.0, %v3648
        %v3650 = vpop.f32.mrb[0].mxu0
        %3651 = vdwg.mxu0
        %s3652 = scalar_lea.vmem %s4, 144
        %v3653 = vld [vmem:[%s3652] sm:$0xff]
        %v3654 = vld [vmem:[%s3652 + $0x8] sm:$0xff]
        %v3655 = vld [vmem:[%s3652 + $0x10] sm:$0xf]
        %v3657 = vsel %vm2645, %v3653, 0
        %v3660 = vsel %vm2645, %v3654, 0
        %v3663 = vsel %vm2645, %v3655, 0
        %v3666 = vsel %vm2655, %v3649, 0
        %3668 = vmatprep.subr.mxu0 0.0
        %3669 = vmatpush1.msra.mxu0 %v3634
        %3670 = vmatprep.subr.mxu0 0.0
        %3671 = vmatpush1.msra.mxu0 %v3639
        %3672 = vmatprep.subr.mxu0 0.0
        %3673 = vmatpush1.msra.mxu0 %v3644
        %3674 = vmatprep.subr.mxu0 0.0
        %3675 = vmatpush1.msra.mxu0 %v3666
        %3676 = vmatprep.subr.mxu0 0.0
        %3677 = vmatpush1.msra.mxu0 0.0
        %3678 = vmatprep.subr.mxu0 0.0
        %3679 = vmatpush1.msra.mxu0 0.0
        %3680 = vmatprep.subr.mxu0 0.0
        %3681 = vmatpush1.msra.mxu0 0.0
        %3682 = vmatprep.subr.mxu0 0.0
        %3683 = vmatpush1.msra.mxu0 0.0
        %3684 = vmatprep.subr.mxu0 0.0
        %3685 = vmatpush1.msra.mxu0 0.0
        %3686 = vmatprep.subr.mxu0 0.0
        %3687 = vmatpush1.msra.mxu0 0.0
        %3688 = vmatprep.subr.mxu0 0.0
        %3689 = vmatpush1.msra.mxu0 0.0
        %3690 = vmatprep.subr.mxu0 0.0
        %3691 = vmatpush1.msra.mxu0 0.0
        %3692 = vmatprep.subr.mxu0 0.0
        %3693 = vmatpush1.msra.mxu0 0.0
        %3694 = vmatprep.subr.mxu0 0.0
        %3695 = vmatpush1.msra.mxu0 0.0
        %3696 = vmatprep.subr.mxu0 0.0
        %3697 = vmatpush1.msra.mxu0 0.0
        %3698 = vmatprep.subr.mxu0 0.0
        %3699 = vmatpush1.msra.mxu0 0.0
        %3700 = vmatprep.subr.mxu0 0.0
        %3701 = vmatpush1.msra.mxu0 0.0
        %3702 = vmatprep.subr.mxu0 0.0
        %3703 = vmatpush1.msra.mxu0 0.0
        %3704 = vmatprep.subr.mxu0 0.0
        %3705 = vmatpush1.msra.mxu0 0.0
        %3706 = vmatprep.subr.mxu0 0.0
        %3707 = vmatpush1.msra.mxu0 0.0
        %3708 = vmatprep.subr.mxu0 0.0
        %3709 = vmatpush1.msra.mxu0 0.0
        %3710 = vmatprep.subr.mxu0 0.0
        %3711 = vmatpush1.msra.mxu0 0.0
        %3712 = vmatprep.subr.mxu0 0.0
        %3713 = vmatpush1.msra.mxu0 0.0
        %3714 = vmatprep.subr.mxu0 0.0
        %3715 = vmatpush1.msra.mxu0 0.0
        %3716 = vmatprep.subr.mxu0 0.0
        %3717 = vmatpush1.msra.mxu0 0.0
        %3718 = vmatprep.subr.mxu0 0.0
        %3719 = vmatpush1.msra.mxu0 0.0
        %3720 = vmatprep.subr.mxu0 0.0
        %3721 = vmatpush1.msra.mxu0 0.0
        %3722 = vmatprep.subr.mxu0 0.0
        %3723 = vmatpush1.msra.mxu0 0.0
        %3724 = vmatprep.subr.mxu0 0.0
        %3725 = vmatpush1.msra.mxu0 0.0
        %3726 = vmatprep.subr.mxu0 0.0
        %3727 = vmatpush1.msra.mxu0 0.0
        %3728 = vmatprep.subr.mxu0 0.0
        %3729 = vmatpush1.msra.mxu0 0.0
        %3730 = vmatprep.subr.mxu0 0.0
        %3731 = vmatpush1.msra.mxu0 0.0
        %3732 = vmatprep.mubr.f32.mxu0 0.0
        %3733 = vmatmul.mubr.f32.gmra.mrb[0].mxu0 %v3657
        %v3734 = vpop.f32.mrb[0].mxu0
        %v3735 = vadd.f32 0.0, %v3734
        %v3736 = vpop.f32.mrb[0].mxu0
        %3737 = vmatprep.mubr.f32.mxu0 0.0
        %3738 = vmatmul.mubr.f32.gmra.mrb[0].mxu0 %v3660
        %v3739 = vpop.f32.mrb[0].mxu0
        %v3740 = vadd.f32 0.0, %v3739
        %v3741 = vpop.f32.mrb[0].mxu0
        %3742 = vmatprep.mubr.f32.mxu0 0.0
        %3743 = vmatmul.mubr.f32.gmra.mrb[0].mxu0 %v3663
        %v3744 = vpop.f32.mrb[0].mxu0
        %v3745 = vadd.f32 0.0, %v3744
        %v3746 = vpop.f32.mrb[0].mxu0
        %3747 = vdwg.mxu0
        %v3748 = vadd.f32 %v3564, %v3735
        %v3749 = vadd.f32 %v3565, %v3740
        %v3750 = vadd.f32 %v3566, %v3745
        %3751 = vmatprep.subr.mxu0 0.0
        %3752 = vmatpush1.msra.mxu0 %v2045
        %3753 = vmatprep.subr.mxu0 0.0
        %3754 = vmatpush1.msra.mxu0 %v2046
        %3755 = vmatprep.subr.mxu0 0.0
        %3756 = vmatpush1.msra.mxu0 %v2047
        %3757 = vmatprep.subr.mxu0 0.0
        %3758 = vmatpush1.msra.mxu0 %v2048
        %3759 = vmatprep.subr.mxu0 0.0
        %3760 = vmatpush1.msra.mxu0 %v2049
        %3761 = vmatprep.subr.mxu0 0.0
        %3762 = vmatpush1.msra.mxu0 %v2050
        %3763 = vmatprep.subr.mxu0 0.0
        %3764 = vmatpush1.msra.mxu0 %v2051
        %3765 = vmatprep.subr.mxu0 0.0
        %3766 = vmatpush1.msra.mxu0 %v2052
        %3767 = vmatprep.subr.mxu0 0.0
        %3768 = vmatpush1.msra.mxu0 %v2053
        %3769 = vmatprep.subr.mxu0 0.0
        %3770 = vmatpush1.msra.mxu0 %v2054
        %3771 = vmatprep.subr.mxu0 0.0
        %3772 = vmatpush1.msra.mxu0 %v2055
        %3773 = vmatprep.subr.mxu0 0.0
        %3774 = vmatpush1.msra.mxu0 %v2056
        %3775 = vmatprep.subr.mxu0 0.0
        %3776 = vmatpush1.msra.mxu0 %v2057
        %3777 = vmatprep.subr.mxu0 0.0
        %3778 = vmatpush1.msra.mxu0 %v2058
        %3779 = vmatprep.subr.mxu0 0.0
        %3780 = vmatpush1.msra.mxu0 %v2059
        %3781 = vmatprep.subr.mxu0 0.0
        %3782 = vmatpush1.msra.mxu0 %v2060
        %3783 = vmatprep.subr.mxu0 0.0
        %3784 = vmatpush1.msra.mxu0 0.0
        %3785 = vmatprep.subr.mxu0 0.0
        %3786 = vmatpush1.msra.mxu0 0.0
        %3787 = vmatprep.subr.mxu0 0.0
        %3788 = vmatpush1.msra.mxu0 0.0
        %3789 = vmatprep.subr.mxu0 0.0
        %3790 = vmatpush1.msra.mxu0 0.0
        %3791 = vmatprep.subr.mxu0 0.0
        %3792 = vmatpush1.msra.mxu0 0.0
        %3793 = vmatprep.subr.mxu0 0.0
        %3794 = vmatpush1.msra.mxu0 0.0
        %3795 = vmatprep.subr.mxu0 0.0
        %3796 = vmatpush1.msra.mxu0 0.0
        %3797 = vmatprep.subr.mxu0 0.0
        %3798 = vmatpush1.msra.mxu0 0.0
        %3799 = vmatprep.subr.mxu0 0.0
        %3800 = vmatpush1.msra.mxu0 0.0
        %3801 = vmatprep.subr.mxu0 0.0
        %3802 = vmatpush1.msra.mxu0 0.0
        %3803 = vmatprep.subr.mxu0 0.0
        %3804 = vmatpush1.msra.mxu0 0.0
        %3805 = vmatprep.subr.mxu0 0.0
        %3806 = vmatpush1.msra.mxu0 0.0
        %3807 = vmatprep.subr.mxu0 0.0
        %3808 = vmatpush1.msra.mxu0 0.0
        %3809 = vmatprep.subr.mxu0 0.0
        %3810 = vmatpush1.msra.mxu0 0.0
        %3811 = vmatprep.subr.mxu0 0.0
        %3812 = vmatpush1.msra.mxu0 0.0
        %3813 = vmatprep.subr.mxu0 0.0
        %3814 = vmatpush1.msra.mxu0 0.0
        %3815 = vmatprep.mubr.f32.mxu0 0.0
        %3816 = vmatmul.mubr.f32.gmra.mrb[0].mxu0 %v2464
        %v3817 = vpop.f32.mrb[0].mxu0
        %v3818 = vadd.f32 0.0, %v3817
        %v3819 = vpop.f32.mrb[0].mxu0
        %3820 = vmatprep.mubr.f32.mxu0 0.0
        %3821 = vmatmul.mubr.f32.gmra.mrb[0].mxu0 %v2465
        %v3822 = vpop.f32.mrb[0].mxu0
        %v3823 = vadd.f32 0.0, %v3822
        %v3824 = vpop.f32.mrb[0].mxu0
        %3825 = vmatprep.mubr.f32.mxu0 0.0
        %3826 = vmatmul.mubr.f32.gmra.mrb[0].mxu0 %v2466
        %v3827 = vpop.f32.mrb[0].mxu0
        %v3828 = vadd.f32 0.0, %v3827
        %v3829 = vpop.f32.mrb[0].mxu0
        %3830 = vmatprep.mubr.f32.mxu0 0.0
        %3831 = vmatmul.mubr.f32.gmra.mrb[0].mxu0 %v2467
        %v3832 = vpop.f32.mrb[0].mxu0
        %v3833 = vadd.f32 0.0, %v3832
        %v3834 = vpop.f32.mrb[0].mxu0
        %3835 = vdwg.mxu0
        %s3836 = scalar_lea.vmem %s4, 168
        %v3837 = vld [vmem:[%s3836] sm:$0xff]
        %v3838 = vld [vmem:[%s3836 + $0x8] sm:$0xff]
        %v3839 = vld [vmem:[%s3836 + $0x10] sm:$0xf]
        %v3841 = vsel %vm2645, %v3837, 0
        %v3844 = vsel %vm2645, %v3838, 0
        %v3847 = vsel %vm2645, %v3839, 0
        %v3850 = vsel %vm2655, %v3833, 0
        %3852 = vmatprep.subr.mxu0 0.0
        %3853 = vmatpush1.msra.mxu0 %v3818
        %3854 = vmatprep.subr.mxu0 0.0
        %3855 = vmatpush1.msra.mxu0 %v3823
        %3856 = vmatprep.subr.mxu0 0.0
        %3857 = vmatpush1.msra.mxu0 %v3828
        %3858 = vmatprep.subr.mxu0 0.0
        %3859 = vmatpush1.msra.mxu0 %v3850
        %3860 = vmatprep.subr.mxu0 0.0
        %3861 = vmatpush1.msra.mxu0 0.0
        %3862 = vmatprep.subr.mxu0 0.0
        %3863 = vmatpush1.msra.mxu0 0.0
        %3864 = vmatprep.subr.mxu0 0.0
        %3865 = vmatpush1.msra.mxu0 0.0
        %3866 = vmatprep.subr.mxu0 0.0
        %3867 = vmatpush1.msra.mxu0 0.0
        %3868 = vmatprep.subr.mxu0 0.0
        %3869 = vmatpush1.msra.mxu0 0.0
        %3870 = vmatprep.subr.mxu0 0.0
        %3871 = vmatpush1.msra.mxu0 0.0
        %3872 = vmatprep.subr.mxu0 0.0
        %3873 = vmatpush1.msra.mxu0 0.0
        %3874 = vmatprep.subr.mxu0 0.0
        %3875 = vmatpush1.msra.mxu0 0.0
        %3876 = vmatprep.subr.mxu0 0.0
        %3877 = vmatpush1.msra.mxu0 0.0
        %3878 = vmatprep.subr.mxu0 0.0
        %3879 = vmatpush1.msra.mxu0 0.0
        %3880 = vmatprep.subr.mxu0 0.0
        %3881 = vmatpush1.msra.mxu0 0.0
        %3882 = vmatprep.subr.mxu0 0.0
        %3883 = vmatpush1.msra.mxu0 0.0
        %3884 = vmatprep.subr.mxu0 0.0
        %3885 = vmatpush1.msra.mxu0 0.0
        %3886 = vmatprep.subr.mxu0 0.0
        %3887 = vmatpush1.msra.mxu0 0.0
        %3888 = vmatprep.subr.mxu0 0.0
        %3889 = vmatpush1.msra.mxu0 0.0
        %3890 = vmatprep.subr.mxu0 0.0
        %3891 = vmatpush1.msra.mxu0 0.0
        %3892 = vmatprep.subr.mxu0 0.0
        %3893 = vmatpush1.msra.mxu0 0.0
        %3894 = vmatprep.subr.mxu0 0.0
        %3895 = vmatpush1.msra.mxu0 0.0
        %3896 = vmatprep.subr.mxu0 0.0
        %3897 = vmatpush1.msra.mxu0 0.0
        %3898 = vmatprep.subr.mxu0 0.0
        %3899 = vmatpush1.msra.mxu0 0.0
        %3900 = vmatprep.subr.mxu0 0.0
        %3901 = vmatpush1.msra.mxu0 0.0
        %3902 = vmatprep.subr.mxu0 0.0
        %3903 = vmatpush1.msra.mxu0 0.0
        %3904 = vmatprep.subr.mxu0 0.0
        %3905 = vmatpush1.msra.mxu0 0.0
        %3906 = vmatprep.subr.mxu0 0.0
        %3907 = vmatpush1.msra.mxu0 0.0
        %3908 = vmatprep.subr.mxu0 0.0
        %3909 = vmatpush1.msra.mxu0 0.0
        %3910 = vmatprep.subr.mxu0 0.0
        %3911 = vmatpush1.msra.mxu0 0.0
        %3912 = vmatprep.subr.mxu0 0.0
        %3913 = vmatpush1.msra.mxu0 0.0
        %3914 = vmatprep.subr.mxu0 0.0
        %3915 = vmatpush1.msra.mxu0 0.0
        %3916 = vmatprep.mubr.f32.mxu0 0.0
        %3917 = vmatmul.mubr.f32.gmra.mrb[0].mxu0 %v3841
        %v3918 = vpop.f32.mrb[0].mxu0
        %v3919 = vadd.f32 0.0, %v3918
        %v3920 = vpop.f32.mrb[0].mxu0
        %3921 = vmatprep.mubr.f32.mxu0 0.0
        %3922 = vmatmul.mubr.f32.gmra.mrb[0].mxu0 %v3844
        %v3923 = vpop.f32.mrb[0].mxu0
        %v3924 = vadd.f32 0.0, %v3923
        %v3925 = vpop.f32.mrb[0].mxu0
        %3926 = vmatprep.mubr.f32.mxu0 0.0
        %3927 = vmatmul.mubr.f32.gmra.mrb[0].mxu0 %v3847
        %v3928 = vpop.f32.mrb[0].mxu0
        %v3929 = vadd.f32 0.0, %v3928
        %v3930 = vpop.f32.mrb[0].mxu0
        %3931 = vdwg.mxu0
        %v3932 = vadd.f32 %v3748, %v3919
        %v3933 = vadd.f32 %v3749, %v3924
        %v3934 = vadd.f32 %v3750, %v3929
        %3935 = vmatprep.subr.mxu0 0.0
        %3936 = vmatpush1.msra.mxu0 %v2241
        %3937 = vmatprep.subr.mxu0 0.0
        %3938 = vmatpush1.msra.mxu0 %v2242
        %3939 = vmatprep.subr.mxu0 0.0
        %3940 = vmatpush1.msra.mxu0 %v2243
        %3941 = vmatprep.subr.mxu0 0.0
        %3942 = vmatpush1.msra.mxu0 %v2244
        %3943 = vmatprep.subr.mxu0 0.0
        %3944 = vmatpush1.msra.mxu0 %v2245
        %3945 = vmatprep.subr.mxu0 0.0
        %3946 = vmatpush1.msra.mxu0 %v2246
        %3947 = vmatprep.subr.mxu0 0.0
        %3948 = vmatpush1.msra.mxu0 %v2247
        %3949 = vmatprep.subr.mxu0 0.0
        %3950 = vmatpush1.msra.mxu0 %v2248
        %3951 = vmatprep.subr.mxu0 0.0
        %3952 = vmatpush1.msra.mxu0 %v2249
        %3953 = vmatprep.subr.mxu0 0.0
        %3954 = vmatpush1.msra.mxu0 %v2250
        %3955 = vmatprep.subr.mxu0 0.0
        %3956 = vmatpush1.msra.mxu0 %v2251
        %3957 = vmatprep.subr.mxu0 0.0
        %3958 = vmatpush1.msra.mxu0 %v2252
        %3959 = vmatprep.subr.mxu0 0.0
        %3960 = vmatpush1.msra.mxu0 %v2253
        %3961 = vmatprep.subr.mxu0 0.0
        %3962 = vmatpush1.msra.mxu0 %v2254
        %3963 = vmatprep.subr.mxu0 0.0
        %3964 = vmatpush1.msra.mxu0 %v2255
        %3965 = vmatprep.subr.mxu0 0.0
        %3966 = vmatpush1.msra.mxu0 %v2256
        %3967 = vmatprep.subr.mxu0 0.0
        %3968 = vmatpush1.msra.mxu0 0.0
        %3969 = vmatprep.subr.mxu0 0.0
        %3970 = vmatpush1.msra.mxu0 0.0
        %3971 = vmatprep.subr.mxu0 0.0
        %3972 = vmatpush1.msra.mxu0 0.0
        %3973 = vmatprep.subr.mxu0 0.0
        %3974 = vmatpush1.msra.mxu0 0.0
        %3975 = vmatprep.subr.mxu0 0.0
        %3976 = vmatpush1.msra.mxu0 0.0
        %3977 = vmatprep.subr.mxu0 0.0
        %3978 = vmatpush1.msra.mxu0 0.0
        %3979 = vmatprep.subr.mxu0 0.0
        %3980 = vmatpush1.msra.mxu0 0.0
        %3981 = vmatprep.subr.mxu0 0.0
        %3982 = vmatpush1.msra.mxu0 0.0
        %3983 = vmatprep.subr.mxu0 0.0
        %3984 = vmatpush1.msra.mxu0 0.0
        %3985 = vmatprep.subr.mxu0 0.0
        %3986 = vmatpush1.msra.mxu0 0.0
        %3987 = vmatprep.subr.mxu0 0.0
        %3988 = vmatpush1.msra.mxu0 0.0
        %3989 = vmatprep.subr.mxu0 0.0
        %3990 = vmatpush1.msra.mxu0 0.0
        %3991 = vmatprep.subr.mxu0 0.0
        %3992 = vmatpush1.msra.mxu0 0.0
        %3993 = vmatprep.subr.mxu0 0.0
        %3994 = vmatpush1.msra.mxu0 0.0
        %3995 = vmatprep.subr.mxu0 0.0
        %3996 = vmatpush1.msra.mxu0 0.0
        %3997 = vmatprep.subr.mxu0 0.0
        %3998 = vmatpush1.msra.mxu0 0.0
        %3999 = vmatprep.mubr.f32.mxu0 0.0
        %4000 = vmatmul.mubr.f32.gmra.mrb[0].mxu0 %v2464
        %v4001 = vpop.f32.mrb[0].mxu0
        %v4002 = vadd.f32 0.0, %v4001
        %v4003 = vpop.f32.mrb[0].mxu0
        %4004 = vmatprep.mubr.f32.mxu0 0.0
        %4005 = vmatmul.mubr.f32.gmra.mrb[0].mxu0 %v2465
        %v4006 = vpop.f32.mrb[0].mxu0
        %v4007 = vadd.f32 0.0, %v4006
        %v4008 = vpop.f32.mrb[0].mxu0
        %4009 = vmatprep.mubr.f32.mxu0 0.0
        %4010 = vmatmul.mubr.f32.gmra.mrb[0].mxu0 %v2466
        %v4011 = vpop.f32.mrb[0].mxu0
        %v4012 = vadd.f32 0.0, %v4011
        %v4013 = vpop.f32.mrb[0].mxu0
        %4014 = vmatprep.mubr.f32.mxu0 0.0
        %4015 = vmatmul.mubr.f32.gmra.mrb[0].mxu0 %v2467
        %v4016 = vpop.f32.mrb[0].mxu0
        %v4017 = vadd.f32 0.0, %v4016
        %v4018 = vpop.f32.mrb[0].mxu0
        %4019 = vdwg.mxu0
        %s4020 = scalar_lea.vmem %s4, 192
        %v4021 = vld [vmem:[%s4020] sm:$0xff]
        %v4022 = vld [vmem:[%s4020 + $0x8] sm:$0xff]
        %v4023 = vld [vmem:[%s4020 + $0x10] sm:$0xf]
        %v4025 = vsel %vm2645, %v4021, 0
        %v4028 = vsel %vm2645, %v4022, 0
        %v4031 = vsel %vm2645, %v4023, 0
        %v4034 = vsel %vm2655, %v4017, 0
        %4036 = vmatprep.subr.mxu0 0.0
        %4037 = vmatpush1.msra.mxu0 %v4002
        %4038 = vmatprep.subr.mxu0 0.0
        %4039 = vmatpush1.msra.mxu0 %v4007
        %4040 = vmatprep.subr.mxu0 0.0
        %4041 = vmatpush1.msra.mxu0 %v4012
        %4042 = vmatprep.subr.mxu0 0.0
        %4043 = vmatpush1.msra.mxu0 %v4034
        %4044 = vmatprep.subr.mxu0 0.0
        %4045 = vmatpush1.msra.mxu0 0.0
        %4046 = vmatprep.subr.mxu0 0.0
        %4047 = vmatpush1.msra.mxu0 0.0
        %4048 = vmatprep.subr.mxu0 0.0
        %4049 = vmatpush1.msra.mxu0 0.0
        %4050 = vmatprep.subr.mxu0 0.0
        %4051 = vmatpush1.msra.mxu0 0.0
        %4052 = vmatprep.subr.mxu0 0.0
        %4053 = vmatpush1.msra.mxu0 0.0
        %4054 = vmatprep.subr.mxu0 0.0
        %4055 = vmatpush1.msra.mxu0 0.0
        %4056 = vmatprep.subr.mxu0 0.0
        %4057 = vmatpush1.msra.mxu0 0.0
        %4058 = vmatprep.subr.mxu0 0.0
        %4059 = vmatpush1.msra.mxu0 0.0
        %4060 = vmatprep.subr.mxu0 0.0
        %4061 = vmatpush1.msra.mxu0 0.0
        %4062 = vmatprep.subr.mxu0 0.0
        %4063 = vmatpush1.msra.mxu0 0.0
        %4064 = vmatprep.subr.mxu0 0.0
        %4065 = vmatpush1.msra.mxu0 0.0
        %4066 = vmatprep.subr.mxu0 0.0
        %4067 = vmatpush1.msra.mxu0 0.0
        %4068 = vmatprep.subr.mxu0 0.0
        %4069 = vmatpush1.msra.mxu0 0.0
        %4070 = vmatprep.subr.mxu0 0.0
        %4071 = vmatpush1.msra.mxu0 0.0
        %4072 = vmatprep.subr.mxu0 0.0
        %4073 = vmatpush1.msra.mxu0 0.0
        %4074 = vmatprep.subr.mxu0 0.0
        %4075 = vmatpush1.msra.mxu0 0.0
        %4076 = vmatprep.subr.mxu0 0.0
        %4077 = vmatpush1.msra.mxu0 0.0
        %4078 = vmatprep.subr.mxu0 0.0
        %4079 = vmatpush1.msra.mxu0 0.0
        %4080 = vmatprep.subr.mxu0 0.0
        %4081 = vmatpush1.msra.mxu0 0.0
        %4082 = vmatprep.subr.mxu0 0.0
        %4083 = vmatpush1.msra.mxu0 0.0
        %4084 = vmatprep.subr.mxu0 0.0
        %4085 = vmatpush1.msra.mxu0 0.0
        %4086 = vmatprep.subr.mxu0 0.0
        %4087 = vmatpush1.msra.mxu0 0.0
        %4088 = vmatprep.subr.mxu0 0.0
        %4089 = vmatpush1.msra.mxu0 0.0
        %4090 = vmatprep.subr.mxu0 0.0
        %4091 = vmatpush1.msra.mxu0 0.0
        %4092 = vmatprep.subr.mxu0 0.0
        %4093 = vmatpush1.msra.mxu0 0.0
        %4094 = vmatprep.subr.mxu0 0.0
        %4095 = vmatpush1.msra.mxu0 0.0
        %4096 = vmatprep.subr.mxu0 0.0
        %4097 = vmatpush1.msra.mxu0 0.0
        %4098 = vmatprep.subr.mxu0 0.0
        %4099 = vmatpush1.msra.mxu0 0.0
        %4100 = vmatprep.mubr.f32.mxu0 0.0
        %4101 = vmatmul.mubr.f32.gmra.mrb[0].mxu0 %v4025
        %v4102 = vpop.f32.mrb[0].mxu0
        %v4103 = vadd.f32 0.0, %v4102
        %v4104 = vpop.f32.mrb[0].mxu0
        %4105 = vmatprep.mubr.f32.mxu0 0.0
        %4106 = vmatmul.mubr.f32.gmra.mrb[0].mxu0 %v4028
        %v4107 = vpop.f32.mrb[0].mxu0
        %v4108 = vadd.f32 0.0, %v4107
        %v4109 = vpop.f32.mrb[0].mxu0
        %4110 = vmatprep.mubr.f32.mxu0 0.0
        %4111 = vmatmul.mubr.f32.gmra.mrb[0].mxu0 %v4031
        %v4112 = vpop.f32.mrb[0].mxu0
        %v4113 = vadd.f32 0.0, %v4112
        %v4114 = vpop.f32.mrb[0].mxu0
        %4115 = vdwg.mxu0
        %v4116 = vadd.f32 %v3932, %v4103
        %v4117 = vadd.f32 %v3933, %v4108
        %v4118 = vadd.f32 %v3934, %v4113
        %v4119 = vld [vmem:[%s5] sm:$0xff]
        %v4120 = vld [vmem:[%s5 + $0x8] sm:$0xff]
        %v4121 = vld [vmem:[%s5 + $0x10] sm:$0xf]
        %4123 = vset.pattern.permute.xlu0 0
        %4124 = vperm.xlu0 %4123, %v4119
        %v4125 = vpop.permute.xlu0 %4124
        %4128 = vset.pattern.permute.xlu0 0
        %4129 = vperm.xlu0 %4128, %v4120
        %v4130 = vpop.permute.xlu0 %4129
        %4133 = vset.pattern.permute.xlu0 0
        %4134 = vperm.xlu0 %4133, %v4121
        %v4135 = vpop.permute.xlu0 %4134
        %v4137 = vadd.f32 %v4116, %v4125
        %v4138 = vadd.f32 %v4117, %v4130
        %v4139 = vadd.f32 %v4118, %v4135
        %v4140 = vtanh.pop %v4137
        %v4141 = vtanh.pop %v4138
        %v4142 = vtanh.pop %v4139
        %4143 = vmatprep.subr.mxu0 0.0
        %4144 = vmatpush1.msra.mxu0 %v680
        %4145 = vmatprep.subr.mxu0 0.0
        %4146 = vmatpush1.msra.mxu0 %v681
        %4147 = vmatprep.subr.mxu0 0.0
        %4148 = vmatpush1.msra.mxu0 %v682
        %4149 = vmatprep.subr.mxu0 0.0
        %4150 = vmatpush1.msra.mxu0 %v683
        %4151 = vmatprep.subr.mxu0 0.0
        %4152 = vmatpush1.msra.mxu0 %v684
        %4153 = vmatprep.subr.mxu0 0.0
        %4154 = vmatpush1.msra.mxu0 %v685
        %4155 = vmatprep.subr.mxu0 0.0
        %4156 = vmatpush1.msra.mxu0 %v686
        %4157 = vmatprep.subr.mxu0 0.0
        %4158 = vmatpush1.msra.mxu0 %v687
        %4159 = vmatprep.subr.mxu0 0.0
        %4160 = vmatpush1.msra.mxu0 %v688
        %4161 = vmatprep.subr.mxu0 0.0
        %4162 = vmatpush1.msra.mxu0 %v689
        %4163 = vmatprep.subr.mxu0 0.0
        %4164 = vmatpush1.msra.mxu0 %v690
        %4165 = vmatprep.subr.mxu0 0.0
        %4166 = vmatpush1.msra.mxu0 %v691
        %4167 = vmatprep.subr.mxu0 0.0
        %4168 = vmatpush1.msra.mxu0 %v692
        %4169 = vmatprep.subr.mxu0 0.0
        %4170 = vmatpush1.msra.mxu0 %v693
        %4171 = vmatprep.subr.mxu0 0.0
        %4172 = vmatpush1.msra.mxu0 %v694
        %4173 = vmatprep.subr.mxu0 0.0
        %4174 = vmatpush1.msra.mxu0 %v695
        %4175 = vmatprep.subr.mxu0 0.0
        %4176 = vmatpush1.msra.mxu0 0.0
        %4177 = vmatprep.subr.mxu0 0.0
        %4178 = vmatpush1.msra.mxu0 0.0
        %4179 = vmatprep.subr.mxu0 0.0
        %4180 = vmatpush1.msra.mxu0 0.0
        %4181 = vmatprep.subr.mxu0 0.0
        %4182 = vmatpush1.msra.mxu0 0.0
        %4183 = vmatprep.subr.mxu0 0.0
        %4184 = vmatpush1.msra.mxu0 0.0
        %4185 = vmatprep.subr.mxu0 0.0
        %4186 = vmatpush1.msra.mxu0 0.0
        %4187 = vmatprep.subr.mxu0 0.0
        %4188 = vmatpush1.msra.mxu0 0.0
        %4189 = vmatprep.subr.mxu0 0.0
        %4190 = vmatpush1.msra.mxu0 0.0
        %4191 = vmatprep.subr.mxu0 0.0
        %4192 = vmatpush1.msra.mxu0 0.0
        %4193 = vmatprep.subr.mxu0 0.0
        %4194 = vmatpush1.msra.mxu0 0.0
        %4195 = vmatprep.subr.mxu0 0.0
        %4196 = vmatpush1.msra.mxu0 0.0
        %4197 = vmatprep.subr.mxu0 0.0
        %4198 = vmatpush1.msra.mxu0 0.0
        %4199 = vmatprep.subr.mxu0 0.0
        %4200 = vmatpush1.msra.mxu0 0.0
        %4201 = vmatprep.subr.mxu0 0.0
        %4202 = vmatpush1.msra.mxu0 0.0
        %4203 = vmatprep.subr.mxu0 0.0
        %4204 = vmatpush1.msra.mxu0 0.0
        %4205 = vmatprep.subr.mxu0 0.0
        %4206 = vmatpush1.msra.mxu0 0.0
        %4207 = vmatprep.mubr.f32.mxu0 0.0
        %4208 = vmatmul.mubr.f32.gmra.mrb[0].mxu0 %v4140
        %v4209 = vpop.f32.mrb[0].mxu0
        %v4210 = vadd.f32 0.0, %v4209
        %v4211 = vpop.f32.mrb[0].mxu0
        %4212 = vmatprep.mubr.f32.mxu0 0.0
        %4213 = vmatmul.mubr.f32.gmra.mrb[0].mxu0 %v4141
        %v4214 = vpop.f32.mrb[0].mxu0
        %v4215 = vadd.f32 0.0, %v4214
        %v4216 = vpop.f32.mrb[0].mxu0
        %4217 = vmatprep.mubr.f32.mxu0 0.0
        %4218 = vmatmul.mubr.f32.gmra.mrb[0].mxu0 %v4142
        %v4219 = vpop.f32.mrb[0].mxu0
        %v4220 = vadd.f32 0.0, %v4219
        %v4221 = vpop.f32.mrb[0].mxu0
        %4222 = vdwg.mxu0
        %v4223 = vld [vmem:[%s6] sm:$0xff]
        %v4224 = vld [vmem:[%s6 + $0x8] sm:$0x3]
        %4225 = vmatprep.subr.mxu0 0.0
        %4226 = vmatpush1.msra.mxu0 %v771
        %4227 = vmatprep.subr.mxu0 0.0
        %4228 = vmatpush1.msra.mxu0 %v772
        %4229 = vmatprep.subr.mxu0 0.0
        %4230 = vmatpush1.msra.mxu0 %v773
        %4231 = vmatprep.subr.mxu0 0.0
        %4232 = vmatpush1.msra.mxu0 %v774
        %4233 = vmatprep.subr.mxu0 0.0
        %4234 = vmatpush1.msra.mxu0 %v775
        %4235 = vmatprep.subr.mxu0 0.0
        %4236 = vmatpush1.msra.mxu0 %v776
        %4237 = vmatprep.subr.mxu0 0.0
        %4238 = vmatpush1.msra.mxu0 %v777
        %4239 = vmatprep.subr.mxu0 0.0
        %4240 = vmatpush1.msra.mxu0 %v778
        %4241 = vmatprep.subr.mxu0 0.0
        %4242 = vmatpush1.msra.mxu0 %v779
        %4243 = vmatprep.subr.mxu0 0.0
        %4244 = vmatpush1.msra.mxu0 %v780
        %4245 = vmatprep.subr.mxu0 0.0
        %4246 = vmatpush1.msra.mxu0 %v781
        %4247 = vmatprep.subr.mxu0 0.0
        %4248 = vmatpush1.msra.mxu0 %v782
        %4249 = vmatprep.subr.mxu0 0.0
        %4250 = vmatpush1.msra.mxu0 %v783
        %4251 = vmatprep.subr.mxu0 0.0
        %4252 = vmatpush1.msra.mxu0 %v784
        %4253 = vmatprep.subr.mxu0 0.0
        %4254 = vmatpush1.msra.mxu0 %v785
        %4255 = vmatprep.subr.mxu0 0.0
        %4256 = vmatpush1.msra.mxu0 %v786
        %4257 = vmatprep.subr.mxu0 0.0
        %4258 = vmatpush1.msra.mxu0 0.0
        %4259 = vmatprep.subr.mxu0 0.0
        %4260 = vmatpush1.msra.mxu0 0.0
        %4261 = vmatprep.subr.mxu0 0.0
        %4262 = vmatpush1.msra.mxu0 0.0
        %4263 = vmatprep.subr.mxu0 0.0
        %4264 = vmatpush1.msra.mxu0 0.0
        %4265 = vmatprep.subr.mxu0 0.0
        %4266 = vmatpush1.msra.mxu0 0.0
        %4267 = vmatprep.subr.mxu0 0.0
        %4268 = vmatpush1.msra.mxu0 0.0
        %4269 = vmatprep.subr.mxu0 0.0
        %4270 = vmatpush1.msra.mxu0 0.0
        %4271 = vmatprep.subr.mxu0 0.0
        %4272 = vmatpush1.msra.mxu0 0.0
        %4273 = vmatprep.subr.mxu0 0.0
        %4274 = vmatpush1.msra.mxu0 0.0
        %4275 = vmatprep.subr.mxu0 0.0
        %4276 = vmatpush1.msra.mxu0 0.0
        %4277 = vmatprep.subr.mxu0 0.0
        %4278 = vmatpush1.msra.mxu0 0.0
        %4279 = vmatprep.subr.mxu0 0.0
        %4280 = vmatpush1.msra.mxu0 0.0
        %4281 = vmatprep.subr.mxu0 0.0
        %4282 = vmatpush1.msra.mxu0 0.0
        %4283 = vmatprep.subr.mxu0 0.0
        %4284 = vmatpush1.msra.mxu0 0.0
        %4285 = vmatprep.subr.mxu0 0.0
        %4286 = vmatpush1.msra.mxu0 0.0
        %4287 = vmatprep.subr.mxu0 0.0
        %4288 = vmatpush1.msra.mxu0 0.0
        %4289 = vmatprep.mubr.f32.mxu0 0.0
        %4290 = vmatmul.mubr.f32.gmra.mrb[0].mxu0 %v4140
        %v4291 = vpop.f32.mrb[0].mxu0
        %v4292 = vadd.f32 0.0, %v4291
        %v4293 = vpop.f32.mrb[0].mxu0
        %4294 = vmatprep.mubr.f32.mxu0 0.0
        %4295 = vmatmul.mubr.f32.gmra.mrb[0].mxu0 %v4141
        %v4296 = vpop.f32.mrb[0].mxu0
        %v4297 = vadd.f32 0.0, %v4296
        %v4298 = vpop.f32.mrb[0].mxu0
        %4299 = vmatprep.mubr.f32.mxu0 0.0
        %4300 = vmatmul.mubr.f32.gmra.mrb[0].mxu0 %v4142
        %v4301 = vpop.f32.mrb[0].mxu0
        %v4302 = vadd.f32 0.0, %v4301
        %v4303 = vpop.f32.mrb[0].mxu0
        %4304 = vdwg.mxu0
        %s4305 = scalar_lea.vmem %s6, 16
        %v4306 = vld [vmem:[%s4305] sm:$0xff]
        %v4307 = vld [vmem:[%s4305 + $0x8] sm:$0x3]
        %vm4308 = vcmask 162816
        %v4310 = vsel %vm4308, %v4306, 0
        %v4313 = vsel %vm4308, %v4307, 0
        %vm4315 = vcmask 1043456
        %v4317 = vsel %vm4315, %v4302, 0
        %4319 = vmatprep.subr.mxu0 0.0
        %4320 = vmatpush1.msra.mxu0 %v4292
        %4321 = vmatprep.subr.mxu0 0.0
        %4322 = vmatpush1.msra.mxu0 %v4297
        %4323 = vmatprep.subr.mxu0 0.0
        %4324 = vmatpush1.msra.mxu0 %v4317
        %4325 = vmatprep.subr.mxu0 0.0
        %4326 = vmatpush1.msra.mxu0 0.0
        %4327 = vmatprep.subr.mxu0 0.0
        %4328 = vmatpush1.msra.mxu0 0.0
        %4329 = vmatprep.subr.mxu0 0.0
        %4330 = vmatpush1.msra.mxu0 0.0
        %4331 = vmatprep.subr.mxu0 0.0
        %4332 = vmatpush1.msra.mxu0 0.0
        %4333 = vmatprep.subr.mxu0 0.0
        %4334 = vmatpush1.msra.mxu0 0.0
        %4335 = vmatprep.subr.mxu0 0.0
        %4336 = vmatpush1.msra.mxu0 0.0
        %4337 = vmatprep.subr.mxu0 0.0
        %4338 = vmatpush1.msra.mxu0 0.0
        %4339 = vmatprep.subr.mxu0 0.0
        %4340 = vmatpush1.msra.mxu0 0.0
        %4341 = vmatprep.subr.mxu0 0.0
        %4342 = vmatpush1.msra.mxu0 0.0
        %4343 = vmatprep.subr.mxu0 0.0
        %4344 = vmatpush1.msra.mxu0 0.0
        %4345 = vmatprep.subr.mxu0 0.0
        %4346 = vmatpush1.msra.mxu0 0.0
        %4347 = vmatprep.subr.mxu0 0.0
        %4348 = vmatpush1.msra.mxu0 0.0
        %4349 = vmatprep.subr.mxu0 0.0
        %4350 = vmatpush1.msra.mxu0 0.0
        %4351 = vmatprep.subr.mxu0 0.0
        %4352 = vmatpush1.msra.mxu0 0.0
        %4353 = vmatprep.subr.mxu0 0.0
        %4354 = vmatpush1.msra.mxu0 0.0
        %4355 = vmatprep.subr.mxu0 0.0
        %4356 = vmatpush1.msra.mxu0 0.0
        %4357 = vmatprep.subr.mxu0 0.0
        %4358 = vmatpush1.msra.mxu0 0.0
        %4359 = vmatprep.subr.mxu0 0.0
        %4360 = vmatpush1.msra.mxu0 0.0
        %4361 = vmatprep.subr.mxu0 0.0
        %4362 = vmatpush1.msra.mxu0 0.0
        %4363 = vmatprep.subr.mxu0 0.0
        %4364 = vmatpush1.msra.mxu0 0.0
        %4365 = vmatprep.subr.mxu0 0.0
        %4366 = vmatpush1.msra.mxu0 0.0
        %4367 = vmatprep.subr.mxu0 0.0
        %4368 = vmatpush1.msra.mxu0 0.0
        %4369 = vmatprep.subr.mxu0 0.0
        %4370 = vmatpush1.msra.mxu0 0.0
        %4371 = vmatprep.subr.mxu0 0.0
        %4372 = vmatpush1.msra.mxu0 0.0
        %4373 = vmatprep.subr.mxu0 0.0
        %4374 = vmatpush1.msra.mxu0 0.0
        %4375 = vmatprep.subr.mxu0 0.0
        %4376 = vmatpush1.msra.mxu0 0.0
        %4377 = vmatprep.subr.mxu0 0.0
        %4378 = vmatpush1.msra.mxu0 0.0
        %4379 = vmatprep.subr.mxu0 0.0
        %4380 = vmatpush1.msra.mxu0 0.0
        %4381 = vmatprep.subr.mxu0 0.0
        %4382 = vmatpush1.msra.mxu0 0.0
        %4383 = vmatprep.mubr.f32.mxu0 0.0
        %4384 = vmatmul.mubr.f32.gmra.mrb[0].mxu0 %v4310
        %v4385 = vpop.f32.mrb[0].mxu0
        %v4386 = vadd.f32 0.0, %v4385
        %v4387 = vpop.f32.mrb[0].mxu0
        %4388 = vmatprep.mubr.f32.mxu0 0.0
        %4389 = vmatmul.mubr.f32.gmra.mrb[0].mxu0 %v4313
        %v4390 = vpop.f32.mrb[0].mxu0
        %v4391 = vadd.f32 0.0, %v4390
        %v4392 = vpop.f32.mrb[0].mxu0
        %4393 = vdwg.mxu0
        %v4395 = vsel %vm4308, %v4223, 0
        %v4398 = vsel %vm4308, %v4224, 0
        %v4401 = vsel %vm4315, %v4220, 0
        %4403 = vmatprep.subr.mxu0 0.0
        %4404 = vmatpush1.msra.mxu0 %v4210
        %4405 = vmatprep.subr.mxu0 0.0
        %4406 = vmatpush1.msra.mxu0 %v4215
        %4407 = vmatprep.subr.mxu0 0.0
        %4408 = vmatpush1.msra.mxu0 %v4401
        %4409 = vmatprep.subr.mxu0 0.0
        %4410 = vmatpush1.msra.mxu0 0.0
        %4411 = vmatprep.subr.mxu0 0.0
        %4412 = vmatpush1.msra.mxu0 0.0
        %4413 = vmatprep.subr.mxu0 0.0
        %4414 = vmatpush1.msra.mxu0 0.0
        %4415 = vmatprep.subr.mxu0 0.0
        %4416 = vmatpush1.msra.mxu0 0.0
        %4417 = vmatprep.subr.mxu0 0.0
        %4418 = vmatpush1.msra.mxu0 0.0
        %4419 = vmatprep.subr.mxu0 0.0
        %4420 = vmatpush1.msra.mxu0 0.0
        %4421 = vmatprep.subr.mxu0 0.0
        %4422 = vmatpush1.msra.mxu0 0.0
        %4423 = vmatprep.subr.mxu0 0.0
        %4424 = vmatpush1.msra.mxu0 0.0
        %4425 = vmatprep.subr.mxu0 0.0
        %4426 = vmatpush1.msra.mxu0 0.0
        %4427 = vmatprep.subr.mxu0 0.0
        %4428 = vmatpush1.msra.mxu0 0.0
        %4429 = vmatprep.subr.mxu0 0.0
        %4430 = vmatpush1.msra.mxu0 0.0
        %4431 = vmatprep.subr.mxu0 0.0
        %4432 = vmatpush1.msra.mxu0 0.0
        %4433 = vmatprep.subr.mxu0 0.0
        %4434 = vmatpush1.msra.mxu0 0.0
        %4435 = vmatprep.subr.mxu0 0.0
        %4436 = vmatpush1.msra.mxu0 0.0
        %4437 = vmatprep.subr.mxu0 0.0
        %4438 = vmatpush1.msra.mxu0 0.0
        %4439 = vmatprep.subr.mxu0 0.0
        %4440 = vmatpush1.msra.mxu0 0.0
        %4441 = vmatprep.subr.mxu0 0.0
        %4442 = vmatpush1.msra.mxu0 0.0
        %4443 = vmatprep.subr.mxu0 0.0
        %4444 = vmatpush1.msra.mxu0 0.0
        %4445 = vmatprep.subr.mxu0 0.0
        %4446 = vmatpush1.msra.mxu0 0.0
        %4447 = vmatprep.subr.mxu0 0.0
        %4448 = vmatpush1.msra.mxu0 0.0
        %4449 = vmatprep.subr.mxu0 0.0
        %4450 = vmatpush1.msra.mxu0 0.0
        %4451 = vmatprep.subr.mxu0 0.0
        %4452 = vmatpush1.msra.mxu0 0.0
        %4453 = vmatprep.subr.mxu0 0.0
        %4454 = vmatpush1.msra.mxu0 0.0
        %4455 = vmatprep.subr.mxu0 0.0
        %4456 = vmatpush1.msra.mxu0 0.0
        %4457 = vmatprep.subr.mxu0 0.0
        %4458 = vmatpush1.msra.mxu0 0.0
        %4459 = vmatprep.subr.mxu0 0.0
        %4460 = vmatpush1.msra.mxu0 0.0
        %4461 = vmatprep.subr.mxu0 0.0
        %4462 = vmatpush1.msra.mxu0 0.0
        %4463 = vmatprep.subr.mxu0 0.0
        %4464 = vmatpush1.msra.mxu0 0.0
        %4465 = vmatprep.subr.mxu0 0.0
        %4466 = vmatpush1.msra.mxu0 0.0
        %4467 = vmatprep.mubr.f32.mxu0 0.0
        %4468 = vmatmul.mubr.f32.gmra.mrb[0].mxu0 %v4395
        %v4469 = vpop.f32.mrb[0].mxu0
        %v4470 = vadd.f32 %v4386, %v4469
        %v4471 = vpop.f32.mrb[0].mxu0
        %4472 = vmatprep.mubr.f32.mxu0 0.0
        %4473 = vmatmul.mubr.f32.gmra.mrb[0].mxu0 %v4398
        %v4474 = vpop.f32.mrb[0].mxu0
        %v4475 = vadd.f32 %v4391, %v4474
        %v4476 = vpop.f32.mrb[0].mxu0
        %4477 = vdwg.mxu0
        %4478 = vmatprep.subr.mxu0 0.0
        %4479 = vmatpush1.msra.mxu0 %v1065
        %4480 = vmatprep.subr.mxu0 0.0
        %4481 = vmatpush1.msra.mxu0 %v1066
        %4482 = vmatprep.subr.mxu0 0.0
        %4483 = vmatpush1.msra.mxu0 %v1067
        %4484 = vmatprep.subr.mxu0 0.0
        %4485 = vmatpush1.msra.mxu0 %v1068
        %4486 = vmatprep.subr.mxu0 0.0
        %4487 = vmatpush1.msra.mxu0 %v1069
        %4488 = vmatprep.subr.mxu0 0.0
        %4489 = vmatpush1.msra.mxu0 %v1070
        %4490 = vmatprep.subr.mxu0 0.0
        %4491 = vmatpush1.msra.mxu0 %v1071
        %4492 = vmatprep.subr.mxu0 0.0
        %4493 = vmatpush1.msra.mxu0 %v1072
        %4494 = vmatprep.subr.mxu0 0.0
        %4495 = vmatpush1.msra.mxu0 %v1073
        %4496 = vmatprep.subr.mxu0 0.0
        %4497 = vmatpush1.msra.mxu0 %v1074
        %4498 = vmatprep.subr.mxu0 0.0
        %4499 = vmatpush1.msra.mxu0 %v1075
        %4500 = vmatprep.subr.mxu0 0.0
        %4501 = vmatpush1.msra.mxu0 %v1076
        %4502 = vmatprep.subr.mxu0 0.0
        %4503 = vmatpush1.msra.mxu0 %v1077
        %4504 = vmatprep.subr.mxu0 0.0
        %4505 = vmatpush1.msra.mxu0 %v1078
        %4506 = vmatprep.subr.mxu0 0.0
        %4507 = vmatpush1.msra.mxu0 %v1079
        %4508 = vmatprep.subr.mxu0 0.0
        %4509 = vmatpush1.msra.mxu0 %v1080
        %4510 = vmatprep.subr.mxu0 0.0
        %4511 = vmatpush1.msra.mxu0 0.0
        %4512 = vmatprep.subr.mxu0 0.0
        %4513 = vmatpush1.msra.mxu0 0.0
        %4514 = vmatprep.subr.mxu0 0.0
        %4515 = vmatpush1.msra.mxu0 0.0
        %4516 = vmatprep.subr.mxu0 0.0
        %4517 = vmatpush1.msra.mxu0 0.0
        %4518 = vmatprep.subr.mxu0 0.0
        %4519 = vmatpush1.msra.mxu0 0.0
        %4520 = vmatprep.subr.mxu0 0.0
        %4521 = vmatpush1.msra.mxu0 0.0
        %4522 = vmatprep.subr.mxu0 0.0
        %4523 = vmatpush1.msra.mxu0 0.0
        %4524 = vmatprep.subr.mxu0 0.0
        %4525 = vmatpush1.msra.mxu0 0.0
        %4526 = vmatprep.subr.mxu0 0.0
        %4527 = vmatpush1.msra.mxu0 0.0
        %4528 = vmatprep.subr.mxu0 0.0
        %4529 = vmatpush1.msra.mxu0 0.0
        %4530 = vmatprep.subr.mxu0 0.0
        %4531 = vmatpush1.msra.mxu0 0.0
        %4532 = vmatprep.subr.mxu0 0.0
        %4533 = vmatpush1.msra.mxu0 0.0
        %4534 = vmatprep.subr.mxu0 0.0
        %4535 = vmatpush1.msra.mxu0 0.0
        %4536 = vmatprep.subr.mxu0 0.0
        %4537 = vmatpush1.msra.mxu0 0.0
        %4538 = vmatprep.subr.mxu0 0.0
        %4539 = vmatpush1.msra.mxu0 0.0
        %4540 = vmatprep.subr.mxu0 0.0
        %4541 = vmatpush1.msra.mxu0 0.0
        %4542 = vmatprep.mubr.f32.mxu0 0.0
        %4543 = vmatmul.mubr.f32.gmra.mrb[0].mxu0 %v4140
        %v4544 = vpop.f32.mrb[0].mxu0
        %v4545 = vadd.f32 0.0, %v4544
        %v4546 = vpop.f32.mrb[0].mxu0
        %4547 = vmatprep.mubr.f32.mxu0 0.0
        %4548 = vmatmul.mubr.f32.gmra.mrb[0].mxu0 %v4141
        %v4549 = vpop.f32.mrb[0].mxu0
        %v4550 = vadd.f32 0.0, %v4549
        %v4551 = vpop.f32.mrb[0].mxu0
        %4552 = vmatprep.mubr.f32.mxu0 0.0
        %4553 = vmatmul.mubr.f32.gmra.mrb[0].mxu0 %v4142
        %v4554 = vpop.f32.mrb[0].mxu0
        %v4555 = vadd.f32 0.0, %v4554
        %v4556 = vpop.f32.mrb[0].mxu0
        %4557 = vdwg.mxu0
        %s4558 = scalar_lea.vmem %s6, 32
        %v4559 = vld [vmem:[%s4558] sm:$0xff]
        %v4560 = vld [vmem:[%s4558 + $0x8] sm:$0x3]
        %v4562 = vsel %vm4308, %v4559, 0
        %v4565 = vsel %vm4308, %v4560, 0
        %v4568 = vsel %vm4315, %v4555, 0
        %4570 = vmatprep.subr.mxu0 0.0
        %4571 = vmatpush1.msra.mxu0 %v4545
        %4572 = vmatprep.subr.mxu0 0.0
        %4573 = vmatpush1.msra.mxu0 %v4550
        %4574 = vmatprep.subr.mxu0 0.0
        %4575 = vmatpush1.msra.mxu0 %v4568
        %4576 = vmatprep.subr.mxu0 0.0
        %4577 = vmatpush1.msra.mxu0 0.0
        %4578 = vmatprep.subr.mxu0 0.0
        %4579 = vmatpush1.msra.mxu0 0.0
        %4580 = vmatprep.subr.mxu0 0.0
        %4581 = vmatpush1.msra.mxu0 0.0
        %4582 = vmatprep.subr.mxu0 0.0
        %4583 = vmatpush1.msra.mxu0 0.0
        %4584 = vmatprep.subr.mxu0 0.0
        %4585 = vmatpush1.msra.mxu0 0.0
        %4586 = vmatprep.subr.mxu0 0.0
        %4587 = vmatpush1.msra.mxu0 0.0
        %4588 = vmatprep.subr.mxu0 0.0
        %4589 = vmatpush1.msra.mxu0 0.0
        %4590 = vmatprep.subr.mxu0 0.0
        %4591 = vmatpush1.msra.mxu0 0.0
        %4592 = vmatprep.subr.mxu0 0.0
        %4593 = vmatpush1.msra.mxu0 0.0
        %4594 = vmatprep.subr.mxu0 0.0
        %4595 = vmatpush1.msra.mxu0 0.0
        %4596 = vmatprep.subr.mxu0 0.0
        %4597 = vmatpush1.msra.mxu0 0.0
        %4598 = vmatprep.subr.mxu0 0.0
        %4599 = vmatpush1.msra.mxu0 0.0
        %4600 = vmatprep.subr.mxu0 0.0
        %4601 = vmatpush1.msra.mxu0 0.0
        %4602 = vmatprep.subr.mxu0 0.0
        %4603 = vmatpush1.msra.mxu0 0.0
        %4604 = vmatprep.subr.mxu0 0.0
        %4605 = vmatpush1.msra.mxu0 0.0
        %4606 = vmatprep.subr.mxu0 0.0
        %4607 = vmatpush1.msra.mxu0 0.0
        %4608 = vmatprep.subr.mxu0 0.0
        %4609 = vmatpush1.msra.mxu0 0.0
        %4610 = vmatprep.subr.mxu0 0.0
        %4611 = vmatpush1.msra.mxu0 0.0
        %4612 = vmatprep.subr.mxu0 0.0
        %4613 = vmatpush1.msra.mxu0 0.0
        %4614 = vmatprep.subr.mxu0 0.0
        %4615 = vmatpush1.msra.mxu0 0.0
        %4616 = vmatprep.subr.mxu0 0.0
        %4617 = vmatpush1.msra.mxu0 0.0
        %4618 = vmatprep.subr.mxu0 0.0
        %4619 = vmatpush1.msra.mxu0 0.0
        %4620 = vmatprep.subr.mxu0 0.0
        %4621 = vmatpush1.msra.mxu0 0.0
        %4622 = vmatprep.subr.mxu0 0.0
        %4623 = vmatpush1.msra.mxu0 0.0
        %4624 = vmatprep.subr.mxu0 0.0
        %4625 = vmatpush1.msra.mxu0 0.0
        %4626 = vmatprep.subr.mxu0 0.0
        %4627 = vmatpush1.msra.mxu0 0.0
        %4628 = vmatprep.subr.mxu0 0.0
        %4629 = vmatpush1.msra.mxu0 0.0
        %4630 = vmatprep.subr.mxu0 0.0
        %4631 = vmatpush1.msra.mxu0 0.0
        %4632 = vmatprep.subr.mxu0 0.0
        %4633 = vmatpush1.msra.mxu0 0.0
        %4634 = vmatprep.mubr.f32.mxu0 0.0
        %4635 = vmatmul.mubr.f32.gmra.mrb[0].mxu0 %v4562
        %v4636 = vpop.f32.mrb[0].mxu0
        %v4637 = vadd.f32 0.0, %v4636
        %v4638 = vpop.f32.mrb[0].mxu0
        %4639 = vmatprep.mubr.f32.mxu0 0.0
        %4640 = vmatmul.mubr.f32.gmra.mrb[0].mxu0 %v4565
        %v4641 = vpop.f32.mrb[0].mxu0
        %v4642 = vadd.f32 0.0, %v4641
        %v4643 = vpop.f32.mrb[0].mxu0
        %4644 = vdwg.mxu0
        %v4645 = vadd.f32 %v4470, %v4637
        %v4646 = vadd.f32 %v4475, %v4642
        %4647 = vmatprep.subr.mxu0 0.0
        %4648 = vmatpush1.msra.mxu0 %v1261
        %4649 = vmatprep.subr.mxu0 0.0
        %4650 = vmatpush1.msra.mxu0 %v1262
        %4651 = vmatprep.subr.mxu0 0.0
        %4652 = vmatpush1.msra.mxu0 %v1263
        %4653 = vmatprep.subr.mxu0 0.0
        %4654 = vmatpush1.msra.mxu0 %v1264
        %4655 = vmatprep.subr.mxu0 0.0
        %4656 = vmatpush1.msra.mxu0 %v1265
        %4657 = vmatprep.subr.mxu0 0.0
        %4658 = vmatpush1.msra.mxu0 %v1266
        %4659 = vmatprep.subr.mxu0 0.0
        %4660 = vmatpush1.msra.mxu0 %v1267
        %4661 = vmatprep.subr.mxu0 0.0
        %4662 = vmatpush1.msra.mxu0 %v1268
        %4663 = vmatprep.subr.mxu0 0.0
        %4664 = vmatpush1.msra.mxu0 %v1269
        %4665 = vmatprep.subr.mxu0 0.0
        %4666 = vmatpush1.msra.mxu0 %v1270
        %4667 = vmatprep.subr.mxu0 0.0
        %4668 = vmatpush1.msra.mxu0 %v1271
        %4669 = vmatprep.subr.mxu0 0.0
        %4670 = vmatpush1.msra.mxu0 %v1272
        %4671 = vmatprep.subr.mxu0 0.0
        %4672 = vmatpush1.msra.mxu0 %v1273
        %4673 = vmatprep.subr.mxu0 0.0
        %4674 = vmatpush1.msra.mxu0 %v1274
        %4675 = vmatprep.subr.mxu0 0.0
        %4676 = vmatpush1.msra.mxu0 %v1275
        %4677 = vmatprep.subr.mxu0 0.0
        %4678 = vmatpush1.msra.mxu0 %v1276
        %4679 = vmatprep.subr.mxu0 0.0
        %4680 = vmatpush1.msra.mxu0 0.0
        %4681 = vmatprep.subr.mxu0 0.0
        %4682 = vmatpush1.msra.mxu0 0.0
        %4683 = vmatprep.subr.mxu0 0.0
        %4684 = vmatpush1.msra.mxu0 0.0
        %4685 = vmatprep.subr.mxu0 0.0
        %4686 = vmatpush1.msra.mxu0 0.0
        %4687 = vmatprep.subr.mxu0 0.0
        %4688 = vmatpush1.msra.mxu0 0.0
        %4689 = vmatprep.subr.mxu0 0.0
        %4690 = vmatpush1.msra.mxu0 0.0
        %4691 = vmatprep.subr.mxu0 0.0
        %4692 = vmatpush1.msra.mxu0 0.0
        %4693 = vmatprep.subr.mxu0 0.0
        %4694 = vmatpush1.msra.mxu0 0.0
        %4695 = vmatprep.subr.mxu0 0.0
        %4696 = vmatpush1.msra.mxu0 0.0
        %4697 = vmatprep.subr.mxu0 0.0
        %4698 = vmatpush1.msra.mxu0 0.0
        %4699 = vmatprep.subr.mxu0 0.0
        %4700 = vmatpush1.msra.mxu0 0.0
        %4701 = vmatprep.subr.mxu0 0.0
        %4702 = vmatpush1.msra.mxu0 0.0
        %4703 = vmatprep.subr.mxu0 0.0
        %4704 = vmatpush1.msra.mxu0 0.0
        %4705 = vmatprep.subr.mxu0 0.0
        %4706 = vmatpush1.msra.mxu0 0.0
        %4707 = vmatprep.subr.mxu0 0.0
        %4708 = vmatpush1.msra.mxu0 0.0
        %4709 = vmatprep.subr.mxu0 0.0
        %4710 = vmatpush1.msra.mxu0 0.0
        %4711 = vmatprep.mubr.f32.mxu0 0.0
        %4712 = vmatmul.mubr.f32.gmra.mrb[0].mxu0 %v4140
        %v4713 = vpop.f32.mrb[0].mxu0
        %v4714 = vadd.f32 0.0, %v4713
        %v4715 = vpop.f32.mrb[0].mxu0
        %4716 = vmatprep.mubr.f32.mxu0 0.0
        %4717 = vmatmul.mubr.f32.gmra.mrb[0].mxu0 %v4141
        %v4718 = vpop.f32.mrb[0].mxu0
        %v4719 = vadd.f32 0.0, %v4718
        %v4720 = vpop.f32.mrb[0].mxu0
        %4721 = vmatprep.mubr.f32.mxu0 0.0
        %4722 = vmatmul.mubr.f32.gmra.mrb[0].mxu0 %v4142
        %v4723 = vpop.f32.mrb[0].mxu0
        %v4724 = vadd.f32 0.0, %v4723
        %v4725 = vpop.f32.mrb[0].mxu0
        %4726 = vdwg.mxu0
        %s4727 = scalar_lea.vmem %s6, 48
        %v4728 = vld [vmem:[%s4727] sm:$0xff]
        %v4729 = vld [vmem:[%s4727 + $0x8] sm:$0x3]
        %v4731 = vsel %vm4308, %v4728, 0
        %v4734 = vsel %vm4308, %v4729, 0
        %v4737 = vsel %vm4315, %v4724, 0
        %4739 = vmatprep.subr.mxu0 0.0
        %4740 = vmatpush1.msra.mxu0 %v4714
        %4741 = vmatprep.subr.mxu0 0.0
        %4742 = vmatpush1.msra.mxu0 %v4719
        %4743 = vmatprep.subr.mxu0 0.0
        %4744 = vmatpush1.msra.mxu0 %v4737
        %4745 = vmatprep.subr.mxu0 0.0
        %4746 = vmatpush1.msra.mxu0 0.0
        %4747 = vmatprep.subr.mxu0 0.0
        %4748 = vmatpush1.msra.mxu0 0.0
        %4749 = vmatprep.subr.mxu0 0.0
        %4750 = vmatpush1.msra.mxu0 0.0
        %4751 = vmatprep.subr.mxu0 0.0
        %4752 = vmatpush1.msra.mxu0 0.0
        %4753 = vmatprep.subr.mxu0 0.0
        %4754 = vmatpush1.msra.mxu0 0.0
        %4755 = vmatprep.subr.mxu0 0.0
        %4756 = vmatpush1.msra.mxu0 0.0
        %4757 = vmatprep.subr.mxu0 0.0
        %4758 = vmatpush1.msra.mxu0 0.0
        %4759 = vmatprep.subr.mxu0 0.0
        %4760 = vmatpush1.msra.mxu0 0.0
        %4761 = vmatprep.subr.mxu0 0.0
        %4762 = vmatpush1.msra.mxu0 0.0
        %4763 = vmatprep.subr.mxu0 0.0
        %4764 = vmatpush1.msra.mxu0 0.0
        %4765 = vmatprep.subr.mxu0 0.0
        %4766 = vmatpush1.msra.mxu0 0.0
        %4767 = vmatprep.subr.mxu0 0.0
        %4768 = vmatpush1.msra.mxu0 0.0
        %4769 = vmatprep.subr.mxu0 0.0
        %4770 = vmatpush1.msra.mxu0 0.0
        %4771 = vmatprep.subr.mxu0 0.0
        %4772 = vmatpush1.msra.mxu0 0.0
        %4773 = vmatprep.subr.mxu0 0.0
        %4774 = vmatpush1.msra.mxu0 0.0
        %4775 = vmatprep.subr.mxu0 0.0
        %4776 = vmatpush1.msra.mxu0 0.0
        %4777 = vmatprep.subr.mxu0 0.0
        %4778 = vmatpush1.msra.mxu0 0.0
        %4779 = vmatprep.subr.mxu0 0.0
        %4780 = vmatpush1.msra.mxu0 0.0
        %4781 = vmatprep.subr.mxu0 0.0
        %4782 = vmatpush1.msra.mxu0 0.0
        %4783 = vmatprep.subr.mxu0 0.0
        %4784 = vmatpush1.msra.mxu0 0.0
        %4785 = vmatprep.subr.mxu0 0.0
        %4786 = vmatpush1.msra.mxu0 0.0
        %4787 = vmatprep.subr.mxu0 0.0
        %4788 = vmatpush1.msra.mxu0 0.0
        %4789 = vmatprep.subr.mxu0 0.0
        %4790 = vmatpush1.msra.mxu0 0.0
        %4791 = vmatprep.subr.mxu0 0.0
        %4792 = vmatpush1.msra.mxu0 0.0
        %4793 = vmatprep.subr.mxu0 0.0
        %4794 = vmatpush1.msra.mxu0 0.0
        %4795 = vmatprep.subr.mxu0 0.0
        %4796 = vmatpush1.msra.mxu0 0.0
        %4797 = vmatprep.subr.mxu0 0.0
        %4798 = vmatpush1.msra.mxu0 0.0
        %4799 = vmatprep.subr.mxu0 0.0
        %4800 = vmatpush1.msra.mxu0 0.0
        %4801 = vmatprep.subr.mxu0 0.0
        %4802 = vmatpush1.msra.mxu0 0.0
        %4803 = vmatprep.mubr.f32.mxu0 0.0
        %4804 = vmatmul.mubr.f32.gmra.mrb[0].mxu0 %v4731
        %v4805 = vpop.f32.mrb[0].mxu0
        %v4806 = vadd.f32 0.0, %v4805
        %v4807 = vpop.f32.mrb[0].mxu0
        %4808 = vmatprep.mubr.f32.mxu0 0.0
        %4809 = vmatmul.mubr.f32.gmra.mrb[0].mxu0 %v4734
        %v4810 = vpop.f32.mrb[0].mxu0
        %v4811 = vadd.f32 0.0, %v4810
        %v4812 = vpop.f32.mrb[0].mxu0
        %4813 = vdwg.mxu0
        %v4814 = vadd.f32 %v4645, %v4806
        %v4815 = vadd.f32 %v4646, %v4811
        %4816 = vmatprep.subr.mxu0 0.0
        %4817 = vmatpush1.msra.mxu0 %v1457
        %4818 = vmatprep.subr.mxu0 0.0
        %4819 = vmatpush1.msra.mxu0 %v1458
        %4820 = vmatprep.subr.mxu0 0.0
        %4821 = vmatpush1.msra.mxu0 %v1459
        %4822 = vmatprep.subr.mxu0 0.0
        %4823 = vmatpush1.msra.mxu0 %v1460
        %4824 = vmatprep.subr.mxu0 0.0
        %4825 = vmatpush1.msra.mxu0 %v1461
        %4826 = vmatprep.subr.mxu0 0.0
        %4827 = vmatpush1.msra.mxu0 %v1462
        %4828 = vmatprep.subr.mxu0 0.0
        %4829 = vmatpush1.msra.mxu0 %v1463
        %4830 = vmatprep.subr.mxu0 0.0
        %4831 = vmatpush1.msra.mxu0 %v1464
        %4832 = vmatprep.subr.mxu0 0.0
        %4833 = vmatpush1.msra.mxu0 %v1465
        %4834 = vmatprep.subr.mxu0 0.0
        %4835 = vmatpush1.msra.mxu0 %v1466
        %4836 = vmatprep.subr.mxu0 0.0
        %4837 = vmatpush1.msra.mxu0 %v1467
        %4838 = vmatprep.subr.mxu0 0.0
        %4839 = vmatpush1.msra.mxu0 %v1468
        %4840 = vmatprep.subr.mxu0 0.0
        %4841 = vmatpush1.msra.mxu0 %v1469
        %4842 = vmatprep.subr.mxu0 0.0
        %4843 = vmatpush1.msra.mxu0 %v1470
        %4844 = vmatprep.subr.mxu0 0.0
        %4845 = vmatpush1.msra.mxu0 %v1471
        %4846 = vmatprep.subr.mxu0 0.0
        %4847 = vmatpush1.msra.mxu0 %v1472
        %4848 = vmatprep.subr.mxu0 0.0
        %4849 = vmatpush1.msra.mxu0 0.0
        %4850 = vmatprep.subr.mxu0 0.0
        %4851 = vmatpush1.msra.mxu0 0.0
        %4852 = vmatprep.subr.mxu0 0.0
        %4853 = vmatpush1.msra.mxu0 0.0
        %4854 = vmatprep.subr.mxu0 0.0
        %4855 = vmatpush1.msra.mxu0 0.0
        %4856 = vmatprep.subr.mxu0 0.0
        %4857 = vmatpush1.msra.mxu0 0.0
        %4858 = vmatprep.subr.mxu0 0.0
        %4859 = vmatpush1.msra.mxu0 0.0
        %4860 = vmatprep.subr.mxu0 0.0
        %4861 = vmatpush1.msra.mxu0 0.0
        %4862 = vmatprep.subr.mxu0 0.0
        %4863 = vmatpush1.msra.mxu0 0.0
        %4864 = vmatprep.subr.mxu0 0.0
        %4865 = vmatpush1.msra.mxu0 0.0
        %4866 = vmatprep.subr.mxu0 0.0
        %4867 = vmatpush1.msra.mxu0 0.0
        %4868 = vmatprep.subr.mxu0 0.0
        %4869 = vmatpush1.msra.mxu0 0.0
        %4870 = vmatprep.subr.mxu0 0.0
        %4871 = vmatpush1.msra.mxu0 0.0
        %4872 = vmatprep.subr.mxu0 0.0
        %4873 = vmatpush1.msra.mxu0 0.0
        %4874 = vmatprep.subr.mxu0 0.0
        %4875 = vmatpush1.msra.mxu0 0.0
        %4876 = vmatprep.subr.mxu0 0.0
        %4877 = vmatpush1.msra.mxu0 0.0
        %4878 = vmatprep.subr.mxu0 0.0
        %4879 = vmatpush1.msra.mxu0 0.0
        %4880 = vmatprep.mubr.f32.mxu0 0.0
        %4881 = vmatmul.mubr.f32.gmra.mrb[0].mxu0 %v4140
        %v4882 = vpop.f32.mrb[0].mxu0
        %v4883 = vadd.f32 0.0, %v4882
        %v4884 = vpop.f32.mrb[0].mxu0
        %4885 = vmatprep.mubr.f32.mxu0 0.0
        %4886 = vmatmul.mubr.f32.gmra.mrb[0].mxu0 %v4141
        %v4887 = vpop.f32.mrb[0].mxu0
        %v4888 = vadd.f32 0.0, %v4887
        %v4889 = vpop.f32.mrb[0].mxu0
        %4890 = vmatprep.mubr.f32.mxu0 0.0
        %4891 = vmatmul.mubr.f32.gmra.mrb[0].mxu0 %v4142
        %v4892 = vpop.f32.mrb[0].mxu0
        %v4893 = vadd.f32 0.0, %v4892
        %v4894 = vpop.f32.mrb[0].mxu0
        %4895 = vdwg.mxu0
        %s4896 = scalar_lea.vmem %s6, 64
        %v4897 = vld [vmem:[%s4896] sm:$0xff]
        %v4898 = vld [vmem:[%s4896 + $0x8] sm:$0x3]
        %v4900 = vsel %vm4308, %v4897, 0
        %v4903 = vsel %vm4308, %v4898, 0
        %v4906 = vsel %vm4315, %v4893, 0
        %4908 = vmatprep.subr.mxu0 0.0
        %4909 = vmatpush1.msra.mxu0 %v4883
        %4910 = vmatprep.subr.mxu0 0.0
        %4911 = vmatpush1.msra.mxu0 %v4888
        %4912 = vmatprep.subr.mxu0 0.0
        %4913 = vmatpush1.msra.mxu0 %v4906
        %4914 = vmatprep.subr.mxu0 0.0
        %4915 = vmatpush1.msra.mxu0 0.0
        %4916 = vmatprep.subr.mxu0 0.0
        %4917 = vmatpush1.msra.mxu0 0.0
        %4918 = vmatprep.subr.mxu0 0.0
        %4919 = vmatpush1.msra.mxu0 0.0
        %4920 = vmatprep.subr.mxu0 0.0
        %4921 = vmatpush1.msra.mxu0 0.0
        %4922 = vmatprep.subr.mxu0 0.0
        %4923 = vmatpush1.msra.mxu0 0.0
        %4924 = vmatprep.subr.mxu0 0.0
        %4925 = vmatpush1.msra.mxu0 0.0
        %4926 = vmatprep.subr.mxu0 0.0
        %4927 = vmatpush1.msra.mxu0 0.0
        %4928 = vmatprep.subr.mxu0 0.0
        %4929 = vmatpush1.msra.mxu0 0.0
        %4930 = vmatprep.subr.mxu0 0.0
        %4931 = vmatpush1.msra.mxu0 0.0
        %4932 = vmatprep.subr.mxu0 0.0
        %4933 = vmatpush1.msra.mxu0 0.0
        %4934 = vmatprep.subr.mxu0 0.0
        %4935 = vmatpush1.msra.mxu0 0.0
        %4936 = vmatprep.subr.mxu0 0.0
        %4937 = vmatpush1.msra.mxu0 0.0
        %4938 = vmatprep.subr.mxu0 0.0
        %4939 = vmatpush1.msra.mxu0 0.0
        %4940 = vmatprep.subr.mxu0 0.0
        %4941 = vmatpush1.msra.mxu0 0.0
        %4942 = vmatprep.subr.mxu0 0.0
        %4943 = vmatpush1.msra.mxu0 0.0
        %4944 = vmatprep.subr.mxu0 0.0
        %4945 = vmatpush1.msra.mxu0 0.0
        %4946 = vmatprep.subr.mxu0 0.0
        %4947 = vmatpush1.msra.mxu0 0.0
        %4948 = vmatprep.subr.mxu0 0.0
        %4949 = vmatpush1.msra.mxu0 0.0
        %4950 = vmatprep.subr.mxu0 0.0
        %4951 = vmatpush1.msra.mxu0 0.0
        %4952 = vmatprep.subr.mxu0 0.0
        %4953 = vmatpush1.msra.mxu0 0.0
        %4954 = vmatprep.subr.mxu0 0.0
        %4955 = vmatpush1.msra.mxu0 0.0
        %4956 = vmatprep.subr.mxu0 0.0
        %4957 = vmatpush1.msra.mxu0 0.0
        %4958 = vmatprep.subr.mxu0 0.0
        %4959 = vmatpush1.msra.mxu0 0.0
        %4960 = vmatprep.subr.mxu0 0.0
        %4961 = vmatpush1.msra.mxu0 0.0
        %4962 = vmatprep.subr.mxu0 0.0
        %4963 = vmatpush1.msra.mxu0 0.0
        %4964 = vmatprep.subr.mxu0 0.0
        %4965 = vmatpush1.msra.mxu0 0.0
        %4966 = vmatprep.subr.mxu0 0.0
        %4967 = vmatpush1.msra.mxu0 0.0
        %4968 = vmatprep.subr.mxu0 0.0
        %4969 = vmatpush1.msra.mxu0 0.0
        %4970 = vmatprep.subr.mxu0 0.0
        %4971 = vmatpush1.msra.mxu0 0.0
        %4972 = vmatprep.mubr.f32.mxu0 0.0
        %4973 = vmatmul.mubr.f32.gmra.mrb[0].mxu0 %v4900
        %v4974 = vpop.f32.mrb[0].mxu0
        %v4975 = vadd.f32 0.0, %v4974
        %v4976 = vpop.f32.mrb[0].mxu0
        %4977 = vmatprep.mubr.f32.mxu0 0.0
        %4978 = vmatmul.mubr.f32.gmra.mrb[0].mxu0 %v4903
        %v4979 = vpop.f32.mrb[0].mxu0
        %v4980 = vadd.f32 0.0, %v4979
        %v4981 = vpop.f32.mrb[0].mxu0
        %4982 = vdwg.mxu0
        %v4983 = vadd.f32 %v4814, %v4975
        %v4984 = vadd.f32 %v4815, %v4980
        %4985 = vmatprep.subr.mxu0 0.0
        %4986 = vmatpush1.msra.mxu0 %v1653
        %4987 = vmatprep.subr.mxu0 0.0
        %4988 = vmatpush1.msra.mxu0 %v1654
        %4989 = vmatprep.subr.mxu0 0.0
        %4990 = vmatpush1.msra.mxu0 %v1655
        %4991 = vmatprep.subr.mxu0 0.0
        %4992 = vmatpush1.msra.mxu0 %v1656
        %4993 = vmatprep.subr.mxu0 0.0
        %4994 = vmatpush1.msra.mxu0 %v1657
        %4995 = vmatprep.subr.mxu0 0.0
        %4996 = vmatpush1.msra.mxu0 %v1658
        %4997 = vmatprep.subr.mxu0 0.0
        %4998 = vmatpush1.msra.mxu0 %v1659
        %4999 = vmatprep.subr.mxu0 0.0
        %5000 = vmatpush1.msra.mxu0 %v1660
        %5001 = vmatprep.subr.mxu0 0.0
        %5002 = vmatpush1.msra.mxu0 %v1661
        %5003 = vmatprep.subr.mxu0 0.0
        %5004 = vmatpush1.msra.mxu0 %v1662
        %5005 = vmatprep.subr.mxu0 0.0
        %5006 = vmatpush1.msra.mxu0 %v1663
        %5007 = vmatprep.subr.mxu0 0.0
        %5008 = vmatpush1.msra.mxu0 %v1664
        %5009 = vmatprep.subr.mxu0 0.0
        %5010 = vmatpush1.msra.mxu0 %v1665
        %5011 = vmatprep.subr.mxu0 0.0
        %5012 = vmatpush1.msra.mxu0 %v1666
        %5013 = vmatprep.subr.mxu0 0.0
        %5014 = vmatpush1.msra.mxu0 %v1667
        %5015 = vmatprep.subr.mxu0 0.0
        %5016 = vmatpush1.msra.mxu0 %v1668
        %5017 = vmatprep.subr.mxu0 0.0
        %5018 = vmatpush1.msra.mxu0 0.0
        %5019 = vmatprep.subr.mxu0 0.0
        %5020 = vmatpush1.msra.mxu0 0.0
        %5021 = vmatprep.subr.mxu0 0.0
        %5022 = vmatpush1.msra.mxu0 0.0
        %5023 = vmatprep.subr.mxu0 0.0
        %5024 = vmatpush1.msra.mxu0 0.0
        %5025 = vmatprep.subr.mxu0 0.0
        %5026 = vmatpush1.msra.mxu0 0.0
        %5027 = vmatprep.subr.mxu0 0.0
        %5028 = vmatpush1.msra.mxu0 0.0
        %5029 = vmatprep.subr.mxu0 0.0
        %5030 = vmatpush1.msra.mxu0 0.0
        %5031 = vmatprep.subr.mxu0 0.0
        %5032 = vmatpush1.msra.mxu0 0.0
        %5033 = vmatprep.subr.mxu0 0.0
        %5034 = vmatpush1.msra.mxu0 0.0
        %5035 = vmatprep.subr.mxu0 0.0
        %5036 = vmatpush1.msra.mxu0 0.0
        %5037 = vmatprep.subr.mxu0 0.0
        %5038 = vmatpush1.msra.mxu0 0.0
        %5039 = vmatprep.subr.mxu0 0.0
        %5040 = vmatpush1.msra.mxu0 0.0
        %5041 = vmatprep.subr.mxu0 0.0
        %5042 = vmatpush1.msra.mxu0 0.0
        %5043 = vmatprep.subr.mxu0 0.0
        %5044 = vmatpush1.msra.mxu0 0.0
        %5045 = vmatprep.subr.mxu0 0.0
        %5046 = vmatpush1.msra.mxu0 0.0
        %5047 = vmatprep.subr.mxu0 0.0
        %5048 = vmatpush1.msra.mxu0 0.0
        %5049 = vmatprep.mubr.f32.mxu0 0.0
        %5050 = vmatmul.mubr.f32.gmra.mrb[0].mxu0 %v4140
        %v5051 = vpop.f32.mrb[0].mxu0
        %v5052 = vadd.f32 0.0, %v5051
        %v5053 = vpop.f32.mrb[0].mxu0
        %5054 = vmatprep.mubr.f32.mxu0 0.0
        %5055 = vmatmul.mubr.f32.gmra.mrb[0].mxu0 %v4141
        %v5056 = vpop.f32.mrb[0].mxu0
        %v5057 = vadd.f32 0.0, %v5056
        %v5058 = vpop.f32.mrb[0].mxu0
        %5059 = vmatprep.mubr.f32.mxu0 0.0
        %5060 = vmatmul.mubr.f32.gmra.mrb[0].mxu0 %v4142
        %v5061 = vpop.f32.mrb[0].mxu0
        %v5062 = vadd.f32 0.0, %v5061
        %v5063 = vpop.f32.mrb[0].mxu0
        %5064 = vdwg.mxu0
        %s5065 = scalar_lea.vmem %s6, 80
        %v5066 = vld [vmem:[%s5065] sm:$0xff]
        %v5067 = vld [vmem:[%s5065 + $0x8] sm:$0x3]
        %v5069 = vsel %vm4308, %v5066, 0
        %v5072 = vsel %vm4308, %v5067, 0
        %v5075 = vsel %vm4315, %v5062, 0
        %5077 = vmatprep.subr.mxu0 0.0
        %5078 = vmatpush1.msra.mxu0 %v5052
        %5079 = vmatprep.subr.mxu0 0.0
        %5080 = vmatpush1.msra.mxu0 %v5057
        %5081 = vmatprep.subr.mxu0 0.0
        %5082 = vmatpush1.msra.mxu0 %v5075
        %5083 = vmatprep.subr.mxu0 0.0
        %5084 = vmatpush1.msra.mxu0 0.0
        %5085 = vmatprep.subr.mxu0 0.0
        %5086 = vmatpush1.msra.mxu0 0.0
        %5087 = vmatprep.subr.mxu0 0.0
        %5088 = vmatpush1.msra.mxu0 0.0
        %5089 = vmatprep.subr.mxu0 0.0
        %5090 = vmatpush1.msra.mxu0 0.0
        %5091 = vmatprep.subr.mxu0 0.0
        %5092 = vmatpush1.msra.mxu0 0.0
        %5093 = vmatprep.subr.mxu0 0.0
        %5094 = vmatpush1.msra.mxu0 0.0
        %5095 = vmatprep.subr.mxu0 0.0
        %5096 = vmatpush1.msra.mxu0 0.0
        %5097 = vmatprep.subr.mxu0 0.0
        %5098 = vmatpush1.msra.mxu0 0.0
        %5099 = vmatprep.subr.mxu0 0.0
        %5100 = vmatpush1.msra.mxu0 0.0
        %5101 = vmatprep.subr.mxu0 0.0
        %5102 = vmatpush1.msra.mxu0 0.0
        %5103 = vmatprep.subr.mxu0 0.0
        %5104 = vmatpush1.msra.mxu0 0.0
        %5105 = vmatprep.subr.mxu0 0.0
        %5106 = vmatpush1.msra.mxu0 0.0
        %5107 = vmatprep.subr.mxu0 0.0
        %5108 = vmatpush1.msra.mxu0 0.0
        %5109 = vmatprep.subr.mxu0 0.0
        %5110 = vmatpush1.msra.mxu0 0.0
        %5111 = vmatprep.subr.mxu0 0.0
        %5112 = vmatpush1.msra.mxu0 0.0
        %5113 = vmatprep.subr.mxu0 0.0
        %5114 = vmatpush1.msra.mxu0 0.0
        %5115 = vmatprep.subr.mxu0 0.0
        %5116 = vmatpush1.msra.mxu0 0.0
        %5117 = vmatprep.subr.mxu0 0.0
        %5118 = vmatpush1.msra.mxu0 0.0
        %5119 = vmatprep.subr.mxu0 0.0
        %5120 = vmatpush1.msra.mxu0 0.0
        %5121 = vmatprep.subr.mxu0 0.0
        %5122 = vmatpush1.msra.mxu0 0.0
        %5123 = vmatprep.subr.mxu0 0.0
        %5124 = vmatpush1.msra.mxu0 0.0
        %5125 = vmatprep.subr.mxu0 0.0
        %5126 = vmatpush1.msra.mxu0 0.0
        %5127 = vmatprep.subr.mxu0 0.0
        %5128 = vmatpush1.msra.mxu0 0.0
        %5129 = vmatprep.subr.mxu0 0.0
        %5130 = vmatpush1.msra.mxu0 0.0
        %5131 = vmatprep.subr.mxu0 0.0
        %5132 = vmatpush1.msra.mxu0 0.0
        %5133 = vmatprep.subr.mxu0 0.0
        %5134 = vmatpush1.msra.mxu0 0.0
        %5135 = vmatprep.subr.mxu0 0.0
        %5136 = vmatpush1.msra.mxu0 0.0
        %5137 = vmatprep.subr.mxu0 0.0
        %5138 = vmatpush1.msra.mxu0 0.0
        %5139 = vmatprep.subr.mxu0 0.0
        %5140 = vmatpush1.msra.mxu0 0.0
        %5141 = vmatprep.mubr.f32.mxu0 0.0
        %5142 = vmatmul.mubr.f32.gmra.mrb[0].mxu0 %v5069
        %v5143 = vpop.f32.mrb[0].mxu0
        %v5144 = vadd.f32 0.0, %v5143
        %v5145 = vpop.f32.mrb[0].mxu0
        %5146 = vmatprep.mubr.f32.mxu0 0.0
        %5147 = vmatmul.mubr.f32.gmra.mrb[0].mxu0 %v5072
        %v5148 = vpop.f32.mrb[0].mxu0
        %v5149 = vadd.f32 0.0, %v5148
        %v5150 = vpop.f32.mrb[0].mxu0
        %5151 = vdwg.mxu0
        %v5152 = vadd.f32 %v4983, %v5144
        %v5153 = vadd.f32 %v4984, %v5149
        %5154 = vmatprep.subr.mxu0 0.0
        %5155 = vmatpush1.msra.mxu0 %v1849
        %5156 = vmatprep.subr.mxu0 0.0
        %5157 = vmatpush1.msra.mxu0 %v1850
        %5158 = vmatprep.subr.mxu0 0.0
        %5159 = vmatpush1.msra.mxu0 %v1851
        %5160 = vmatprep.subr.mxu0 0.0
        %5161 = vmatpush1.msra.mxu0 %v1852
        %5162 = vmatprep.subr.mxu0 0.0
        %5163 = vmatpush1.msra.mxu0 %v1853
        %5164 = vmatprep.subr.mxu0 0.0
        %5165 = vmatpush1.msra.mxu0 %v1854
        %5166 = vmatprep.subr.mxu0 0.0
        %5167 = vmatpush1.msra.mxu0 %v1855
        %5168 = vmatprep.subr.mxu0 0.0
        %5169 = vmatpush1.msra.mxu0 %v1856
        %5170 = vmatprep.subr.mxu0 0.0
        %5171 = vmatpush1.msra.mxu0 %v1857
        %5172 = vmatprep.subr.mxu0 0.0
        %5173 = vmatpush1.msra.mxu0 %v1858
        %5174 = vmatprep.subr.mxu0 0.0
        %5175 = vmatpush1.msra.mxu0 %v1859
        %5176 = vmatprep.subr.mxu0 0.0
        %5177 = vmatpush1.msra.mxu0 %v1860
        %5178 = vmatprep.subr.mxu0 0.0
        %5179 = vmatpush1.msra.mxu0 %v1861
        %5180 = vmatprep.subr.mxu0 0.0
        %5181 = vmatpush1.msra.mxu0 %v1862
        %5182 = vmatprep.subr.mxu0 0.0
        %5183 = vmatpush1.msra.mxu0 %v1863
        %5184 = vmatprep.subr.mxu0 0.0
        %5185 = vmatpush1.msra.mxu0 %v1864
        %5186 = vmatprep.subr.mxu0 0.0
        %5187 = vmatpush1.msra.mxu0 0.0
        %5188 = vmatprep.subr.mxu0 0.0
        %5189 = vmatpush1.msra.mxu0 0.0
        %5190 = vmatprep.subr.mxu0 0.0
        %5191 = vmatpush1.msra.mxu0 0.0
        %5192 = vmatprep.subr.mxu0 0.0
        %5193 = vmatpush1.msra.mxu0 0.0
        %5194 = vmatprep.subr.mxu0 0.0
        %5195 = vmatpush1.msra.mxu0 0.0
        %5196 = vmatprep.subr.mxu0 0.0
        %5197 = vmatpush1.msra.mxu0 0.0
        %5198 = vmatprep.subr.mxu0 0.0
        %5199 = vmatpush1.msra.mxu0 0.0
        %5200 = vmatprep.subr.mxu0 0.0
        %5201 = vmatpush1.msra.mxu0 0.0
        %5202 = vmatprep.subr.mxu0 0.0
        %5203 = vmatpush1.msra.mxu0 0.0
        %5204 = vmatprep.subr.mxu0 0.0
        %5205 = vmatpush1.msra.mxu0 0.0
        %5206 = vmatprep.subr.mxu0 0.0
        %5207 = vmatpush1.msra.mxu0 0.0
        %5208 = vmatprep.subr.mxu0 0.0
        %5209 = vmatpush1.msra.mxu0 0.0
        %5210 = vmatprep.subr.mxu0 0.0
        %5211 = vmatpush1.msra.mxu0 0.0
        %5212 = vmatprep.subr.mxu0 0.0
        %5213 = vmatpush1.msra.mxu0 0.0
        %5214 = vmatprep.subr.mxu0 0.0
        %5215 = vmatpush1.msra.mxu0 0.0
        %5216 = vmatprep.subr.mxu0 0.0
        %5217 = vmatpush1.msra.mxu0 0.0
        %5218 = vmatprep.mubr.f32.mxu0 0.0
        %5219 = vmatmul.mubr.f32.gmra.mrb[0].mxu0 %v4140
        %v5220 = vpop.f32.mrb[0].mxu0
        %v5221 = vadd.f32 0.0, %v5220
        %v5222 = vpop.f32.mrb[0].mxu0
        %5223 = vmatprep.mubr.f32.mxu0 0.0
        %5224 = vmatmul.mubr.f32.gmra.mrb[0].mxu0 %v4141
        %v5225 = vpop.f32.mrb[0].mxu0
        %v5226 = vadd.f32 0.0, %v5225
        %v5227 = vpop.f32.mrb[0].mxu0
        %5228 = vmatprep.mubr.f32.mxu0 0.0
        %5229 = vmatmul.mubr.f32.gmra.mrb[0].mxu0 %v4142
        %v5230 = vpop.f32.mrb[0].mxu0
        %v5231 = vadd.f32 0.0, %v5230
        %v5232 = vpop.f32.mrb[0].mxu0
        %5233 = vdwg.mxu0
        %s5234 = scalar_lea.vmem %s6, 96
        %v5235 = vld [vmem:[%s5234] sm:$0xff]
        %v5236 = vld [vmem:[%s5234 + $0x8] sm:$0x3]
        %v5238 = vsel %vm4308, %v5235, 0
        %v5241 = vsel %vm4308, %v5236, 0
        %v5244 = vsel %vm4315, %v5231, 0
        %5246 = vmatprep.subr.mxu0 0.0
        %5247 = vmatpush1.msra.mxu0 %v5221
        %5248 = vmatprep.subr.mxu0 0.0
        %5249 = vmatpush1.msra.mxu0 %v5226
        %5250 = vmatprep.subr.mxu0 0.0
        %5251 = vmatpush1.msra.mxu0 %v5244
        %5252 = vmatprep.subr.mxu0 0.0
        %5253 = vmatpush1.msra.mxu0 0.0
        %5254 = vmatprep.subr.mxu0 0.0
        %5255 = vmatpush1.msra.mxu0 0.0
        %5256 = vmatprep.subr.mxu0 0.0
        %5257 = vmatpush1.msra.mxu0 0.0
        %5258 = vmatprep.subr.mxu0 0.0
        %5259 = vmatpush1.msra.mxu0 0.0
        %5260 = vmatprep.subr.mxu0 0.0
        %5261 = vmatpush1.msra.mxu0 0.0
        %5262 = vmatprep.subr.mxu0 0.0
        %5263 = vmatpush1.msra.mxu0 0.0
        %5264 = vmatprep.subr.mxu0 0.0
        %5265 = vmatpush1.msra.mxu0 0.0
        %5266 = vmatprep.subr.mxu0 0.0
        %5267 = vmatpush1.msra.mxu0 0.0
        %5268 = vmatprep.subr.mxu0 0.0
        %5269 = vmatpush1.msra.mxu0 0.0
        %5270 = vmatprep.subr.mxu0 0.0
        %5271 = vmatpush1.msra.mxu0 0.0
        %5272 = vmatprep.subr.mxu0 0.0
        %5273 = vmatpush1.msra.mxu0 0.0
        %5274 = vmatprep.subr.mxu0 0.0
        %5275 = vmatpush1.msra.mxu0 0.0
        %5276 = vmatprep.subr.mxu0 0.0
        %5277 = vmatpush1.msra.mxu0 0.0
        %5278 = vmatprep.subr.mxu0 0.0
        %5279 = vmatpush1.msra.mxu0 0.0
        %5280 = vmatprep.subr.mxu0 0.0
        %5281 = vmatpush1.msra.mxu0 0.0
        %5282 = vmatprep.subr.mxu0 0.0
        %5283 = vmatpush1.msra.mxu0 0.0
        %5284 = vmatprep.subr.mxu0 0.0
        %5285 = vmatpush1.msra.mxu0 0.0
        %5286 = vmatprep.subr.mxu0 0.0
        %5287 = vmatpush1.msra.mxu0 0.0
        %5288 = vmatprep.subr.mxu0 0.0
        %5289 = vmatpush1.msra.mxu0 0.0
        %5290 = vmatprep.subr.mxu0 0.0
        %5291 = vmatpush1.msra.mxu0 0.0
        %5292 = vmatprep.subr.mxu0 0.0
        %5293 = vmatpush1.msra.mxu0 0.0
        %5294 = vmatprep.subr.mxu0 0.0
        %5295 = vmatpush1.msra.mxu0 0.0
        %5296 = vmatprep.subr.mxu0 0.0
        %5297 = vmatpush1.msra.mxu0 0.0
        %5298 = vmatprep.subr.mxu0 0.0
        %5299 = vmatpush1.msra.mxu0 0.0
        %5300 = vmatprep.subr.mxu0 0.0
        %5301 = vmatpush1.msra.mxu0 0.0
        %5302 = vmatprep.subr.mxu0 0.0
        %5303 = vmatpush1.msra.mxu0 0.0
        %5304 = vmatprep.subr.mxu0 0.0
        %5305 = vmatpush1.msra.mxu0 0.0
        %5306 = vmatprep.subr.mxu0 0.0
        %5307 = vmatpush1.msra.mxu0 0.0
        %5308 = vmatprep.subr.mxu0 0.0
        %5309 = vmatpush1.msra.mxu0 0.0
        %5310 = vmatprep.mubr.f32.mxu0 0.0
        %5311 = vmatmul.mubr.f32.gmra.mrb[0].mxu0 %v5238
        %v5312 = vpop.f32.mrb[0].mxu0
        %v5313 = vadd.f32 0.0, %v5312
        %v5314 = vpop.f32.mrb[0].mxu0
        %5315 = vmatprep.mubr.f32.mxu0 0.0
        %5316 = vmatmul.mubr.f32.gmra.mrb[0].mxu0 %v5241
        %v5317 = vpop.f32.mrb[0].mxu0
        %v5318 = vadd.f32 0.0, %v5317
        %v5319 = vpop.f32.mrb[0].mxu0
        %5320 = vdwg.mxu0
        %v5321 = vadd.f32 %v5152, %v5313
        %v5322 = vadd.f32 %v5153, %v5318
        %5323 = vmatprep.subr.mxu0 0.0
        %5324 = vmatpush1.msra.mxu0 %v2045
        %5325 = vmatprep.subr.mxu0 0.0
        %5326 = vmatpush1.msra.mxu0 %v2046
        %5327 = vmatprep.subr.mxu0 0.0
        %5328 = vmatpush1.msra.mxu0 %v2047
        %5329 = vmatprep.subr.mxu0 0.0
        %5330 = vmatpush1.msra.mxu0 %v2048
        %5331 = vmatprep.subr.mxu0 0.0
        %5332 = vmatpush1.msra.mxu0 %v2049
        %5333 = vmatprep.subr.mxu0 0.0
        %5334 = vmatpush1.msra.mxu0 %v2050
        %5335 = vmatprep.subr.mxu0 0.0
        %5336 = vmatpush1.msra.mxu0 %v2051
        %5337 = vmatprep.subr.mxu0 0.0
        %5338 = vmatpush1.msra.mxu0 %v2052
        %5339 = vmatprep.subr.mxu0 0.0
        %5340 = vmatpush1.msra.mxu0 %v2053
        %5341 = vmatprep.subr.mxu0 0.0
        %5342 = vmatpush1.msra.mxu0 %v2054
        %5343 = vmatprep.subr.mxu0 0.0
        %5344 = vmatpush1.msra.mxu0 %v2055
        %5345 = vmatprep.subr.mxu0 0.0
        %5346 = vmatpush1.msra.mxu0 %v2056
        %5347 = vmatprep.subr.mxu0 0.0
        %5348 = vmatpush1.msra.mxu0 %v2057
        %5349 = vmatprep.subr.mxu0 0.0
        %5350 = vmatpush1.msra.mxu0 %v2058
        %5351 = vmatprep.subr.mxu0 0.0
        %5352 = vmatpush1.msra.mxu0 %v2059
        %5353 = vmatprep.subr.mxu0 0.0
        %5354 = vmatpush1.msra.mxu0 %v2060
        %5355 = vmatprep.subr.mxu0 0.0
        %5356 = vmatpush1.msra.mxu0 0.0
        %5357 = vmatprep.subr.mxu0 0.0
        %5358 = vmatpush1.msra.mxu0 0.0
        %5359 = vmatprep.subr.mxu0 0.0
        %5360 = vmatpush1.msra.mxu0 0.0
        %5361 = vmatprep.subr.mxu0 0.0
        %5362 = vmatpush1.msra.mxu0 0.0
        %5363 = vmatprep.subr.mxu0 0.0
        %5364 = vmatpush1.msra.mxu0 0.0
        %5365 = vmatprep.subr.mxu0 0.0
        %5366 = vmatpush1.msra.mxu0 0.0
        %5367 = vmatprep.subr.mxu0 0.0
        %5368 = vmatpush1.msra.mxu0 0.0
        %5369 = vmatprep.subr.mxu0 0.0
        %5370 = vmatpush1.msra.mxu0 0.0
        %5371 = vmatprep.subr.mxu0 0.0
        %5372 = vmatpush1.msra.mxu0 0.0
        %5373 = vmatprep.subr.mxu0 0.0
        %5374 = vmatpush1.msra.mxu0 0.0
        %5375 = vmatprep.subr.mxu0 0.0
        %5376 = vmatpush1.msra.mxu0 0.0
        %5377 = vmatprep.subr.mxu0 0.0
        %5378 = vmatpush1.msra.mxu0 0.0
        %5379 = vmatprep.subr.mxu0 0.0
        %5380 = vmatpush1.msra.mxu0 0.0
        %5381 = vmatprep.subr.mxu0 0.0
        %5382 = vmatpush1.msra.mxu0 0.0
        %5383 = vmatprep.subr.mxu0 0.0
        %5384 = vmatpush1.msra.mxu0 0.0
        %5385 = vmatprep.subr.mxu0 0.0
        %5386 = vmatpush1.msra.mxu0 0.0
        %5387 = vmatprep.mubr.f32.mxu0 0.0
        %5388 = vmatmul.mubr.f32.gmra.mrb[0].mxu0 %v4140
        %v5389 = vpop.f32.mrb[0].mxu0
        %v5390 = vadd.f32 0.0, %v5389
        %v5391 = vpop.f32.mrb[0].mxu0
        %5392 = vmatprep.mubr.f32.mxu0 0.0
        %5393 = vmatmul.mubr.f32.gmra.mrb[0].mxu0 %v4141
        %v5394 = vpop.f32.mrb[0].mxu0
        %v5395 = vadd.f32 0.0, %v5394
        %v5396 = vpop.f32.mrb[0].mxu0
        %5397 = vmatprep.mubr.f32.mxu0 0.0
        %5398 = vmatmul.mubr.f32.gmra.mrb[0].mxu0 %v4142
        %v5399 = vpop.f32.mrb[0].mxu0
        %v5400 = vadd.f32 0.0, %v5399
        %v5401 = vpop.f32.mrb[0].mxu0
        %5402 = vdwg.mxu0
        %s5403 = scalar_lea.vmem %s6, 112
        %v5404 = vld [vmem:[%s5403] sm:$0xff]
        %v5405 = vld [vmem:[%s5403 + $0x8] sm:$0x3]
        %v5407 = vsel %vm4308, %v5404, 0
        %v5410 = vsel %vm4308, %v5405, 0
        %v5413 = vsel %vm4315, %v5400, 0
        %5415 = vmatprep.subr.mxu0 0.0
        %5416 = vmatpush1.msra.mxu0 %v5390
        %5417 = vmatprep.subr.mxu0 0.0
        %5418 = vmatpush1.msra.mxu0 %v5395
        %5419 = vmatprep.subr.mxu0 0.0
        %5420 = vmatpush1.msra.mxu0 %v5413
        %5421 = vmatprep.subr.mxu0 0.0
        %5422 = vmatpush1.msra.mxu0 0.0
        %5423 = vmatprep.subr.mxu0 0.0
        %5424 = vmatpush1.msra.mxu0 0.0
        %5425 = vmatprep.subr.mxu0 0.0
        %5426 = vmatpush1.msra.mxu0 0.0
        %5427 = vmatprep.subr.mxu0 0.0
        %5428 = vmatpush1.msra.mxu0 0.0
        %5429 = vmatprep.subr.mxu0 0.0
        %5430 = vmatpush1.msra.mxu0 0.0
        %5431 = vmatprep.subr.mxu0 0.0
        %5432 = vmatpush1.msra.mxu0 0.0
        %5433 = vmatprep.subr.mxu0 0.0
        %5434 = vmatpush1.msra.mxu0 0.0
        %5435 = vmatprep.subr.mxu0 0.0
        %5436 = vmatpush1.msra.mxu0 0.0
        %5437 = vmatprep.subr.mxu0 0.0
        %5438 = vmatpush1.msra.mxu0 0.0
        %5439 = vmatprep.subr.mxu0 0.0
        %5440 = vmatpush1.msra.mxu0 0.0
        %5441 = vmatprep.subr.mxu0 0.0
        %5442 = vmatpush1.msra.mxu0 0.0
        %5443 = vmatprep.subr.mxu0 0.0
        %5444 = vmatpush1.msra.mxu0 0.0
        %5445 = vmatprep.subr.mxu0 0.0
        %5446 = vmatpush1.msra.mxu0 0.0
        %5447 = vmatprep.subr.mxu0 0.0
        %5448 = vmatpush1.msra.mxu0 0.0
        %5449 = vmatprep.subr.mxu0 0.0
        %5450 = vmatpush1.msra.mxu0 0.0
        %5451 = vmatprep.subr.mxu0 0.0
        %5452 = vmatpush1.msra.mxu0 0.0
        %5453 = vmatprep.subr.mxu0 0.0
        %5454 = vmatpush1.msra.mxu0 0.0
        %5455 = vmatprep.subr.mxu0 0.0
        %5456 = vmatpush1.msra.mxu0 0.0
        %5457 = vmatprep.subr.mxu0 0.0
        %5458 = vmatpush1.msra.mxu0 0.0
        %5459 = vmatprep.subr.mxu0 0.0
        %5460 = vmatpush1.msra.mxu0 0.0
        %5461 = vmatprep.subr.mxu0 0.0
        %5462 = vmatpush1.msra.mxu0 0.0
        %5463 = vmatprep.subr.mxu0 0.0
        %5464 = vmatpush1.msra.mxu0 0.0
        %5465 = vmatprep.subr.mxu0 0.0
        %5466 = vmatpush1.msra.mxu0 0.0
        %5467 = vmatprep.subr.mxu0 0.0
        %5468 = vmatpush1.msra.mxu0 0.0
        %5469 = vmatprep.subr.mxu0 0.0
        %5470 = vmatpush1.msra.mxu0 0.0
        %5471 = vmatprep.subr.mxu0 0.0
        %5472 = vmatpush1.msra.mxu0 0.0
        %5473 = vmatprep.subr.mxu0 0.0
        %5474 = vmatpush1.msra.mxu0 0.0
        %5475 = vmatprep.subr.mxu0 0.0
        %5476 = vmatpush1.msra.mxu0 0.0
        %5477 = vmatprep.subr.mxu0 0.0
        %5478 = vmatpush1.msra.mxu0 0.0
        %5479 = vmatprep.mubr.f32.mxu0 0.0
        %5480 = vmatmul.mubr.f32.gmra.mrb[0].mxu0 %v5407
        %v5481 = vpop.f32.mrb[0].mxu0
        %v5482 = vadd.f32 0.0, %v5481
        %v5483 = vpop.f32.mrb[0].mxu0
        %5484 = vmatprep.mubr.f32.mxu0 0.0
        %5485 = vmatmul.mubr.f32.gmra.mrb[0].mxu0 %v5410
        %v5486 = vpop.f32.mrb[0].mxu0
        %v5487 = vadd.f32 0.0, %v5486
        %v5488 = vpop.f32.mrb[0].mxu0
        %5489 = vdwg.mxu0
        %v5490 = vadd.f32 %v5321, %v5482
        %v5491 = vadd.f32 %v5322, %v5487
        %5492 = vmatprep.subr.mxu0 0.0
        %5493 = vmatpush1.msra.mxu0 %v2241
        %5494 = vmatprep.subr.mxu0 0.0
        %5495 = vmatpush1.msra.mxu0 %v2242
        %5496 = vmatprep.subr.mxu0 0.0
        %5497 = vmatpush1.msra.mxu0 %v2243
        %5498 = vmatprep.subr.mxu0 0.0
        %5499 = vmatpush1.msra.mxu0 %v2244
        %5500 = vmatprep.subr.mxu0 0.0
        %5501 = vmatpush1.msra.mxu0 %v2245
        %5502 = vmatprep.subr.mxu0 0.0
        %5503 = vmatpush1.msra.mxu0 %v2246
        %5504 = vmatprep.subr.mxu0 0.0
        %5505 = vmatpush1.msra.mxu0 %v2247
        %5506 = vmatprep.subr.mxu0 0.0
        %5507 = vmatpush1.msra.mxu0 %v2248
        %5508 = vmatprep.subr.mxu0 0.0
        %5509 = vmatpush1.msra.mxu0 %v2249
        %5510 = vmatprep.subr.mxu0 0.0
        %5511 = vmatpush1.msra.mxu0 %v2250
        %5512 = vmatprep.subr.mxu0 0.0
        %5513 = vmatpush1.msra.mxu0 %v2251
        %5514 = vmatprep.subr.mxu0 0.0
        %5515 = vmatpush1.msra.mxu0 %v2252
        %5516 = vmatprep.subr.mxu0 0.0
        %5517 = vmatpush1.msra.mxu0 %v2253
        %5518 = vmatprep.subr.mxu0 0.0
        %5519 = vmatpush1.msra.mxu0 %v2254
        %5520 = vmatprep.subr.mxu0 0.0
        %5521 = vmatpush1.msra.mxu0 %v2255
        %5522 = vmatprep.subr.mxu0 0.0
        %5523 = vmatpush1.msra.mxu0 %v2256
        %5524 = vmatprep.subr.mxu0 0.0
        %5525 = vmatpush1.msra.mxu0 0.0
        %5526 = vmatprep.subr.mxu0 0.0
        %5527 = vmatpush1.msra.mxu0 0.0
        %5528 = vmatprep.subr.mxu0 0.0
        %5529 = vmatpush1.msra.mxu0 0.0
        %5530 = vmatprep.subr.mxu0 0.0
        %5531 = vmatpush1.msra.mxu0 0.0
        %5532 = vmatprep.subr.mxu0 0.0
        %5533 = vmatpush1.msra.mxu0 0.0
        %5534 = vmatprep.subr.mxu0 0.0
        %5535 = vmatpush1.msra.mxu0 0.0
        %5536 = vmatprep.subr.mxu0 0.0
        %5537 = vmatpush1.msra.mxu0 0.0
        %5538 = vmatprep.subr.mxu0 0.0
        %5539 = vmatpush1.msra.mxu0 0.0
        %5540 = vmatprep.subr.mxu0 0.0
        %5541 = vmatpush1.msra.mxu0 0.0
        %5542 = vmatprep.subr.mxu0 0.0
        %5543 = vmatpush1.msra.mxu0 0.0
        %5544 = vmatprep.subr.mxu0 0.0
        %5545 = vmatpush1.msra.mxu0 0.0
        %5546 = vmatprep.subr.mxu0 0.0
        %5547 = vmatpush1.msra.mxu0 0.0
        %5548 = vmatprep.subr.mxu0 0.0
        %5549 = vmatpush1.msra.mxu0 0.0
        %5550 = vmatprep.subr.mxu0 0.0
        %5551 = vmatpush1.msra.mxu0 0.0
        %5552 = vmatprep.subr.mxu0 0.0
        %5553 = vmatpush1.msra.mxu0 0.0
        %5554 = vmatprep.subr.mxu0 0.0
        %5555 = vmatpush1.msra.mxu0 0.0
        %5556 = vmatprep.mubr.f32.mxu0 0.0
        %5557 = vmatmul.mubr.f32.gmra.mrb[0].mxu0 %v4140
        %v5558 = vpop.f32.mrb[0].mxu0
        %v5559 = vadd.f32 0.0, %v5558
        %v5560 = vpop.f32.mrb[0].mxu0
        %5561 = vmatprep.mubr.f32.mxu0 0.0
        %5562 = vmatmul.mubr.f32.gmra.mrb[0].mxu0 %v4141
        %v5563 = vpop.f32.mrb[0].mxu0
        %v5564 = vadd.f32 0.0, %v5563
        %v5565 = vpop.f32.mrb[0].mxu0
        %5566 = vmatprep.mubr.f32.mxu0 0.0
        %5567 = vmatmul.mubr.f32.gmra.mrb[0].mxu0 %v4142
        %v5568 = vpop.f32.mrb[0].mxu0
        %v5569 = vadd.f32 0.0, %v5568
        %v5570 = vpop.f32.mrb[0].mxu0
        %5571 = vdwg.mxu0
        %s5572 = scalar_lea.vmem %s6, 128
        %v5573 = vld [vmem:[%s5572] sm:$0xff]
        %v5574 = vld [vmem:[%s5572 + $0x8] sm:$0x3]
        %v5576 = vsel %vm4308, %v5573, 0
        %v5579 = vsel %vm4308, %v5574, 0
        %v5582 = vsel %vm4315, %v5569, 0
        %5584 = vmatprep.subr.mxu0 0.0
        %5585 = vmatpush1.msra.mxu0 %v5559
        %5586 = vmatprep.subr.mxu0 0.0
        %5587 = vmatpush1.msra.mxu0 %v5564
        %5588 = vmatprep.subr.mxu0 0.0
        %5589 = vmatpush1.msra.mxu0 %v5582
        %5590 = vmatprep.subr.mxu0 0.0
        %5591 = vmatpush1.msra.mxu0 0.0
        %5592 = vmatprep.subr.mxu0 0.0
        %5593 = vmatpush1.msra.mxu0 0.0
        %5594 = vmatprep.subr.mxu0 0.0
        %5595 = vmatpush1.msra.mxu0 0.0
        %5596 = vmatprep.subr.mxu0 0.0
        %5597 = vmatpush1.msra.mxu0 0.0
        %5598 = vmatprep.subr.mxu0 0.0
        %5599 = vmatpush1.msra.mxu0 0.0
        %5600 = vmatprep.subr.mxu0 0.0
        %5601 = vmatpush1.msra.mxu0 0.0
        %5602 = vmatprep.subr.mxu0 0.0
        %5603 = vmatpush1.msra.mxu0 0.0
        %5604 = vmatprep.subr.mxu0 0.0
        %5605 = vmatpush1.msra.mxu0 0.0
        %5606 = vmatprep.subr.mxu0 0.0
        %5607 = vmatpush1.msra.mxu0 0.0
        %5608 = vmatprep.subr.mxu0 0.0
        %5609 = vmatpush1.msra.mxu0 0.0
        %5610 = vmatprep.subr.mxu0 0.0
        %5611 = vmatpush1.msra.mxu0 0.0
        %5612 = vmatprep.subr.mxu0 0.0
        %5613 = vmatpush1.msra.mxu0 0.0
        %5614 = vmatprep.subr.mxu0 0.0
        %5615 = vmatpush1.msra.mxu0 0.0
        %5616 = vmatprep.subr.mxu0 0.0
        %5617 = vmatpush1.msra.mxu0 0.0
        %5618 = vmatprep.subr.mxu0 0.0
        %5619 = vmatpush1.msra.mxu0 0.0
        %5620 = vmatprep.subr.mxu0 0.0
        %5621 = vmatpush1.msra.mxu0 0.0
        %5622 = vmatprep.subr.mxu0 0.0
        %5623 = vmatpush1.msra.mxu0 0.0
        %5624 = vmatprep.subr.mxu0 0.0
        %5625 = vmatpush1.msra.mxu0 0.0
        %5626 = vmatprep.subr.mxu0 0.0
        %5627 = vmatpush1.msra.mxu0 0.0
        %5628 = vmatprep.subr.mxu0 0.0
        %5629 = vmatpush1.msra.mxu0 0.0
        %5630 = vmatprep.subr.mxu0 0.0
        %5631 = vmatpush1.msra.mxu0 0.0
        %5632 = vmatprep.subr.mxu0 0.0
        %5633 = vmatpush1.msra.mxu0 0.0
        %5634 = vmatprep.subr.mxu0 0.0
        %5635 = vmatpush1.msra.mxu0 0.0
        %5636 = vmatprep.subr.mxu0 0.0
        %5637 = vmatpush1.msra.mxu0 0.0
        %5638 = vmatprep.subr.mxu0 0.0
        %5639 = vmatpush1.msra.mxu0 0.0
        %5640 = vmatprep.subr.mxu0 0.0
        %5641 = vmatpush1.msra.mxu0 0.0
        %5642 = vmatprep.subr.mxu0 0.0
        %5643 = vmatpush1.msra.mxu0 0.0
        %5644 = vmatprep.subr.mxu0 0.0
        %5645 = vmatpush1.msra.mxu0 0.0
        %5646 = vmatprep.subr.mxu0 0.0
        %5647 = vmatpush1.msra.mxu0 0.0
        %5648 = vmatprep.mubr.f32.mxu0 0.0
        %5649 = vmatmul.mubr.f32.gmra.mrb[0].mxu0 %v5576
        %v5650 = vpop.f32.mrb[0].mxu0
        %v5651 = vadd.f32 0.0, %v5650
        %v5652 = vpop.f32.mrb[0].mxu0
        %5653 = vmatprep.mubr.f32.mxu0 0.0
        %5654 = vmatmul.mubr.f32.gmra.mrb[0].mxu0 %v5579
        %v5655 = vpop.f32.mrb[0].mxu0
        %v5656 = vadd.f32 0.0, %v5655
        %v5657 = vpop.f32.mrb[0].mxu0
        %5658 = vdwg.mxu0
        %v5659 = vadd.f32 %v5490, %v5651
        %v5660 = vadd.f32 %v5491, %v5656
        %v5661 = vld [vmem:[%s7] sm:$0xff]
        %v5662 = vld [vmem:[%s7 + $0x8] sm:$0x3]
        %5664 = vset.pattern.permute.xlu0 0
        %5665 = vperm.xlu0 %5664, %v5661
        %v5666 = vpop.permute.xlu0 %5665
        %5669 = vset.pattern.permute.xlu0 0
        %5670 = vperm.xlu0 %5669, %v5662
        %v5671 = vpop.permute.xlu0 %5670
        %v5673 = vadd.f32 %v5659, %v5666
        %v5674 = vadd.f32 %v5660, %v5671
        %v5675 = vtanh.pop %v5673
        %v5676 = vtanh.pop %v5674
        %v5677 = vlaneseq
        %v5678 = vand.u32 %v5677, 127
        %v5679 = vld [vmem:[%s9] sm:$0x1]
        %vm5680 = vcmp.eq.s32.totalorder %v5678, 0
        %v5681 = vsel %vm5680, 1, 0
        %v5682 = vcvt.s32.f32 %v5681
        %vm5683 = vcmask 80896
        %v5685 = vsel %vm5683, %v5682, 0
        %vm5687 = vcmask 1041408
        %v5689 = vsel %vm5687, %v5676, 0
        %5691 = vmatprep.subr.mxu0 0.0
        %5692 = vmatpush1.msra.mxu0 %v5675
        %5693 = vmatprep.subr.mxu0 0.0
        %5694 = vmatpush1.msra.mxu0 %v5689
        %5695 = vmatprep.subr.mxu0 0.0
        %5696 = vmatpush1.msra.mxu0 0.0
        %5697 = vmatprep.subr.mxu0 0.0
        %5698 = vmatpush1.msra.mxu0 0.0
        %5699 = vmatprep.subr.mxu0 0.0
        %5700 = vmatpush1.msra.mxu0 0.0
        %5701 = vmatprep.subr.mxu0 0.0
        %5702 = vmatpush1.msra.mxu0 0.0
        %5703 = vmatprep.subr.mxu0 0.0
        %5704 = vmatpush1.msra.mxu0 0.0
        %5705 = vmatprep.subr.mxu0 0.0
        %5706 = vmatpush1.msra.mxu0 0.0
        %5707 = vmatprep.subr.mxu0 0.0
        %5708 = vmatpush1.msra.mxu0 0.0
        %5709 = vmatprep.subr.mxu0 0.0
        %5710 = vmatpush1.msra.mxu0 0.0
        %5711 = vmatprep.subr.mxu0 0.0
        %5712 = vmatpush1.msra.mxu0 0.0
        %5713 = vmatprep.subr.mxu0 0.0
        %5714 = vmatpush1.msra.mxu0 0.0
        %5715 = vmatprep.subr.mxu0 0.0
        %5716 = vmatpush1.msra.mxu0 0.0
        %5717 = vmatprep.subr.mxu0 0.0
        %5718 = vmatpush1.msra.mxu0 0.0
        %5719 = vmatprep.subr.mxu0 0.0
        %5720 = vmatpush1.msra.mxu0 0.0
        %5721 = vmatprep.subr.mxu0 0.0
        %5722 = vmatpush1.msra.mxu0 0.0
        %5723 = vmatprep.subr.mxu0 0.0
        %5724 = vmatpush1.msra.mxu0 0.0
        %5725 = vmatprep.subr.mxu0 0.0
        %5726 = vmatpush1.msra.mxu0 0.0
        %5727 = vmatprep.subr.mxu0 0.0
        %5728 = vmatpush1.msra.mxu0 0.0
        %5729 = vmatprep.subr.mxu0 0.0
        %5730 = vmatpush1.msra.mxu0 0.0
        %5731 = vmatprep.subr.mxu0 0.0
        %5732 = vmatpush1.msra.mxu0 0.0
        %5733 = vmatprep.subr.mxu0 0.0
        %5734 = vmatpush1.msra.mxu0 0.0
        %5735 = vmatprep.subr.mxu0 0.0
        %5736 = vmatpush1.msra.mxu0 0.0
        %5737 = vmatprep.subr.mxu0 0.0
        %5738 = vmatpush1.msra.mxu0 0.0
        %5739 = vmatprep.subr.mxu0 0.0
        %5740 = vmatpush1.msra.mxu0 0.0
        %5741 = vmatprep.subr.mxu0 0.0
        %5742 = vmatpush1.msra.mxu0 0.0
        %5743 = vmatprep.subr.mxu0 0.0
        %5744 = vmatpush1.msra.mxu0 0.0
        %5745 = vmatprep.subr.mxu0 0.0
        %5746 = vmatpush1.msra.mxu0 0.0
        %5747 = vmatprep.subr.mxu0 0.0
        %5748 = vmatpush1.msra.mxu0 0.0
        %5749 = vmatprep.subr.mxu0 0.0
        %5750 = vmatpush1.msra.mxu0 0.0
        %5751 = vmatprep.subr.mxu0 0.0
        %5752 = vmatpush1.msra.mxu0 0.0
        %5753 = vmatprep.subr.mxu0 0.0
        %5754 = vmatpush1.msra.mxu0 0.0
        %5755 = vmatprep.mubr.f32.mxu0 0.0
        %5756 = vmatmul.mubr.f32.gmra.mrb[0].mxu0 %v5685
        %v5757 = vpop.f32.mrb[0].mxu0
        %v5758 = vadd.f32 0.0, %v5757
        %v5759 = vpop.f32.mrb[0].mxu0
        %5760 = vdwg.mxu0
        %v5761 = vld [vmem:[#allocation5] sm:$0xff]
        %v5762 = vld [vmem:[#allocation5 + $0x8] sm:$0xff]
        %v5763 = vld [vmem:[#allocation5 + $0x10] sm:$0xff]
        %v5764 = vld [vmem:[#allocation5 + $0x18] sm:$0xff]
        %v5765 = vld [vmem:[#allocation5 + $0x20] sm:$0xff]
        %v5766 = vld [vmem:[#allocation5 + $0x28] sm:$0xff]
        %v5767 = vld [vmem:[#allocation5 + $0x30] sm:$0xff]
        %v5768 = vld [vmem:[#allocation5 + $0x38] sm:$0xff]
        %v5769 = vld [vmem:[#allocation5 + $0x40] sm:$0xff]
        %v5770 = vld [vmem:[#allocation5 + $0x48] sm:$0xff]
        %v5771 = vld [vmem:[#allocation5 + $0x50] sm:$0xff]
        %v5772 = vld [vmem:[#allocation5 + $0x58] sm:$0xff]
        %v5773 = vld [vmem:[#allocation5 + $0x60] sm:$0xff]
        %v5774 = vld [vmem:[#allocation5 + $0x68] sm:$0xff]
        %v5775 = vld [vmem:[#allocation5 + $0x70] sm:$0xff]
        %v5776 = vld [vmem:[#allocation5 + $0x78] sm:$0xff]
        %5777 = vmatprep.subr.mxu0 0.0
        %5778 = vmatpush1.msra.mxu0 %v5761
        %5779 = vmatprep.subr.mxu0 0.0
        %5780 = vmatpush1.msra.mxu0 %v5762
        %5781 = vmatprep.subr.mxu0 0.0
        %5782 = vmatpush1.msra.mxu0 %v5763
        %5783 = vmatprep.subr.mxu0 0.0
        %5784 = vmatpush1.msra.mxu0 %v5764
        %5785 = vmatprep.subr.mxu0 0.0
        %5786 = vmatpush1.msra.mxu0 %v5765
        %5787 = vmatprep.subr.mxu0 0.0
        %5788 = vmatpush1.msra.mxu0 %v5766
        %5789 = vmatprep.subr.mxu0 0.0
        %5790 = vmatpush1.msra.mxu0 %v5767
        %5791 = vmatprep.subr.mxu0 0.0
        %5792 = vmatpush1.msra.mxu0 %v5768
        %5793 = vmatprep.subr.mxu0 0.0
        %5794 = vmatpush1.msra.mxu0 %v5769
        %5795 = vmatprep.subr.mxu0 0.0
        %5796 = vmatpush1.msra.mxu0 %v5770
        %5797 = vmatprep.subr.mxu0 0.0
        %5798 = vmatpush1.msra.mxu0 %v5771
        %5799 = vmatprep.subr.mxu0 0.0
        %5800 = vmatpush1.msra.mxu0 %v5772
        %5801 = vmatprep.subr.mxu0 0.0
        %5802 = vmatpush1.msra.mxu0 %v5773
        %5803 = vmatprep.subr.mxu0 0.0
        %5804 = vmatpush1.msra.mxu0 %v5774
        %5805 = vmatprep.subr.mxu0 0.0
        %5806 = vmatpush1.msra.mxu0 %v5775
        %5807 = vmatprep.subr.mxu0 0.0
        %5808 = vmatpush1.msra.mxu0 %v5776
        %5809 = vmatprep.subr.mxu0 0.0
        %5810 = vmatpush1.msra.mxu0 0.0
        %5811 = vmatprep.subr.mxu0 0.0
        %5812 = vmatpush1.msra.mxu0 0.0
        %5813 = vmatprep.subr.mxu0 0.0
        %5814 = vmatpush1.msra.mxu0 0.0
        %5815 = vmatprep.subr.mxu0 0.0
        %5816 = vmatpush1.msra.mxu0 0.0
        %5817 = vmatprep.subr.mxu0 0.0
        %5818 = vmatpush1.msra.mxu0 0.0
        %5819 = vmatprep.subr.mxu0 0.0
        %5820 = vmatpush1.msra.mxu0 0.0
        %5821 = vmatprep.subr.mxu0 0.0
        %5822 = vmatpush1.msra.mxu0 0.0
        %5823 = vmatprep.subr.mxu0 0.0
        %5824 = vmatpush1.msra.mxu0 0.0
        %5825 = vmatprep.subr.mxu0 0.0
        %5826 = vmatpush1.msra.mxu0 0.0
        %5827 = vmatprep.subr.mxu0 0.0
        %5828 = vmatpush1.msra.mxu0 0.0
        %5829 = vmatprep.subr.mxu0 0.0
        %5830 = vmatpush1.msra.mxu0 0.0
        %5831 = vmatprep.subr.mxu0 0.0
        %5832 = vmatpush1.msra.mxu0 0.0
        %5833 = vmatprep.subr.mxu0 0.0
        %5834 = vmatpush1.msra.mxu0 0.0
        %5835 = vmatprep.subr.mxu0 0.0
        %5836 = vmatpush1.msra.mxu0 0.0
        %5837 = vmatprep.subr.mxu0 0.0
        %5838 = vmatpush1.msra.mxu0 0.0
        %5839 = vmatprep.subr.mxu0 0.0
        %5840 = vmatpush1.msra.mxu0 0.0
        %5841 = vmatprep.mubr.f32.mxu0 0.0
        %5842 = vmatmul.mubr.f32.gmra.mrb[0].mxu0 %v5758
        %v5843 = vpop.f32.mrb[0].mxu0
        %v5844 = vadd.f32 0.0, %v5843
        %v5845 = vpop.f32.mrb[0].mxu0
        %5846 = vdwg.mxu0
        %v5847 = vadd.f32 %v5679, %v5844
        %vm5848 = vcmp.eq.s32.totalorder %v5678, 1
        %v5849 = vsel %vm5848, 1, 0
        %v5850 = vcvt.s32.f32 %v5849
        %v5852 = vsel %vm5683, %v5850, 0
        %5854 = vmatprep.subr.mxu0 0.0
        %5855 = vmatpush1.msra.mxu0 %v5675
        %5856 = vmatprep.subr.mxu0 0.0
        %5857 = vmatpush1.msra.mxu0 %v5689
        %5858 = vmatprep.subr.mxu0 0.0
        %5859 = vmatpush1.msra.mxu0 0.0
        %5860 = vmatprep.subr.mxu0 0.0
        %5861 = vmatpush1.msra.mxu0 0.0
        %5862 = vmatprep.subr.mxu0 0.0
        %5863 = vmatpush1.msra.mxu0 0.0
        %5864 = vmatprep.subr.mxu0 0.0
        %5865 = vmatpush1.msra.mxu0 0.0
        %5866 = vmatprep.subr.mxu0 0.0
        %5867 = vmatpush1.msra.mxu0 0.0
        %5868 = vmatprep.subr.mxu0 0.0
        %5869 = vmatpush1.msra.mxu0 0.0
        %5870 = vmatprep.subr.mxu0 0.0
        %5871 = vmatpush1.msra.mxu0 0.0
        %5872 = vmatprep.subr.mxu0 0.0
        %5873 = vmatpush1.msra.mxu0 0.0
        %5874 = vmatprep.subr.mxu0 0.0
        %5875 = vmatpush1.msra.mxu0 0.0
        %5876 = vmatprep.subr.mxu0 0.0
        %5877 = vmatpush1.msra.mxu0 0.0
        %5878 = vmatprep.subr.mxu0 0.0
        %5879 = vmatpush1.msra.mxu0 0.0
        %5880 = vmatprep.subr.mxu0 0.0
        %5881 = vmatpush1.msra.mxu0 0.0
        %5882 = vmatprep.subr.mxu0 0.0
        %5883 = vmatpush1.msra.mxu0 0.0
        %5884 = vmatprep.subr.mxu0 0.0
        %5885 = vmatpush1.msra.mxu0 0.0
        %5886 = vmatprep.subr.mxu0 0.0
        %5887 = vmatpush1.msra.mxu0 0.0
        %5888 = vmatprep.subr.mxu0 0.0
        %5889 = vmatpush1.msra.mxu0 0.0
        %5890 = vmatprep.subr.mxu0 0.0
        %5891 = vmatpush1.msra.mxu0 0.0
        %5892 = vmatprep.subr.mxu0 0.0
        %5893 = vmatpush1.msra.mxu0 0.0
        %5894 = vmatprep.subr.mxu0 0.0
        %5895 = vmatpush1.msra.mxu0 0.0
        %5896 = vmatprep.subr.mxu0 0.0
        %5897 = vmatpush1.msra.mxu0 0.0
        %5898 = vmatprep.subr.mxu0 0.0
        %5899 = vmatpush1.msra.mxu0 0.0
        %5900 = vmatprep.subr.mxu0 0.0
        %5901 = vmatpush1.msra.mxu0 0.0
        %5902 = vmatprep.subr.mxu0 0.0
        %5903 = vmatpush1.msra.mxu0 0.0
        %5904 = vmatprep.subr.mxu0 0.0
        %5905 = vmatpush1.msra.mxu0 0.0
        %5906 = vmatprep.subr.mxu0 0.0
        %5907 = vmatpush1.msra.mxu0 0.0
        %5908 = vmatprep.subr.mxu0 0.0
        %5909 = vmatpush1.msra.mxu0 0.0
        %5910 = vmatprep.subr.mxu0 0.0
        %5911 = vmatpush1.msra.mxu0 0.0
        %5912 = vmatprep.subr.mxu0 0.0
        %5913 = vmatpush1.msra.mxu0 0.0
        %5914 = vmatprep.subr.mxu0 0.0
        %5915 = vmatpush1.msra.mxu0 0.0
        %5916 = vmatprep.subr.mxu0 0.0
        %5917 = vmatpush1.msra.mxu0 0.0
        %5918 = vmatprep.mubr.f32.mxu0 0.0
        %5919 = vmatmul.mubr.f32.gmra.mrb[0].mxu0 %v5852
        %v5920 = vpop.f32.mrb[0].mxu0
        %v5921 = vadd.f32 0.0, %v5920
        %v5922 = vpop.f32.mrb[0].mxu0
        %5923 = vdwg.mxu0
        %s5924 = scalar_lea.vmem [#allocation5], 128
        %v5925 = vld [vmem:[%s5924] sm:$0xff]
        %v5926 = vld [vmem:[%s5924 + $0x8] sm:$0xff]
        %v5927 = vld [vmem:[%s5924 + $0x10] sm:$0xff]
        %v5928 = vld [vmem:[%s5924 + $0x18] sm:$0xff]
        %v5929 = vld [vmem:[%s5924 + $0x20] sm:$0xff]
        %v5930 = vld [vmem:[%s5924 + $0x28] sm:$0xff]
        %v5931 = vld [vmem:[%s5924 + $0x30] sm:$0xff]
        %v5932 = vld [vmem:[%s5924 + $0x38] sm:$0xff]
        %v5933 = vld [vmem:[%s5924 + $0x40] sm:$0xff]
        %v5934 = vld [vmem:[%s5924 + $0x48] sm:$0xff]
        %v5935 = vld [vmem:[%s5924 + $0x50] sm:$0xff]
        %v5936 = vld [vmem:[%s5924 + $0x58] sm:$0xff]
        %v5937 = vld [vmem:[%s5924 + $0x60] sm:$0xff]
        %v5938 = vld [vmem:[%s5924 + $0x68] sm:$0xff]
        %v5939 = vld [vmem:[%s5924 + $0x70] sm:$0xff]
        %v5940 = vld [vmem:[%s5924 + $0x78] sm:$0xff]
        %5941 = vmatprep.subr.mxu0 0.0
        %5942 = vmatpush1.msra.mxu0 %v5925
        %5943 = vmatprep.subr.mxu0 0.0
        %5944 = vmatpush1.msra.mxu0 %v5926
        %5945 = vmatprep.subr.mxu0 0.0
        %5946 = vmatpush1.msra.mxu0 %v5927
        %5947 = vmatprep.subr.mxu0 0.0
        %5948 = vmatpush1.msra.mxu0 %v5928
        %5949 = vmatprep.subr.mxu0 0.0
        %5950 = vmatpush1.msra.mxu0 %v5929
        %5951 = vmatprep.subr.mxu0 0.0
        %5952 = vmatpush1.msra.mxu0 %v5930
        %5953 = vmatprep.subr.mxu0 0.0
        %5954 = vmatpush1.msra.mxu0 %v5931
        %5955 = vmatprep.subr.mxu0 0.0
        %5956 = vmatpush1.msra.mxu0 %v5932
        %5957 = vmatprep.subr.mxu0 0.0
        %5958 = vmatpush1.msra.mxu0 %v5933
        %5959 = vmatprep.subr.mxu0 0.0
        %5960 = vmatpush1.msra.mxu0 %v5934
        %5961 = vmatprep.subr.mxu0 0.0
        %5962 = vmatpush1.msra.mxu0 %v5935
        %5963 = vmatprep.subr.mxu0 0.0
        %5964 = vmatpush1.msra.mxu0 %v5936
        %5965 = vmatprep.subr.mxu0 0.0
        %5966 = vmatpush1.msra.mxu0 %v5937
        %5967 = vmatprep.subr.mxu0 0.0
        %5968 = vmatpush1.msra.mxu0 %v5938
        %5969 = vmatprep.subr.mxu0 0.0
        %5970 = vmatpush1.msra.mxu0 %v5939
        %5971 = vmatprep.subr.mxu0 0.0
        %5972 = vmatpush1.msra.mxu0 %v5940
        %5973 = vmatprep.subr.mxu0 0.0
        %5974 = vmatpush1.msra.mxu0 0.0
        %5975 = vmatprep.subr.mxu0 0.0
        %5976 = vmatpush1.msra.mxu0 0.0
        %5977 = vmatprep.subr.mxu0 0.0
        %5978 = vmatpush1.msra.mxu0 0.0
        %5979 = vmatprep.subr.mxu0 0.0
        %5980 = vmatpush1.msra.mxu0 0.0
        %5981 = vmatprep.subr.mxu0 0.0
        %5982 = vmatpush1.msra.mxu0 0.0
        %5983 = vmatprep.subr.mxu0 0.0
        %5984 = vmatpush1.msra.mxu0 0.0
        %5985 = vmatprep.subr.mxu0 0.0
        %5986 = vmatpush1.msra.mxu0 0.0
        %5987 = vmatprep.subr.mxu0 0.0
        %5988 = vmatpush1.msra.mxu0 0.0
        %5989 = vmatprep.subr.mxu0 0.0
        %5990 = vmatpush1.msra.mxu0 0.0
        %5991 = vmatprep.subr.mxu0 0.0
        %5992 = vmatpush1.msra.mxu0 0.0
        %5993 = vmatprep.subr.mxu0 0.0
        %5994 = vmatpush1.msra.mxu0 0.0
        %5995 = vmatprep.subr.mxu0 0.0
        %5996 = vmatpush1.msra.mxu0 0.0
        %5997 = vmatprep.subr.mxu0 0.0
        %5998 = vmatpush1.msra.mxu0 0.0
        %5999 = vmatprep.subr.mxu0 0.0
        %6000 = vmatpush1.msra.mxu0 0.0
        %6001 = vmatprep.subr.mxu0 0.0
        %6002 = vmatpush1.msra.mxu0 0.0
        %6003 = vmatprep.subr.mxu0 0.0
        %6004 = vmatpush1.msra.mxu0 0.0
        %6005 = vmatprep.mubr.f32.mxu0 0.0
        %6006 = vmatmul.mubr.f32.gmra.mrb[0].mxu0 %v5921
        %v6007 = vpop.f32.mrb[0].mxu0
        %v6008 = vadd.f32 0.0, %v6007
        %v6009 = vpop.f32.mrb[0].mxu0
        %6010 = vdwg.mxu0
        %v6011 = vadd.f32 %v5847, %v6008
        %vm6012 = vcmp.eq.s32.totalorder %v5678, 2
        %v6013 = vsel %vm6012, 1, 0
        %v6014 = vcvt.s32.f32 %v6013
        %v6016 = vsel %vm5683, %v6014, 0
        %6018 = vmatprep.subr.mxu0 0.0
        %6019 = vmatpush1.msra.mxu0 %v5675
        %6020 = vmatprep.subr.mxu0 0.0
        %6021 = vmatpush1.msra.mxu0 %v5689
        %6022 = vmatprep.subr.mxu0 0.0
        %6023 = vmatpush1.msra.mxu0 0.0
        %6024 = vmatprep.subr.mxu0 0.0
        %6025 = vmatpush1.msra.mxu0 0.0
        %6026 = vmatprep.subr.mxu0 0.0
        %6027 = vmatpush1.msra.mxu0 0.0
        %6028 = vmatprep.subr.mxu0 0.0
        %6029 = vmatpush1.msra.mxu0 0.0
        %6030 = vmatprep.subr.mxu0 0.0
        %6031 = vmatpush1.msra.mxu0 0.0
        %6032 = vmatprep.subr.mxu0 0.0
        %6033 = vmatpush1.msra.mxu0 0.0
        %6034 = vmatprep.subr.mxu0 0.0
        %6035 = vmatpush1.msra.mxu0 0.0
        %6036 = vmatprep.subr.mxu0 0.0
        %6037 = vmatpush1.msra.mxu0 0.0
        %6038 = vmatprep.subr.mxu0 0.0
        %6039 = vmatpush1.msra.mxu0 0.0
        %6040 = vmatprep.subr.mxu0 0.0
        %6041 = vmatpush1.msra.mxu0 0.0
        %6042 = vmatprep.subr.mxu0 0.0
        %6043 = vmatpush1.msra.mxu0 0.0
        %6044 = vmatprep.subr.mxu0 0.0
        %6045 = vmatpush1.msra.mxu0 0.0
        %6046 = vmatprep.subr.mxu0 0.0
        %6047 = vmatpush1.msra.mxu0 0.0
        %6048 = vmatprep.subr.mxu0 0.0
        %6049 = vmatpush1.msra.mxu0 0.0
        %6050 = vmatprep.subr.mxu0 0.0
        %6051 = vmatpush1.msra.mxu0 0.0
        %6052 = vmatprep.subr.mxu0 0.0
        %6053 = vmatpush1.msra.mxu0 0.0
        %6054 = vmatprep.subr.mxu0 0.0
        %6055 = vmatpush1.msra.mxu0 0.0
        %6056 = vmatprep.subr.mxu0 0.0
        %6057 = vmatpush1.msra.mxu0 0.0
        %6058 = vmatprep.subr.mxu0 0.0
        %6059 = vmatpush1.msra.mxu0 0.0
        %6060 = vmatprep.subr.mxu0 0.0
        %6061 = vmatpush1.msra.mxu0 0.0
        %6062 = vmatprep.subr.mxu0 0.0
        %6063 = vmatpush1.msra.mxu0 0.0
        %6064 = vmatprep.subr.mxu0 0.0
        %6065 = vmatpush1.msra.mxu0 0.0
        %6066 = vmatprep.subr.mxu0 0.0
        %6067 = vmatpush1.msra.mxu0 0.0
        %6068 = vmatprep.subr.mxu0 0.0
        %6069 = vmatpush1.msra.mxu0 0.0
        %6070 = vmatprep.subr.mxu0 0.0
        %6071 = vmatpush1.msra.mxu0 0.0
        %6072 = vmatprep.subr.mxu0 0.0
        %6073 = vmatpush1.msra.mxu0 0.0
        %6074 = vmatprep.subr.mxu0 0.0
        %6075 = vmatpush1.msra.mxu0 0.0
        %6076 = vmatprep.subr.mxu0 0.0
        %6077 = vmatpush1.msra.mxu0 0.0
        %6078 = vmatprep.subr.mxu0 0.0
        %6079 = vmatpush1.msra.mxu0 0.0
        %6080 = vmatprep.subr.mxu0 0.0
        %6081 = vmatpush1.msra.mxu0 0.0
        %6082 = vmatprep.mubr.f32.mxu0 0.0
        %6083 = vmatmul.mubr.f32.gmra.mrb[0].mxu0 %v6016
        %v6084 = vpop.f32.mrb[0].mxu0
        %v6085 = vadd.f32 0.0, %v6084
        %v6086 = vpop.f32.mrb[0].mxu0
        %6087 = vdwg.mxu0
        %s6088 = scalar_lea.vmem [#allocation5], 256
        %v6089 = vld [vmem:[%s6088] sm:$0xff]
        %v6090 = vld [vmem:[%s6088 + $0x8] sm:$0xff]
        %v6091 = vld [vmem:[%s6088 + $0x10] sm:$0xff]
        %v6092 = vld [vmem:[%s6088 + $0x18] sm:$0xff]
        %v6093 = vld [vmem:[%s6088 + $0x20] sm:$0xff]
        %v6094 = vld [vmem:[%s6088 + $0x28] sm:$0xff]
        %v6095 = vld [vmem:[%s6088 + $0x30] sm:$0xff]
        %v6096 = vld [vmem:[%s6088 + $0x38] sm:$0xff]
        %v6097 = vld [vmem:[%s6088 + $0x40] sm:$0xff]
        %v6098 = vld [vmem:[%s6088 + $0x48] sm:$0xff]
        %v6099 = vld [vmem:[%s6088 + $0x50] sm:$0xff]
        %v6100 = vld [vmem:[%s6088 + $0x58] sm:$0xff]
        %v6101 = vld [vmem:[%s6088 + $0x60] sm:$0xff]
        %v6102 = vld [vmem:[%s6088 + $0x68] sm:$0xff]
        %v6103 = vld [vmem:[%s6088 + $0x70] sm:$0xff]
        %v6104 = vld [vmem:[%s6088 + $0x78] sm:$0xff]
        %6105 = vmatprep.subr.mxu0 0.0
        %6106 = vmatpush1.msra.mxu0 %v6089
        %6107 = vmatprep.subr.mxu0 0.0
        %6108 = vmatpush1.msra.mxu0 %v6090
        %6109 = vmatprep.subr.mxu0 0.0
        %6110 = vmatpush1.msra.mxu0 %v6091
        %6111 = vmatprep.subr.mxu0 0.0
        %6112 = vmatpush1.msra.mxu0 %v6092
        %6113 = vmatprep.subr.mxu0 0.0
        %6114 = vmatpush1.msra.mxu0 %v6093
        %6115 = vmatprep.subr.mxu0 0.0
        %6116 = vmatpush1.msra.mxu0 %v6094
        %6117 = vmatprep.subr.mxu0 0.0
        %6118 = vmatpush1.msra.mxu0 %v6095
        %6119 = vmatprep.subr.mxu0 0.0
        %6120 = vmatpush1.msra.mxu0 %v6096
        %6121 = vmatprep.subr.mxu0 0.0
        %6122 = vmatpush1.msra.mxu0 %v6097
        %6123 = vmatprep.subr.mxu0 0.0
        %6124 = vmatpush1.msra.mxu0 %v6098
        %6125 = vmatprep.subr.mxu0 0.0
        %6126 = vmatpush1.msra.mxu0 %v6099
        %6127 = vmatprep.subr.mxu0 0.0
        %6128 = vmatpush1.msra.mxu0 %v6100
        %6129 = vmatprep.subr.mxu0 0.0
        %6130 = vmatpush1.msra.mxu0 %v6101
        %6131 = vmatprep.subr.mxu0 0.0
        %6132 = vmatpush1.msra.mxu0 %v6102
        %6133 = vmatprep.subr.mxu0 0.0
        %6134 = vmatpush1.msra.mxu0 %v6103
        %6135 = vmatprep.subr.mxu0 0.0
        %6136 = vmatpush1.msra.mxu0 %v6104
        %6137 = vmatprep.subr.mxu0 0.0
        %6138 = vmatpush1.msra.mxu0 0.0
        %6139 = vmatprep.subr.mxu0 0.0
        %6140 = vmatpush1.msra.mxu0 0.0
        %6141 = vmatprep.subr.mxu0 0.0
        %6142 = vmatpush1.msra.mxu0 0.0
        %6143 = vmatprep.subr.mxu0 0.0
        %6144 = vmatpush1.msra.mxu0 0.0
        %6145 = vmatprep.subr.mxu0 0.0
        %6146 = vmatpush1.msra.mxu0 0.0
        %6147 = vmatprep.subr.mxu0 0.0
        %6148 = vmatpush1.msra.mxu0 0.0
        %6149 = vmatprep.subr.mxu0 0.0
        %6150 = vmatpush1.msra.mxu0 0.0
        %6151 = vmatprep.subr.mxu0 0.0
        %6152 = vmatpush1.msra.mxu0 0.0
        %6153 = vmatprep.subr.mxu0 0.0
        %6154 = vmatpush1.msra.mxu0 0.0
        %6155 = vmatprep.subr.mxu0 0.0
        %6156 = vmatpush1.msra.mxu0 0.0
        %6157 = vmatprep.subr.mxu0 0.0
        %6158 = vmatpush1.msra.mxu0 0.0
        %6159 = vmatprep.subr.mxu0 0.0
        %6160 = vmatpush1.msra.mxu0 0.0
        %6161 = vmatprep.subr.mxu0 0.0
        %6162 = vmatpush1.msra.mxu0 0.0
        %6163 = vmatprep.subr.mxu0 0.0
        %6164 = vmatpush1.msra.mxu0 0.0
        %6165 = vmatprep.subr.mxu0 0.0
        %6166 = vmatpush1.msra.mxu0 0.0
        %6167 = vmatprep.subr.mxu0 0.0
        %6168 = vmatpush1.msra.mxu0 0.0
        %6169 = vmatprep.mubr.f32.mxu0 0.0
        %6170 = vmatmul.mubr.f32.gmra.mrb[0].mxu0 %v6085
        %v6171 = vpop.f32.mrb[0].mxu0
        %v6172 = vadd.f32 0.0, %v6171
        %v6173 = vpop.f32.mrb[0].mxu0
        %6174 = vdwg.mxu0
        %v6175 = vadd.f32 %v6011, %v6172
        %vm6176 = vcmp.eq.s32.totalorder %v5678, 3
        %v6177 = vsel %vm6176, 1, 0
        %v6178 = vcvt.s32.f32 %v6177
        %v6180 = vsel %vm5683, %v6178, 0
        %6182 = vmatprep.subr.mxu0 0.0
        %6183 = vmatpush1.msra.mxu0 %v5675
        %6184 = vmatprep.subr.mxu0 0.0
        %6185 = vmatpush1.msra.mxu0 %v5689
        %6186 = vmatprep.subr.mxu0 0.0
        %6187 = vmatpush1.msra.mxu0 0.0
        %6188 = vmatprep.subr.mxu0 0.0
        %6189 = vmatpush1.msra.mxu0 0.0
        %6190 = vmatprep.subr.mxu0 0.0
        %6191 = vmatpush1.msra.mxu0 0.0
        %6192 = vmatprep.subr.mxu0 0.0
        %6193 = vmatpush1.msra.mxu0 0.0
        %6194 = vmatprep.subr.mxu0 0.0
        %6195 = vmatpush1.msra.mxu0 0.0
        %6196 = vmatprep.subr.mxu0 0.0
        %6197 = vmatpush1.msra.mxu0 0.0
        %6198 = vmatprep.subr.mxu0 0.0
        %6199 = vmatpush1.msra.mxu0 0.0
        %6200 = vmatprep.subr.mxu0 0.0
        %6201 = vmatpush1.msra.mxu0 0.0
        %6202 = vmatprep.subr.mxu0 0.0
        %6203 = vmatpush1.msra.mxu0 0.0
        %6204 = vmatprep.subr.mxu0 0.0
        %6205 = vmatpush1.msra.mxu0 0.0
        %6206 = vmatprep.subr.mxu0 0.0
        %6207 = vmatpush1.msra.mxu0 0.0
        %6208 = vmatprep.subr.mxu0 0.0
        %6209 = vmatpush1.msra.mxu0 0.0
        %6210 = vmatprep.subr.mxu0 0.0
        %6211 = vmatpush1.msra.mxu0 0.0
        %6212 = vmatprep.subr.mxu0 0.0
        %6213 = vmatpush1.msra.mxu0 0.0
        %6214 = vmatprep.subr.mxu0 0.0
        %6215 = vmatpush1.msra.mxu0 0.0
        %6216 = vmatprep.subr.mxu0 0.0
        %6217 = vmatpush1.msra.mxu0 0.0
        %6218 = vmatprep.subr.mxu0 0.0
        %6219 = vmatpush1.msra.mxu0 0.0
        %6220 = vmatprep.subr.mxu0 0.0
        %6221 = vmatpush1.msra.mxu0 0.0
        %6222 = vmatprep.subr.mxu0 0.0
        %6223 = vmatpush1.msra.mxu0 0.0
        %6224 = vmatprep.subr.mxu0 0.0
        %6225 = vmatpush1.msra.mxu0 0.0
        %6226 = vmatprep.subr.mxu0 0.0
        %6227 = vmatpush1.msra.mxu0 0.0
        %6228 = vmatprep.subr.mxu0 0.0
        %6229 = vmatpush1.msra.mxu0 0.0
        %6230 = vmatprep.subr.mxu0 0.0
        %6231 = vmatpush1.msra.mxu0 0.0
        %6232 = vmatprep.subr.mxu0 0.0
        %6233 = vmatpush1.msra.mxu0 0.0
        %6234 = vmatprep.subr.mxu0 0.0
        %6235 = vmatpush1.msra.mxu0 0.0
        %6236 = vmatprep.subr.mxu0 0.0
        %6237 = vmatpush1.msra.mxu0 0.0
        %6238 = vmatprep.subr.mxu0 0.0
        %6239 = vmatpush1.msra.mxu0 0.0
        %6240 = vmatprep.subr.mxu0 0.0
        %6241 = vmatpush1.msra.mxu0 0.0
        %6242 = vmatprep.subr.mxu0 0.0
        %6243 = vmatpush1.msra.mxu0 0.0
        %6244 = vmatprep.subr.mxu0 0.0
        %6245 = vmatpush1.msra.mxu0 0.0
        %6246 = vmatprep.mubr.f32.mxu0 0.0
        %6247 = vmatmul.mubr.f32.gmra.mrb[0].mxu0 %v6180
        %v6248 = vpop.f32.mrb[0].mxu0
        %v6249 = vadd.f32 0.0, %v6248
        %v6250 = vpop.f32.mrb[0].mxu0
        %6251 = vdwg.mxu0
        %s6252 = scalar_lea.vmem [#allocation5], 384
        %v6253 = vld [vmem:[%s6252] sm:$0xff]
        %v6254 = vld [vmem:[%s6252 + $0x8] sm:$0xff]
        %v6255 = vld [vmem:[%s6252 + $0x10] sm:$0xff]
        %v6256 = vld [vmem:[%s6252 + $0x18] sm:$0xff]
        %v6257 = vld [vmem:[%s6252 + $0x20] sm:$0xff]
        %v6258 = vld [vmem:[%s6252 + $0x28] sm:$0xff]
        %v6259 = vld [vmem:[%s6252 + $0x30] sm:$0xff]
        %v6260 = vld [vmem:[%s6252 + $0x38] sm:$0xff]
        %v6261 = vld [vmem:[%s6252 + $0x40] sm:$0xff]
        %v6262 = vld [vmem:[%s6252 + $0x48] sm:$0xff]
        %v6263 = vld [vmem:[%s6252 + $0x50] sm:$0xff]
        %v6264 = vld [vmem:[%s6252 + $0x58] sm:$0xff]
        %v6265 = vld [vmem:[%s6252 + $0x60] sm:$0xff]
        %v6266 = vld [vmem:[%s6252 + $0x68] sm:$0xff]
        %v6267 = vld [vmem:[%s6252 + $0x70] sm:$0xff]
        %v6268 = vld [vmem:[%s6252 + $0x78] sm:$0xff]
        %6269 = vmatprep.subr.mxu0 0.0
        %6270 = vmatpush1.msra.mxu0 %v6253
        %6271 = vmatprep.subr.mxu0 0.0
        %6272 = vmatpush1.msra.mxu0 %v6254
        %6273 = vmatprep.subr.mxu0 0.0
        %6274 = vmatpush1.msra.mxu0 %v6255
        %6275 = vmatprep.subr.mxu0 0.0
        %6276 = vmatpush1.msra.mxu0 %v6256
        %6277 = vmatprep.subr.mxu0 0.0
        %6278 = vmatpush1.msra.mxu0 %v6257
        %6279 = vmatprep.subr.mxu0 0.0
        %6280 = vmatpush1.msra.mxu0 %v6258
        %6281 = vmatprep.subr.mxu0 0.0
        %6282 = vmatpush1.msra.mxu0 %v6259
        %6283 = vmatprep.subr.mxu0 0.0
        %6284 = vmatpush1.msra.mxu0 %v6260
        %6285 = vmatprep.subr.mxu0 0.0
        %6286 = vmatpush1.msra.mxu0 %v6261
        %6287 = vmatprep.subr.mxu0 0.0
        %6288 = vmatpush1.msra.mxu0 %v6262
        %6289 = vmatprep.subr.mxu0 0.0
        %6290 = vmatpush1.msra.mxu0 %v6263
        %6291 = vmatprep.subr.mxu0 0.0
        %6292 = vmatpush1.msra.mxu0 %v6264
        %6293 = vmatprep.subr.mxu0 0.0
        %6294 = vmatpush1.msra.mxu0 %v6265
        %6295 = vmatprep.subr.mxu0 0.0
        %6296 = vmatpush1.msra.mxu0 %v6266
        %6297 = vmatprep.subr.mxu0 0.0
        %6298 = vmatpush1.msra.mxu0 %v6267
        %6299 = vmatprep.subr.mxu0 0.0
        %6300 = vmatpush1.msra.mxu0 %v6268
        %6301 = vmatprep.subr.mxu0 0.0
        %6302 = vmatpush1.msra.mxu0 0.0
        %6303 = vmatprep.subr.mxu0 0.0
        %6304 = vmatpush1.msra.mxu0 0.0
        %6305 = vmatprep.subr.mxu0 0.0
        %6306 = vmatpush1.msra.mxu0 0.0
        %6307 = vmatprep.subr.mxu0 0.0
        %6308 = vmatpush1.msra.mxu0 0.0
        %6309 = vmatprep.subr.mxu0 0.0
        %6310 = vmatpush1.msra.mxu0 0.0
        %6311 = vmatprep.subr.mxu0 0.0
        %6312 = vmatpush1.msra.mxu0 0.0
        %6313 = vmatprep.subr.mxu0 0.0
        %6314 = vmatpush1.msra.mxu0 0.0
        %6315 = vmatprep.subr.mxu0 0.0
        %6316 = vmatpush1.msra.mxu0 0.0
        %6317 = vmatprep.subr.mxu0 0.0
        %6318 = vmatpush1.msra.mxu0 0.0
        %6319 = vmatprep.subr.mxu0 0.0
        %6320 = vmatpush1.msra.mxu0 0.0
        %6321 = vmatprep.subr.mxu0 0.0
        %6322 = vmatpush1.msra.mxu0 0.0
        %6323 = vmatprep.subr.mxu0 0.0
        %6324 = vmatpush1.msra.mxu0 0.0
        %6325 = vmatprep.subr.mxu0 0.0
        %6326 = vmatpush1.msra.mxu0 0.0
        %6327 = vmatprep.subr.mxu0 0.0
        %6328 = vmatpush1.msra.mxu0 0.0
        %6329 = vmatprep.subr.mxu0 0.0
        %6330 = vmatpush1.msra.mxu0 0.0
        %6331 = vmatprep.subr.mxu0 0.0
        %6332 = vmatpush1.msra.mxu0 0.0
        %6333 = vmatprep.mubr.f32.mxu0 0.0
        %6334 = vmatmul.mubr.f32.gmra.mrb[0].mxu0 %v6249
        %v6335 = vpop.f32.mrb[0].mxu0
        %v6336 = vadd.f32 0.0, %v6335
        %v6337 = vpop.f32.mrb[0].mxu0
        %6338 = vdwg.mxu0
        %v6339 = vadd.f32 %v6175, %v6336
        %vm6340 = vcmp.eq.s32.totalorder %v5678, 4
        %v6341 = vsel %vm6340, 1, 0
        %v6342 = vcvt.s32.f32 %v6341
        %v6344 = vsel %vm5683, %v6342, 0
        %6346 = vmatprep.subr.mxu0 0.0
        %6347 = vmatpush1.msra.mxu0 %v5675
        %6348 = vmatprep.subr.mxu0 0.0
        %6349 = vmatpush1.msra.mxu0 %v5689
        %6350 = vmatprep.subr.mxu0 0.0
        %6351 = vmatpush1.msra.mxu0 0.0
        %6352 = vmatprep.subr.mxu0 0.0
        %6353 = vmatpush1.msra.mxu0 0.0
        %6354 = vmatprep.subr.mxu0 0.0
        %6355 = vmatpush1.msra.mxu0 0.0
        %6356 = vmatprep.subr.mxu0 0.0
        %6357 = vmatpush1.msra.mxu0 0.0
        %6358 = vmatprep.subr.mxu0 0.0
        %6359 = vmatpush1.msra.mxu0 0.0
        %6360 = vmatprep.subr.mxu0 0.0
        %6361 = vmatpush1.msra.mxu0 0.0
        %6362 = vmatprep.subr.mxu0 0.0
        %6363 = vmatpush1.msra.mxu0 0.0
        %6364 = vmatprep.subr.mxu0 0.0
        %6365 = vmatpush1.msra.mxu0 0.0
        %6366 = vmatprep.subr.mxu0 0.0
        %6367 = vmatpush1.msra.mxu0 0.0
        %6368 = vmatprep.subr.mxu0 0.0
        %6369 = vmatpush1.msra.mxu0 0.0
        %6370 = vmatprep.subr.mxu0 0.0
        %6371 = vmatpush1.msra.mxu0 0.0
        %6372 = vmatprep.subr.mxu0 0.0
        %6373 = vmatpush1.msra.mxu0 0.0
        %6374 = vmatprep.subr.mxu0 0.0
        %6375 = vmatpush1.msra.mxu0 0.0
        %6376 = vmatprep.subr.mxu0 0.0
        %6377 = vmatpush1.msra.mxu0 0.0
        %6378 = vmatprep.subr.mxu0 0.0
        %6379 = vmatpush1.msra.mxu0 0.0
        %6380 = vmatprep.subr.mxu0 0.0
        %6381 = vmatpush1.msra.mxu0 0.0
        %6382 = vmatprep.subr.mxu0 0.0
        %6383 = vmatpush1.msra.mxu0 0.0
        %6384 = vmatprep.subr.mxu0 0.0
        %6385 = vmatpush1.msra.mxu0 0.0
        %6386 = vmatprep.subr.mxu0 0.0
        %6387 = vmatpush1.msra.mxu0 0.0
        %6388 = vmatprep.subr.mxu0 0.0
        %6389 = vmatpush1.msra.mxu0 0.0
        %6390 = vmatprep.subr.mxu0 0.0
        %6391 = vmatpush1.msra.mxu0 0.0
        %6392 = vmatprep.subr.mxu0 0.0
        %6393 = vmatpush1.msra.mxu0 0.0
        %6394 = vmatprep.subr.mxu0 0.0
        %6395 = vmatpush1.msra.mxu0 0.0
        %6396 = vmatprep.subr.mxu0 0.0
        %6397 = vmatpush1.msra.mxu0 0.0
        %6398 = vmatprep.subr.mxu0 0.0
        %6399 = vmatpush1.msra.mxu0 0.0
        %6400 = vmatprep.subr.mxu0 0.0
        %6401 = vmatpush1.msra.mxu0 0.0
        %6402 = vmatprep.subr.mxu0 0.0
        %6403 = vmatpush1.msra.mxu0 0.0
        %6404 = vmatprep.subr.mxu0 0.0
        %6405 = vmatpush1.msra.mxu0 0.0
        %6406 = vmatprep.subr.mxu0 0.0
        %6407 = vmatpush1.msra.mxu0 0.0
        %6408 = vmatprep.subr.mxu0 0.0
        %6409 = vmatpush1.msra.mxu0 0.0
        %6410 = vmatprep.mubr.f32.mxu0 0.0
        %6411 = vmatmul.mubr.f32.gmra.mrb[0].mxu0 %v6344
        %v6412 = vpop.f32.mrb[0].mxu0
        %v6413 = vadd.f32 0.0, %v6412
        %v6414 = vpop.f32.mrb[0].mxu0
        %6415 = vdwg.mxu0
        %s6416 = scalar_lea.vmem [#allocation5], 512
        %v6417 = vld [vmem:[%s6416] sm:$0xff]
        %v6418 = vld [vmem:[%s6416 + $0x8] sm:$0xff]
        %v6419 = vld [vmem:[%s6416 + $0x10] sm:$0xff]
        %v6420 = vld [vmem:[%s6416 + $0x18] sm:$0xff]
        %v6421 = vld [vmem:[%s6416 + $0x20] sm:$0xff]
        %v6422 = vld [vmem:[%s6416 + $0x28] sm:$0xff]
        %v6423 = vld [vmem:[%s6416 + $0x30] sm:$0xff]
        %v6424 = vld [vmem:[%s6416 + $0x38] sm:$0xff]
        %v6425 = vld [vmem:[%s6416 + $0x40] sm:$0xff]
        %v6426 = vld [vmem:[%s6416 + $0x48] sm:$0xff]
        %v6427 = vld [vmem:[%s6416 + $0x50] sm:$0xff]
        %v6428 = vld [vmem:[%s6416 + $0x58] sm:$0xff]
        %v6429 = vld [vmem:[%s6416 + $0x60] sm:$0xff]
        %v6430 = vld [vmem:[%s6416 + $0x68] sm:$0xff]
        %v6431 = vld [vmem:[%s6416 + $0x70] sm:$0xff]
        %v6432 = vld [vmem:[%s6416 + $0x78] sm:$0xff]
        %6433 = vmatprep.subr.mxu0 0.0
        %6434 = vmatpush1.msra.mxu0 %v6417
        %6435 = vmatprep.subr.mxu0 0.0
        %6436 = vmatpush1.msra.mxu0 %v6418
        %6437 = vmatprep.subr.mxu0 0.0
        %6438 = vmatpush1.msra.mxu0 %v6419
        %6439 = vmatprep.subr.mxu0 0.0
        %6440 = vmatpush1.msra.mxu0 %v6420
        %6441 = vmatprep.subr.mxu0 0.0
        %6442 = vmatpush1.msra.mxu0 %v6421
        %6443 = vmatprep.subr.mxu0 0.0
        %6444 = vmatpush1.msra.mxu0 %v6422
        %6445 = vmatprep.subr.mxu0 0.0
        %6446 = vmatpush1.msra.mxu0 %v6423
        %6447 = vmatprep.subr.mxu0 0.0
        %6448 = vmatpush1.msra.mxu0 %v6424
        %6449 = vmatprep.subr.mxu0 0.0
        %6450 = vmatpush1.msra.mxu0 %v6425
        %6451 = vmatprep.subr.mxu0 0.0
        %6452 = vmatpush1.msra.mxu0 %v6426
        %6453 = vmatprep.subr.mxu0 0.0
        %6454 = vmatpush1.msra.mxu0 %v6427
        %6455 = vmatprep.subr.mxu0 0.0
        %6456 = vmatpush1.msra.mxu0 %v6428
        %6457 = vmatprep.subr.mxu0 0.0
        %6458 = vmatpush1.msra.mxu0 %v6429
        %6459 = vmatprep.subr.mxu0 0.0
        %6460 = vmatpush1.msra.mxu0 %v6430
        %6461 = vmatprep.subr.mxu0 0.0
        %6462 = vmatpush1.msra.mxu0 %v6431
        %6463 = vmatprep.subr.mxu0 0.0
        %6464 = vmatpush1.msra.mxu0 %v6432
        %6465 = vmatprep.subr.mxu0 0.0
        %6466 = vmatpush1.msra.mxu0 0.0
        %6467 = vmatprep.subr.mxu0 0.0
        %6468 = vmatpush1.msra.mxu0 0.0
        %6469 = vmatprep.subr.mxu0 0.0
        %6470 = vmatpush1.msra.mxu0 0.0
        %6471 = vmatprep.subr.mxu0 0.0
        %6472 = vmatpush1.msra.mxu0 0.0
        %6473 = vmatprep.subr.mxu0 0.0
        %6474 = vmatpush1.msra.mxu0 0.0
        %6475 = vmatprep.subr.mxu0 0.0
        %6476 = vmatpush1.msra.mxu0 0.0
        %6477 = vmatprep.subr.mxu0 0.0
        %6478 = vmatpush1.msra.mxu0 0.0
        %6479 = vmatprep.subr.mxu0 0.0
        %6480 = vmatpush1.msra.mxu0 0.0
        %6481 = vmatprep.subr.mxu0 0.0
        %6482 = vmatpush1.msra.mxu0 0.0
        %6483 = vmatprep.subr.mxu0 0.0
        %6484 = vmatpush1.msra.mxu0 0.0
        %6485 = vmatprep.subr.mxu0 0.0
        %6486 = vmatpush1.msra.mxu0 0.0
        %6487 = vmatprep.subr.mxu0 0.0
        %6488 = vmatpush1.msra.mxu0 0.0
        %6489 = vmatprep.subr.mxu0 0.0
        %6490 = vmatpush1.msra.mxu0 0.0
        %6491 = vmatprep.subr.mxu0 0.0
        %6492 = vmatpush1.msra.mxu0 0.0
        %6493 = vmatprep.subr.mxu0 0.0
        %6494 = vmatpush1.msra.mxu0 0.0
        %6495 = vmatprep.subr.mxu0 0.0
        %6496 = vmatpush1.msra.mxu0 0.0
        %6497 = vmatprep.mubr.f32.mxu0 0.0
        %6498 = vmatmul.mubr.f32.gmra.mrb[0].mxu0 %v6413
        %v6499 = vpop.f32.mrb[0].mxu0
        %v6500 = vadd.f32 0.0, %v6499
        %v6501 = vpop.f32.mrb[0].mxu0
        %6502 = vdwg.mxu0
        %v6503 = vadd.f32 %v6339, %v6500
        %vm6504 = vcmp.eq.s32.totalorder %v5678, 5
        %v6505 = vsel %vm6504, 1, 0
        %v6506 = vcvt.s32.f32 %v6505
        %v6508 = vsel %vm5683, %v6506, 0
        %6510 = vmatprep.subr.mxu0 0.0
        %6511 = vmatpush1.msra.mxu0 %v5675
        %6512 = vmatprep.subr.mxu0 0.0
        %6513 = vmatpush1.msra.mxu0 %v5689
        %6514 = vmatprep.subr.mxu0 0.0
        %6515 = vmatpush1.msra.mxu0 0.0
        %6516 = vmatprep.subr.mxu0 0.0
        %6517 = vmatpush1.msra.mxu0 0.0
        %6518 = vmatprep.subr.mxu0 0.0
        %6519 = vmatpush1.msra.mxu0 0.0
        %6520 = vmatprep.subr.mxu0 0.0
        %6521 = vmatpush1.msra.mxu0 0.0
        %6522 = vmatprep.subr.mxu0 0.0
        %6523 = vmatpush1.msra.mxu0 0.0
        %6524 = vmatprep.subr.mxu0 0.0
        %6525 = vmatpush1.msra.mxu0 0.0
        %6526 = vmatprep.subr.mxu0 0.0
        %6527 = vmatpush1.msra.mxu0 0.0
        %6528 = vmatprep.subr.mxu0 0.0
        %6529 = vmatpush1.msra.mxu0 0.0
        %6530 = vmatprep.subr.mxu0 0.0
        %6531 = vmatpush1.msra.mxu0 0.0
        %6532 = vmatprep.subr.mxu0 0.0
        %6533 = vmatpush1.msra.mxu0 0.0
        %6534 = vmatprep.subr.mxu0 0.0
        %6535 = vmatpush1.msra.mxu0 0.0
        %6536 = vmatprep.subr.mxu0 0.0
        %6537 = vmatpush1.msra.mxu0 0.0
        %6538 = vmatprep.subr.mxu0 0.0
        %6539 = vmatpush1.msra.mxu0 0.0
        %6540 = vmatprep.subr.mxu0 0.0
        %6541 = vmatpush1.msra.mxu0 0.0
        %6542 = vmatprep.subr.mxu0 0.0
        %6543 = vmatpush1.msra.mxu0 0.0
        %6544 = vmatprep.subr.mxu0 0.0
        %6545 = vmatpush1.msra.mxu0 0.0
        %6546 = vmatprep.subr.mxu0 0.0
        %6547 = vmatpush1.msra.mxu0 0.0
        %6548 = vmatprep.subr.mxu0 0.0
        %6549 = vmatpush1.msra.mxu0 0.0
        %6550 = vmatprep.subr.mxu0 0.0
        %6551 = vmatpush1.msra.mxu0 0.0
        %6552 = vmatprep.subr.mxu0 0.0
        %6553 = vmatpush1.msra.mxu0 0.0
        %6554 = vmatprep.subr.mxu0 0.0
        %6555 = vmatpush1.msra.mxu0 0.0
        %6556 = vmatprep.subr.mxu0 0.0
        %6557 = vmatpush1.msra.mxu0 0.0
        %6558 = vmatprep.subr.mxu0 0.0
        %6559 = vmatpush1.msra.mxu0 0.0
        %6560 = vmatprep.subr.mxu0 0.0
        %6561 = vmatpush1.msra.mxu0 0.0
        %6562 = vmatprep.subr.mxu0 0.0
        %6563 = vmatpush1.msra.mxu0 0.0
        %6564 = vmatprep.subr.mxu0 0.0
        %6565 = vmatpush1.msra.mxu0 0.0
        %6566 = vmatprep.subr.mxu0 0.0
        %6567 = vmatpush1.msra.mxu0 0.0
        %6568 = vmatprep.subr.mxu0 0.0
        %6569 = vmatpush1.msra.mxu0 0.0
        %6570 = vmatprep.subr.mxu0 0.0
        %6571 = vmatpush1.msra.mxu0 0.0
        %6572 = vmatprep.subr.mxu0 0.0
        %6573 = vmatpush1.msra.mxu0 0.0
        %6574 = vmatprep.mubr.f32.mxu0 0.0
        %6575 = vmatmul.mubr.f32.gmra.mrb[0].mxu0 %v6508
        %v6576 = vpop.f32.mrb[0].mxu0
        %v6577 = vadd.f32 0.0, %v6576
        %v6578 = vpop.f32.mrb[0].mxu0
        %6579 = vdwg.mxu0
        %s6580 = scalar_lea.vmem [#allocation5], 640
        %v6581 = vld [vmem:[%s6580] sm:$0xff]
        %v6582 = vld [vmem:[%s6580 + $0x8] sm:$0xff]
        %v6583 = vld [vmem:[%s6580 + $0x10] sm:$0xff]
        %v6584 = vld [vmem:[%s6580 + $0x18] sm:$0xff]
        %v6585 = vld [vmem:[%s6580 + $0x20] sm:$0xff]
        %v6586 = vld [vmem:[%s6580 + $0x28] sm:$0xff]
        %v6587 = vld [vmem:[%s6580 + $0x30] sm:$0xff]
        %v6588 = vld [vmem:[%s6580 + $0x38] sm:$0xff]
        %v6589 = vld [vmem:[%s6580 + $0x40] sm:$0xff]
        %v6590 = vld [vmem:[%s6580 + $0x48] sm:$0xff]
        %v6591 = vld [vmem:[%s6580 + $0x50] sm:$0xff]
        %v6592 = vld [vmem:[%s6580 + $0x58] sm:$0xff]
        %v6593 = vld [vmem:[%s6580 + $0x60] sm:$0xff]
        %v6594 = vld [vmem:[%s6580 + $0x68] sm:$0xff]
        %v6595 = vld [vmem:[%s6580 + $0x70] sm:$0xff]
        %v6596 = vld [vmem:[%s6580 + $0x78] sm:$0xff]
        %6597 = vmatprep.subr.mxu0 0.0
        %6598 = vmatpush1.msra.mxu0 %v6581
        %6599 = vmatprep.subr.mxu0 0.0
        %6600 = vmatpush1.msra.mxu0 %v6582
        %6601 = vmatprep.subr.mxu0 0.0
        %6602 = vmatpush1.msra.mxu0 %v6583
        %6603 = vmatprep.subr.mxu0 0.0
        %6604 = vmatpush1.msra.mxu0 %v6584
        %6605 = vmatprep.subr.mxu0 0.0
        %6606 = vmatpush1.msra.mxu0 %v6585
        %6607 = vmatprep.subr.mxu0 0.0
        %6608 = vmatpush1.msra.mxu0 %v6586
        %6609 = vmatprep.subr.mxu0 0.0
        %6610 = vmatpush1.msra.mxu0 %v6587
        %6611 = vmatprep.subr.mxu0 0.0
        %6612 = vmatpush1.msra.mxu0 %v6588
        %6613 = vmatprep.subr.mxu0 0.0
        %6614 = vmatpush1.msra.mxu0 %v6589
        %6615 = vmatprep.subr.mxu0 0.0
        %6616 = vmatpush1.msra.mxu0 %v6590
        %6617 = vmatprep.subr.mxu0 0.0
        %6618 = vmatpush1.msra.mxu0 %v6591
        %6619 = vmatprep.subr.mxu0 0.0
        %6620 = vmatpush1.msra.mxu0 %v6592
        %6621 = vmatprep.subr.mxu0 0.0
        %6622 = vmatpush1.msra.mxu0 %v6593
        %6623 = vmatprep.subr.mxu0 0.0
        %6624 = vmatpush1.msra.mxu0 %v6594
        %6625 = vmatprep.subr.mxu0 0.0
        %6626 = vmatpush1.msra.mxu0 %v6595
        %6627 = vmatprep.subr.mxu0 0.0
        %6628 = vmatpush1.msra.mxu0 %v6596
        %6629 = vmatprep.subr.mxu0 0.0
        %6630 = vmatpush1.msra.mxu0 0.0
        %6631 = vmatprep.subr.mxu0 0.0
        %6632 = vmatpush1.msra.mxu0 0.0
        %6633 = vmatprep.subr.mxu0 0.0
        %6634 = vmatpush1.msra.mxu0 0.0
        %6635 = vmatprep.subr.mxu0 0.0
        %6636 = vmatpush1.msra.mxu0 0.0
        %6637 = vmatprep.subr.mxu0 0.0
        %6638 = vmatpush1.msra.mxu0 0.0
        %6639 = vmatprep.subr.mxu0 0.0
        %6640 = vmatpush1.msra.mxu0 0.0
        %6641 = vmatprep.subr.mxu0 0.0
        %6642 = vmatpush1.msra.mxu0 0.0
        %6643 = vmatprep.subr.mxu0 0.0
        %6644 = vmatpush1.msra.mxu0 0.0
        %6645 = vmatprep.subr.mxu0 0.0
        %6646 = vmatpush1.msra.mxu0 0.0
        %6647 = vmatprep.subr.mxu0 0.0
        %6648 = vmatpush1.msra.mxu0 0.0
        %6649 = vmatprep.subr.mxu0 0.0
        %6650 = vmatpush1.msra.mxu0 0.0
        %6651 = vmatprep.subr.mxu0 0.0
        %6652 = vmatpush1.msra.mxu0 0.0
        %6653 = vmatprep.subr.mxu0 0.0
        %6654 = vmatpush1.msra.mxu0 0.0
        %6655 = vmatprep.subr.mxu0 0.0
        %6656 = vmatpush1.msra.mxu0 0.0
        %6657 = vmatprep.subr.mxu0 0.0
        %6658 = vmatpush1.msra.mxu0 0.0
        %6659 = vmatprep.subr.mxu0 0.0
        %6660 = vmatpush1.msra.mxu0 0.0
        %6661 = vmatprep.mubr.f32.mxu0 0.0
        %6662 = vmatmul.mubr.f32.gmra.mrb[0].mxu0 %v6577
        %v6663 = vpop.f32.mrb[0].mxu0
        %v6664 = vadd.f32 0.0, %v6663
        %v6665 = vpop.f32.mrb[0].mxu0
        %6666 = vdwg.mxu0
        %v6667 = vadd.f32 %v6503, %v6664
        %vm6668 = vcmp.eq.s32.totalorder %v5678, 6
        %v6669 = vsel %vm6668, 1, 0
        %v6670 = vcvt.s32.f32 %v6669
        %v6672 = vsel %vm5683, %v6670, 0
        %6674 = vmatprep.subr.mxu0 0.0
        %6675 = vmatpush1.msra.mxu0 %v5675
        %6676 = vmatprep.subr.mxu0 0.0
        %6677 = vmatpush1.msra.mxu0 %v5689
        %6678 = vmatprep.subr.mxu0 0.0
        %6679 = vmatpush1.msra.mxu0 0.0
        %6680 = vmatprep.subr.mxu0 0.0
        %6681 = vmatpush1.msra.mxu0 0.0
        %6682 = vmatprep.subr.mxu0 0.0
        %6683 = vmatpush1.msra.mxu0 0.0
        %6684 = vmatprep.subr.mxu0 0.0
        %6685 = vmatpush1.msra.mxu0 0.0
        %6686 = vmatprep.subr.mxu0 0.0
        %6687 = vmatpush1.msra.mxu0 0.0
        %6688 = vmatprep.subr.mxu0 0.0
        %6689 = vmatpush1.msra.mxu0 0.0
        %6690 = vmatprep.subr.mxu0 0.0
        %6691 = vmatpush1.msra.mxu0 0.0
        %6692 = vmatprep.subr.mxu0 0.0
        %6693 = vmatpush1.msra.mxu0 0.0
        %6694 = vmatprep.subr.mxu0 0.0
        %6695 = vmatpush1.msra.mxu0 0.0
        %6696 = vmatprep.subr.mxu0 0.0
        %6697 = vmatpush1.msra.mxu0 0.0
        %6698 = vmatprep.subr.mxu0 0.0
        %6699 = vmatpush1.msra.mxu0 0.0
        %6700 = vmatprep.subr.mxu0 0.0
        %6701 = vmatpush1.msra.mxu0 0.0
        %6702 = vmatprep.subr.mxu0 0.0
        %6703 = vmatpush1.msra.mxu0 0.0
        %6704 = vmatprep.subr.mxu0 0.0
        %6705 = vmatpush1.msra.mxu0 0.0
        %6706 = vmatprep.subr.mxu0 0.0
        %6707 = vmatpush1.msra.mxu0 0.0
        %6708 = vmatprep.subr.mxu0 0.0
        %6709 = vmatpush1.msra.mxu0 0.0
        %6710 = vmatprep.subr.mxu0 0.0
        %6711 = vmatpush1.msra.mxu0 0.0
        %6712 = vmatprep.subr.mxu0 0.0
        %6713 = vmatpush1.msra.mxu0 0.0
        %6714 = vmatprep.subr.mxu0 0.0
        %6715 = vmatpush1.msra.mxu0 0.0
        %6716 = vmatprep.subr.mxu0 0.0
        %6717 = vmatpush1.msra.mxu0 0.0
        %6718 = vmatprep.subr.mxu0 0.0
        %6719 = vmatpush1.msra.mxu0 0.0
        %6720 = vmatprep.subr.mxu0 0.0
        %6721 = vmatpush1.msra.mxu0 0.0
        %6722 = vmatprep.subr.mxu0 0.0
        %6723 = vmatpush1.msra.mxu0 0.0
        %6724 = vmatprep.subr.mxu0 0.0
        %6725 = vmatpush1.msra.mxu0 0.0
        %6726 = vmatprep.subr.mxu0 0.0
        %6727 = vmatpush1.msra.mxu0 0.0
        %6728 = vmatprep.subr.mxu0 0.0
        %6729 = vmatpush1.msra.mxu0 0.0
        %6730 = vmatprep.subr.mxu0 0.0
        %6731 = vmatpush1.msra.mxu0 0.0
        %6732 = vmatprep.subr.mxu0 0.0
        %6733 = vmatpush1.msra.mxu0 0.0
        %6734 = vmatprep.subr.mxu0 0.0
        %6735 = vmatpush1.msra.mxu0 0.0
        %6736 = vmatprep.subr.mxu0 0.0
        %6737 = vmatpush1.msra.mxu0 0.0
        %6738 = vmatprep.mubr.f32.mxu0 0.0
        %6739 = vmatmul.mubr.f32.gmra.mrb[0].mxu0 %v6672
        %v6740 = vpop.f32.mrb[0].mxu0
        %v6741 = vadd.f32 0.0, %v6740
        %v6742 = vpop.f32.mrb[0].mxu0
        %6743 = vdwg.mxu0
        %s6744 = scalar_lea.vmem [#allocation5], 768
        %v6745 = vld [vmem:[%s6744] sm:$0xff]
        %v6746 = vld [vmem:[%s6744 + $0x8] sm:$0xff]
        %v6747 = vld [vmem:[%s6744 + $0x10] sm:$0xff]
        %v6748 = vld [vmem:[%s6744 + $0x18] sm:$0xff]
        %v6749 = vld [vmem:[%s6744 + $0x20] sm:$0xff]
        %v6750 = vld [vmem:[%s6744 + $0x28] sm:$0xff]
        %v6751 = vld [vmem:[%s6744 + $0x30] sm:$0xff]
        %v6752 = vld [vmem:[%s6744 + $0x38] sm:$0xff]
        %v6753 = vld [vmem:[%s6744 + $0x40] sm:$0xff]
        %v6754 = vld [vmem:[%s6744 + $0x48] sm:$0xff]
        %v6755 = vld [vmem:[%s6744 + $0x50] sm:$0xff]
        %v6756 = vld [vmem:[%s6744 + $0x58] sm:$0xff]
        %v6757 = vld [vmem:[%s6744 + $0x60] sm:$0xff]
        %v6758 = vld [vmem:[%s6744 + $0x68] sm:$0xff]
        %v6759 = vld [vmem:[%s6744 + $0x70] sm:$0xff]
        %v6760 = vld [vmem:[%s6744 + $0x78] sm:$0xff]
        %6761 = vmatprep.subr.mxu0 0.0
        %6762 = vmatpush1.msra.mxu0 %v6745
        %6763 = vmatprep.subr.mxu0 0.0
        %6764 = vmatpush1.msra.mxu0 %v6746
        %6765 = vmatprep.subr.mxu0 0.0
        %6766 = vmatpush1.msra.mxu0 %v6747
        %6767 = vmatprep.subr.mxu0 0.0
        %6768 = vmatpush1.msra.mxu0 %v6748
        %6769 = vmatprep.subr.mxu0 0.0
        %6770 = vmatpush1.msra.mxu0 %v6749
        %6771 = vmatprep.subr.mxu0 0.0
        %6772 = vmatpush1.msra.mxu0 %v6750
        %6773 = vmatprep.subr.mxu0 0.0
        %6774 = vmatpush1.msra.mxu0 %v6751
        %6775 = vmatprep.subr.mxu0 0.0
        %6776 = vmatpush1.msra.mxu0 %v6752
        %6777 = vmatprep.subr.mxu0 0.0
        %6778 = vmatpush1.msra.mxu0 %v6753
        %6779 = vmatprep.subr.mxu0 0.0
        %6780 = vmatpush1.msra.mxu0 %v6754
        %6781 = vmatprep.subr.mxu0 0.0
        %6782 = vmatpush1.msra.mxu0 %v6755
        %6783 = vmatprep.subr.mxu0 0.0
        %6784 = vmatpush1.msra.mxu0 %v6756
        %6785 = vmatprep.subr.mxu0 0.0
        %6786 = vmatpush1.msra.mxu0 %v6757
        %6787 = vmatprep.subr.mxu0 0.0
        %6788 = vmatpush1.msra.mxu0 %v6758
        %6789 = vmatprep.subr.mxu0 0.0
        %6790 = vmatpush1.msra.mxu0 %v6759
        %6791 = vmatprep.subr.mxu0 0.0
        %6792 = vmatpush1.msra.mxu0 %v6760
        %6793 = vmatprep.subr.mxu0 0.0
        %6794 = vmatpush1.msra.mxu0 0.0
        %6795 = vmatprep.subr.mxu0 0.0
        %6796 = vmatpush1.msra.mxu0 0.0
        %6797 = vmatprep.subr.mxu0 0.0
        %6798 = vmatpush1.msra.mxu0 0.0
        %6799 = vmatprep.subr.mxu0 0.0
        %6800 = vmatpush1.msra.mxu0 0.0
        %6801 = vmatprep.subr.mxu0 0.0
        %6802 = vmatpush1.msra.mxu0 0.0
        %6803 = vmatprep.subr.mxu0 0.0
        %6804 = vmatpush1.msra.mxu0 0.0
        %6805 = vmatprep.subr.mxu0 0.0
        %6806 = vmatpush1.msra.mxu0 0.0
        %6807 = vmatprep.subr.mxu0 0.0
        %6808 = vmatpush1.msra.mxu0 0.0
        %6809 = vmatprep.subr.mxu0 0.0
        %6810 = vmatpush1.msra.mxu0 0.0
        %6811 = vmatprep.subr.mxu0 0.0
        %6812 = vmatpush1.msra.mxu0 0.0
        %6813 = vmatprep.subr.mxu0 0.0
        %6814 = vmatpush1.msra.mxu0 0.0
        %6815 = vmatprep.subr.mxu0 0.0
        %6816 = vmatpush1.msra.mxu0 0.0
        %6817 = vmatprep.subr.mxu0 0.0
        %6818 = vmatpush1.msra.mxu0 0.0
        %6819 = vmatprep.subr.mxu0 0.0
        %6820 = vmatpush1.msra.mxu0 0.0
        %6821 = vmatprep.subr.mxu0 0.0
        %6822 = vmatpush1.msra.mxu0 0.0
        %6823 = vmatprep.subr.mxu0 0.0
        %6824 = vmatpush1.msra.mxu0 0.0
        %6825 = vmatprep.mubr.f32.mxu0 0.0
        %6826 = vmatmul.mubr.f32.gmra.mrb[0].mxu0 %v6741
        %v6827 = vpop.f32.mrb[0].mxu0
        %v6828 = vadd.f32 0.0, %v6827
        %v6829 = vpop.f32.mrb[0].mxu0
        %6830 = vdwg.mxu0
        %v6831 = vadd.f32 %v6667, %v6828
        %vm6832 = vcmp.eq.s32.totalorder %v5678, 7
        %v6833 = vsel %vm6832, 1, 0
        %v6834 = vcvt.s32.f32 %v6833
        %v6836 = vsel %vm5683, %v6834, 0
        %6838 = vmatprep.subr.mxu0 0.0
        %6839 = vmatpush1.msra.mxu0 %v5675
        %6840 = vmatprep.subr.mxu0 0.0
        %6841 = vmatpush1.msra.mxu0 %v5689
        %6842 = vmatprep.subr.mxu0 0.0
        %6843 = vmatpush1.msra.mxu0 0.0
        %6844 = vmatprep.subr.mxu0 0.0
        %6845 = vmatpush1.msra.mxu0 0.0
        %6846 = vmatprep.subr.mxu0 0.0
        %6847 = vmatpush1.msra.mxu0 0.0
        %6848 = vmatprep.subr.mxu0 0.0
        %6849 = vmatpush1.msra.mxu0 0.0
        %6850 = vmatprep.subr.mxu0 0.0
        %6851 = vmatpush1.msra.mxu0 0.0
        %6852 = vmatprep.subr.mxu0 0.0
        %6853 = vmatpush1.msra.mxu0 0.0
        %6854 = vmatprep.subr.mxu0 0.0
        %6855 = vmatpush1.msra.mxu0 0.0
        %6856 = vmatprep.subr.mxu0 0.0
        %6857 = vmatpush1.msra.mxu0 0.0
        %6858 = vmatprep.subr.mxu0 0.0
        %6859 = vmatpush1.msra.mxu0 0.0
        %6860 = vmatprep.subr.mxu0 0.0
        %6861 = vmatpush1.msra.mxu0 0.0
        %6862 = vmatprep.subr.mxu0 0.0
        %6863 = vmatpush1.msra.mxu0 0.0
        %6864 = vmatprep.subr.mxu0 0.0
        %6865 = vmatpush1.msra.mxu0 0.0
        %6866 = vmatprep.subr.mxu0 0.0
        %6867 = vmatpush1.msra.mxu0 0.0
        %6868 = vmatprep.subr.mxu0 0.0
        %6869 = vmatpush1.msra.mxu0 0.0
        %6870 = vmatprep.subr.mxu0 0.0
        %6871 = vmatpush1.msra.mxu0 0.0
        %6872 = vmatprep.subr.mxu0 0.0
        %6873 = vmatpush1.msra.mxu0 0.0
        %6874 = vmatprep.subr.mxu0 0.0
        %6875 = vmatpush1.msra.mxu0 0.0
        %6876 = vmatprep.subr.mxu0 0.0
        %6877 = vmatpush1.msra.mxu0 0.0
        %6878 = vmatprep.subr.mxu0 0.0
        %6879 = vmatpush1.msra.mxu0 0.0
        %6880 = vmatprep.subr.mxu0 0.0
        %6881 = vmatpush1.msra.mxu0 0.0
        %6882 = vmatprep.subr.mxu0 0.0
        %6883 = vmatpush1.msra.mxu0 0.0
        %6884 = vmatprep.subr.mxu0 0.0
        %6885 = vmatpush1.msra.mxu0 0.0
        %6886 = vmatprep.subr.mxu0 0.0
        %6887 = vmatpush1.msra.mxu0 0.0
        %6888 = vmatprep.subr.mxu0 0.0
        %6889 = vmatpush1.msra.mxu0 0.0
        %6890 = vmatprep.subr.mxu0 0.0
        %6891 = vmatpush1.msra.mxu0 0.0
        %6892 = vmatprep.subr.mxu0 0.0
        %6893 = vmatpush1.msra.mxu0 0.0
        %6894 = vmatprep.subr.mxu0 0.0
        %6895 = vmatpush1.msra.mxu0 0.0
        %6896 = vmatprep.subr.mxu0 0.0
        %6897 = vmatpush1.msra.mxu0 0.0
        %6898 = vmatprep.subr.mxu0 0.0
        %6899 = vmatpush1.msra.mxu0 0.0
        %6900 = vmatprep.subr.mxu0 0.0
        %6901 = vmatpush1.msra.mxu0 0.0
        %6902 = vmatprep.mubr.f32.mxu0 0.0
        %6903 = vmatmul.mubr.f32.gmra.mrb[0].mxu0 %v6836
        %v6904 = vpop.f32.mrb[0].mxu0
        %v6905 = vadd.f32 0.0, %v6904
        %v6906 = vpop.f32.mrb[0].mxu0
        %6907 = vdwg.mxu0
        %s6908 = scalar_lea.vmem [#allocation5], 896
        %v6909 = vld [vmem:[%s6908] sm:$0xff]
        %v6910 = vld [vmem:[%s6908 + $0x8] sm:$0xff]
        %v6911 = vld [vmem:[%s6908 + $0x10] sm:$0xff]
        %v6912 = vld [vmem:[%s6908 + $0x18] sm:$0xff]
        %v6913 = vld [vmem:[%s6908 + $0x20] sm:$0xff]
        %v6914 = vld [vmem:[%s6908 + $0x28] sm:$0xff]
        %v6915 = vld [vmem:[%s6908 + $0x30] sm:$0xff]
        %v6916 = vld [vmem:[%s6908 + $0x38] sm:$0xff]
        %v6917 = vld [vmem:[%s6908 + $0x40] sm:$0xff]
        %v6918 = vld [vmem:[%s6908 + $0x48] sm:$0xff]
        %v6919 = vld [vmem:[%s6908 + $0x50] sm:$0xff]
        %v6920 = vld [vmem:[%s6908 + $0x58] sm:$0xff]
        %v6921 = vld [vmem:[%s6908 + $0x60] sm:$0xff]
        %v6922 = vld [vmem:[%s6908 + $0x68] sm:$0xff]
        %v6923 = vld [vmem:[%s6908 + $0x70] sm:$0xff]
        %v6924 = vld [vmem:[%s6908 + $0x78] sm:$0xff]
        %6925 = vmatprep.subr.mxu0 0.0
        %6926 = vmatpush1.msra.mxu0 %v6909
        %6927 = vmatprep.subr.mxu0 0.0
        %6928 = vmatpush1.msra.mxu0 %v6910
        %6929 = vmatprep.subr.mxu0 0.0
        %6930 = vmatpush1.msra.mxu0 %v6911
        %6931 = vmatprep.subr.mxu0 0.0
        %6932 = vmatpush1.msra.mxu0 %v6912
        %6933 = vmatprep.subr.mxu0 0.0
        %6934 = vmatpush1.msra.mxu0 %v6913
        %6935 = vmatprep.subr.mxu0 0.0
        %6936 = vmatpush1.msra.mxu0 %v6914
        %6937 = vmatprep.subr.mxu0 0.0
        %6938 = vmatpush1.msra.mxu0 %v6915
        %6939 = vmatprep.subr.mxu0 0.0
        %6940 = vmatpush1.msra.mxu0 %v6916
        %6941 = vmatprep.subr.mxu0 0.0
        %6942 = vmatpush1.msra.mxu0 %v6917
        %6943 = vmatprep.subr.mxu0 0.0
        %6944 = vmatpush1.msra.mxu0 %v6918
        %6945 = vmatprep.subr.mxu0 0.0
        %6946 = vmatpush1.msra.mxu0 %v6919
        %6947 = vmatprep.subr.mxu0 0.0
        %6948 = vmatpush1.msra.mxu0 %v6920
        %6949 = vmatprep.subr.mxu0 0.0
        %6950 = vmatpush1.msra.mxu0 %v6921
        %6951 = vmatprep.subr.mxu0 0.0
        %6952 = vmatpush1.msra.mxu0 %v6922
        %6953 = vmatprep.subr.mxu0 0.0
        %6954 = vmatpush1.msra.mxu0 %v6923
        %6955 = vmatprep.subr.mxu0 0.0
        %6956 = vmatpush1.msra.mxu0 %v6924
        %6957 = vmatprep.subr.mxu0 0.0
        %6958 = vmatpush1.msra.mxu0 0.0
        %6959 = vmatprep.subr.mxu0 0.0
        %6960 = vmatpush1.msra.mxu0 0.0
        %6961 = vmatprep.subr.mxu0 0.0
        %6962 = vmatpush1.msra.mxu0 0.0
        %6963 = vmatprep.subr.mxu0 0.0
        %6964 = vmatpush1.msra.mxu0 0.0
        %6965 = vmatprep.subr.mxu0 0.0
        %6966 = vmatpush1.msra.mxu0 0.0
        %6967 = vmatprep.subr.mxu0 0.0
        %6968 = vmatpush1.msra.mxu0 0.0
        %6969 = vmatprep.subr.mxu0 0.0
        %6970 = vmatpush1.msra.mxu0 0.0
        %6971 = vmatprep.subr.mxu0 0.0
        %6972 = vmatpush1.msra.mxu0 0.0
        %6973 = vmatprep.subr.mxu0 0.0
        %6974 = vmatpush1.msra.mxu0 0.0
        %6975 = vmatprep.subr.mxu0 0.0
        %6976 = vmatpush1.msra.mxu0 0.0
        %6977 = vmatprep.subr.mxu0 0.0
        %6978 = vmatpush1.msra.mxu0 0.0
        %6979 = vmatprep.subr.mxu0 0.0
        %6980 = vmatpush1.msra.mxu0 0.0
        %6981 = vmatprep.subr.mxu0 0.0
        %6982 = vmatpush1.msra.mxu0 0.0
        %6983 = vmatprep.subr.mxu0 0.0
        %6984 = vmatpush1.msra.mxu0 0.0
        %6985 = vmatprep.subr.mxu0 0.0
        %6986 = vmatpush1.msra.mxu0 0.0
        %6987 = vmatprep.subr.mxu0 0.0
        %6988 = vmatpush1.msra.mxu0 0.0
        %6989 = vmatprep.mubr.f32.mxu0 0.0
        %6990 = vmatmul.mubr.f32.gmra.mrb[0].mxu0 %v6905
        %v6991 = vpop.f32.mrb[0].mxu0
        %v6992 = vadd.f32 0.0, %v6991
        %v6993 = vpop.f32.mrb[0].mxu0
        %6994 = vdwg.mxu0
        %v6995 = vadd.f32 %v6831, %v6992
        %vm6996 = vcmp.eq.s32.totalorder %v5678, 8
        %v6997 = vsel %vm6996, 1, 0
        %v6998 = vcvt.s32.f32 %v6997
        %v7000 = vsel %vm5683, %v6998, 0
        %7002 = vmatprep.subr.mxu0 0.0
        %7003 = vmatpush1.msra.mxu0 %v5675
        %7004 = vmatprep.subr.mxu0 0.0
        %7005 = vmatpush1.msra.mxu0 %v5689
        %7006 = vmatprep.subr.mxu0 0.0
        %7007 = vmatpush1.msra.mxu0 0.0
        %7008 = vmatprep.subr.mxu0 0.0
        %7009 = vmatpush1.msra.mxu0 0.0
        %7010 = vmatprep.subr.mxu0 0.0
        %7011 = vmatpush1.msra.mxu0 0.0
        %7012 = vmatprep.subr.mxu0 0.0
        %7013 = vmatpush1.msra.mxu0 0.0
        %7014 = vmatprep.subr.mxu0 0.0
        %7015 = vmatpush1.msra.mxu0 0.0
        %7016 = vmatprep.subr.mxu0 0.0
        %7017 = vmatpush1.msra.mxu0 0.0
        %7018 = vmatprep.subr.mxu0 0.0
        %7019 = vmatpush1.msra.mxu0 0.0
        %7020 = vmatprep.subr.mxu0 0.0
        %7021 = vmatpush1.msra.mxu0 0.0
        %7022 = vmatprep.subr.mxu0 0.0
        %7023 = vmatpush1.msra.mxu0 0.0
        %7024 = vmatprep.subr.mxu0 0.0
        %7025 = vmatpush1.msra.mxu0 0.0
        %7026 = vmatprep.subr.mxu0 0.0
        %7027 = vmatpush1.msra.mxu0 0.0
        %7028 = vmatprep.subr.mxu0 0.0
        %7029 = vmatpush1.msra.mxu0 0.0
        %7030 = vmatprep.subr.mxu0 0.0
        %7031 = vmatpush1.msra.mxu0 0.0
        %7032 = vmatprep.subr.mxu0 0.0
        %7033 = vmatpush1.msra.mxu0 0.0
        %7034 = vmatprep.subr.mxu0 0.0
        %7035 = vmatpush1.msra.mxu0 0.0
        %7036 = vmatprep.subr.mxu0 0.0
        %7037 = vmatpush1.msra.mxu0 0.0
        %7038 = vmatprep.subr.mxu0 0.0
        %7039 = vmatpush1.msra.mxu0 0.0
        %7040 = vmatprep.subr.mxu0 0.0
        %7041 = vmatpush1.msra.mxu0 0.0
        %7042 = vmatprep.subr.mxu0 0.0
        %7043 = vmatpush1.msra.mxu0 0.0
        %7044 = vmatprep.subr.mxu0 0.0
        %7045 = vmatpush1.msra.mxu0 0.0
        %7046 = vmatprep.subr.mxu0 0.0
        %7047 = vmatpush1.msra.mxu0 0.0
        %7048 = vmatprep.subr.mxu0 0.0
        %7049 = vmatpush1.msra.mxu0 0.0
        %7050 = vmatprep.subr.mxu0 0.0
        %7051 = vmatpush1.msra.mxu0 0.0
        %7052 = vmatprep.subr.mxu0 0.0
        %7053 = vmatpush1.msra.mxu0 0.0
        %7054 = vmatprep.subr.mxu0 0.0
        %7055 = vmatpush1.msra.mxu0 0.0
        %7056 = vmatprep.subr.mxu0 0.0
        %7057 = vmatpush1.msra.mxu0 0.0
        %7058 = vmatprep.subr.mxu0 0.0
        %7059 = vmatpush1.msra.mxu0 0.0
        %7060 = vmatprep.subr.mxu0 0.0
        %7061 = vmatpush1.msra.mxu0 0.0
        %7062 = vmatprep.subr.mxu0 0.0
        %7063 = vmatpush1.msra.mxu0 0.0
        %7064 = vmatprep.subr.mxu0 0.0
        %7065 = vmatpush1.msra.mxu0 0.0
        %7066 = vmatprep.mubr.f32.mxu0 0.0
        %7067 = vmatmul.mubr.f32.gmra.mrb[0].mxu0 %v7000
        %v7068 = vpop.f32.mrb[0].mxu0
        %v7069 = vadd.f32 0.0, %v7068
        %v7070 = vpop.f32.mrb[0].mxu0
        %7071 = vdwg.mxu0
        %s7072 = scalar_lea.vmem [#allocation5], 1024
        %v7073 = vld [vmem:[%s7072] sm:$0xff]
        %v7074 = vld [vmem:[%s7072 + $0x8] sm:$0xff]
        %v7075 = vld [vmem:[%s7072 + $0x10] sm:$0xff]
        %v7076 = vld [vmem:[%s7072 + $0x18] sm:$0xff]
        %v7077 = vld [vmem:[%s7072 + $0x20] sm:$0xff]
        %v7078 = vld [vmem:[%s7072 + $0x28] sm:$0xff]
        %v7079 = vld [vmem:[%s7072 + $0x30] sm:$0xff]
        %v7080 = vld [vmem:[%s7072 + $0x38] sm:$0xff]
        %v7081 = vld [vmem:[%s7072 + $0x40] sm:$0xff]
        %v7082 = vld [vmem:[%s7072 + $0x48] sm:$0xff]
        %v7083 = vld [vmem:[%s7072 + $0x50] sm:$0xff]
        %v7084 = vld [vmem:[%s7072 + $0x58] sm:$0xff]
        %v7085 = vld [vmem:[%s7072 + $0x60] sm:$0xff]
        %v7086 = vld [vmem:[%s7072 + $0x68] sm:$0xff]
        %v7087 = vld [vmem:[%s7072 + $0x70] sm:$0xff]
        %v7088 = vld [vmem:[%s7072 + $0x78] sm:$0xff]
        %7089 = vmatprep.subr.mxu0 0.0
        %7090 = vmatpush1.msra.mxu0 %v7073
        %7091 = vmatprep.subr.mxu0 0.0
        %7092 = vmatpush1.msra.mxu0 %v7074
        %7093 = vmatprep.subr.mxu0 0.0
        %7094 = vmatpush1.msra.mxu0 %v7075
        %7095 = vmatprep.subr.mxu0 0.0
        %7096 = vmatpush1.msra.mxu0 %v7076
        %7097 = vmatprep.subr.mxu0 0.0
        %7098 = vmatpush1.msra.mxu0 %v7077
        %7099 = vmatprep.subr.mxu0 0.0
        %7100 = vmatpush1.msra.mxu0 %v7078
        %7101 = vmatprep.subr.mxu0 0.0
        %7102 = vmatpush1.msra.mxu0 %v7079
        %7103 = vmatprep.subr.mxu0 0.0
        %7104 = vmatpush1.msra.mxu0 %v7080
        %7105 = vmatprep.subr.mxu0 0.0
        %7106 = vmatpush1.msra.mxu0 %v7081
        %7107 = vmatprep.subr.mxu0 0.0
        %7108 = vmatpush1.msra.mxu0 %v7082
        %7109 = vmatprep.subr.mxu0 0.0
        %7110 = vmatpush1.msra.mxu0 %v7083
        %7111 = vmatprep.subr.mxu0 0.0
        %7112 = vmatpush1.msra.mxu0 %v7084
        %7113 = vmatprep.subr.mxu0 0.0
        %7114 = vmatpush1.msra.mxu0 %v7085
        %7115 = vmatprep.subr.mxu0 0.0
        %7116 = vmatpush1.msra.mxu0 %v7086
        %7117 = vmatprep.subr.mxu0 0.0
        %7118 = vmatpush1.msra.mxu0 %v7087
        %7119 = vmatprep.subr.mxu0 0.0
        %7120 = vmatpush1.msra.mxu0 %v7088
        %7121 = vmatprep.subr.mxu0 0.0
        %7122 = vmatpush1.msra.mxu0 0.0
        %7123 = vmatprep.subr.mxu0 0.0
        %7124 = vmatpush1.msra.mxu0 0.0
        %7125 = vmatprep.subr.mxu0 0.0
        %7126 = vmatpush1.msra.mxu0 0.0
        %7127 = vmatprep.subr.mxu0 0.0
        %7128 = vmatpush1.msra.mxu0 0.0
        %7129 = vmatprep.subr.mxu0 0.0
        %7130 = vmatpush1.msra.mxu0 0.0
        %7131 = vmatprep.subr.mxu0 0.0
        %7132 = vmatpush1.msra.mxu0 0.0
        %7133 = vmatprep.subr.mxu0 0.0
        %7134 = vmatpush1.msra.mxu0 0.0
        %7135 = vmatprep.subr.mxu0 0.0
        %7136 = vmatpush1.msra.mxu0 0.0
        %7137 = vmatprep.subr.mxu0 0.0
        %7138 = vmatpush1.msra.mxu0 0.0
        %7139 = vmatprep.subr.mxu0 0.0
        %7140 = vmatpush1.msra.mxu0 0.0
        %7141 = vmatprep.subr.mxu0 0.0
        %7142 = vmatpush1.msra.mxu0 0.0
        %7143 = vmatprep.subr.mxu0 0.0
        %7144 = vmatpush1.msra.mxu0 0.0
        %7145 = vmatprep.subr.mxu0 0.0
        %7146 = vmatpush1.msra.mxu0 0.0
        %7147 = vmatprep.subr.mxu0 0.0
        %7148 = vmatpush1.msra.mxu0 0.0
        %7149 = vmatprep.subr.mxu0 0.0
        %7150 = vmatpush1.msra.mxu0 0.0
        %7151 = vmatprep.subr.mxu0 0.0
        %7152 = vmatpush1.msra.mxu0 0.0
        %7153 = vmatprep.mubr.f32.mxu0 0.0
        %7154 = vmatmul.mubr.f32.gmra.mrb[0].mxu0 %v7069
        %v7155 = vpop.f32.mrb[0].mxu0
        %v7156 = vadd.f32 0.0, %v7155
        %v7157 = vpop.f32.mrb[0].mxu0
        %7158 = vdwg.mxu0
        %v7159 = vadd.f32 %v6995, %v7156
        %vm7160 = vcmp.eq.s32.totalorder %v5678, 9
        %v7161 = vsel %vm7160, 1, 0
        %v7162 = vcvt.s32.f32 %v7161
        %v7164 = vsel %vm5683, %v7162, 0
        %7166 = vmatprep.subr.mxu0 0.0
        %7167 = vmatpush1.msra.mxu0 %v5675
        %7168 = vmatprep.subr.mxu0 0.0
        %7169 = vmatpush1.msra.mxu0 %v5689
        %7170 = vmatprep.subr.mxu0 0.0
        %7171 = vmatpush1.msra.mxu0 0.0
        %7172 = vmatprep.subr.mxu0 0.0
        %7173 = vmatpush1.msra.mxu0 0.0
        %7174 = vmatprep.subr.mxu0 0.0
        %7175 = vmatpush1.msra.mxu0 0.0
        %7176 = vmatprep.subr.mxu0 0.0
        %7177 = vmatpush1.msra.mxu0 0.0
        %7178 = vmatprep.subr.mxu0 0.0
        %7179 = vmatpush1.msra.mxu0 0.0
        %7180 = vmatprep.subr.mxu0 0.0
        %7181 = vmatpush1.msra.mxu0 0.0
        %7182 = vmatprep.subr.mxu0 0.0
        %7183 = vmatpush1.msra.mxu0 0.0
        %7184 = vmatprep.subr.mxu0 0.0
        %7185 = vmatpush1.msra.mxu0 0.0
        %7186 = vmatprep.subr.mxu0 0.0
        %7187 = vmatpush1.msra.mxu0 0.0
        %7188 = vmatprep.subr.mxu0 0.0
        %7189 = vmatpush1.msra.mxu0 0.0
        %7190 = vmatprep.subr.mxu0 0.0
        %7191 = vmatpush1.msra.mxu0 0.0
        %7192 = vmatprep.subr.mxu0 0.0
        %7193 = vmatpush1.msra.mxu0 0.0
        %7194 = vmatprep.subr.mxu0 0.0
        %7195 = vmatpush1.msra.mxu0 0.0
        %7196 = vmatprep.subr.mxu0 0.0
        %7197 = vmatpush1.msra.mxu0 0.0
        %7198 = vmatprep.subr.mxu0 0.0
        %7199 = vmatpush1.msra.mxu0 0.0
        %7200 = vmatprep.subr.mxu0 0.0
        %7201 = vmatpush1.msra.mxu0 0.0
        %7202 = vmatprep.subr.mxu0 0.0
        %7203 = vmatpush1.msra.mxu0 0.0
        %7204 = vmatprep.subr.mxu0 0.0
        %7205 = vmatpush1.msra.mxu0 0.0
        %7206 = vmatprep.subr.mxu0 0.0
        %7207 = vmatpush1.msra.mxu0 0.0
        %7208 = vmatprep.subr.mxu0 0.0
        %7209 = vmatpush1.msra.mxu0 0.0
        %7210 = vmatprep.subr.mxu0 0.0
        %7211 = vmatpush1.msra.mxu0 0.0
        %7212 = vmatprep.subr.mxu0 0.0
        %7213 = vmatpush1.msra.mxu0 0.0
        %7214 = vmatprep.subr.mxu0 0.0
        %7215 = vmatpush1.msra.mxu0 0.0
        %7216 = vmatprep.subr.mxu0 0.0
        %7217 = vmatpush1.msra.mxu0 0.0
        %7218 = vmatprep.subr.mxu0 0.0
        %7219 = vmatpush1.msra.mxu0 0.0
        %7220 = vmatprep.subr.mxu0 0.0
        %7221 = vmatpush1.msra.mxu0 0.0
        %7222 = vmatprep.subr.mxu0 0.0
        %7223 = vmatpush1.msra.mxu0 0.0
        %7224 = vmatprep.subr.mxu0 0.0
        %7225 = vmatpush1.msra.mxu0 0.0
        %7226 = vmatprep.subr.mxu0 0.0
        %7227 = vmatpush1.msra.mxu0 0.0
        %7228 = vmatprep.subr.mxu0 0.0
        %7229 = vmatpush1.msra.mxu0 0.0
        %7230 = vmatprep.mubr.f32.mxu0 0.0
        %7231 = vmatmul.mubr.f32.gmra.mrb[0].mxu0 %v7164
        %v7232 = vpop.f32.mrb[0].mxu0
        %v7233 = vadd.f32 0.0, %v7232
        %v7234 = vpop.f32.mrb[0].mxu0
        %7235 = vdwg.mxu0
        %s7236 = scalar_lea.vmem [#allocation5], 1152
        %v7237 = vld [vmem:[%s7236] sm:$0xff]
        %v7238 = vld [vmem:[%s7236 + $0x8] sm:$0xff]
        %v7239 = vld [vmem:[%s7236 + $0x10] sm:$0xff]
        %v7240 = vld [vmem:[%s7236 + $0x18] sm:$0xff]
        %v7241 = vld [vmem:[%s7236 + $0x20] sm:$0xff]
        %v7242 = vld [vmem:[%s7236 + $0x28] sm:$0xff]
        %v7243 = vld [vmem:[%s7236 + $0x30] sm:$0xff]
        %v7244 = vld [vmem:[%s7236 + $0x38] sm:$0xff]
        %v7245 = vld [vmem:[%s7236 + $0x40] sm:$0xff]
        %v7246 = vld [vmem:[%s7236 + $0x48] sm:$0xff]
        %v7247 = vld [vmem:[%s7236 + $0x50] sm:$0xff]
        %v7248 = vld [vmem:[%s7236 + $0x58] sm:$0xff]
        %v7249 = vld [vmem:[%s7236 + $0x60] sm:$0xff]
        %v7250 = vld [vmem:[%s7236 + $0x68] sm:$0xff]
        %v7251 = vld [vmem:[%s7236 + $0x70] sm:$0xff]
        %v7252 = vld [vmem:[%s7236 + $0x78] sm:$0xff]
        %7253 = vmatprep.subr.mxu0 0.0
        %7254 = vmatpush1.msra.mxu0 %v7237
        %7255 = vmatprep.subr.mxu0 0.0
        %7256 = vmatpush1.msra.mxu0 %v7238
        %7257 = vmatprep.subr.mxu0 0.0
        %7258 = vmatpush1.msra.mxu0 %v7239
        %7259 = vmatprep.subr.mxu0 0.0
        %7260 = vmatpush1.msra.mxu0 %v7240
        %7261 = vmatprep.subr.mxu0 0.0
        %7262 = vmatpush1.msra.mxu0 %v7241
        %7263 = vmatprep.subr.mxu0 0.0
        %7264 = vmatpush1.msra.mxu0 %v7242
        %7265 = vmatprep.subr.mxu0 0.0
        %7266 = vmatpush1.msra.mxu0 %v7243
        %7267 = vmatprep.subr.mxu0 0.0
        %7268 = vmatpush1.msra.mxu0 %v7244
        %7269 = vmatprep.subr.mxu0 0.0
        %7270 = vmatpush1.msra.mxu0 %v7245
        %7271 = vmatprep.subr.mxu0 0.0
        %7272 = vmatpush1.msra.mxu0 %v7246
        %7273 = vmatprep.subr.mxu0 0.0
        %7274 = vmatpush1.msra.mxu0 %v7247
        %7275 = vmatprep.subr.mxu0 0.0
        %7276 = vmatpush1.msra.mxu0 %v7248
        %7277 = vmatprep.subr.mxu0 0.0
        %7278 = vmatpush1.msra.mxu0 %v7249
        %7279 = vmatprep.subr.mxu0 0.0
        %7280 = vmatpush1.msra.mxu0 %v7250
        %7281 = vmatprep.subr.mxu0 0.0
        %7282 = vmatpush1.msra.mxu0 %v7251
        %7283 = vmatprep.subr.mxu0 0.0
        %7284 = vmatpush1.msra.mxu0 %v7252
        %7285 = vmatprep.subr.mxu0 0.0
        %7286 = vmatpush1.msra.mxu0 0.0
        %7287 = vmatprep.subr.mxu0 0.0
        %7288 = vmatpush1.msra.mxu0 0.0
        %7289 = vmatprep.subr.mxu0 0.0
        %7290 = vmatpush1.msra.mxu0 0.0
        %7291 = vmatprep.subr.mxu0 0.0
        %7292 = vmatpush1.msra.mxu0 0.0
        %7293 = vmatprep.subr.mxu0 0.0
        %7294 = vmatpush1.msra.mxu0 0.0
        %7295 = vmatprep.subr.mxu0 0.0
        %7296 = vmatpush1.msra.mxu0 0.0
        %7297 = vmatprep.subr.mxu0 0.0
        %7298 = vmatpush1.msra.mxu0 0.0
        %7299 = vmatprep.subr.mxu0 0.0
        %7300 = vmatpush1.msra.mxu0 0.0
        %7301 = vmatprep.subr.mxu0 0.0
        %7302 = vmatpush1.msra.mxu0 0.0
        %7303 = vmatprep.subr.mxu0 0.0
        %7304 = vmatpush1.msra.mxu0 0.0
        %7305 = vmatprep.subr.mxu0 0.0
        %7306 = vmatpush1.msra.mxu0 0.0
        %7307 = vmatprep.subr.mxu0 0.0
        %7308 = vmatpush1.msra.mxu0 0.0
        %7309 = vmatprep.subr.mxu0 0.0
        %7310 = vmatpush1.msra.mxu0 0.0
        %7311 = vmatprep.subr.mxu0 0.0
        %7312 = vmatpush1.msra.mxu0 0.0
        %7313 = vmatprep.subr.mxu0 0.0
        %7314 = vmatpush1.msra.mxu0 0.0
        %7315 = vmatprep.subr.mxu0 0.0
        %7316 = vmatpush1.msra.mxu0 0.0
        %7317 = vmatprep.mubr.f32.mxu0 0.0
        %7318 = vmatmul.mubr.f32.gmra.mrb[0].mxu0 %v7233
        %v7319 = vpop.f32.mrb[0].mxu0
        %v7320 = vadd.f32 0.0, %v7319
        %v7321 = vpop.f32.mrb[0].mxu0
        %7322 = vdwg.mxu0
        %v7323 = vadd.f32 %v7159, %v7320
        %v7324 = vtanh.pop %v7323
        %v7325 = vld [vmem:[%s10] sm:$0xff]
        %v7326 = vld [vmem:[%s10 + $0x8] sm:$0xff]
        %v7327 = vld [vmem:[%s10 + $0x10] sm:$0xff]
        %v7328 = vld [vmem:[%s10 + $0x18] sm:$0xff]
        %v7329 = vld [vmem:[%s10 + $0x20] sm:$0xff]
        %v7330 = vld [vmem:[%s10 + $0x28] sm:$0xff]
        %v7331 = vld [vmem:[%s10 + $0x30] sm:$0xff]
        %v7332 = vld [vmem:[%s10 + $0x38] sm:$0xff]
        %v7333 = vld [vmem:[%s10 + $0x40] sm:$0xff]
        %v7334 = vld [vmem:[%s10 + $0x48] sm:$0xff]
        %v7335 = vld [vmem:[%s10 + $0x50] sm:$0xff]
        %v7336 = vld [vmem:[%s10 + $0x58] sm:$0xff]
        %v7337 = vld [vmem:[%s10 + $0x60] sm:$0xff]
        %v7338 = vld [vmem:[%s10 + $0x68] sm:$0xff]
        %v7339 = vld [vmem:[%s10 + $0x70] sm:$0xff]
        %v7340 = vld [vmem:[%s10 + $0x78] sm:$0xff]
        %v7341 = vld [vmem:[#allocation7] sm:$0x1]
        %7342 = vmatprep.subr.mxu0 0.0
        %7343 = vmatpush1.msra.mxu0 %v7325
        %7344 = vmatprep.subr.mxu0 0.0
        %7345 = vmatpush1.msra.mxu0 %v7326
        %7346 = vmatprep.subr.mxu0 0.0
        %7347 = vmatpush1.msra.mxu0 %v7327
        %7348 = vmatprep.subr.mxu0 0.0
        %7349 = vmatpush1.msra.mxu0 %v7328
        %7350 = vmatprep.subr.mxu0 0.0
        %7351 = vmatpush1.msra.mxu0 %v7329
        %7352 = vmatprep.subr.mxu0 0.0
        %7353 = vmatpush1.msra.mxu0 %v7330
        %7354 = vmatprep.subr.mxu0 0.0
        %7355 = vmatpush1.msra.mxu0 %v7331
        %7356 = vmatprep.subr.mxu0 0.0
        %7357 = vmatpush1.msra.mxu0 %v7332
        %7358 = vmatprep.subr.mxu0 0.0
        %7359 = vmatpush1.msra.mxu0 %v7333
        %7360 = vmatprep.subr.mxu0 0.0
        %7361 = vmatpush1.msra.mxu0 %v7334
        %7362 = vmatprep.subr.mxu0 0.0
        %7363 = vmatpush1.msra.mxu0 %v7335
        %7364 = vmatprep.subr.mxu0 0.0
        %7365 = vmatpush1.msra.mxu0 %v7336
        %7366 = vmatprep.subr.mxu0 0.0
        %7367 = vmatpush1.msra.mxu0 %v7337
        %7368 = vmatprep.subr.mxu0 0.0
        %7369 = vmatpush1.msra.mxu0 %v7338
        %7370 = vmatprep.subr.mxu0 0.0
        %7371 = vmatpush1.msra.mxu0 %v7339
        %7372 = vmatprep.subr.mxu0 0.0
        %7373 = vmatpush1.msra.mxu0 %v7340
        %7374 = vmatprep.subr.mxu0 0.0
        %7375 = vmatpush1.msra.mxu0 0.0
        %7376 = vmatprep.subr.mxu0 0.0
        %7377 = vmatpush1.msra.mxu0 0.0
        %7378 = vmatprep.subr.mxu0 0.0
        %7379 = vmatpush1.msra.mxu0 0.0
        %7380 = vmatprep.subr.mxu0 0.0
        %7381 = vmatpush1.msra.mxu0 0.0
        %7382 = vmatprep.subr.mxu0 0.0
        %7383 = vmatpush1.msra.mxu0 0.0
        %7384 = vmatprep.subr.mxu0 0.0
        %7385 = vmatpush1.msra.mxu0 0.0
        %7386 = vmatprep.subr.mxu0 0.0
        %7387 = vmatpush1.msra.mxu0 0.0
        %7388 = vmatprep.subr.mxu0 0.0
        %7389 = vmatpush1.msra.mxu0 0.0
        %7390 = vmatprep.subr.mxu0 0.0
        %7391 = vmatpush1.msra.mxu0 0.0
        %7392 = vmatprep.subr.mxu0 0.0
        %7393 = vmatpush1.msra.mxu0 0.0
        %7394 = vmatprep.subr.mxu0 0.0
        %7395 = vmatpush1.msra.mxu0 0.0
        %7396 = vmatprep.subr.mxu0 0.0
        %7397 = vmatpush1.msra.mxu0 0.0
        %7398 = vmatprep.subr.mxu0 0.0
        %7399 = vmatpush1.msra.mxu0 0.0
        %7400 = vmatprep.subr.mxu0 0.0
        %7401 = vmatpush1.msra.mxu0 0.0
        %7402 = vmatprep.subr.mxu0 0.0
        %7403 = vmatpush1.msra.mxu0 0.0
        %7404 = vmatprep.subr.mxu0 0.0
        %7405 = vmatpush1.msra.mxu0 0.0
        %7406 = vmatprep.mubr.f32.mxu0 0.0
        %7407 = vmatmul.mubr.f32.gmra.mrb[0].mxu0 %v7324
        %v7408 = vpop.f32.mrb[0].mxu0
        %v7409 = vadd.f32 %v7341, %v7408
        %v7410 = vpop.f32.mrb[0].mxu0
        %7411 = vdwg.mxu0
        %v7412 = vtanh.pop %v7409
        %v7413 = vld [vmem:[%s12] sm:$0xff]
        %v7414 = vld [vmem:[%s12 + $0x8] sm:$0xff]
        %v7415 = vld [vmem:[%s12 + $0x10] sm:$0xff]
        %v7416 = vld [vmem:[%s12 + $0x18] sm:$0xff]
        %v7417 = vld [vmem:[%s12 + $0x20] sm:$0xff]
        %v7418 = vld [vmem:[%s12 + $0x28] sm:$0xff]
        %v7419 = vld [vmem:[%s12 + $0x30] sm:$0xff]
        %v7420 = vld [vmem:[%s12 + $0x38] sm:$0xff]
        %v7421 = vld [vmem:[%s12 + $0x40] sm:$0xff]
        %v7422 = vld [vmem:[%s12 + $0x48] sm:$0xff]
        %v7423 = vld [vmem:[%s12 + $0x50] sm:$0xff]
        %v7424 = vld [vmem:[%s12 + $0x58] sm:$0xff]
        %v7425 = vld [vmem:[%s12 + $0x60] sm:$0xff]
        %v7426 = vld [vmem:[%s12 + $0x68] sm:$0xff]
        %v7427 = vld [vmem:[%s12 + $0x70] sm:$0xff]
        %v7428 = vld [vmem:[%s12 + $0x78] sm:$0xff]
        %v7429 = vld [vmem:[#allocation8] sm:$0x1]
        %7430 = vmatprep.subr.mxu0 0.0
        %7431 = vmatpush1.msra.mxu0 %v7413
        %7432 = vmatprep.subr.mxu0 0.0
        %7433 = vmatpush1.msra.mxu0 %v7414
        %7434 = vmatprep.subr.mxu0 0.0
        %7435 = vmatpush1.msra.mxu0 %v7415
        %7436 = vmatprep.subr.mxu0 0.0
        %7437 = vmatpush1.msra.mxu0 %v7416
        %7438 = vmatprep.subr.mxu0 0.0
        %7439 = vmatpush1.msra.mxu0 %v7417
        %7440 = vmatprep.subr.mxu0 0.0
        %7441 = vmatpush1.msra.mxu0 %v7418
        %7442 = vmatprep.subr.mxu0 0.0
        %7443 = vmatpush1.msra.mxu0 %v7419
        %7444 = vmatprep.subr.mxu0 0.0
        %7445 = vmatpush1.msra.mxu0 %v7420
        %7446 = vmatprep.subr.mxu0 0.0
        %7447 = vmatpush1.msra.mxu0 %v7421
        %7448 = vmatprep.subr.mxu0 0.0
        %7449 = vmatpush1.msra.mxu0 %v7422
        %7450 = vmatprep.subr.mxu0 0.0
        %7451 = vmatpush1.msra.mxu0 %v7423
        %7452 = vmatprep.subr.mxu0 0.0
        %7453 = vmatpush1.msra.mxu0 %v7424
        %7454 = vmatprep.subr.mxu0 0.0
        %7455 = vmatpush1.msra.mxu0 %v7425
        %7456 = vmatprep.subr.mxu0 0.0
        %7457 = vmatpush1.msra.mxu0 %v7426
        %7458 = vmatprep.subr.mxu0 0.0
        %7459 = vmatpush1.msra.mxu0 %v7427
        %7460 = vmatprep.subr.mxu0 0.0
        %7461 = vmatpush1.msra.mxu0 %v7428
        %7462 = vmatprep.subr.mxu0 0.0
        %7463 = vmatpush1.msra.mxu0 0.0
        %7464 = vmatprep.subr.mxu0 0.0
        %7465 = vmatpush1.msra.mxu0 0.0
        %7466 = vmatprep.subr.mxu0 0.0
        %7467 = vmatpush1.msra.mxu0 0.0
        %7468 = vmatprep.subr.mxu0 0.0
        %7469 = vmatpush1.msra.mxu0 0.0
        %7470 = vmatprep.subr.mxu0 0.0
        %7471 = vmatpush1.msra.mxu0 0.0
        %7472 = vmatprep.subr.mxu0 0.0
        %7473 = vmatpush1.msra.mxu0 0.0
        %7474 = vmatprep.subr.mxu0 0.0
        %7475 = vmatpush1.msra.mxu0 0.0
        %7476 = vmatprep.subr.mxu0 0.0
        %7477 = vmatpush1.msra.mxu0 0.0
        %7478 = vmatprep.subr.mxu0 0.0
        %7479 = vmatpush1.msra.mxu0 0.0
        %7480 = vmatprep.subr.mxu0 0.0
        %7481 = vmatpush1.msra.mxu0 0.0
        %7482 = vmatprep.subr.mxu0 0.0
        %7483 = vmatpush1.msra.mxu0 0.0
        %7484 = vmatprep.subr.mxu0 0.0
        %7485 = vmatpush1.msra.mxu0 0.0
        %7486 = vmatprep.subr.mxu0 0.0
        %7487 = vmatpush1.msra.mxu0 0.0
        %7488 = vmatprep.subr.mxu0 0.0
        %7489 = vmatpush1.msra.mxu0 0.0
        %7490 = vmatprep.subr.mxu0 0.0
        %7491 = vmatpush1.msra.mxu0 0.0
        %7492 = vmatprep.subr.mxu0 0.0
        %7493 = vmatpush1.msra.mxu0 0.0
        %7494 = vmatprep.mubr.f32.mxu0 0.0
        %7495 = vmatmul.mubr.f32.gmra.mrb[0].mxu0 %v7412
        %v7496 = vpop.f32.mrb[0].mxu0
        %v7497 = vadd.f32 %v7429, %v7496
        %v7498 = vpop.f32.mrb[0].mxu0
        %7499 = vdwg.mxu0
        %v7500 = vld [vmem:[#allocation10] sm:$0xff]
        %v7501 = vld [vmem:[#allocation10 + $0x8] sm:$0xff]
        %v7502 = vld [vmem:[#allocation10 + $0x10] sm:$0xff]
        %v7503 = vld [vmem:[#allocation10 + $0x18] sm:$0xff]
        %v7504 = vld [vmem:[#allocation10 + $0x20] sm:$0xff]
        %v7505 = vld [vmem:[#allocation10 + $0x28] sm:$0xff]
        %v7506 = vld [vmem:[#allocation10 + $0x30] sm:$0xff]
        %v7507 = vld [vmem:[#allocation10 + $0x38] sm:$0xff]
        %v7508 = vld [vmem:[#allocation10 + $0x40] sm:$0xff]
        %v7509 = vld [vmem:[#allocation10 + $0x48] sm:$0xff]
        %v7510 = vld [vmem:[#allocation10 + $0x50] sm:$0xff]
        %v7511 = vld [vmem:[#allocation10 + $0x58] sm:$0xff]
        %v7512 = vld [vmem:[#allocation10 + $0x60] sm:$0xff]
        %v7513 = vld [vmem:[#allocation10 + $0x68] sm:$0xff]
        %v7514 = vld [vmem:[#allocation10 + $0x70] sm:$0xff]
        %v7515 = vld [vmem:[#allocation10 + $0x78] sm:$0xff]
        %v7516 = vld [vmem:[#allocation11] sm:$0x1]
        %7517 = vmatprep.subr.mxu0 0.0
        %7518 = vmatpush1.msra.mxu0 %v7500
        %7519 = vmatprep.subr.mxu0 0.0
        %7520 = vmatpush1.msra.mxu0 %v7501
        %7521 = vmatprep.subr.mxu0 0.0
        %7522 = vmatpush1.msra.mxu0 %v7502
        %7523 = vmatprep.subr.mxu0 0.0
        %7524 = vmatpush1.msra.mxu0 %v7503
        %7525 = vmatprep.subr.mxu0 0.0
        %7526 = vmatpush1.msra.mxu0 %v7504
        %7527 = vmatprep.subr.mxu0 0.0
        %7528 = vmatpush1.msra.mxu0 %v7505
        %7529 = vmatprep.subr.mxu0 0.0
        %7530 = vmatpush1.msra.mxu0 %v7506
        %7531 = vmatprep.subr.mxu0 0.0
        %7532 = vmatpush1.msra.mxu0 %v7507
        %7533 = vmatprep.subr.mxu0 0.0
        %7534 = vmatpush1.msra.mxu0 %v7508
        %7535 = vmatprep.subr.mxu0 0.0
        %7536 = vmatpush1.msra.mxu0 %v7509
        %7537 = vmatprep.subr.mxu0 0.0
        %7538 = vmatpush1.msra.mxu0 %v7510
        %7539 = vmatprep.subr.mxu0 0.0
        %7540 = vmatpush1.msra.mxu0 %v7511
        %7541 = vmatprep.subr.mxu0 0.0
        %7542 = vmatpush1.msra.mxu0 %v7512
        %7543 = vmatprep.subr.mxu0 0.0
        %7544 = vmatpush1.msra.mxu0 %v7513
        %7545 = vmatprep.subr.mxu0 0.0
        %7546 = vmatpush1.msra.mxu0 %v7514
        %7547 = vmatprep.subr.mxu0 0.0
        %7548 = vmatpush1.msra.mxu0 %v7515
        %7549 = vmatprep.subr.mxu0 0.0
        %7550 = vmatpush1.msra.mxu0 0.0
        %7551 = vmatprep.subr.mxu0 0.0
        %7552 = vmatpush1.msra.mxu0 0.0
        %7553 = vmatprep.subr.mxu0 0.0
        %7554 = vmatpush1.msra.mxu0 0.0
        %7555 = vmatprep.subr.mxu0 0.0
        %7556 = vmatpush1.msra.mxu0 0.0
        %7557 = vmatprep.subr.mxu0 0.0
        %7558 = vmatpush1.msra.mxu0 0.0
        %7559 = vmatprep.subr.mxu0 0.0
        %7560 = vmatpush1.msra.mxu0 0.0
        %7561 = vmatprep.subr.mxu0 0.0
        %7562 = vmatpush1.msra.mxu0 0.0
        %7563 = vmatprep.subr.mxu0 0.0
        %7564 = vmatpush1.msra.mxu0 0.0
        %7565 = vmatprep.subr.mxu0 0.0
        %7566 = vmatpush1.msra.mxu0 0.0
        %7567 = vmatprep.subr.mxu0 0.0
        %7568 = vmatpush1.msra.mxu0 0.0
        %7569 = vmatprep.subr.mxu0 0.0
        %7570 = vmatpush1.msra.mxu0 0.0
        %7571 = vmatprep.subr.mxu0 0.0
        %7572 = vmatpush1.msra.mxu0 0.0
        %7573 = vmatprep.subr.mxu0 0.0
        %7574 = vmatpush1.msra.mxu0 0.0
        %7575 = vmatprep.subr.mxu0 0.0
        %7576 = vmatpush1.msra.mxu0 0.0
        %7577 = vmatprep.subr.mxu0 0.0
        %7578 = vmatpush1.msra.mxu0 0.0
        %7579 = vmatprep.subr.mxu0 0.0
        %7580 = vmatpush1.msra.mxu0 0.0
        %7581 = vmatprep.mubr.f32.mxu0 0.0
        %7582 = vmatmul.mubr.f32.gmra.mrb[0].mxu0 %v7324
        %v7583 = vpop.f32.mrb[0].mxu0
        %v7584 = vadd.f32 %v7516, %v7583
        %v7585 = vpop.f32.mrb[0].mxu0
        %7586 = vdwg.mxu0
        %v7587 = vtanh.pop %v7584
        %v7588 = vld [vmem:[#allocation13] sm:$0xff]
        %v7589 = vld [vmem:[#allocation13 + $0x8] sm:$0xff]
        %v7590 = vld [vmem:[#allocation13 + $0x10] sm:$0xff]
        %v7591 = vld [vmem:[#allocation13 + $0x18] sm:$0xff]
        %v7592 = vld [vmem:[#allocation13 + $0x20] sm:$0xff]
        %v7593 = vld [vmem:[#allocation13 + $0x28] sm:$0xff]
        %v7594 = vld [vmem:[#allocation13 + $0x30] sm:$0xff]
        %v7595 = vld [vmem:[#allocation13 + $0x38] sm:$0xff]
        %v7596 = vld [vmem:[#allocation13 + $0x40] sm:$0xff]
        %v7597 = vld [vmem:[#allocation13 + $0x48] sm:$0xff]
        %v7598 = vld [vmem:[#allocation13 + $0x50] sm:$0xff]
        %v7599 = vld [vmem:[#allocation13 + $0x58] sm:$0xff]
        %v7600 = vld [vmem:[#allocation13 + $0x60] sm:$0xff]
        %v7601 = vld [vmem:[#allocation13 + $0x68] sm:$0xff]
        %v7602 = vld [vmem:[#allocation13 + $0x70] sm:$0xff]
        %v7603 = vld [vmem:[#allocation13 + $0x78] sm:$0xff]
        %v7604 = vld [vmem:[#allocation14] sm:$0x1]
        %7605 = vmatprep.subr.mxu0 0.0
        %7606 = vmatpush1.msra.mxu0 %v7588
        %7607 = vmatprep.subr.mxu0 0.0
        %7608 = vmatpush1.msra.mxu0 %v7589
        %7609 = vmatprep.subr.mxu0 0.0
        %7610 = vmatpush1.msra.mxu0 %v7590
        %7611 = vmatprep.subr.mxu0 0.0
        %7612 = vmatpush1.msra.mxu0 %v7591
        %7613 = vmatprep.subr.mxu0 0.0
        %7614 = vmatpush1.msra.mxu0 %v7592
        %7615 = vmatprep.subr.mxu0 0.0
        %7616 = vmatpush1.msra.mxu0 %v7593
        %7617 = vmatprep.subr.mxu0 0.0
        %7618 = vmatpush1.msra.mxu0 %v7594
        %7619 = vmatprep.subr.mxu0 0.0
        %7620 = vmatpush1.msra.mxu0 %v7595
        %7621 = vmatprep.subr.mxu0 0.0
        %7622 = vmatpush1.msra.mxu0 %v7596
        %7623 = vmatprep.subr.mxu0 0.0
        %7624 = vmatpush1.msra.mxu0 %v7597
        %7625 = vmatprep.subr.mxu0 0.0
        %7626 = vmatpush1.msra.mxu0 %v7598
        %7627 = vmatprep.subr.mxu0 0.0
        %7628 = vmatpush1.msra.mxu0 %v7599
        %7629 = vmatprep.subr.mxu0 0.0
        %7630 = vmatpush1.msra.mxu0 %v7600
        %7631 = vmatprep.subr.mxu0 0.0
        %7632 = vmatpush1.msra.mxu0 %v7601
        %7633 = vmatprep.subr.mxu0 0.0
        %7634 = vmatpush1.msra.mxu0 %v7602
        %7635 = vmatprep.subr.mxu0 0.0
        %7636 = vmatpush1.msra.mxu0 %v7603
        %7637 = vmatprep.subr.mxu0 0.0
        %7638 = vmatpush1.msra.mxu0 0.0
        %7639 = vmatprep.subr.mxu0 0.0
        %7640 = vmatpush1.msra.mxu0 0.0
        %7641 = vmatprep.subr.mxu0 0.0
        %7642 = vmatpush1.msra.mxu0 0.0
        %7643 = vmatprep.subr.mxu0 0.0
        %7644 = vmatpush1.msra.mxu0 0.0
        %7645 = vmatprep.subr.mxu0 0.0
        %7646 = vmatpush1.msra.mxu0 0.0
        %7647 = vmatprep.subr.mxu0 0.0
        %7648 = vmatpush1.msra.mxu0 0.0
        %7649 = vmatprep.subr.mxu0 0.0
        %7650 = vmatpush1.msra.mxu0 0.0
        %7651 = vmatprep.subr.mxu0 0.0
        %7652 = vmatpush1.msra.mxu0 0.0
        %7653 = vmatprep.subr.mxu0 0.0
        %7654 = vmatpush1.msra.mxu0 0.0
        %7655 = vmatprep.subr.mxu0 0.0
        %7656 = vmatpush1.msra.mxu0 0.0
        %7657 = vmatprep.subr.mxu0 0.0
        %7658 = vmatpush1.msra.mxu0 0.0
        %7659 = vmatprep.subr.mxu0 0.0
        %7660 = vmatpush1.msra.mxu0 0.0
        %7661 = vmatprep.subr.mxu0 0.0
        %7662 = vmatpush1.msra.mxu0 0.0
        %7663 = vmatprep.subr.mxu0 0.0
        %7664 = vmatpush1.msra.mxu0 0.0
        %7665 = vmatprep.subr.mxu0 0.0
        %7666 = vmatpush1.msra.mxu0 0.0
        %7667 = vmatprep.subr.mxu0 0.0
        %7668 = vmatpush1.msra.mxu0 0.0
        %7669 = vmatprep.mubr.f32.mxu0 0.0
        %7670 = vmatmul.mubr.f32.gmra.mrb[0].mxu0 %v7587
        %v7671 = vpop.f32.mrb[0].mxu0
        %v7672 = vadd.f32 %v7604, %v7671
        %v7673 = vpop.f32.mrb[0].mxu0
        %7674 = vdwg.mxu0
        %7676 = vset.pattern.permute.xlu0 0
        %7677 = vperm.xlu0 %7676, %v7497
        %v7678 = vpop.permute.xlu0 %7677
        %v7680 = vadd.f32 %v7672, %v7678
        %7681 = vst [vmem:[%s674] sm:$0x1] %v7680
        %s7682 = sand.u32 %s428, 1
        %s7683 = scalar_lea.sflag [#allocation4], %s7682
        %s7684 = sand.u32 %s428, 1
        %s7685 = scalar_lea.vmem [#allocation16], %s7684
        // Predicated region
        $region125: #{dueling_dqn_forward.1} parent=91 // pred_check
          %p7686 = pneg %p438
        $region126: #{dueling_dqn_forward.1} parent=91 // pred_check_branch
          %7688 = sbr.rel (%p7686) target = $region128
        $region127: #{dueling_dqn_forward.1} parent=91 // pred_region
          %s7690 = ssub.s32 16, 16
          %7691 = vsyncadd %s7683, %s7690
          %s7692 = smul.addr %s37, 16
          %s7693 = scalar_lea.hbm %s18, %s7692
          %s7695 = sshll.u32 %s7685, 4
          %s7696 = int_to_ptr.vmem [resolvable:$true] %s7695
          %7698 = dma.vmem_to_hbm [thread:$0]  %s7696, 16, %s7693, %s7683
        $region128: #{dueling_dqn_forward.1} parent=91 // pred_fallthru
          _
      $region92: #{dueling_dqn_forward.1} parent=5 // pred_fallthru
        _
      %p7699 = scmp.le.s32.totalorder 2, %s32
      // Predicated region
      $region129: #{dueling_dqn_forward.1} parent=5 // pred_check
        %p7700 = pneg %p7699
      $region130: #{dueling_dqn_forward.1} parent=5 // pred_check_branch
        %7702 = sbr.rel (%p7700) target = $region132
      $region131: #{dueling_dqn_forward.1} parent=5 // pred_region
        %s7703 = ssub.s32 %s32, 2
        // Predicated region
        $region133: #{dueling_dqn_forward.1} parent=131 // pred_check
          %p7704 = pneg %p444
        $region134: #{dueling_dqn_forward.1} parent=131 // pred_check_branch
          %7706 = sbr.rel (%p7704) target = $region136
        $region135: #{dueling_dqn_forward.1} parent=131 // pred_region
          %s7707 = sand.u32 %s429, 1
          %s7708 = scalar_lea.sflag [#allocation4], %s7707
          %s7709 = sand.u32 %s429, 1
          %s7710 = scalar_lea.vmem [#allocation16], %s7709
          %7711 = dma.done %s7708, 16
        $region136: #{dueling_dqn_forward.1} parent=131 // pred_fallthru
          _
      $region132: #{dueling_dqn_forward.1} parent=5 // pred_fallthru
        _
    $region6: #{dueling_dqn_forward.1} parent=1 // loop_footer
      %s36 = sadd.s32 1, %s32
    $region7: #{dueling_dqn_forward.1} parent=1 // loop_footer_branch
      %31 = sbr.rel target = $region3
    $region8: #{dueling_dqn_forward.1} parent=1 // loop_exit
      _
    %7712 = vsyncpa [#allocation3], 1
    %s7713 = scalar_lea.sflag [#allocation3], 1
    %7714 = vsyncpa %s7713, 1
    %7715 = vsyncpa [#allocation6], 1
    %7716 = vsyncpa [#allocation9], 1
    %7717 = vsyncpa [#allocation12], 1
    %7718 = vsyncpa [#allocation15], 1
    %7719 = vsyncpa [#allocation4], 1
    %s7720 = scalar_lea.sflag [#allocation4], 1
    %7721 = vsyncpa %s7720, 1

</llo_original>
